<compile_context>
chip_gen: v5e
topology: v5e:2x2
jax: 0.10.0
libtpu: 0.0.40
codegen_flags: <defaults>
</compile_context>

<pallas_src>
import math

import jax
import jax.numpy as jnp
from jax.experimental import pallas as pl
from jax.experimental.pallas import tpu as pltpu  # noqa: F401  (TPU backend assumed)

D_MODEL = 32
N_HEAD = 4
D_HEAD = D_MODEL // N_HEAD
D_FF = 64
VOCAB = 50
LN_EPS = 1e-5
ATTN_SCALE = 1.0 / math.sqrt(D_HEAD)


# ----------------------------------------------------------------------------
# In-kernel helpers (pure functions on loaded values; everything fits VMEM)
# ----------------------------------------------------------------------------
def _layer_norm(x, g, b):
    mu = jnp.mean(x, axis=-1, keepdims=True)
    var = jnp.mean((x - mu) ** 2, axis=-1, keepdims=True)
    return (x - mu) * jax.lax.rsqrt(var + LN_EPS) * g + b


def _softmax_rows(s):
    s = s - jnp.max(s, axis=-1, keepdims=True)
    p = jnp.exp(s)
    return p * pl.reciprocal(jnp.sum(p, axis=-1, keepdims=True), approx=True)


def _mh_attention(q, k, v, mask_add, B, Lq, Lk, n_head):
    # q: (B*Lq, n_head*D_HEAD), k/v: (B*Lk, n_head*D_HEAD), batch-major rows.
    # mask_add: (B, Lk) additive float mask (0 = valid, -1e9 = padded key).
    out_batches = []
    for b in range(B):
        qb = q[b * Lq:(b + 1) * Lq, :]
        kb = k[b * Lk:(b + 1) * Lk, :]
        vb = v[b * Lk:(b + 1) * Lk, :]
        mb = mask_add[b:b + 1, :]                                   # (1, Lk)
        heads = []
        for h in range(n_head):
            sl = slice(h * D_HEAD, (h + 1) * D_HEAD)
            qh, kh, vh = qb[:, sl], kb[:, sl], vb[:, sl]
            s = jax.lax.dot_general(
                qh, kh, (((1,), (1,)), ((), ())),
                preferred_element_type=jnp.float32) * ATTN_SCALE + mb
            p = _softmax_rows(s)
            heads.append(jnp.dot(p, vh, preferred_element_type=jnp.float32))
        out_batches.append(jnp.concatenate(heads, axis=-1))         # (Lq, n_head*D_HEAD)
    return jnp.concatenate(out_batches, axis=0)                     # (B*Lq, n_head*D_HEAD)


# ----------------------------------------------------------------------------
# Kernel 1: frontend (image conv3x3-as-matmul + fused ReLU, text projection)
# ----------------------------------------------------------------------------
def _frontend_kernel(cols_ref, convw_ref, convb_ref, emb_ref, projw_ref, projb_ref,
                     img_ref, txt_ref):
    conv = (jnp.dot(cols_ref[...], convw_ref[...], preferred_element_type=jnp.float32)
            + convb_ref[...])
    img_ref[...] = jnp.maximum(conv, 0.0)                           # conv + ReLU fused
    txt_ref[...] = (jnp.dot(emb_ref[...], projw_ref[...], preferred_element_type=jnp.float32)
                    + projb_ref[...])


def pallas_frontend(cols, conv_w, conv_b, emb, proj_w, proj_b):
    m_img = cols.shape[0]
    m_txt = emb.shape[0]
    return pl.pallas_call(
        _frontend_kernel,
        out_shape=(jax.ShapeDtypeStruct((m_img, D_MODEL), jnp.float32),
                   jax.ShapeDtypeStruct((m_txt, D_MODEL), jnp.float32)),
    )(cols, conv_w, conv_b.reshape(1, -1), emb, proj_w, proj_b.reshape(1, -1))


# ----------------------------------------------------------------------------
# Kernel 2: fully fused multimodal-fusion encoder layer (post-norm DETR style)
# ----------------------------------------------------------------------------
def _make_fusion_kernel(B, L):
    def kernel(src_ref, pos_ref, mask_ref,
               wqk_ref, bqk_ref, wv_ref, bv_ref, wo_ref, bo_ref,
               ln1g_ref, ln1b_ref, w1_ref, b1_ref, w2_ref, b2_ref,
               ln2g_ref, ln2b_ref, out_ref):
        src = src_ref[...]
        qp = src + pos_ref[...]                                     # query/key carry pos
        qk = (jnp.dot(qp, wqk_ref[...], preferred_element_type=jnp.float32)
              + bqk_ref[...])                                       # (B*L, 2D) lane-dense
        v = (jnp.dot(src, wv_ref[...], preferred_element_type=jnp.float32)
             + bv_ref[...])                                         # value = src (no pos)
        q = qk[:, :D_MODEL]
        k = qk[:, D_MODEL:]
        attn = _mh_attention(q, k, v, mask_ref[...], B, L, L, N_HEAD)
        attn = (jnp.dot(attn, wo_ref[...], preferred_element_type=jnp.float32)
                + bo_ref[...])
        x = _layer_norm(src + attn, ln1g_ref[...], ln1b_ref[...])
        h = jnp.maximum(
            jnp.dot(x, w1_ref[...], preferred_element_type=jnp.float32) + b1_ref[...], 0.0)
        ffn = jnp.dot(h, w2_ref[...], preferred_element_type=jnp.float32) + b2_ref[...]
        out_ref[...] = _layer_norm(x + ffn, ln2g_ref[...], ln2b_ref[...])
    return kernel


def pallas_fusion_layer(src_bm, pos_bm, mask_add, p, B, L):
    a = p["attn"]
    wqk = jnp.concatenate([a["wq"], a["wk"]], axis=1)               # (D, 2D)
    bqk = jnp.concatenate([a["bq"], a["bk"]], axis=0).reshape(1, -1)
    return pl.pallas_call(
        _make_fusion_kernel(B, L),
        out_shape=jax.ShapeDtypeStruct((B * L, D_MODEL), jnp.float32),
    )(src_bm, pos_bm, mask_add,
      wqk, bqk, a["wv"], a["bv"].reshape(1, -1), a["wo"], a["bo"].reshape(1, -1),
      p["ln1_g"].reshape(1, -1), p["ln1_b"].reshape(1, -1),
      p["w1"], p["b1"].reshape(1, -1), p["w2"], p["b2"].reshape(1, -1),
      p["ln2_g"].reshape(1, -1), p["ln2_b"].reshape(1, -1))


# ----------------------------------------------------------------------------
# Kernel 3: fused dual cross-attention (explanation + correction heads) + add-LN
# ----------------------------------------------------------------------------
def _make_dual_cross_kernel(B, Tq, Lk):
    def kernel(qsrc_ref, posq_ref, mem_ref, posm_ref, mask_ref,
               wq2_ref, bq2_ref, wk2_ref, bk2_ref, wv2_ref, bv2_ref,
               woe_ref, boe_ref, woc_ref, boc_ref,
               lneg_ref, lneb_ref, lncg_ref, lncb_ref,
               exp_ref, cor_ref):
        qsrc = qsrc_ref[...]
        mem = mem_ref[...]
        q_in = qsrc + posq_ref[...]
        k_in = mem + posm_ref[...]
        # Both interaction heads computed at once: N = 2*D_MODEL lane-dense projections.
        q2 = jnp.dot(q_in, wq2_ref[...], preferred_element_type=jnp.float32) + bq2_ref[...]
        k2 = jnp.dot(k_in, wk2_ref[...], preferred_element_type=jnp.float32) + bk2_ref[...]
        v2 = jnp.dot(mem, wv2_ref[...], preferred_element_type=jnp.float32) + bv2_ref[...]
        attn2 = _mh_attention(q2, k2, v2, mask_ref[...], B, Tq, Lk, 2 * N_HEAD)  # (B*Tq, 2D)
        attn_e = attn2[:, :D_MODEL]
        attn_c = attn2[:, D_MODEL:]
        out_e = jnp.dot(attn_e, woe_ref[...], preferred_element_type=jnp.float32) + boe_ref[...]
        out_c = jnp.dot(attn_c, woc_ref[...], preferred_element_type=jnp.float32) + boc_ref[...]
        exp_ref[...] = _layer_norm(qsrc + out_e, lneg_ref[...], lneb_ref[...])
        cor_ref[...] = _layer_norm(qsrc + out_c, lncg_ref[...], lncb_ref[...])
    return kernel


def pallas_dual_cross_attention(qsrc_bm, posq_bm, mem_bm, posm_bm, mask_add,
                                pe, pc, B, Tq, Lk):
    ae, ac = pe["attn"], pc["attn"]
    wq2 = jnp.concatenate([ae["wq"], ac["wq"]], axis=1)
    bq2 = jnp.concatenate([ae["bq"], ac["bq"]], axis=0).reshape(1, -1)
    wk2 = jnp.concatenate([ae["wk"], ac["wk"]], axis=1)
    bk2 = jnp.concatenate([ae["bk"], ac["bk"]], axis=0).reshape(1, -1)
    wv2 = jnp.concatenate([ae["wv"], ac["wv"]], axis=1)
    bv2 = jnp.concatenate([ae["bv"], ac["bv"]], axis=0).reshape(1, -1)
    return pl.pallas_call(
        _make_dual_cross_kernel(B, Tq, Lk),
        out_shape=(jax.ShapeDtypeStruct((B * Tq, D_MODEL), jnp.float32),
                   jax.ShapeDtypeStruct((B * Tq, D_MODEL), jnp.float32)),
    )(qsrc_bm, posq_bm, mem_bm, posm_bm, mask_add,
      wq2, bq2, wk2, bk2, wv2, bv2,
      ae["wo"], ae["bo"].reshape(1, -1), ac["wo"], ac["bo"].reshape(1, -1),
      pe["ln_g"].reshape(1, -1), pe["ln_b"].reshape(1, -1),
      pc["ln_g"].reshape(1, -1), pc["ln_b"].reshape(1, -1))


# ----------------------------------------------------------------------------
# JAX glue: im2col, sine position embedding (pure layout / trig, tiny)
# ----------------------------------------------------------------------------
def image_frontend_cols(x_nchw):
    B, C, H, W = x_nchw.shape
    x = jnp.transpose(x_nchw, (0, 2, 3, 1))                         # NHWC
    xp = jnp.pad(x, ((0, 0), (1, 1), (1, 1), (0, 0)))
    patches = [xp[:, dh:dh + H, dw:dw + W, :] for dh in range(3) for dw in range(3)]
    return jnp.concatenate(patches, axis=-1).reshape(B * H * W, C * 9)


def sine_position_embedding_2d(H, W, D):
    num_pos_feats = D // 2
    y = jnp.broadcast_to(jnp.arange(1, H + 1, dtype=jnp.float32)[:, None], (H, W))
    x = jnp.broadcast_to(jnp.arange(1, W + 1, dtype=jnp.float32)[None, :], (H, W))
    dim_t = jnp.arange(num_pos_feats, dtype=jnp.float32)
    dim_t = 10000.0 ** (2.0 * jnp.floor(dim_t / 2.0) / num_pos_feats)
    pos_x = x[:, :, None] / dim_t
    pos_y = y[:, :, None] / dim_t
    pos_x = jnp.stack([jnp.sin(pos_x[:, :, 0::2]), jnp.cos(pos_x[:, :, 1::2])],
                      axis=3).reshape(H, W, -1)
    pos_y = jnp.stack([jnp.sin(pos_y[:, :, 0::2]), jnp.cos(pos_y[:, :, 1::2])],
                      axis=3).reshape(H, W, -1)
    return jnp.concatenate([pos_y, pos_x], axis=2).reshape(H * W, D)


# ----------------------------------------------------------------------------
# FCTREncoder.forward (eval path == forward_test)
# ----------------------------------------------------------------------------
def fctr_encoder_forward(images, token_ids, lengths, params):
    B, C, H, W = images.shape
    T = token_ids.shape[1]
    HW = H * W
    L = HW + T

    # ---- frontend: image conv(+ReLU) and text projection in ONE pallas_call
    cols = image_frontend_cols(images)                              # (B*HW, C*9)
    # TODO(synk): embedding gather stays in XLA (data-dependent gather; no clean
    # whole-block Pallas form at this size).
    emb = jnp.take(params["text"]["embed"], token_ids, axis=0).reshape(B * T, D_MODEL)
    img_bm, txt_bm = pallas_frontend(
        cols, params["image"]["conv_w"], params["image"]["conv_b"],
        emb, params["text"]["proj_w"], params["text"]["proj_b"])    # (B*HW, D), (B*T, D)

    # ---- masks & positions (tiny glue, reused by both fused kernels)
    img_mask = jnp.zeros((B, HW), dtype=bool)                       # no image padding
    txt_mask = jnp.arange(T)[None, :] >= lengths[:, None]           # (B, T) True = pad
    padding_mask_cat = jnp.concatenate([img_mask, txt_mask], axis=1)  # (B, L)
    mask_add = jnp.where(padding_mask_cat, -1e9, 0.0).astype(jnp.float32)

    sine_pos = sine_position_embedding_2d(H, W, D_MODEL)            # (HW, D)
    pos_cat_single = jnp.concatenate(
        [sine_pos, jnp.zeros((T, D_MODEL), jnp.float32)], axis=0)   # (L, D)
    pos_cat_bm = jnp.broadcast_to(
        pos_cat_single[None], (B, L, D_MODEL)).reshape(B * L, D_MODEL)

    src_bm = jnp.concatenate(
        [img_bm.reshape(B, HW, D_MODEL), txt_bm.reshape(B, T, D_MODEL)], axis=1
    ).reshape(B * L, D_MODEL)

    # ---- _multimodal_fusion_process: one fused encoder-layer kernel
    fused_bm = pallas_fusion_layer(src_bm, pos_cat_bm, mask_add, params["fusion"], B, L)

    # ---- _attentional_interaction_process: both cross-attention heads in one kernel
    tok_pos = params["tokpos"]["tok_pos"][:T]                       # (T, D)
    pos_rs_bm = jnp.broadcast_to(tok_pos[None], (B, T, D_MODEL)).reshape(B * T, D_MODEL)
    exp_bm, cor_bm = pallas_dual_cross_attention(
        txt_bm, pos_rs_bm, fused_bm, pos_cat_bm, mask_add,
        params["explain"], params["correct"], B, T, L)

    # ---- restore (L, B, D) PyTorch/DETR layout for returned features only
    def to_lbd(x_bm, n_tok):
        return x_bm.reshape(B, n_tok, D_MODEL).transpose(1, 0, 2)

    visual_feat = {
        "feature": to_lbd(img_bm, HW),
        "mask": img_mask,
        "position": jnp.broadcast_to(sine_pos[:, None, :], (HW, B, D_MODEL)),
    }
    raw_sent_feat = {"feature": to_lbd(txt_bm, T), "padding_mask": txt_mask}
    aligned_feat = {
        "feature": to_lbd(fused_bm, L),
        "position": jnp.broadcast_to(pos_cat_single[:, None, :], (L, B, D_MODEL)),
        "padding_mask": padding_mask_cat,
    }
    aim_rst = {
        "explanation_signal": to_lbd(exp_bm, T),
        "correction_signal": to_lbd(cor_bm, T),
        "position_embed": jnp.broadcast_to(tok_pos[:, None, :], (T, B, D_MODEL)),
    }
    return {
        "visual": visual_feat,
        "raw_sentence": raw_sent_feat,
        "aligned_feat": aligned_feat,
        "attentional_interaction": aim_rst,
    }


# ----------------------------------------------------------------------------
# Deterministic parameter init
# ----------------------------------------------------------------------------
def init_params(key):
    key_iter = iter(jax.random.split(key, 64))

    def w(shape, scale=0.05):
        return jax.random.normal(next(key_iter), shape, jnp.float32) * scale

    zeros = lambda s: jnp.zeros(s, jnp.float32)
    ones = lambda s: jnp.ones(s, jnp.float32)

    def attn_params():
        return {
            "wq": w((D_MODEL, D_MODEL)), "bq": zeros((D_MODEL,)),
            "wk": w((D_MODEL, D_MODEL)), "bk": zeros((D_MODEL,)),
            "wv": w((D_MODEL, D_MODEL)), "bv": zeros((D_MODEL,)),
            "wo": w((D_MODEL, D_MODEL)), "bo": zeros((D_MODEL,)),
        }

    return {
        "image": {"conv_w": w((4 * 9, D_MODEL)), "conv_b": zeros((D_MODEL,))},
        "text": {
            "embed": w((VOCAB, D_MODEL), 0.1),
            "proj_w": w((D_MODEL, D_MODEL)),
            "proj_b": zeros((D_MODEL,)),
        },
        "tokpos": {"tok_pos": w((64, D_MODEL), 0.1)},
        "fusion": {
            "attn": attn_params(),
            "ln1_g": ones((D_MODEL,)), "ln1_b": zeros((D_MODEL,)),
            "w1": w((D_MODEL, D_FF)), "b1": zeros((D_FF,)),
            "w2": w((D_FF, D_MODEL)), "b2": zeros((D_MODEL,)),
            "ln2_g": ones((D_MODEL,)), "ln2_b": zeros((D_MODEL,)),
        },
        "explain": {"attn": attn_params(), "ln_g": ones((D_MODEL,)), "ln_b": zeros((D_MODEL,))},
        "correct": {"attn": attn_params(), "ln_g": ones((D_MODEL,)), "ln_b": zeros((D_MODEL,))},
    }


if __name__ == "__main__":
    B, C, H, W, T = 2, 4, 8, 8, 8
    key = jax.random.PRNGKey(0)
    k_img, k_ids, k_par = jax.random.split(key, 3)

    images = jax.random.normal(k_img, (B, C, H, W), jnp.float32)    # NCHW like PyTorch
    token_ids = jax.random.randint(k_ids, (B, T), 0, VOCAB)
    lengths = jnp.array([T, T - 2], dtype=jnp.int32)                # second sentence padded
    params = init_params(k_par)

    out = jax.jit(fctr_encoder_forward)(images, token_ids, lengths, params)
    out = jax.tree_util.tree_map(jax.block_until_ready, out)

    L_total = H * W + T
    assert out["visual"]["feature"].shape == (H * W, B, D_MODEL)
    assert out["raw_sentence"]["feature"].shape == (T, B, D_MODEL)
    assert out["aligned_feat"]["feature"].shape == (L_total, B, D_MODEL)
    assert out["aligned_feat"]["padding_mask"].shape == (B, L_total)
    assert out["attentional_interaction"]["explanation_signal"].shape == (T, B, D_MODEL)
    assert out["attentional_interaction"]["correction_signal"].shape == (T, B, D_MODEL)
    assert out["attentional_interaction"]["position_embed"].shape == (T, B, D_MODEL)
    assert bool(jnp.all(jnp.isfinite(out["aligned_feat"]["feature"])))

    print("KERNEL_OK")
</pallas_src>

<mosaic_0001>
module attributes {stable_mosaic.version = 11 : i64} {
  func.func @_frontend_kernel(%arg0: memref<128x36xf32, #tpu.memory_space<vmem>>, %arg1: memref<36x32xf32, #tpu.memory_space<vmem>>, %arg2: memref<1x32xf32, #tpu.memory_space<vmem>>, %arg3: memref<16x32xf32, #tpu.memory_space<vmem>>, %arg4: memref<32x32xf32, #tpu.memory_space<vmem>>, %arg5: memref<1x32xf32, #tpu.memory_space<vmem>>, %arg6: memref<128x32xf32, #tpu.memory_space<vmem>>, %arg7: memref<16x32xf32, #tpu.memory_space<vmem>>) attributes {dimension_semantics = [], scalar_prefetch = 0 : i64, scratch_operands = 0 : i64, tpu.core_type = #tpu.core_type<tc>} {
    %c0 = arith.constant 0 : index
    %c0_0 = arith.constant 0 : index
    %0 = vector.load %arg0[%c0, %c0_0] : memref<128x36xf32, #tpu.memory_space<vmem>>, vector<128x36xf32>
    %c0_1 = arith.constant 0 : index
    %c0_2 = arith.constant 0 : index
    %1 = vector.load %arg1[%c0_1, %c0_2] : memref<36x32xf32, #tpu.memory_space<vmem>>, vector<36x32xf32>
    %cst = arith.constant dense<0.000000e+00> : vector<128x32xf32>
    %2 = tpu.matmul %0, %1, %cst {dimension_numbers = #tpu.dot_dimension_numbers<[1], [0], [0], [1], [0, 0, 1, 1], [], []>} : vector<128x36xf32>, vector<36x32xf32>, vector<128x32xf32> -> vector<128x32xf32>
    %c0_3 = arith.constant 0 : index
    %c0_4 = arith.constant 0 : index
    %3 = vector.load %arg2[%c0_3, %c0_4] : memref<1x32xf32, #tpu.memory_space<vmem>>, vector<1x32xf32>
    %4 = vector.broadcast %3 : vector<1x32xf32> to vector<128x32xf32>
    %5 = arith.addf %2, %4 : vector<128x32xf32>
    %cst_5 = arith.constant 0.000000e+00 : f32
    %6 = vector.broadcast %cst_5 : f32 to vector<128x32xf32>
    %7 = arith.maximumf %5, %6 : vector<128x32xf32>
    %c0_6 = arith.constant 0 : index
    %c0_7 = arith.constant 0 : index
    %8 = vector.load %arg6[%c0_6, %c0_7] : memref<128x32xf32, #tpu.memory_space<vmem>>, vector<128x32xf32>
    tpu.vector_store %arg6[%c0_6, %c0_7], %7 {strides = array<i32>} : memref<128x32xf32, #tpu.memory_space<vmem>>, vector<128x32xf32>,
    %c0_8 = arith.constant 0 : index
    %c0_9 = arith.constant 0 : index
    %9 = vector.load %arg3[%c0_8, %c0_9] : memref<16x32xf32, #tpu.memory_space<vmem>>, vector<16x32xf32>
    %c0_10 = arith.constant 0 : index
    %c0_11 = arith.constant 0 : index
    %10 = vector.load %arg4[%c0_10, %c0_11] : memref<32x32xf32, #tpu.memory_space<vmem>>, vector<32x32xf32>
    %cst_12 = arith.constant dense<0.000000e+00> : vector<16x32xf32>
    %11 = tpu.matmul %9, %10, %cst_12 {dimension_numbers = #tpu.dot_dimension_numbers<[1], [0], [0], [1], [0, 0, 1, 1], [], []>} : vector<16x32xf32>, vector<32x32xf32>, vector<16x32xf32> -> vector<16x32xf32>
    %c0_13 = arith.constant 0 : index
    %c0_14 = arith.constant 0 : index
    %12 = vector.load %arg5[%c0_13, %c0_14] : memref<1x32xf32, #tpu.memory_space<vmem>>, vector<1x32xf32>
    %13 = vector.broadcast %12 : vector<1x32xf32> to vector<16x32xf32>
    %14 = arith.addf %11, %13 : vector<16x32xf32>
    %c0_15 = arith.constant 0 : index
    %c0_16 = arith.constant 0 : index
    %15 = vector.load %arg7[%c0_15, %c0_16] : memref<16x32xf32, #tpu.memory_space<vmem>>, vector<16x32xf32>
    tpu.vector_store %arg7[%c0_15, %c0_16], %14 {strides = array<i32>} : memref<16x32xf32, #tpu.memory_space<vmem>>, vector<16x32xf32>,
    return
  }
}

module attributes {stable_mosaic.version = 11 : i64} {
  func.func @kernel(%arg0: memref<144x32xf32, #tpu.memory_space<vmem>>, %arg1: memref<144x32xf32, #tpu.memory_space<vmem>>, %arg2: memref<2x72xf32, #tpu.memory_space<vmem>>, %arg3: memref<32x64xf32, #tpu.memory_space<vmem>>, %arg4: memref<1x64xf32, #tpu.memory_space<vmem>>, %arg5: memref<32x32xf32, #tpu.memory_space<vmem>>, %arg6: memref<1x32xf32, #tpu.memory_space<vmem>>, %arg7: memref<32x32xf32, #tpu.memory_space<vmem>>, %arg8: memref<1x32xf32, #tpu.memory_space<vmem>>, %arg9: memref<1x32xf32, #tpu.memory_space<vmem>>, %arg10: memref<1x32xf32, #tpu.memory_space<vmem>>, %arg11: memref<32x64xf32, #tpu.memory_space<vmem>>, %arg12: memref<1x64xf32, #tpu.memory_space<vmem>>, %arg13: memref<64x32xf32, #tpu.memory_space<vmem>>, %arg14: memref<1x32xf32, #tpu.memory_space<vmem>>, %arg15: memref<1x32xf32, #tpu.memory_space<vmem>>, %arg16: memref<1x32xf32, #tpu.memory_space<vmem>>, %arg17: memref<144x32xf32, #tpu.memory_space<vmem>>) attributes {dimension_semantics = [], scalar_prefetch = 0 : i64, scratch_operands = 0 : i64, tpu.core_type = #tpu.core_type<tc>} {
    %c0 = arith.constant 0 : index
    %c0_0 = arith.constant 0 : index
    %0 = vector.load %arg0[%c0, %c0_0] : memref<144x32xf32, #tpu.memory_space<vmem>>, vector<144x32xf32>
    %c0_1 = arith.constant 0 : index
    %c0_2 = arith.constant 0 : index
    %1 = vector.load %arg1[%c0_1, %c0_2] : memref<144x32xf32, #tpu.memory_space<vmem>>, vector<144x32xf32>
    %2 = arith.addf %0, %1 : vector<144x32xf32>
    %c0_3 = arith.constant 0 : index
    %c0_4 = arith.constant 0 : index
    %3 = vector.load %arg3[%c0_3, %c0_4] : memref<32x64xf32, #tpu.memory_space<vmem>>, vector<32x64xf32>
    %cst = arith.constant dense<0.000000e+00> : vector<144x64xf32>
    %4 = tpu.matmul %2, %3, %cst {dimension_numbers = #tpu.dot_dimension_numbers<[1], [0], [0], [1], [0, 0, 1, 1], [], []>} : vector<144x32xf32>, vector<32x64xf32>, vector<144x64xf32> -> vector<144x64xf32>
    %c0_5 = arith.constant 0 : index
    %c0_6 = arith.constant 0 : index
    %5 = vector.load %arg4[%c0_5, %c0_6] : memref<1x64xf32, #tpu.memory_space<vmem>>, vector<1x64xf32>
    %6 = vector.broadcast %5 : vector<1x64xf32> to vector<144x64xf32>
    %7 = arith.addf %4, %6 : vector<144x64xf32>
    %c0_7 = arith.constant 0 : index
    %c0_8 = arith.constant 0 : index
    %8 = vector.load %arg5[%c0_7, %c0_8] : memref<32x32xf32, #tpu.memory_space<vmem>>, vector<32x32xf32>
    %cst_9 = arith.constant dense<0.000000e+00> : vector<144x32xf32>
    %9 = tpu.matmul %0, %8, %cst_9 {dimension_numbers = #tpu.dot_dimension_numbers<[1], [0], [0], [1], [0, 0, 1, 1], [], []>} : vector<144x32xf32>, vector<32x32xf32>, vector<144x32xf32> -> vector<144x32xf32>
    %c0_10 = arith.constant 0 : index
    %c0_11 = arith.constant 0 : index
    %10 = vector.load %arg6[%c0_10, %c0_11] : memref<1x32xf32, #tpu.memory_space<vmem>>, vector<1x32xf32>
    %11 = vector.broadcast %10 : vector<1x32xf32> to vector<144x32xf32>
    %12 = arith.addf %9, %11 : vector<144x32xf32>
    %13 = vector.extract_strided_slice %7 {offsets = [0, 0], sizes = [144, 32], strides = [1, 1]} : vector<144x64xf32> to vector<144x32xf32>
    %14 = vector.extract_strided_slice %7 {offsets = [0, 32], sizes = [144, 32], strides = [1, 1]} : vector<144x64xf32> to vector<144x32xf32>
    %c0_12 = arith.constant 0 : index
    %c0_13 = arith.constant 0 : index
    %15 = vector.load %arg2[%c0_12, %c0_13] : memref<2x72xf32, #tpu.memory_space<vmem>>, vector<2x72xf32>
    %16 = vector.extract_strided_slice %13 {offsets = [0, 0], sizes = [72, 32], strides = [1, 1]} : vector<144x32xf32> to vector<72x32xf32>
    %17 = vector.extract_strided_slice %14 {offsets = [0, 0], sizes = [72, 32], strides = [1, 1]} : vector<144x32xf32> to vector<72x32xf32>
    %18 = vector.extract_strided_slice %12 {offsets = [0, 0], sizes = [72, 32], strides = [1, 1]} : vector<144x32xf32> to vector<72x32xf32>
    %19 = vector.extract_strided_slice %15 {offsets = [0, 0], sizes = [1, 72], strides = [1, 1]} : vector<2x72xf32> to vector<1x72xf32>
    %20 = vector.extract_strided_slice %16 {offsets = [0, 0], sizes = [72, 8], strides = [1, 1]} : vector<72x32xf32> to vector<72x8xf32>
    %21 = vector.extract_strided_slice %17 {offsets = [0, 0], sizes = [72, 8], strides = [1, 1]} : vector<72x32xf32> to vector<72x8xf32>
    %22 = vector.extract_strided_slice %18 {offsets = [0, 0], sizes = [72, 8], strides = [1, 1]} : vector<72x32xf32> to vector<72x8xf32>
    %cst_14 = arith.constant dense<0.000000e+00> : vector<72x72xf32>
    %23 = tpu.matmul %20, %21, %cst_14 {dimension_numbers = #tpu.dot_dimension_numbers<[1], [1], [0], [0], [0, 0, 1, 0], [], []>} : vector<72x8xf32>, vector<72x8xf32>, vector<72x72xf32> -> vector<72x72xf32>
    %cst_15 = arith.constant 0.353553385 : f32
    %24 = vector.broadcast %cst_15 : f32 to vector<72x72xf32>
    %25 = arith.mulf %23, %24 : vector<72x72xf32>
    %26 = vector.broadcast %19 : vector<1x72xf32> to vector<72x72xf32>
    %27 = arith.addf %25, %26 : vector<72x72xf32>
    %cst_16 = arith.constant dense<0xFF800000> : vector<72xf32>
    %28 = vector.multi_reduction <maximumf>, %27, %cst_16 [1] : vector<72x72xf32> to vector<72xf32>
    %29 = vector.shape_cast %28 : vector<72xf32> to vector<72x1xf32>
    %30 = vector.broadcast %29 : vector<72x1xf32> to vector<72x72xf32>
    %31 = arith.subf %27, %30 : vector<72x72xf32>
    %32 = math.exp %31 : vector<72x72xf32>
    %cst_17 = arith.constant dense<0.000000e+00> : vector<72xf32>
    %33 = vector.multi_reduction <add>, %32, %cst_17 [1] : vector<72x72xf32> to vector<72xf32>
    %34 = vector.shape_cast %33 : vector<72xf32> to vector<72x1xf32>
    %35 = tpu.reciprocal %34 {approx = true} : vector<72x1xf32> -> vector<72x1xf32>
    %36 = vector.broadcast %35 : vector<72x1xf32> to vector<72x72xf32>
    %37 = arith.mulf %32, %36 : vector<72x72xf32>
    %cst_18 = arith.constant dense<0.000000e+00> : vector<72x8xf32>
    %38 = tpu.matmul %37, %22, %cst_18 {dimension_numbers = #tpu.dot_dimension_numbers<[1], [0], [0], [1], [0, 0, 1, 1], [], []>} : vector<72x72xf32>, vector<72x8xf32>, vector<72x8xf32> -> vector<72x8xf32>
    %39 = vector.extract_strided_slice %16 {offsets = [0, 8], sizes = [72, 8], strides = [1, 1]} : vector<72x32xf32> to vector<72x8xf32>
    %40 = vector.extract_strided_slice %17 {offsets = [0, 8], sizes = [72, 8], strides = [1, 1]} : vector<72x32xf32> to vector<72x8xf32>
    %41 = vector.extract_strided_slice %18 {offsets = [0, 8], sizes = [72, 8], strides = [1, 1]} : vector<72x32xf32> to vector<72x8xf32>
    %cst_19 = arith.constant dense<0.000000e+00> : vector<72x72xf32>
    %42 = tpu.matmul %39, %40, %cst_19 {dimension_numbers = #tpu.dot_dimension_numbers<[1], [1], [0], [0], [0, 0, 1, 0], [], []>} : vector<72x8xf32>, vector<72x8xf32>, vector<72x72xf32> -> vector<72x72xf32>
    %cst_20 = arith.constant 0.353553385 : f32
    %43 = vector.broadcast %cst_20 : f32 to vector<72x72xf32>
    %44 = arith.mulf %42, %43 : vector<72x72xf32>
    %45 = vector.broadcast %19 : vector<1x72xf32> to vector<72x72xf32>
    %46 = arith.addf %44, %45 : vector<72x72xf32>
    %cst_21 = arith.constant dense<0xFF800000> : vector<72xf32>
    %47 = vector.multi_reduction <maximumf>, %46, %cst_21 [1] : vector<72x72xf32> to vector<72xf32>
    %48 = vector.shape_cast %47 : vector<72xf32> to vector<72x1xf32>
    %49 = vector.broadcast %48 : vector<72x1xf32> to vector<72x72xf32>
    %50 = arith.subf %46, %49 : vector<72x72xf32>
    %51 = math.exp %50 : vector<72x72xf32>
    %cst_22 = arith.constant dense<0.000000e+00> : vector<72xf32>
    %52 = vector.multi_reduction <add>, %51, %cst_22 [1] : vector<72x72xf32> to vector<72xf32>
    %53 = vector.shape_cast %52 : vector<72xf32> to vector<72x1xf32>
    %54 = tpu.reciprocal %53 {approx = true} : vector<72x1xf32> -> vector<72x1xf32>
    %55 = vector.broadcast %54 : vector<72x1xf32> to vector<72x72xf32>
    %56 = arith.mulf %51, %55 : vector<72x72xf32>
    %cst_23 = arith.constant dense<0.000000e+00> : vector<72x8xf32>
    %57 = tpu.matmul %56, %41, %cst_23 {dimension_numbers = #tpu.dot_dimension_numbers<[1], [0], [0], [1], [0, 0, 1, 1], [], []>} : vector<72x72xf32>, vector<72x8xf32>, vector<72x8xf32> -> vector<72x8xf32>
    %58 = vector.extract_strided_slice %16 {offsets = [0, 16], sizes = [72, 8], strides = [1, 1]} : vector<72x32xf32> to vector<72x8xf32>
    %59 = vector.extract_strided_slice %17 {offsets = [0, 16], sizes = [72, 8], strides = [1, 1]} : vector<72x32xf32> to vector<72x8xf32>
    %60 = vector.extract_strided_slice %18 {offsets = [0, 16], sizes = [72, 8], strides = [1, 1]} : vector<72x32xf32> to vector<72x8xf32>
    %cst_24 = arith.constant dense<0.000000e+00> : vector<72x72xf32>
    %61 = tpu.matmul %58, %59, %cst_24 {dimension_numbers = #tpu.dot_dimension_numbers<[1], [1], [0], [0], [0, 0, 1, 0], [], []>} : vector<72x8xf32>, vector<72x8xf32>, vector<72x72xf32> -> vector<72x72xf32>
    %cst_25 = arith.constant 0.353553385 : f32
    %62 = vector.broadcast %cst_25 : f32 to vector<72x72xf32>
    %63 = arith.mulf %61, %62 : vector<72x72xf32>
    %64 = vector.broadcast %19 : vector<1x72xf32> to vector<72x72xf32>
    %65 = arith.addf %63, %64 : vector<72x72xf32>
    %cst_26 = arith.constant dense<0xFF800000> : vector<72xf32>
    %66 = vector.multi_reduction <maximumf>, %65, %cst_26 [1] : vector<72x72xf32> to vector<72xf32>
    %67 = vector.shape_cast %66 : vector<72xf32> to vector<72x1xf32>
    %68 = vector.broadcast %67 : vector<72x1xf32> to vector<72x72xf32>
    %69 = arith.subf %65, %68 : vector<72x72xf32>
    %70 = math.exp %69 : vector<72x72xf32>
    %cst_27 = arith.constant dense<0.000000e+00> : vector<72xf32>
    %71 = vector.multi_reduction <add>, %70, %cst_27 [1] : vector<72x72xf32> to vector<72xf32>
    %72 = vector.shape_cast %71 : vector<72xf32> to vector<72x1xf32>
    %73 = tpu.reciprocal %72 {approx = true} : vector<72x1xf32> -> vector<72x1xf32>
    %74 = vector.broadcast %73 : vector<72x1xf32> to vector<72x72xf32>
    %75 = arith.mulf %70, %74 : vector<72x72xf32>
    %cst_28 = arith.constant dense<0.000000e+00> : vector<72x8xf32>
    %76 = tpu.matmul %75, %60, %cst_28 {dimension_numbers = #tpu.dot_dimension_numbers<[1], [0], [0], [1], [0, 0, 1, 1], [], []>} : vector<72x72xf32>, vector<72x8xf32>, vector<72x8xf32> -> vector<72x8xf32>
    %77 = vector.extract_strided_slice %16 {offsets = [0, 24], sizes = [72, 8], strides = [1, 1]} : vector<72x32xf32> to vector<72x8xf32>
    %78 = vector.extract_strided_slice %17 {offsets = [0, 24], sizes = [72, 8], strides = [1, 1]} : vector<72x32xf32> to vector<72x8xf32>
    %79 = vector.extract_strided_slice %18 {offsets = [0, 24], sizes = [72, 8], strides = [1, 1]} : vector<72x32xf32> to vector<72x8xf32>
    %cst_29 = arith.constant dense<0.000000e+00> : vector<72x72xf32>
    %80 = tpu.matmul %77, %78, %cst_29 {dimension_numbers = #tpu.dot_dimension_numbers<[1], [1], [0], [0], [0, 0, 1, 0], [], []>} : vector<72x8xf32>, vector<72x8xf32>, vector<72x72xf32> -> vector<72x72xf32>
    %cst_30 = arith.constant 0.353553385 : f32
    %81 = vector.broadcast %cst_30 : f32 to vector<72x72xf32>
    %82 = arith.mulf %80, %81 : vector<72x72xf32>
    %83 = vector.broadcast %19 : vector<1x72xf32> to vector<72x72xf32>
    %84 = arith.addf %82, %83 : vector<72x72xf32>
    %cst_31 = arith.constant dense<0xFF800000> : vector<72xf32>
    %85 = vector.multi_reduction <maximumf>, %84, %cst_31 [1] : vector<72x72xf32> to vector<72xf32>
    %86 = vector.shape_cast %85 : vector<72xf32> to vector<72x1xf32>
    %87 = vector.broadcast %86 : vector<72x1xf32> to vector<72x72xf32>
    %88 = arith.subf %84, %87 : vector<72x72xf32>
    %89 = math.exp %88 : vector<72x72xf32>
    %cst_32 = arith.constant dense<0.000000e+00> : vector<72xf32>
    %90 = vector.multi_reduction <add>, %89, %cst_32 [1] : vector<72x72xf32> to vector<72xf32>
    %91 = vector.shape_cast %90 : vector<72xf32> to vector<72x1xf32>
    %92 = tpu.reciprocal %91 {approx = true} : vector<72x1xf32> -> vector<72x1xf32>
    %93 = vector.broadcast %92 : vector<72x1xf32> to vector<72x72xf32>
    %94 = arith.mulf %89, %93 : vector<72x72xf32>
    %cst_33 = arith.constant dense<0.000000e+00> : vector<72x8xf32>
    %95 = tpu.matmul %94, %79, %cst_33 {dimension_numbers = #tpu.dot_dimension_numbers<[1], [0], [0], [1], [0, 0, 1, 1], [], []>} : vector<72x72xf32>, vector<72x8xf32>, vector<72x8xf32> -> vector<72x8xf32>
    %96 = tpu.concatenate %38, %57, %76, %95 in 1 : vector<72x8xf32>, vector<72x8xf32>, vector<72x8xf32>, vector<72x8xf32> -> vector<72x32xf32>
    %97 = vector.extract_strided_slice %13 {offsets = [72, 0], sizes = [72, 32], strides = [1, 1]} : vector<144x32xf32> to vector<72x32xf32>
    %98 = vector.extract_strided_slice %14 {offsets = [72, 0], sizes = [72, 32], strides = [1, 1]} : vector<144x32xf32> to vector<72x32xf32>
    %99 = vector.extract_strided_slice %12 {offsets = [72, 0], sizes = [72, 32], strides = [1, 1]} : vector<144x32xf32> to vector<72x32xf32>
    %100 = vector.extract_strided_slice %15 {offsets = [1, 0], sizes = [1, 72], strides = [1, 1]} : vector<2x72xf32> to vector<1x72xf32>
    %101 = vector.extract_strided_slice %97 {offsets = [0, 0], sizes = [72, 8], strides = [1, 1]} : vector<72x32xf32> to vector<72x8xf32>
    %102 = vector.extract_strided_slice %98 {offsets = [0, 0], sizes = [72, 8], strides = [1, 1]} : vector<72x32xf32> to vector<72x8xf32>
    %103 = vector.extract_strided_slice %99 {offsets = [0, 0], sizes = [72, 8], strides = [1, 1]} : vector<72x32xf32> to vector<72x8xf32>
    %cst_34 = arith.constant dense<0.000000e+00> : vector<72x72xf32>
    %104 = tpu.matmul %101, %102, %cst_34 {dimension_numbers = #tpu.dot_dimension_numbers<[1], [1], [0], [0], [0, 0, 1, 0], [], []>} : vector<72x8xf32>, vector<72x8xf32>, vector<72x72xf32> -> vector<72x72xf32>
    %cst_35 = arith.constant 0.353553385 : f32
    %105 = vector.broadcast %cst_35 : f32 to vector<72x72xf32>
    %106 = arith.mulf %104, %105 : vector<72x72xf32>
    %107 = vector.broadcast %100 : vector<1x72xf32> to vector<72x72xf32>
    %108 = arith.addf %106, %107 : vector<72x72xf32>
    %cst_36 = arith.constant dense<0xFF800000> : vector<72xf32>
    %109 = vector.multi_reduction <maximumf>, %108, %cst_36 [1] : vector<72x72xf32> to vector<72xf32>
    %110 = vector.shape_cast %109 : vector<72xf32> to vector<72x1xf32>
    %111 = vector.broadcast %110 : vector<72x1xf32> to vector<72x72xf32>
    %112 = arith.subf %108, %111 : vector<72x72xf32>
    %113 = math.exp %112 : vector<72x72xf32>
    %cst_37 = arith.constant dense<0.000000e+00> : vector<72xf32>
    %114 = vector.multi_reduction <add>, %113, %cst_37 [1] : vector<72x72xf32> to vector<72xf32>
    %115 = vector.shape_cast %114 : vector<72xf32> to vector<72x1xf32>
    %116 = tpu.reciprocal %115 {approx = true} : vector<72x1xf32> -> vector<72x1xf32>
    %117 = vector.broadcast %116 : vector<72x1xf32> to vector<72x72xf32>
    %118 = arith.mulf %113, %117 : vector<72x72xf32>
    %cst_38 = arith.constant dense<0.000000e+00> : vector<72x8xf32>
    %119 = tpu.matmul %118, %103, %cst_38 {dimension_numbers = #tpu.dot_dimension_numbers<[1], [0], [0], [1], [0, 0, 1, 1], [], []>} : vector<72x72xf32>, vector<72x8xf32>, vector<72x8xf32> -> vector<72x8xf32>
    %120 = vector.extract_strided_slice %97 {offsets = [0, 8], sizes = [72, 8], strides = [1, 1]} : vector<72x32xf32> to vector<72x8xf32>
    %121 = vector.extract_strided_slice %98 {offsets = [0, 8], sizes = [72, 8], strides = [1, 1]} : vector<72x32xf32> to vector<72x8xf32>
    %122 = vector.extract_strided_slice %99 {offsets = [0, 8], sizes = [72, 8], strides = [1, 1]} : vector<72x32xf32> to vector<72x8xf32>
    %cst_39 = arith.constant dense<0.000000e+00> : vector<72x72xf32>
    %123 = tpu.matmul %120, %121, %cst_39 {dimension_numbers = #tpu.dot_dimension_numbers<[1], [1], [0], [0], [0, 0, 1, 0], [], []>} : vector<72x8xf32>, vector<72x8xf32>, vector<72x72xf32> -> vector<72x72xf32>
    %cst_40 = arith.constant 0.353553385 : f32
    %124 = vector.broadcast %cst_40 : f32 to vector<72x72xf32>
    %125 = arith.mulf %123, %124 : vector<72x72xf32>
    %126 = vector.broadcast %100 : vector<1x72xf32> to vector<72x72xf32>
    %127 = arith.addf %125, %126 : vector<72x72xf32>
    %cst_41 = arith.constant dense<0xFF800000> : vector<72xf32>
    %128 = vector.multi_reduction <maximumf>, %127, %cst_41 [1] : vector<72x72xf32> to vector<72xf32>
    %129 = vector.shape_cast %128 : vector<72xf32> to vector<72x1xf32>
    %130 = vector.broadcast %129 : vector<72x1xf32> to vector<72x72xf32>
    %131 = arith.subf %127, %130 : vector<72x72xf32>
    %132 = math.exp %131 : vector<72x72xf32>
    %cst_42 = arith.constant dense<0.000000e+00> : vector<72xf32>
    %133 = vector.multi_reduction <add>, %132, %cst_42 [1] : vector<72x72xf32> to vector<72xf32>
    %134 = vector.shape_cast %133 : vector<72xf32> to vector<72x1xf32>
    %135 = tpu.reciprocal %134 {approx = true} : vector<72x1xf32> -> vector<72x1xf32>
    %136 = vector.broadcast %135 : vector<72x1xf32> to vector<72x72xf32>
    %137 = arith.mulf %132, %136 : vector<72x72xf32>
    %cst_43 = arith.constant dense<0.000000e+00> : vector<72x8xf32>
    %138 = tpu.matmul %137, %122, %cst_43 {dimension_numbers = #tpu.dot_dimension_numbers<[1], [0], [0], [1], [0, 0, 1, 1], [], []>} : vector<72x72xf32>, vector<72x8xf32>, vector<72x8xf32> -> vector<72x8xf32>
    %139 = vector.extract_strided_slice %97 {offsets = [0, 16], sizes = [72, 8], strides = [1, 1]} : vector<72x32xf32> to vector<72x8xf32>
    %140 = vector.extract_strided_slice %98 {offsets = [0, 16], sizes = [72, 8], strides = [1, 1]} : vector<72x32xf32> to vector<72x8xf32>
    %141 = vector.extract_strided_slice %99 {offsets = [0, 16], sizes = [72, 8], strides = [1, 1]} : vector<72x32xf32> to vector<72x8xf32>
    %cst_44 = arith.constant dense<0.000000e+00> : vector<72x72xf32>
    %142 = tpu.matmul %139, %140, %cst_44 {dimension_numbers = #tpu.dot_dimension_numbers<[1], [1], [0], [0], [0, 0, 1, 0], [], []>} : vector<72x8xf32>, vector<72x8xf32>, vector<72x72xf32> -> vector<72x72xf32>
    %cst_45 = arith.constant 0.353553385 : f32
    %143 = vector.broadcast %cst_45 : f32 to vector<72x72xf32>
    %144 = arith.mulf %142, %143 : vector<72x72xf32>
    %145 = vector.broadcast %100 : vector<1x72xf32> to vector<72x72xf32>
    %146 = arith.addf %144, %145 : vector<72x72xf32>
    %cst_46 = arith.constant dense<0xFF800000> : vector<72xf32>
    %147 = vector.multi_reduction <maximumf>, %146, %cst_46 [1] : vector<72x72xf32> to vector<72xf32>
    %148 = vector.shape_cast %147 : vector<72xf32> to vector<72x1xf32>
    %149 = vector.broadcast %148 : vector<72x1xf32> to vector<72x72xf32>
    %150 = arith.subf %146, %149 : vector<72x72xf32>
    %151 = math.exp %150 : vector<72x72xf32>
    %cst_47 = arith.constant dense<0.000000e+00> : vector<72xf32>
    %152 = vector.multi_reduction <add>, %151, %cst_47 [1] : vector<72x72xf32> to vector<72xf32>
    %153 = vector.shape_cast %152 : vector<72xf32> to vector<72x1xf32>
    %154 = tpu.reciprocal %153 {approx = true} : vector<72x1xf32> -> vector<72x1xf32>
    %155 = vector.broadcast %154 : vector<72x1xf32> to vector<72x72xf32>
    %156 = arith.mulf %151, %155 : vector<72x72xf32>
    %cst_48 = arith.constant dense<0.000000e+00> : vector<72x8xf32>
    %157 = tpu.matmul %156, %141, %cst_48 {dimension_numbers = #tpu.dot_dimension_numbers<[1], [0], [0], [1], [0, 0, 1, 1], [], []>} : vector<72x72xf32>, vector<72x8xf32>, vector<72x8xf32> -> vector<72x8xf32>
    %158 = vector.extract_strided_slice %97 {offsets = [0, 24], sizes = [72, 8], strides = [1, 1]} : vector<72x32xf32> to vector<72x8xf32>
    %159 = vector.extract_strided_slice %98 {offsets = [0, 24], sizes = [72, 8], strides = [1, 1]} : vector<72x32xf32> to vector<72x8xf32>
    %160 = vector.extract_strided_slice %99 {offsets = [0, 24], sizes = [72, 8], strides = [1, 1]} : vector<72x32xf32> to vector<72x8xf32>
    %cst_49 = arith.constant dense<0.000000e+00> : vector<72x72xf32>
    %161 = tpu.matmul %158, %159, %cst_49 {dimension_numbers = #tpu.dot_dimension_numbers<[1], [1], [0], [0], [0, 0, 1, 0], [], []>} : vector<72x8xf32>, vector<72x8xf32>, vector<72x72xf32> -> vector<72x72xf32>
    %cst_50 = arith.constant 0.353553385 : f32
    %162 = vector.broadcast %cst_50 : f32 to vector<72x72xf32>
    %163 = arith.mulf %161, %162 : vector<72x72xf32>
    %164 = vector.broadcast %100 : vector<1x72xf32> to vector<72x72xf32>
    %165 = arith.addf %163, %164 : vector<72x72xf32>
    %cst_51 = arith.constant dense<0xFF800000> : vector<72xf32>
    %166 = vector.multi_reduction <maximumf>, %165, %cst_51 [1] : vector<72x72xf32> to vector<72xf32>
    %167 = vector.shape_cast %166 : vector<72xf32> to vector<72x1xf32>
    %168 = vector.broadcast %167 : vector<72x1xf32> to vector<72x72xf32>
    %169 = arith.subf %165, %168 : vector<72x72xf32>
    %170 = math.exp %169 : vector<72x72xf32>
    %cst_52 = arith.constant dense<0.000000e+00> : vector<72xf32>
    %171 = vector.multi_reduction <add>, %170, %cst_52 [1] : vector<72x72xf32> to vector<72xf32>
    %172 = vector.shape_cast %171 : vector<72xf32> to vector<72x1xf32>
    %173 = tpu.reciprocal %172 {approx = true} : vector<72x1xf32> -> vector<72x1xf32>
    %174 = vector.broadcast %173 : vector<72x1xf32> to vector<72x72xf32>
    %175 = arith.mulf %170, %174 : vector<72x72xf32>
    %cst_53 = arith.constant dense<0.000000e+00> : vector<72x8xf32>
    %176 = tpu.matmul %175, %160, %cst_53 {dimension_numbers = #tpu.dot_dimension_numbers<[1], [0], [0], [1], [0, 0, 1, 1], [], []>} : vector<72x72xf32>, vector<72x8xf32>, vector<72x8xf32> -> vector<72x8xf32>
    %177 = tpu.concatenate %119, %138, %157, %176 in 1 : vector<72x8xf32>, vector<72x8xf32>, vector<72x8xf32>, vector<72x8xf32> -> vector<72x32xf32>
    %178 = tpu.concatenate %96, %177 in 0 : vector<72x32xf32>, vector<72x32xf32> -> vector<144x32xf32>
    %c0_54 = arith.constant 0 : index
    %c0_55 = arith.constant 0 : index
    %179 = vector.load %arg7[%c0_54, %c0_55] : memref<32x32xf32, #tpu.memory_space<vmem>>, vector<32x32xf32>
    %cst_56 = arith.constant dense<0.000000e+00> : vector<144x32xf32>
    %180 = tpu.matmul %178, %179, %cst_56 {dimension_numbers = #tpu.dot_dimension_numbers<[1], [0], [0], [1], [0, 0, 1, 1], [], []>} : vector<144x32xf32>, vector<32x32xf32>, vector<144x32xf32> -> vector<144x32xf32>
    %c0_57 = arith.constant 0 : index
    %c0_58 = arith.constant 0 : index
    %181 = vector.load %arg8[%c0_57, %c0_58] : memref<1x32xf32, #tpu.memory_space<vmem>>, vector<1x32xf32>
    %182 = vector.broadcast %181 : vector<1x32xf32> to vector<144x32xf32>
    %183 = arith.addf %180, %182 : vector<144x32xf32>
    %184 = arith.addf %0, %183 : vector<144x32xf32>
    %c0_59 = arith.constant 0 : index
    %c0_60 = arith.constant 0 : index
    %185 = vector.load %arg9[%c0_59, %c0_60] : memref<1x32xf32, #tpu.memory_space<vmem>>, vector<1x32xf32>
    %c0_61 = arith.constant 0 : index
    %c0_62 = arith.constant 0 : index
    %186 = vector.load %arg10[%c0_61, %c0_62] : memref<1x32xf32, #tpu.memory_space<vmem>>, vector<1x32xf32>
    %cst_63 = arith.constant dense<0.000000e+00> : vector<144xf32>
    %187 = vector.multi_reduction <add>, %184, %cst_63 [1] : vector<144x32xf32> to vector<144xf32>
    %188 = vector.shape_cast %187 : vector<144xf32> to vector<144x1xf32>
    %cst_64 = arith.constant 3.200000e+01 : f32
    %189 = vector.broadcast %cst_64 : f32 to vector<144x1xf32>
    %190 = arith.divf %188, %189 : vector<144x1xf32>
    %191 = vector.broadcast %190 : vector<144x1xf32> to vector<144x32xf32>
    %192 = arith.subf %184, %191 : vector<144x32xf32>
    %193 = arith.mulf %192, %192 : vector<144x32xf32>
    %cst_65 = arith.constant dense<0.000000e+00> : vector<144xf32>
    %194 = vector.multi_reduction <add>, %193, %cst_65 [1] : vector<144x32xf32> to vector<144xf32>
    %195 = vector.shape_cast %194 : vector<144xf32> to vector<144x1xf32>
    %cst_66 = arith.constant 3.200000e+01 : f32
    %196 = vector.broadcast %cst_66 : f32 to vector<144x1xf32>
    %197 = arith.divf %195, %196 : vector<144x1xf32>
    %198 = vector.broadcast %190 : vector<144x1xf32> to vector<144x32xf32>
    %199 = arith.subf %184, %198 : vector<144x32xf32>
    %cst_67 = arith.constant 9.99999974E-6 : f32
    %200 = vector.broadcast %cst_67 : f32 to vector<144x1xf32>
    %201 = arith.addf %197, %200 : vector<144x1xf32>
    %202 = math.rsqrt %201 : vector<144x1xf32>
    %203 = vector.broadcast %202 : vector<144x1xf32> to vector<144x32xf32>
    %204 = arith.mulf %199, %203 : vector<144x32xf32>
    %205 = vector.broadcast %185 : vector<1x32xf32> to vector<144x32xf32>
    %206 = arith.mulf %204, %205 : vector<144x32xf32>
    %207 = vector.broadcast %186 : vector<1x32xf32> to vector<144x32xf32>
    %208 = arith.addf %206, %207 : vector<144x32xf32>
    %c0_68 = arith.constant 0 : index
    %c0_69 = arith.constant 0 : index
    %209 = vector.load %arg11[%c0_68, %c0_69] : memref<32x64xf32, #tpu.memory_space<vmem>>, vector<32x64xf32>
    %cst_70 = arith.constant dense<0.000000e+00> : vector<144x64xf32>
    %210 = tpu.matmul %208, %209, %cst_70 {dimension_numbers = #tpu.dot_dimension_numbers<[1], [0], [0], [1], [0, 0, 1, 1], [], []>} : vector<144x32xf32>, vector<32x64xf32>, vector<144x64xf32> -> vector<144x64xf32>
    %c0_71 = arith.constant 0 : index
    %c0_72 = arith.constant 0 : index
    %211 = vector.load %arg12[%c0_71, %c0_72] : memref<1x64xf32, #tpu.memory_space<vmem>>, vector<1x64xf32>
    %212 = vector.broadcast %211 : vector<1x64xf32> to vector<144x64xf32>
    %213 = arith.addf %210, %212 : vector<144x64xf32>
    %cst_73 = arith.constant 0.000000e+00 : f32
    %214 = vector.broadcast %cst_73 : f32 to vector<144x64xf32>
    %215 = arith.maximumf %213, %214 : vector<144x64xf32>
    %c0_74 = arith.constant 0 : index
    %c0_75 = arith.constant 0 : index
    %216 = vector.load %arg13[%c0_74, %c0_75] : memref<64x32xf32, #tpu.memory_space<vmem>>, vector<64x32xf32>
    %cst_76 = arith.constant dense<0.000000e+00> : vector<144x32xf32>
    %217 = tpu.matmul %215, %216, %cst_76 {dimension_numbers = #tpu.dot_dimension_numbers<[1], [0], [0], [1], [0, 0, 1, 1], [], []>} : vector<144x64xf32>, vector<64x32xf32>, vector<144x32xf32> -> vector<144x32xf32>
    %c0_77 = arith.constant 0 : index
    %c0_78 = arith.constant 0 : index
    %218 = vector.load %arg14[%c0_77, %c0_78] : memref<1x32xf32, #tpu.memory_space<vmem>>, vector<1x32xf32>
    %219 = vector.broadcast %218 : vector<1x32xf32> to vector<144x32xf32>
    %220 = arith.addf %217, %219 : vector<144x32xf32>
    %221 = arith.addf %208, %220 : vector<144x32xf32>
    %c0_79 = arith.constant 0 : index
    %c0_80 = arith.constant 0 : index
    %222 = vector.load %arg15[%c0_79, %c0_80] : memref<1x32xf32, #tpu.memory_space<vmem>>, vector<1x32xf32>
    %c0_81 = arith.constant 0 : index
    %c0_82 = arith.constant 0 : index
    %223 = vector.load %arg16[%c0_81, %c0_82] : memref<1x32xf32, #tpu.memory_space<vmem>>, vector<1x32xf32>
    %cst_83 = arith.constant dense<0.000000e+00> : vector<144xf32>
    %224 = vector.multi_reduction <add>, %221, %cst_83 [1] : vector<144x32xf32> to vector<144xf32>
    %225 = vector.shape_cast %224 : vector<144xf32> to vector<144x1xf32>
    %cst_84 = arith.constant 3.200000e+01 : f32
    %226 = vector.broadcast %cst_84 : f32 to vector<144x1xf32>
    %227 = arith.divf %225, %226 : vector<144x1xf32>
    %228 = vector.broadcast %227 : vector<144x1xf32> to vector<144x32xf32>
    %229 = arith.subf %221, %228 : vector<144x32xf32>
    %230 = arith.mulf %229, %229 : vector<144x32xf32>
    %cst_85 = arith.constant dense<0.000000e+00> : vector<144xf32>
    %231 = vector.multi_reduction <add>, %230, %cst_85 [1] : vector<144x32xf32> to vector<144xf32>
    %232 = vector.shape_cast %231 : vector<144xf32> to vector<144x1xf32>
    %cst_86 = arith.constant 3.200000e+01 : f32
    %233 = vector.broadcast %cst_86 : f32 to vector<144x1xf32>
    %234 = arith.divf %232, %233 : vector<144x1xf32>
    %235 = vector.broadcast %227 : vector<144x1xf32> to vector<144x32xf32>
    %236 = arith.subf %221, %235 : vector<144x32xf32>
    %cst_87 = arith.constant 9.99999974E-6 : f32
    %237 = vector.broadcast %cst_87 : f32 to vector<144x1xf32>
    %238 = arith.addf %234, %237 : vector<144x1xf32>
    %239 = math.rsqrt %238 : vector<144x1xf32>
    %240 = vector.broadcast %239 : vector<144x1xf32> to vector<144x32xf32>
    %241 = arith.mulf %236, %240 : vector<144x32xf32>
    %242 = vector.broadcast %222 : vector<1x32xf32> to vector<144x32xf32>
    %243 = arith.mulf %241, %242 : vector<144x32xf32>
    %244 = vector.broadcast %223 : vector<1x32xf32> to vector<144x32xf32>
    %245 = arith.addf %243, %244 : vector<144x32xf32>
    %c0_88 = arith.constant 0 : index
    %c0_89 = arith.constant 0 : index
    %246 = vector.load %arg17[%c0_88, %c0_89] : memref<144x32xf32, #tpu.memory_space<vmem>>, vector<144x32xf32>
    tpu.vector_store %arg17[%c0_88, %c0_89], %245 {strides = array<i32>} : memref<144x32xf32, #tpu.memory_space<vmem>>, vector<144x32xf32>,
    return
  }
}

module attributes {stable_mosaic.version = 11 : i64} {
  func.func @kernel(%arg0: memref<16x32xf32, #tpu.memory_space<vmem>>, %arg1: memref<16x32xf32, #tpu.memory_space<vmem>>, %arg2: memref<144x32xf32, #tpu.memory_space<vmem>>, %arg3: memref<144x32xf32, #tpu.memory_space<vmem>>, %arg4: memref<2x72xf32, #tpu.memory_space<vmem>>, %arg5: memref<32x64xf32, #tpu.memory_space<vmem>>, %arg6: memref<1x64xf32, #tpu.memory_space<vmem>>, %arg7: memref<32x64xf32, #tpu.memory_space<vmem>>, %arg8: memref<1x64xf32, #tpu.memory_space<vmem>>, %arg9: memref<32x64xf32, #tpu.memory_space<vmem>>, %arg10: memref<1x64xf32, #tpu.memory_space<vmem>>, %arg11: memref<32x32xf32, #tpu.memory_space<vmem>>, %arg12: memref<1x32xf32, #tpu.memory_space<vmem>>, %arg13: memref<32x32xf32, #tpu.memory_space<vmem>>, %arg14: memref<1x32xf32, #tpu.memory_space<vmem>>, %arg15: memref<1x32xf32, #tpu.memory_space<vmem>>, %arg16: memref<1x32xf32, #tpu.memory_space<vmem>>, %arg17: memref<1x32xf32, #tpu.memory_space<vmem>>, %arg18: memref<1x32xf32, #tpu.memory_space<vmem>>, %arg19: memref<16x32xf32, #tpu.memory_space<vmem>>, %arg20: memref<16x32xf32, #tpu.memory_space<vmem>>) attributes {dimension_semantics = [], scalar_prefetch = 0 : i64, scratch_operands = 0 : i64, tpu.core_type = #tpu.core_type<tc>} {
    %c0 = arith.constant 0 : index
    %c0_0 = arith.constant 0 : index
    %0 = vector.load %arg0[%c0, %c0_0] : memref<16x32xf32, #tpu.memory_space<vmem>>, vector<16x32xf32>
    %c0_1 = arith.constant 0 : index
    %c0_2 = arith.constant 0 : index
    %1 = vector.load %arg2[%c0_1, %c0_2] : memref<144x32xf32, #tpu.memory_space<vmem>>, vector<144x32xf32>
    %c0_3 = arith.constant 0 : index
    %c0_4 = arith.constant 0 : index
    %2 = vector.load %arg1[%c0_3, %c0_4] : memref<16x32xf32, #tpu.memory_space<vmem>>, vector<16x32xf32>
    %3 = arith.addf %0, %2 : vector<16x32xf32>
    %c0_5 = arith.constant 0 : index
    %c0_6 = arith.constant 0 : index
    %4 = vector.load %arg3[%c0_5, %c0_6] : memref<144x32xf32, #tpu.memory_space<vmem>>, vector<144x32xf32>
    %5 = arith.addf %1, %4 : vector<144x32xf32>
    %c0_7 = arith.constant 0 : index
    %c0_8 = arith.constant 0 : index
    %6 = vector.load %arg5[%c0_7, %c0_8] : memref<32x64xf32, #tpu.memory_space<vmem>>, vector<32x64xf32>
    %cst = arith.constant dense<0.000000e+00> : vector<16x64xf32>
    %7 = tpu.matmul %3, %6, %cst {dimension_numbers = #tpu.dot_dimension_numbers<[1], [0], [0], [1], [0, 0, 1, 1], [], []>} : vector<16x32xf32>, vector<32x64xf32>, vector<16x64xf32> -> vector<16x64xf32>
    %c0_9 = arith.constant 0 : index
    %c0_10 = arith.constant 0 : index
    %8 = vector.load %arg6[%c0_9, %c0_10] : memref<1x64xf32, #tpu.memory_space<vmem>>, vector<1x64xf32>
    %9 = vector.broadcast %8 : vector<1x64xf32> to vector<16x64xf32>
    %10 = arith.addf %7, %9 : vector<16x64xf32>
    %c0_11 = arith.constant 0 : index
    %c0_12 = arith.constant 0 : index
    %11 = vector.load %arg7[%c0_11, %c0_12] : memref<32x64xf32, #tpu.memory_space<vmem>>, vector<32x64xf32>
    %cst_13 = arith.constant dense<0.000000e+00> : vector<144x64xf32>
    %12 = tpu.matmul %5, %11, %cst_13 {dimension_numbers = #tpu.dot_dimension_numbers<[1], [0], [0], [1], [0, 0, 1, 1], [], []>} : vector<144x32xf32>, vector<32x64xf32>, vector<144x64xf32> -> vector<144x64xf32>
    %c0_14 = arith.constant 0 : index
    %c0_15 = arith.constant 0 : index
    %13 = vector.load %arg8[%c0_14, %c0_15] : memref<1x64xf32, #tpu.memory_space<vmem>>, vector<1x64xf32>
    %14 = vector.broadcast %13 : vector<1x64xf32> to vector<144x64xf32>
    %15 = arith.addf %12, %14 : vector<144x64xf32>
    %c0_16 = arith.constant 0 : index
    %c0_17 = arith.constant 0 : index
    %16 = vector.load %arg9[%c0_16, %c0_17] : memref<32x64xf32, #tpu.memory_space<vmem>>, vector<32x64xf32>
    %cst_18 = arith.constant dense<0.000000e+00> : vector<144x64xf32>
    %17 = tpu.matmul %1, %16, %cst_18 {dimension_numbers = #tpu.dot_dimension_numbers<[1], [0], [0], [1], [0, 0, 1, 1], [], []>} : vector<144x32xf32>, vector<32x64xf32>, vector<144x64xf32> -> vector<144x64xf32>
    %c0_19 = arith.constant 0 : index
    %c0_20 = arith.constant 0 : index
    %18 = vector.load %arg10[%c0_19, %c0_20] : memref<1x64xf32, #tpu.memory_space<vmem>>, vector<1x64xf32>
    %19 = vector.broadcast %18 : vector<1x64xf32> to vector<144x64xf32>
    %20 = arith.addf %17, %19 : vector<144x64xf32>
    %c0_21 = arith.constant 0 : index
    %c0_22 = arith.constant 0 : index
    %21 = vector.load %arg4[%c0_21, %c0_22] : memref<2x72xf32, #tpu.memory_space<vmem>>, vector<2x72xf32>
    %22 = vector.extract_strided_slice %10 {offsets = [0, 0], sizes = [8, 64], strides = [1, 1]} : vector<16x64xf32> to vector<8x64xf32>
    %23 = vector.extract_strided_slice %15 {offsets = [0, 0], sizes = [72, 64], strides = [1, 1]} : vector<144x64xf32> to vector<72x64xf32>
    %24 = vector.extract_strided_slice %20 {offsets = [0, 0], sizes = [72, 64], strides = [1, 1]} : vector<144x64xf32> to vector<72x64xf32>
    %25 = vector.extract_strided_slice %21 {offsets = [0, 0], sizes = [1, 72], strides = [1, 1]} : vector<2x72xf32> to vector<1x72xf32>
    %26 = vector.extract_strided_slice %22 {offsets = [0, 0], sizes = [8, 8], strides = [1, 1]} : vector<8x64xf32> to vector<8x8xf32>
    %27 = vector.extract_strided_slice %23 {offsets = [0, 0], sizes = [72, 8], strides = [1, 1]} : vector<72x64xf32> to vector<72x8xf32>
    %28 = vector.extract_strided_slice %24 {offsets = [0, 0], sizes = [72, 8], strides = [1, 1]} : vector<72x64xf32> to vector<72x8xf32>
    %cst_23 = arith.constant dense<0.000000e+00> : vector<8x72xf32>
    %29 = tpu.matmul %26, %27, %cst_23 {dimension_numbers = #tpu.dot_dimension_numbers<[1], [1], [0], [0], [0, 0, 1, 0], [], []>} : vector<8x8xf32>, vector<72x8xf32>, vector<8x72xf32> -> vector<8x72xf32>
    %cst_24 = arith.constant 0.353553385 : f32
    %30 = vector.broadcast %cst_24 : f32 to vector<8x72xf32>
    %31 = arith.mulf %29, %30 : vector<8x72xf32>
    %32 = vector.broadcast %25 : vector<1x72xf32> to vector<8x72xf32>
    %33 = arith.addf %31, %32 : vector<8x72xf32>
    %cst_25 = arith.constant dense<0xFF800000> : vector<8xf32>
    %34 = vector.multi_reduction <maximumf>, %33, %cst_25 [1] : vector<8x72xf32> to vector<8xf32>
    %35 = vector.shape_cast %34 : vector<8xf32> to vector<8x1xf32>
    %36 = vector.broadcast %35 : vector<8x1xf32> to vector<8x72xf32>
    %37 = arith.subf %33, %36 : vector<8x72xf32>
    %38 = math.exp %37 : vector<8x72xf32>
    %cst_26 = arith.constant dense<0.000000e+00> : vector<8xf32>
    %39 = vector.multi_reduction <add>, %38, %cst_26 [1] : vector<8x72xf32> to vector<8xf32>
    %40 = vector.shape_cast %39 : vector<8xf32> to vector<8x1xf32>
    %41 = tpu.reciprocal %40 {approx = true} : vector<8x1xf32> -> vector<8x1xf32>
    %42 = vector.broadcast %41 : vector<8x1xf32> to vector<8x72xf32>
    %43 = arith.mulf %38, %42 : vector<8x72xf32>
    %cst_27 = arith.constant dense<0.000000e+00> : vector<8x8xf32>
    %44 = tpu.matmul %43, %28, %cst_27 {dimension_numbers = #tpu.dot_dimension_numbers<[1], [0], [0], [1], [0, 0, 1, 1], [], []>} : vector<8x72xf32>, vector<72x8xf32>, vector<8x8xf32> -> vector<8x8xf32>
    %45 = vector.extract_strided_slice %22 {offsets = [0, 8], sizes = [8, 8], strides = [1, 1]} : vector<8x64xf32> to vector<8x8xf32>
    %46 = vector.extract_strided_slice %23 {offsets = [0, 8], sizes = [72, 8], strides = [1, 1]} : vector<72x64xf32> to vector<72x8xf32>
    %47 = vector.extract_strided_slice %24 {offsets = [0, 8], sizes = [72, 8], strides = [1, 1]} : vector<72x64xf32> to vector<72x8xf32>
    %cst_28 = arith.constant dense<0.000000e+00> : vector<8x72xf32>
    %48 = tpu.matmul %45, %46, %cst_28 {dimension_numbers = #tpu.dot_dimension_numbers<[1], [1], [0], [0], [0, 0, 1, 0], [], []>} : vector<8x8xf32>, vector<72x8xf32>, vector<8x72xf32> -> vector<8x72xf32>
    %cst_29 = arith.constant 0.353553385 : f32
    %49 = vector.broadcast %cst_29 : f32 to vector<8x72xf32>
    %50 = arith.mulf %48, %49 : vector<8x72xf32>
    %51 = vector.broadcast %25 : vector<1x72xf32> to vector<8x72xf32>
    %52 = arith.addf %50, %51 : vector<8x72xf32>
    %cst_30 = arith.constant dense<0xFF800000> : vector<8xf32>
    %53 = vector.multi_reduction <maximumf>, %52, %cst_30 [1] : vector<8x72xf32> to vector<8xf32>
    %54 = vector.shape_cast %53 : vector<8xf32> to vector<8x1xf32>
    %55 = vector.broadcast %54 : vector<8x1xf32> to vector<8x72xf32>
    %56 = arith.subf %52, %55 : vector<8x72xf32>
    %57 = math.exp %56 : vector<8x72xf32>
    %cst_31 = arith.constant dense<0.000000e+00> : vector<8xf32>
    %58 = vector.multi_reduction <add>, %57, %cst_31 [1] : vector<8x72xf32> to vector<8xf32>
    %59 = vector.shape_cast %58 : vector<8xf32> to vector<8x1xf32>
    %60 = tpu.reciprocal %59 {approx = true} : vector<8x1xf32> -> vector<8x1xf32>
    %61 = vector.broadcast %60 : vector<8x1xf32> to vector<8x72xf32>
    %62 = arith.mulf %57, %61 : vector<8x72xf32>
    %cst_32 = arith.constant dense<0.000000e+00> : vector<8x8xf32>
    %63 = tpu.matmul %62, %47, %cst_32 {dimension_numbers = #tpu.dot_dimension_numbers<[1], [0], [0], [1], [0, 0, 1, 1], [], []>} : vector<8x72xf32>, vector<72x8xf32>, vector<8x8xf32> -> vector<8x8xf32>
    %64 = vector.extract_strided_slice %22 {offsets = [0, 16], sizes = [8, 8], strides = [1, 1]} : vector<8x64xf32> to vector<8x8xf32>
    %65 = vector.extract_strided_slice %23 {offsets = [0, 16], sizes = [72, 8], strides = [1, 1]} : vector<72x64xf32> to vector<72x8xf32>
    %66 = vector.extract_strided_slice %24 {offsets = [0, 16], sizes = [72, 8], strides = [1, 1]} : vector<72x64xf32> to vector<72x8xf32>
    %cst_33 = arith.constant dense<0.000000e+00> : vector<8x72xf32>
    %67 = tpu.matmul %64, %65, %cst_33 {dimension_numbers = #tpu.dot_dimension_numbers<[1], [1], [0], [0], [0, 0, 1, 0], [], []>} : vector<8x8xf32>, vector<72x8xf32>, vector<8x72xf32> -> vector<8x72xf32>
    %cst_34 = arith.constant 0.353553385 : f32
    %68 = vector.broadcast %cst_34 : f32 to vector<8x72xf32>
    %69 = arith.mulf %67, %68 : vector<8x72xf32>
    %70 = vector.broadcast %25 : vector<1x72xf32> to vector<8x72xf32>
    %71 = arith.addf %69, %70 : vector<8x72xf32>
    %cst_35 = arith.constant dense<0xFF800000> : vector<8xf32>
    %72 = vector.multi_reduction <maximumf>, %71, %cst_35 [1] : vector<8x72xf32> to vector<8xf32>
    %73 = vector.shape_cast %72 : vector<8xf32> to vector<8x1xf32>
    %74 = vector.broadcast %73 : vector<8x1xf32> to vector<8x72xf32>
    %75 = arith.subf %71, %74 : vector<8x72xf32>
    %76 = math.exp %75 : vector<8x72xf32>
    %cst_36 = arith.constant dense<0.000000e+00> : vector<8xf32>
    %77 = vector.multi_reduction <add>, %76, %cst_36 [1] : vector<8x72xf32> to vector<8xf32>
    %78 = vector.shape_cast %77 : vector<8xf32> to vector<8x1xf32>
    %79 = tpu.reciprocal %78 {approx = true} : vector<8x1xf32> -> vector<8x1xf32>
    %80 = vector.broadcast %79 : vector<8x1xf32> to vector<8x72xf32>
    %81 = arith.mulf %76, %80 : vector<8x72xf32>
    %cst_37 = arith.constant dense<0.000000e+00> : vector<8x8xf32>
    %82 = tpu.matmul %81, %66, %cst_37 {dimension_numbers = #tpu.dot_dimension_numbers<[1], [0], [0], [1], [0, 0, 1, 1], [], []>} : vector<8x72xf32>, vector<72x8xf32>, vector<8x8xf32> -> vector<8x8xf32>
    %83 = vector.extract_strided_slice %22 {offsets = [0, 24], sizes = [8, 8], strides = [1, 1]} : vector<8x64xf32> to vector<8x8xf32>
    %84 = vector.extract_strided_slice %23 {offsets = [0, 24], sizes = [72, 8], strides = [1, 1]} : vector<72x64xf32> to vector<72x8xf32>
    %85 = vector.extract_strided_slice %24 {offsets = [0, 24], sizes = [72, 8], strides = [1, 1]} : vector<72x64xf32> to vector<72x8xf32>
    %cst_38 = arith.constant dense<0.000000e+00> : vector<8x72xf32>
    %86 = tpu.matmul %83, %84, %cst_38 {dimension_numbers = #tpu.dot_dimension_numbers<[1], [1], [0], [0], [0, 0, 1, 0], [], []>} : vector<8x8xf32>, vector<72x8xf32>, vector<8x72xf32> -> vector<8x72xf32>
    %cst_39 = arith.constant 0.353553385 : f32
    %87 = vector.broadcast %cst_39 : f32 to vector<8x72xf32>
    %88 = arith.mulf %86, %87 : vector<8x72xf32>
    %89 = vector.broadcast %25 : vector<1x72xf32> to vector<8x72xf32>
    %90 = arith.addf %88, %89 : vector<8x72xf32>
    %cst_40 = arith.constant dense<0xFF800000> : vector<8xf32>
    %91 = vector.multi_reduction <maximumf>, %90, %cst_40 [1] : vector<8x72xf32> to vector<8xf32>
    %92 = vector.shape_cast %91 : vector<8xf32> to vector<8x1xf32>
    %93 = vector.broadcast %92 : vector<8x1xf32> to vector<8x72xf32>
    %94 = arith.subf %90, %93 : vector<8x72xf32>
    %95 = math.exp %94 : vector<8x72xf32>
    %cst_41 = arith.constant dense<0.000000e+00> : vector<8xf32>
    %96 = vector.multi_reduction <add>, %95, %cst_41 [1] : vector<8x72xf32> to vector<8xf32>
    %97 = vector.shape_cast %96 : vector<8xf32> to vector<8x1xf32>
    %98 = tpu.reciprocal %97 {approx = true} : vector<8x1xf32> -> vector<8x1xf32>
    %99 = vector.broadcast %98 : vector<8x1xf32> to vector<8x72xf32>
    %100 = arith.mulf %95, %99 : vector<8x72xf32>
    %cst_42 = arith.constant dense<0.000000e+00> : vector<8x8xf32>
    %101 = tpu.matmul %100, %85, %cst_42 {dimension_numbers = #tpu.dot_dimension_numbers<[1], [0], [0], [1], [0, 0, 1, 1], [], []>} : vector<8x72xf32>, vector<72x8xf32>, vector<8x8xf32> -> vector<8x8xf32>
    %102 = vector.extract_strided_slice %22 {offsets = [0, 32], sizes = [8, 8], strides = [1, 1]} : vector<8x64xf32> to vector<8x8xf32>
    %103 = vector.extract_strided_slice %23 {offsets = [0, 32], sizes = [72, 8], strides = [1, 1]} : vector<72x64xf32> to vector<72x8xf32>
    %104 = vector.extract_strided_slice %24 {offsets = [0, 32], sizes = [72, 8], strides = [1, 1]} : vector<72x64xf32> to vector<72x8xf32>
    %cst_43 = arith.constant dense<0.000000e+00> : vector<8x72xf32>
    %105 = tpu.matmul %102, %103, %cst_43 {dimension_numbers = #tpu.dot_dimension_numbers<[1], [1], [0], [0], [0, 0, 1, 0], [], []>} : vector<8x8xf32>, vector<72x8xf32>, vector<8x72xf32> -> vector<8x72xf32>
    %cst_44 = arith.constant 0.353553385 : f32
    %106 = vector.broadcast %cst_44 : f32 to vector<8x72xf32>
    %107 = arith.mulf %105, %106 : vector<8x72xf32>
    %108 = vector.broadcast %25 : vector<1x72xf32> to vector<8x72xf32>
    %109 = arith.addf %107, %108 : vector<8x72xf32>
    %cst_45 = arith.constant dense<0xFF800000> : vector<8xf32>
    %110 = vector.multi_reduction <maximumf>, %109, %cst_45 [1] : vector<8x72xf32> to vector<8xf32>
    %111 = vector.shape_cast %110 : vector<8xf32> to vector<8x1xf32>
    %112 = vector.broadcast %111 : vector<8x1xf32> to vector<8x72xf32>
    %113 = arith.subf %109, %112 : vector<8x72xf32>
    %114 = math.exp %113 : vector<8x72xf32>
    %cst_46 = arith.constant dense<0.000000e+00> : vector<8xf32>
    %115 = vector.multi_reduction <add>, %114, %cst_46 [1] : vector<8x72xf32> to vector<8xf32>
    %116 = vector.shape_cast %115 : vector<8xf32> to vector<8x1xf32>
    %117 = tpu.reciprocal %116 {approx = true} : vector<8x1xf32> -> vector<8x1xf32>
    %118 = vector.broadcast %117 : vector<8x1xf32> to vector<8x72xf32>
    %119 = arith.mulf %114, %118 : vector<8x72xf32>
    %cst_47 = arith.constant dense<0.000000e+00> : vector<8x8xf32>
    %120 = tpu.matmul %119, %104, %cst_47 {dimension_numbers = #tpu.dot_dimension_numbers<[1], [0], [0], [1], [0, 0, 1, 1], [], []>} : vector<8x72xf32>, vector<72x8xf32>, vector<8x8xf32> -> vector<8x8xf32>
    %121 = vector.extract_strided_slice %22 {offsets = [0, 40], sizes = [8, 8], strides = [1, 1]} : vector<8x64xf32> to vector<8x8xf32>
    %122 = vector.extract_strided_slice %23 {offsets = [0, 40], sizes = [72, 8], strides = [1, 1]} : vector<72x64xf32> to vector<72x8xf32>
    %123 = vector.extract_strided_slice %24 {offsets = [0, 40], sizes = [72, 8], strides = [1, 1]} : vector<72x64xf32> to vector<72x8xf32>
    %cst_48 = arith.constant dense<0.000000e+00> : vector<8x72xf32>
    %124 = tpu.matmul %121, %122, %cst_48 {dimension_numbers = #tpu.dot_dimension_numbers<[1], [1], [0], [0], [0, 0, 1, 0], [], []>} : vector<8x8xf32>, vector<72x8xf32>, vector<8x72xf32> -> vector<8x72xf32>
    %cst_49 = arith.constant 0.353553385 : f32
    %125 = vector.broadcast %cst_49 : f32 to vector<8x72xf32>
    %126 = arith.mulf %124, %125 : vector<8x72xf32>
    %127 = vector.broadcast %25 : vector<1x72xf32> to vector<8x72xf32>
    %128 = arith.addf %126, %127 : vector<8x72xf32>
    %cst_50 = arith.constant dense<0xFF800000> : vector<8xf32>
    %129 = vector.multi_reduction <maximumf>, %128, %cst_50 [1] : vector<8x72xf32> to vector<8xf32>
    %130 = vector.shape_cast %129 : vector<8xf32> to vector<8x1xf32>
    %131 = vector.broadcast %130 : vector<8x1xf32> to vector<8x72xf32>
    %132 = arith.subf %128, %131 : vector<8x72xf32>
    %133 = math.exp %132 : vector<8x72xf32>
    %cst_51 = arith.constant dense<0.000000e+00> : vector<8xf32>
    %134 = vector.multi_reduction <add>, %133, %cst_51 [1] : vector<8x72xf32> to vector<8xf32>
    %135 = vector.shape_cast %134 : vector<8xf32> to vector<8x1xf32>
    %136 = tpu.reciprocal %135 {approx = true} : vector<8x1xf32> -> vector<8x1xf32>
    %137 = vector.broadcast %136 : vector<8x1xf32> to vector<8x72xf32>
    %138 = arith.mulf %133, %137 : vector<8x72xf32>
    %cst_52 = arith.constant dense<0.000000e+00> : vector<8x8xf32>
    %139 = tpu.matmul %138, %123, %cst_52 {dimension_numbers = #tpu.dot_dimension_numbers<[1], [0], [0], [1], [0, 0, 1, 1], [], []>} : vector<8x72xf32>, vector<72x8xf32>, vector<8x8xf32> -> vector<8x8xf32>
    %140 = vector.extract_strided_slice %22 {offsets = [0, 48], sizes = [8, 8], strides = [1, 1]} : vector<8x64xf32> to vector<8x8xf32>
    %141 = vector.extract_strided_slice %23 {offsets = [0, 48], sizes = [72, 8], strides = [1, 1]} : vector<72x64xf32> to vector<72x8xf32>
    %142 = vector.extract_strided_slice %24 {offsets = [0, 48], sizes = [72, 8], strides = [1, 1]} : vector<72x64xf32> to vector<72x8xf32>
    %cst_53 = arith.constant dense<0.000000e+00> : vector<8x72xf32>
    %143 = tpu.matmul %140, %141, %cst_53 {dimension_numbers = #tpu.dot_dimension_numbers<[1], [1], [0], [0], [0, 0, 1, 0], [], []>} : vector<8x8xf32>, vector<72x8xf32>, vector<8x72xf32> -> vector<8x72xf32>
    %cst_54 = arith.constant 0.353553385 : f32
    %144 = vector.broadcast %cst_54 : f32 to vector<8x72xf32>
    %145 = arith.mulf %143, %144 : vector<8x72xf32>
    %146 = vector.broadcast %25 : vector<1x72xf32> to vector<8x72xf32>
    %147 = arith.addf %145, %146 : vector<8x72xf32>
    %cst_55 = arith.constant dense<0xFF800000> : vector<8xf32>
    %148 = vector.multi_reduction <maximumf>, %147, %cst_55 [1] : vector<8x72xf32> to vector<8xf32>
    %149 = vector.shape_cast %148 : vector<8xf32> to vector<8x1xf32>
    %150 = vector.broadcast %149 : vector<8x1xf32> to vector<8x72xf32>
    %151 = arith.subf %147, %150 : vector<8x72xf32>
    %152 = math.exp %151 : vector<8x72xf32>
    %cst_56 = arith.constant dense<0.000000e+00> : vector<8xf32>
    %153 = vector.multi_reduction <add>, %152, %cst_56 [1] : vector<8x72xf32> to vector<8xf32>
    %154 = vector.shape_cast %153 : vector<8xf32> to vector<8x1xf32>
    %155 = tpu.reciprocal %154 {approx = true} : vector<8x1xf32> -> vector<8x1xf32>
    %156 = vector.broadcast %155 : vector<8x1xf32> to vector<8x72xf32>
    %157 = arith.mulf %152, %156 : vector<8x72xf32>
    %cst_57 = arith.constant dense<0.000000e+00> : vector<8x8xf32>
    %158 = tpu.matmul %157, %142, %cst_57 {dimension_numbers = #tpu.dot_dimension_numbers<[1], [0], [0], [1], [0, 0, 1, 1], [], []>} : vector<8x72xf32>, vector<72x8xf32>, vector<8x8xf32> -> vector<8x8xf32>
    %159 = vector.extract_strided_slice %22 {offsets = [0, 56], sizes = [8, 8], strides = [1, 1]} : vector<8x64xf32> to vector<8x8xf32>
    %160 = vector.extract_strided_slice %23 {offsets = [0, 56], sizes = [72, 8], strides = [1, 1]} : vector<72x64xf32> to vector<72x8xf32>
    %161 = vector.extract_strided_slice %24 {offsets = [0, 56], sizes = [72, 8], strides = [1, 1]} : vector<72x64xf32> to vector<72x8xf32>
    %cst_58 = arith.constant dense<0.000000e+00> : vector<8x72xf32>
    %162 = tpu.matmul %159, %160, %cst_58 {dimension_numbers = #tpu.dot_dimension_numbers<[1], [1], [0], [0], [0, 0, 1, 0], [], []>} : vector<8x8xf32>, vector<72x8xf32>, vector<8x72xf32> -> vector<8x72xf32>
    %cst_59 = arith.constant 0.353553385 : f32
    %163 = vector.broadcast %cst_59 : f32 to vector<8x72xf32>
    %164 = arith.mulf %162, %163 : vector<8x72xf32>
    %165 = vector.broadcast %25 : vector<1x72xf32> to vector<8x72xf32>
    %166 = arith.addf %164, %165 : vector<8x72xf32>
    %cst_60 = arith.constant dense<0xFF800000> : vector<8xf32>
    %167 = vector.multi_reduction <maximumf>, %166, %cst_60 [1] : vector<8x72xf32> to vector<8xf32>
    %168 = vector.shape_cast %167 : vector<8xf32> to vector<8x1xf32>
    %169 = vector.broadcast %168 : vector<8x1xf32> to vector<8x72xf32>
    %170 = arith.subf %166, %169 : vector<8x72xf32>
    %171 = math.exp %170 : vector<8x72xf32>
    %cst_61 = arith.constant dense<0.000000e+00> : vector<8xf32>
    %172 = vector.multi_reduction <add>, %171, %cst_61 [1] : vector<8x72xf32> to vector<8xf32>
    %173 = vector.shape_cast %172 : vector<8xf32> to vector<8x1xf32>
    %174 = tpu.reciprocal %173 {approx = true} : vector<8x1xf32> -> vector<8x1xf32>
    %175 = vector.broadcast %174 : vector<8x1xf32> to vector<8x72xf32>
    %176 = arith.mulf %171, %175 : vector<8x72xf32>
    %cst_62 = arith.constant dense<0.000000e+00> : vector<8x8xf32>
    %177 = tpu.matmul %176, %161, %cst_62 {dimension_numbers = #tpu.dot_dimension_numbers<[1], [0], [0], [1], [0, 0, 1, 1], [], []>} : vector<8x72xf32>, vector<72x8xf32>, vector<8x8xf32> -> vector<8x8xf32>
    %178 = tpu.concatenate %44, %63, %82, %101, %120, %139, %158, %177 in 1 : vector<8x8xf32>, vector<8x8xf32>, vector<8x8xf32>, vector<8x8xf32>, vector<8x8xf32>, vector<8x8xf32>, vector<8x8xf32>, vector<8x8xf32> -> vector<8x64xf32>
    %179 = vector.extract_strided_slice %10 {offsets = [8, 0], sizes = [8, 64], strides = [1, 1]} : vector<16x64xf32> to vector<8x64xf32>
    %180 = vector.extract_strided_slice %15 {offsets = [72, 0], sizes = [72, 64], strides = [1, 1]} : vector<144x64xf32> to vector<72x64xf32>
    %181 = vector.extract_strided_slice %20 {offsets = [72, 0], sizes = [72, 64], strides = [1, 1]} : vector<144x64xf32> to vector<72x64xf32>
    %182 = vector.extract_strided_slice %21 {offsets = [1, 0], sizes = [1, 72], strides = [1, 1]} : vector<2x72xf32> to vector<1x72xf32>
    %183 = vector.extract_strided_slice %179 {offsets = [0, 0], sizes = [8, 8], strides = [1, 1]} : vector<8x64xf32> to vector<8x8xf32>
    %184 = vector.extract_strided_slice %180 {offsets = [0, 0], sizes = [72, 8], strides = [1, 1]} : vector<72x64xf32> to vector<72x8xf32>
    %185 = vector.extract_strided_slice %181 {offsets = [0, 0], sizes = [72, 8], strides = [1, 1]} : vector<72x64xf32> to vector<72x8xf32>
    %cst_63 = arith.constant dense<0.000000e+00> : vector<8x72xf32>
    %186 = tpu.matmul %183, %184, %cst_63 {dimension_numbers = #tpu.dot_dimension_numbers<[1], [1], [0], [0], [0, 0, 1, 0], [], []>} : vector<8x8xf32>, vector<72x8xf32>, vector<8x72xf32> -> vector<8x72xf32>
    %cst_64 = arith.constant 0.353553385 : f32
    %187 = vector.broadcast %cst_64 : f32 to vector<8x72xf32>
    %188 = arith.mulf %186, %187 : vector<8x72xf32>
    %189 = vector.broadcast %182 : vector<1x72xf32> to vector<8x72xf32>
    %190 = arith.addf %188, %189 : vector<8x72xf32>
    %cst_65 = arith.constant dense<0xFF800000> : vector<8xf32>
    %191 = vector.multi_reduction <maximumf>, %190, %cst_65 [1] : vector<8x72xf32> to vector<8xf32>
    %192 = vector.shape_cast %191 : vector<8xf32> to vector<8x1xf32>
    %193 = vector.broadcast %192 : vector<8x1xf32> to vector<8x72xf32>
    %194 = arith.subf %190, %193 : vector<8x72xf32>
    %195 = math.exp %194 : vector<8x72xf32>
    %cst_66 = arith.constant dense<0.000000e+00> : vector<8xf32>
    %196 = vector.multi_reduction <add>, %195, %cst_66 [1] : vector<8x72xf32> to vector<8xf32>
    %197 = vector.shape_cast %196 : vector<8xf32> to vector<8x1xf32>
    %198 = tpu.reciprocal %197 {approx = true} : vector<8x1xf32> -> vector<8x1xf32>
    %199 = vector.broadcast %198 : vector<8x1xf32> to vector<8x72xf32>
    %200 = arith.mulf %195, %199 : vector<8x72xf32>
    %cst_67 = arith.constant dense<0.000000e+00> : vector<8x8xf32>
    %201 = tpu.matmul %200, %185, %cst_67 {dimension_numbers = #tpu.dot_dimension_numbers<[1], [0], [0], [1], [0, 0, 1, 1], [], []>} : vector<8x72xf32>, vector<72x8xf32>, vector<8x8xf32> -> vector<8x8xf32>
    %202 = vector.extract_strided_slice %179 {offsets = [0, 8], sizes = [8, 8], strides = [1, 1]} : vector<8x64xf32> to vector<8x8xf32>
    %203 = vector.extract_strided_slice %180 {offsets = [0, 8], sizes = [72, 8], strides = [1, 1]} : vector<72x64xf32> to vector<72x8xf32>
    %204 = vector.extract_strided_slice %181 {offsets = [0, 8], sizes = [72, 8], strides = [1, 1]} : vector<72x64xf32> to vector<72x8xf32>
    %cst_68 = arith.constant dense<0.000000e+00> : vector<8x72xf32>
    %205 = tpu.matmul %202, %203, %cst_68 {dimension_numbers = #tpu.dot_dimension_numbers<[1], [1], [0], [0], [0, 0, 1, 0], [], []>} : vector<8x8xf32>, vector<72x8xf32>, vector<8x72xf32> -> vector<8x72xf32>
    %cst_69 = arith.constant 0.353553385 : f32
    %206 = vector.broadcast %cst_69 : f32 to vector<8x72xf32>
    %207 = arith.mulf %205, %206 : vector<8x72xf32>
    %208 = vector.broadcast %182 : vector<1x72xf32> to vector<8x72xf32>
    %209 = arith.addf %207, %208 : vector<8x72xf32>
    %cst_70 = arith.constant dense<0xFF800000> : vector<8xf32>
    %210 = vector.multi_reduction <maximumf>, %209, %cst_70 [1] : vector<8x72xf32> to vector<8xf32>
    %211 = vector.shape_cast %210 : vector<8xf32> to vector<8x1xf32>
    %212 = vector.broadcast %211 : vector<8x1xf32> to vector<8x72xf32>
    %213 = arith.subf %209, %212 : vector<8x72xf32>
    %214 = math.exp %213 : vector<8x72xf32>
    %cst_71 = arith.constant dense<0.000000e+00> : vector<8xf32>
    %215 = vector.multi_reduction <add>, %214, %cst_71 [1] : vector<8x72xf32> to vector<8xf32>
    %216 = vector.shape_cast %215 : vector<8xf32> to vector<8x1xf32>
    %217 = tpu.reciprocal %216 {approx = true} : vector<8x1xf32> -> vector<8x1xf32>
    %218 = vector.broadcast %217 : vector<8x1xf32> to vector<8x72xf32>
    %219 = arith.mulf %214, %218 : vector<8x72xf32>
    %cst_72 = arith.constant dense<0.000000e+00> : vector<8x8xf32>
    %220 = tpu.matmul %219, %204, %cst_72 {dimension_numbers = #tpu.dot_dimension_numbers<[1], [0], [0], [1], [0, 0, 1, 1], [], []>} : vector<8x72xf32>, vector<72x8xf32>, vector<8x8xf32> -> vector<8x8xf32>
    %221 = vector.extract_strided_slice %179 {offsets = [0, 16], sizes = [8, 8], strides = [1, 1]} : vector<8x64xf32> to vector<8x8xf32>
    %222 = vector.extract_strided_slice %180 {offsets = [0, 16], sizes = [72, 8], strides = [1, 1]} : vector<72x64xf32> to vector<72x8xf32>
    %223 = vector.extract_strided_slice %181 {offsets = [0, 16], sizes = [72, 8], strides = [1, 1]} : vector<72x64xf32> to vector<72x8xf32>
    %cst_73 = arith.constant dense<0.000000e+00> : vector<8x72xf32>
    %224 = tpu.matmul %221, %222, %cst_73 {dimension_numbers = #tpu.dot_dimension_numbers<[1], [1], [0], [0], [0, 0, 1, 0], [], []>} : vector<8x8xf32>, vector<72x8xf32>, vector<8x72xf32> -> vector<8x72xf32>
    %cst_74 = arith.constant 0.353553385 : f32
    %225 = vector.broadcast %cst_74 : f32 to vector<8x72xf32>
    %226 = arith.mulf %224, %225 : vector<8x72xf32>
    %227 = vector.broadcast %182 : vector<1x72xf32> to vector<8x72xf32>
    %228 = arith.addf %226, %227 : vector<8x72xf32>
    %cst_75 = arith.constant dense<0xFF800000> : vector<8xf32>
    %229 = vector.multi_reduction <maximumf>, %228, %cst_75 [1] : vector<8x72xf32> to vector<8xf32>
    %230 = vector.shape_cast %229 : vector<8xf32> to vector<8x1xf32>
    %231 = vector.broadcast %230 : vector<8x1xf32> to vector<8x72xf32>
    %232 = arith.subf %228, %231 : vector<8x72xf32>
    %233 = math.exp %232 : vector<8x72xf32>
    %cst_76 = arith.constant dense<0.000000e+00> : vector<8xf32>
    %234 = vector.multi_reduction <add>, %233, %cst_76 [1] : vector<8x72xf32> to vector<8xf32>
    %235 = vector.shape_cast %234 : vector<8xf32> to vector<8x1xf32>
    %236 = tpu.reciprocal %235 {approx = true} : vector<8x1xf32> -> vector<8x1xf32>
    %237 = vector.broadcast %236 : vector<8x1xf32> to vector<8x72xf32>
    %238 = arith.mulf %233, %237 : vector<8x72xf32>
    %cst_77 = arith.constant dense<0.000000e+00> : vector<8x8xf32>
    %239 = tpu.matmul %238, %223, %cst_77 {dimension_numbers = #tpu.dot_dimension_numbers<[1], [0], [0], [1], [0, 0, 1, 1], [], []>} : vector<8x72xf32>, vector<72x8xf32>, vector<8x8xf32> -> vector<8x8xf32>
    %240 = vector.extract_strided_slice %179 {offsets = [0, 24], sizes = [8, 8], strides = [1, 1]} : vector<8x64xf32> to vector<8x8xf32>
    %241 = vector.extract_strided_slice %180 {offsets = [0, 24], sizes = [72, 8], strides = [1, 1]} : vector<72x64xf32> to vector<72x8xf32>
    %242 = vector.extract_strided_slice %181 {offsets = [0, 24], sizes = [72, 8], strides = [1, 1]} : vector<72x64xf32> to vector<72x8xf32>
    %cst_78 = arith.constant dense<0.000000e+00> : vector<8x72xf32>
    %243 = tpu.matmul %240, %241, %cst_78 {dimension_numbers = #tpu.dot_dimension_numbers<[1], [1], [0], [0], [0, 0, 1, 0], [], []>} : vector<8x8xf32>, vector<72x8xf32>, vector<8x72xf32> -> vector<8x72xf32>
    %cst_79 = arith.constant 0.353553385 : f32
    %244 = vector.broadcast %cst_79 : f32 to vector<8x72xf32>
    %245 = arith.mulf %243, %244 : vector<8x72xf32>
    %246 = vector.broadcast %182 : vector<1x72xf32> to vector<8x72xf32>
    %247 = arith.addf %245, %246 : vector<8x72xf32>
    %cst_80 = arith.constant dense<0xFF800000> : vector<8xf32>
    %248 = vector.multi_reduction <maximumf>, %247, %cst_80 [1] : vector<8x72xf32> to vector<8xf32>
    %249 = vector.shape_cast %248 : vector<8xf32> to vector<8x1xf32>
    %250 = vector.broadcast %249 : vector<8x1xf32> to vector<8x72xf32>
    %251 = arith.subf %247, %250 : vector<8x72xf32>
    %252 = math.exp %251 : vector<8x72xf32>
    %cst_81 = arith.constant dense<0.000000e+00> : vector<8xf32>
    %253 = vector.multi_reduction <add>, %252, %cst_81 [1] : vector<8x72xf32> to vector<8xf32>
    %254 = vector.shape_cast %253 : vector<8xf32> to vector<8x1xf32>
    %255 = tpu.reciprocal %254 {approx = true} : vector<8x1xf32> -> vector<8x1xf32>
    %256 = vector.broadcast %255 : vector<8x1xf32> to vector<8x72xf32>
    %257 = arith.mulf %252, %256 : vector<8x72xf32>
    %cst_82 = arith.constant dense<0.000000e+00> : vector<8x8xf32>
    %258 = tpu.matmul %257, %242, %cst_82 {dimension_numbers = #tpu.dot_dimension_numbers<[1], [0], [0], [1], [0, 0, 1, 1], [], []>} : vector<8x72xf32>, vector<72x8xf32>, vector<8x8xf32> -> vector<8x8xf32>
    %259 = vector.extract_strided_slice %179 {offsets = [0, 32], sizes = [8, 8], strides = [1, 1]} : vector<8x64xf32> to vector<8x8xf32>
    %260 = vector.extract_strided_slice %180 {offsets = [0, 32], sizes = [72, 8], strides = [1, 1]} : vector<72x64xf32> to vector<72x8xf32>
    %261 = vector.extract_strided_slice %181 {offsets = [0, 32], sizes = [72, 8], strides = [1, 1]} : vector<72x64xf32> to vector<72x8xf32>
    %cst_83 = arith.constant dense<0.000000e+00> : vector<8x72xf32>
    %262 = tpu.matmul %259, %260, %cst_83 {dimension_numbers = #tpu.dot_dimension_numbers<[1], [1], [0], [0], [0, 0, 1, 0], [], []>} : vector<8x8xf32>, vector<72x8xf32>, vector<8x72xf32> -> vector<8x72xf32>
    %cst_84 = arith.constant 0.353553385 : f32
    %263 = vector.broadcast %cst_84 : f32 to vector<8x72xf32>
    %264 = arith.mulf %262, %263 : vector<8x72xf32>
    %265 = vector.broadcast %182 : vector<1x72xf32> to vector<8x72xf32>
    %266 = arith.addf %264, %265 : vector<8x72xf32>
    %cst_85 = arith.constant dense<0xFF800000> : vector<8xf32>
    %267 = vector.multi_reduction <maximumf>, %266, %cst_85 [1] : vector<8x72xf32> to vector<8xf32>
    %268 = vector.shape_cast %267 : vector<8xf32> to vector<8x1xf32>
    %269 = vector.broadcast %268 : vector<8x1xf32> to vector<8x72xf32>
    %270 = arith.subf %266, %269 : vector<8x72xf32>
    %271 = math.exp %270 : vector<8x72xf32>
    %cst_86 = arith.constant dense<0.000000e+00> : vector<8xf32>
    %272 = vector.multi_reduction <add>, %271, %cst_86 [1] : vector<8x72xf32> to vector<8xf32>
    %273 = vector.shape_cast %272 : vector<8xf32> to vector<8x1xf32>
    %274 = tpu.reciprocal %273 {approx = true} : vector<8x1xf32> -> vector<8x1xf32>
    %275 = vector.broadcast %274 : vector<8x1xf32> to vector<8x72xf32>
    %276 = arith.mulf %271, %275 : vector<8x72xf32>
    %cst_87 = arith.constant dense<0.000000e+00> : vector<8x8xf32>
    %277 = tpu.matmul %276, %261, %cst_87 {dimension_numbers = #tpu.dot_dimension_numbers<[1], [0], [0], [1], [0, 0, 1, 1], [], []>} : vector<8x72xf32>, vector<72x8xf32>, vector<8x8xf32> -> vector<8x8xf32>
    %278 = vector.extract_strided_slice %179 {offsets = [0, 40], sizes = [8, 8], strides = [1, 1]} : vector<8x64xf32> to vector<8x8xf32>
    %279 = vector.extract_strided_slice %180 {offsets = [0, 40], sizes = [72, 8], strides = [1, 1]} : vector<72x64xf32> to vector<72x8xf32>
    %280 = vector.extract_strided_slice %181 {offsets = [0, 40], sizes = [72, 8], strides = [1, 1]} : vector<72x64xf32> to vector<72x8xf32>
    %cst_88 = arith.constant dense<0.000000e+00> : vector<8x72xf32>
    %281 = tpu.matmul %278, %279, %cst_88 {dimension_numbers = #tpu.dot_dimension_numbers<[1], [1], [0], [0], [0, 0, 1, 0], [], []>} : vector<8x8xf32>, vector<72x8xf32>, vector<8x72xf32> -> vector<8x72xf32>
    %cst_89 = arith.constant 0.353553385 : f32
    %282 = vector.broadcast %cst_89 : f32 to vector<8x72xf32>
    %283 = arith.mulf %281, %282 : vector<8x72xf32>
    %284 = vector.broadcast %182 : vector<1x72xf32> to vector<8x72xf32>
    %285 = arith.addf %283, %284 : vector<8x72xf32>
    %cst_90 = arith.constant dense<0xFF800000> : vector<8xf32>
    %286 = vector.multi_reduction <maximumf>, %285, %cst_90 [1] : vector<8x72xf32> to vector<8xf32>
    %287 = vector.shape_cast %286 : vector<8xf32> to vector<8x1xf32>
    %288 = vector.broadcast %287 : vector<8x1xf32> to vector<8x72xf32>
    %289 = arith.subf %285, %288 : vector<8x72xf32>
    %290 = math.exp %289 : vector<8x72xf32>
    %cst_91 = arith.constant dense<0.000000e+00> : vector<8xf32>
    %291 = vector.multi_reduction <add>, %290, %cst_91 [1] : vector<8x72xf32> to vector<8xf32>
    %292 = vector.shape_cast %291 : vector<8xf32> to vector<8x1xf32>
    %293 = tpu.reciprocal %292 {approx = true} : vector<8x1xf32> -> vector<8x1xf32>
    %294 = vector.broadcast %293 : vector<8x1xf32> to vector<8x72xf32>
    %295 = arith.mulf %290, %294 : vector<8x72xf32>
    %cst_92 = arith.constant dense<0.000000e+00> : vector<8x8xf32>
    %296 = tpu.matmul %295, %280, %cst_92 {dimension_numbers = #tpu.dot_dimension_numbers<[1], [0], [0], [1], [0, 0, 1, 1], [], []>} : vector<8x72xf32>, vector<72x8xf32>, vector<8x8xf32> -> vector<8x8xf32>
    %297 = vector.extract_strided_slice %179 {offsets = [0, 48], sizes = [8, 8], strides = [1, 1]} : vector<8x64xf32> to vector<8x8xf32>
    %298 = vector.extract_strided_slice %180 {offsets = [0, 48], sizes = [72, 8], strides = [1, 1]} : vector<72x64xf32> to vector<72x8xf32>
    %299 = vector.extract_strided_slice %181 {offsets = [0, 48], sizes = [72, 8], strides = [1, 1]} : vector<72x64xf32> to vector<72x8xf32>
    %cst_93 = arith.constant dense<0.000000e+00> : vector<8x72xf32>
    %300 = tpu.matmul %297, %298, %cst_93 {dimension_numbers = #tpu.dot_dimension_numbers<[1], [1], [0], [0], [0, 0, 1, 0], [], []>} : vector<8x8xf32>, vector<72x8xf32>, vector<8x72xf32> -> vector<8x72xf32>
    %cst_94 = arith.constant 0.353553385 : f32
    %301 = vector.broadcast %cst_94 : f32 to vector<8x72xf32>
    %302 = arith.mulf %300, %301 : vector<8x72xf32>
    %303 = vector.broadcast %182 : vector<1x72xf32> to vector<8x72xf32>
    %304 = arith.addf %302, %303 : vector<8x72xf32>
    %cst_95 = arith.constant dense<0xFF800000> : vector<8xf32>
    %305 = vector.multi_reduction <maximumf>, %304, %cst_95 [1] : vector<8x72xf32> to vector<8xf32>
    %306 = vector.shape_cast %305 : vector<8xf32> to vector<8x1xf32>
    %307 = vector.broadcast %306 : vector<8x1xf32> to vector<8x72xf32>
    %308 = arith.subf %304, %307 : vector<8x72xf32>
    %309 = math.exp %308 : vector<8x72xf32>
    %cst_96 = arith.constant dense<0.000000e+00> : vector<8xf32>
    %310 = vector.multi_reduction <add>, %309, %cst_96 [1] : vector<8x72xf32> to vector<8xf32>
    %311 = vector.shape_cast %310 : vector<8xf32> to vector<8x1xf32>
    %312 = tpu.reciprocal %311 {approx = true} : vector<8x1xf32> -> vector<8x1xf32>
    %313 = vector.broadcast %312 : vector<8x1xf32> to vector<8x72xf32>
    %314 = arith.mulf %309, %313 : vector<8x72xf32>
    %cst_97 = arith.constant dense<0.000000e+00> : vector<8x8xf32>
    %315 = tpu.matmul %314, %299, %cst_97 {dimension_numbers = #tpu.dot_dimension_numbers<[1], [0], [0], [1], [0, 0, 1, 1], [], []>} : vector<8x72xf32>, vector<72x8xf32>, vector<8x8xf32> -> vector<8x8xf32>
    %316 = vector.extract_strided_slice %179 {offsets = [0, 56], sizes = [8, 8], strides = [1, 1]} : vector<8x64xf32> to vector<8x8xf32>
    %317 = vector.extract_strided_slice %180 {offsets = [0, 56], sizes = [72, 8], strides = [1, 1]} : vector<72x64xf32> to vector<72x8xf32>
    %318 = vector.extract_strided_slice %181 {offsets = [0, 56], sizes = [72, 8], strides = [1, 1]} : vector<72x64xf32> to vector<72x8xf32>
    %cst_98 = arith.constant dense<0.000000e+00> : vector<8x72xf32>
    %319 = tpu.matmul %316, %317, %cst_98 {dimension_numbers = #tpu.dot_dimension_numbers<[1], [1], [0], [0], [0, 0, 1, 0], [], []>} : vector<8x8xf32>, vector<72x8xf32>, vector<8x72xf32> -> vector<8x72xf32>
    %cst_99 = arith.constant 0.353553385 : f32
    %320 = vector.broadcast %cst_99 : f32 to vector<8x72xf32>
    %321 = arith.mulf %319, %320 : vector<8x72xf32>
    %322 = vector.broadcast %182 : vector<1x72xf32> to vector<8x72xf32>
    %323 = arith.addf %321, %322 : vector<8x72xf32>
    %cst_100 = arith.constant dense<0xFF800000> : vector<8xf32>
    %324 = vector.multi_reduction <maximumf>, %323, %cst_100 [1] : vector<8x72xf32> to vector<8xf32>
    %325 = vector.shape_cast %324 : vector<8xf32> to vector<8x1xf32>
    %326 = vector.broadcast %325 : vector<8x1xf32> to vector<8x72xf32>
    %327 = arith.subf %323, %326 : vector<8x72xf32>
    %328 = math.exp %327 : vector<8x72xf32>
    %cst_101 = arith.constant dense<0.000000e+00> : vector<8xf32>
    %329 = vector.multi_reduction <add>, %328, %cst_101 [1] : vector<8x72xf32> to vector<8xf32>
    %330 = vector.shape_cast %329 : vector<8xf32> to vector<8x1xf32>
    %331 = tpu.reciprocal %330 {approx = true} : vector<8x1xf32> -> vector<8x1xf32>
    %332 = vector.broadcast %331 : vector<8x1xf32> to vector<8x72xf32>
    %333 = arith.mulf %328, %332 : vector<8x72xf32>
    %cst_102 = arith.constant dense<0.000000e+00> : vector<8x8xf32>
    %334 = tpu.matmul %333, %318, %cst_102 {dimension_numbers = #tpu.dot_dimension_numbers<[1], [0], [0], [1], [0, 0, 1, 1], [], []>} : vector<8x72xf32>, vector<72x8xf32>, vector<8x8xf32> -> vector<8x8xf32>
    %335 = tpu.concatenate %201, %220, %239, %258, %277, %296, %315, %334 in 1 : vector<8x8xf32>, vector<8x8xf32>, vector<8x8xf32>, vector<8x8xf32>, vector<8x8xf32>, vector<8x8xf32>, vector<8x8xf32>, vector<8x8xf32> -> vector<8x64xf32>
    %336 = tpu.concatenate %178, %335 in 0 : vector<8x64xf32>, vector<8x64xf32> -> vector<16x64xf32>
    %337 = vector.extract_strided_slice %336 {offsets = [0, 0], sizes = [16, 32], strides = [1, 1]} : vector<16x64xf32> to vector<16x32xf32>
    %338 = vector.extract_strided_slice %336 {offsets = [0, 32], sizes = [16, 32], strides = [1, 1]} : vector<16x64xf32> to vector<16x32xf32>
    %c0_103 = arith.constant 0 : index
    %c0_104 = arith.constant 0 : index
    %339 = vector.load %arg11[%c0_103, %c0_104] : memref<32x32xf32, #tpu.memory_space<vmem>>, vector<32x32xf32>
    %cst_105 = arith.constant dense<0.000000e+00> : vector<16x32xf32>
    %340 = tpu.matmul %337, %339, %cst_105 {dimension_numbers = #tpu.dot_dimension_numbers<[1], [0], [0], [1], [0, 0, 1, 1], [], []>} : vector<16x32xf32>, vector<32x32xf32>, vector<16x32xf32> -> vector<16x32xf32>
    %c0_106 = arith.constant 0 : index
    %c0_107 = arith.constant 0 : index
    %341 = vector.load %arg12[%c0_106, %c0_107] : memref<1x32xf32, #tpu.memory_space<vmem>>, vector<1x32xf32>
    %342 = vector.broadcast %341 : vector<1x32xf32> to vector<16x32xf32>
    %343 = arith.addf %340, %342 : vector<16x32xf32>
    %c0_108 = arith.constant 0 : index
    %c0_109 = arith.constant 0 : index
    %344 = vector.load %arg13[%c0_108, %c0_109] : memref<32x32xf32, #tpu.memory_space<vmem>>, vector<32x32xf32>
    %cst_110 = arith.constant dense<0.000000e+00> : vector<16x32xf32>
    %345 = tpu.matmul %338, %344, %cst_110 {dimension_numbers = #tpu.dot_dimension_numbers<[1], [0], [0], [1], [0, 0, 1, 1], [], []>} : vector<16x32xf32>, vector<32x32xf32>, vector<16x32xf32> -> vector<16x32xf32>
    %c0_111 = arith.constant 0 : index
    %c0_112 = arith.constant 0 : index
    %346 = vector.load %arg14[%c0_111, %c0_112] : memref<1x32xf32, #tpu.memory_space<vmem>>, vector<1x32xf32>
    %347 = vector.broadcast %346 : vector<1x32xf32> to vector<16x32xf32>
    %348 = arith.addf %345, %347 : vector<16x32xf32>
    %349 = arith.addf %0, %343 : vector<16x32xf32>
    %c0_113 = arith.constant 0 : index
    %c0_114 = arith.constant 0 : index
    %350 = vector.load %arg15[%c0_113, %c0_114] : memref<1x32xf32, #tpu.memory_space<vmem>>, vector<1x32xf32>
    %c0_115 = arith.constant 0 : index
    %c0_116 = arith.constant 0 : index
    %351 = vector.load %arg16[%c0_115, %c0_116] : memref<1x32xf32, #tpu.memory_space<vmem>>, vector<1x32xf32>
    %cst_117 = arith.constant dense<0.000000e+00> : vector<16xf32>
    %352 = vector.multi_reduction <add>, %349, %cst_117 [1] : vector<16x32xf32> to vector<16xf32>
    %353 = vector.shape_cast %352 : vector<16xf32> to vector<16x1xf32>
    %cst_118 = arith.constant 3.200000e+01 : f32
    %354 = vector.broadcast %cst_118 : f32 to vector<16x1xf32>
    %355 = arith.divf %353, %354 : vector<16x1xf32>
    %356 = vector.broadcast %355 : vector<16x1xf32> to vector<16x32xf32>
    %357 = arith.subf %349, %356 : vector<16x32xf32>
    %358 = arith.mulf %357, %357 : vector<16x32xf32>
    %cst_119 = arith.constant dense<0.000000e+00> : vector<16xf32>
    %359 = vector.multi_reduction <add>, %358, %cst_119 [1] : vector<16x32xf32> to vector<16xf32>
    %360 = vector.shape_cast %359 : vector<16xf32> to vector<16x1xf32>
    %cst_120 = arith.constant 3.200000e+01 : f32
    %361 = vector.broadcast %cst_120 : f32 to vector<16x1xf32>
    %362 = arith.divf %360, %361 : vector<16x1xf32>
    %363 = vector.broadcast %355 : vector<16x1xf32> to vector<16x32xf32>
    %364 = arith.subf %349, %363 : vector<16x32xf32>
    %cst_121 = arith.constant 9.99999974E-6 : f32
    %365 = vector.broadcast %cst_121 : f32 to vector<16x1xf32>
    %366 = arith.addf %362, %365 : vector<16x1xf32>
    %367 = math.rsqrt %366 : vector<16x1xf32>
    %368 = vector.broadcast %367 : vector<16x1xf32> to vector<16x32xf32>
    %369 = arith.mulf %364, %368 : vector<16x32xf32>
    %370 = vector.broadcast %350 : vector<1x32xf32> to vector<16x32xf32>
    %371 = arith.mulf %369, %370 : vector<16x32xf32>
    %372 = vector.broadcast %351 : vector<1x32xf32> to vector<16x32xf32>
    %373 = arith.addf %371, %372 : vector<16x32xf32>
    %c0_122 = arith.constant 0 : index
    %c0_123 = arith.constant 0 : index
    %374 = vector.load %arg19[%c0_122, %c0_123] : memref<16x32xf32, #tpu.memory_space<vmem>>, vector<16x32xf32>
    tpu.vector_store %arg19[%c0_122, %c0_123], %373 {strides = array<i32>} : memref<16x32xf32, #tpu.memory_space<vmem>>, vector<16x32xf32>,
    %375 = arith.addf %0, %348 : vector<16x32xf32>
    %c0_124 = arith.constant 0 : index
    %c0_125 = arith.constant 0 : index
    %376 = vector.load %arg17[%c0_124, %c0_125] : memref<1x32xf32, #tpu.memory_space<vmem>>, vector<1x32xf32>
    %c0_126 = arith.constant 0 : index
    %c0_127 = arith.constant 0 : index
    %377 = vector.load %arg18[%c0_126, %c0_127] : memref<1x32xf32, #tpu.memory_space<vmem>>, vector<1x32xf32>
    %cst_128 = arith.constant dense<0.000000e+00> : vector<16xf32>
    %378 = vector.multi_reduction <add>, %375, %cst_128 [1] : vector<16x32xf32> to vector<16xf32>
    %379 = vector.shape_cast %378 : vector<16xf32> to vector<16x1xf32>
    %cst_129 = arith.constant 3.200000e+01 : f32
    %380 = vector.broadcast %cst_129 : f32 to vector<16x1xf32>
    %381 = arith.divf %379, %380 : vector<16x1xf32>
    %382 = vector.broadcast %381 : vector<16x1xf32> to vector<16x32xf32>
    %383 = arith.subf %375, %382 : vector<16x32xf32>
    %384 = arith.mulf %383, %383 : vector<16x32xf32>
    %cst_130 = arith.constant dense<0.000000e+00> : vector<16xf32>
    %385 = vector.multi_reduction <add>, %384, %cst_130 [1] : vector<16x32xf32> to vector<16xf32>
    %386 = vector.shape_cast %385 : vector<16xf32> to vector<16x1xf32>
    %cst_131 = arith.constant 3.200000e+01 : f32
    %387 = vector.broadcast %cst_131 : f32 to vector<16x1xf32>
    %388 = arith.divf %386, %387 : vector<16x1xf32>
    %389 = vector.broadcast %381 : vector<16x1xf32> to vector<16x32xf32>
    %390 = arith.subf %375, %389 : vector<16x32xf32>
    %cst_132 = arith.constant 9.99999974E-6 : f32
    %391 = vector.broadcast %cst_132 : f32 to vector<16x1xf32>
    %392 = arith.addf %388, %391 : vector<16x1xf32>
    %393 = math.rsqrt %392 : vector<16x1xf32>
    %394 = vector.broadcast %393 : vector<16x1xf32> to vector<16x32xf32>
    %395 = arith.mulf %390, %394 : vector<16x32xf32>
    %396 = vector.broadcast %376 : vector<1x32xf32> to vector<16x32xf32>
    %397 = arith.mulf %395, %396 : vector<16x32xf32>
    %398 = vector.broadcast %377 : vector<1x32xf32> to vector<16x32xf32>
    %399 = arith.addf %397, %398 : vector<16x32xf32>
    %c0_133 = arith.constant 0 : index
    %c0_134 = arith.constant 0 : index
    %400 = vector.load %arg20[%c0_133, %c0_134] : memref<16x32xf32, #tpu.memory_space<vmem>>, vector<16x32xf32>
    tpu.vector_store %arg20[%c0_133, %c0_134], %399 {strides = array<i32>} : memref<16x32xf32, #tpu.memory_space<vmem>>, vector<16x32xf32>,
    return
  }
}

</mosaic_0001>

<llo_original>
// kernel: fctr_encoder_forward.3
$region0: #{fctr_encoder_forward.3}
  #allocation0 [shape = 'u32[]', space=smem, size = 0x4, offset = 0x4, fixed_abs, tag = 'smem constant byte address 0x4 - core index']
  #allocation1 [shape = 'u32[72,128]{1,0:T(1,128)}', space=vmem, size = 0x9000, scoped, tag = 'internal scratch']
  %s0 = inlined_call_operand.vmem [shape: f32[128,36], index: 0, kind: input, shape index: {}]
  %s1 = inlined_call_operand.vmem [shape: f32[36,32], index: 1, kind: input, shape index: {}]
  %s2 = inlined_call_operand.vmem [shape: f32[1,32], index: 2, kind: input, shape index: {}]
  %s3 = inlined_call_operand.vmem [shape: f32[16,32], index: 3, kind: input, shape index: {}]
  %s4 = inlined_call_operand.vmem [shape: f32[32,32], index: 4, kind: input, shape index: {}]
  %s5 = inlined_call_operand.vmem [shape: f32[1,32], index: 5, kind: input, shape index: {}]
  %s6 = inlined_call_operand.vmem [shape: f32[128,32], index: 6, kind: output, shape index: {0}]
  %s7 = inlined_call_operand.vmem [shape: f32[16,32], index: 7, kind: output, shape index: {1}]
  %8 = xla_tuple %s6, %s7
  %s9 = sld [smem:[#allocation0]]
  $region42: #{fctr_encoder_forward.3} parent=0
    _
  %s11 = ssub.s32 1, %s9
  %s12 = scalar_select 0, %s11, %s9
  // Predicated region
  $region2: #{fctr_encoder_forward.3} parent=0 // pred_check
    _
  $region3: #{fctr_encoder_forward.3} parent=0 // pred_check_branch
    %14 = sbr.rel (0) target = $region5
  $region4: #{fctr_encoder_forward.3} parent=0 // pred_region
    _
  $region5: #{fctr_encoder_forward.3} parent=0 // pred_fallthru
    _
  // Predicated region
  $region6: #{fctr_encoder_forward.3} parent=0 // pred_check
    _
  $region7: #{fctr_encoder_forward.3} parent=0 // pred_check_branch
    %16 = sbr.rel (0) target = $region9
  $region8: #{fctr_encoder_forward.3} parent=0 // pred_region
    _
  $region9: #{fctr_encoder_forward.3} parent=0 // pred_fallthru
    _
  // Predicated region
  $region10: #{fctr_encoder_forward.3} parent=0 // pred_check
    _
  $region11: #{fctr_encoder_forward.3} parent=0 // pred_check_branch
    %18 = sbr.rel (0) target = $region13
  $region12: #{fctr_encoder_forward.3} parent=0 // pred_region
    _
  $region13: #{fctr_encoder_forward.3} parent=0 // pred_fallthru
    _
  // Predicated region
  $region14: #{fctr_encoder_forward.3} parent=0 // pred_check
    _
  $region15: #{fctr_encoder_forward.3} parent=0 // pred_check_branch
    %20 = sbr.rel (0) target = $region17
  $region16: #{fctr_encoder_forward.3} parent=0 // pred_region
    _
  $region17: #{fctr_encoder_forward.3} parent=0 // pred_fallthru
    _
  // Predicated region
  $region18: #{fctr_encoder_forward.3} parent=0 // pred_check
    _
  $region19: #{fctr_encoder_forward.3} parent=0 // pred_check_branch
    %22 = sbr.rel (0) target = $region21
  $region20: #{fctr_encoder_forward.3} parent=0 // pred_region
    _
  $region21: #{fctr_encoder_forward.3} parent=0 // pred_fallthru
    _
  // Predicated region
  $region22: #{fctr_encoder_forward.3} parent=0 // pred_check
    _
  $region23: #{fctr_encoder_forward.3} parent=0 // pred_check_branch
    %24 = sbr.rel (0) target = $region25
  $region24: #{fctr_encoder_forward.3} parent=0 // pred_region
    _
  $region25: #{fctr_encoder_forward.3} parent=0 // pred_fallthru
    _
  %v25 = vld [vmem:[%s0] sm:$0xff]
  %v26 = vld [vmem:[%s0 + $0x8] sm:$0xff]
  %v27 = vld [vmem:[%s0 + $0x10] sm:$0xff]
  %v28 = vld [vmem:[%s0 + $0x18] sm:$0xff]
  %v29 = vld [vmem:[%s0 + $0x20] sm:$0xff]
  %v30 = vld [vmem:[%s0 + $0x28] sm:$0xff]
  %v31 = vld [vmem:[%s0 + $0x30] sm:$0xff]
  %v32 = vld [vmem:[%s0 + $0x38] sm:$0xff]
  %v33 = vld [vmem:[%s0 + $0x40] sm:$0xff]
  %v34 = vld [vmem:[%s0 + $0x48] sm:$0xff]
  %v35 = vld [vmem:[%s0 + $0x50] sm:$0xff]
  %v36 = vld [vmem:[%s0 + $0x58] sm:$0xff]
  %v37 = vld [vmem:[%s0 + $0x60] sm:$0xff]
  %v38 = vld [vmem:[%s0 + $0x68] sm:$0xff]
  %v39 = vld [vmem:[%s0 + $0x70] sm:$0xff]
  %v40 = vld [vmem:[%s0 + $0x78] sm:$0xff]
  %v41 = vld [vmem:[%s1] sm:$0xff]
  %v42 = vld [vmem:[%s1 + $0x8] sm:$0xff]
  %v43 = vld [vmem:[%s1 + $0x10] sm:$0xff]
  %v44 = vld [vmem:[%s1 + $0x18] sm:$0xff]
  %v45 = vld [vmem:[%s1 + $0x20] sm:$0xf]
  %v46 = vld [vmem:[%s2] sm:$0x1]
  %v48 = vperm.slane %v46, 0
  %vm50 = vcmask 293888
  %v52 = vsel %vm50, %v25, 0
  %v55 = vsel %vm50, %v26, 0
  %v58 = vsel %vm50, %v27, 0
  %v61 = vsel %vm50, %v28, 0
  %v64 = vsel %vm50, %v29, 0
  %v67 = vsel %vm50, %v30, 0
  %v70 = vsel %vm50, %v31, 0
  %v73 = vsel %vm50, %v32, 0
  %v76 = vsel %vm50, %v33, 0
  %v79 = vsel %vm50, %v34, 0
  %v82 = vsel %vm50, %v35, 0
  %v85 = vsel %vm50, %v36, 0
  %v88 = vsel %vm50, %v37, 0
  %v91 = vsel %vm50, %v38, 0
  %v94 = vsel %vm50, %v39, 0
  %v97 = vsel %vm50, %v40, 0
  %vm99 = vcmask 1043456
  %v101 = vsel %vm99, %v45, 0
  %103 = vmatpush.msra.mxu0 0.0
  %104 = vmatpush.msra.mxu0 0.0
  %105 = vmatpush.msra.mxu0 0.0
  %106 = vmatpush.msra.mxu0 0.0
  %107 = vmatpush.msra.mxu0 0.0
  %108 = vmatpush.msra.mxu0 0.0
  %109 = vmatpush.msra.mxu0 0.0
  %110 = vmatpush.msra.mxu0 0.0
  %111 = vmatpush.msra.mxu0 0.0
  %112 = vmatpush.msra.mxu0 0.0
  %113 = vmatpush.msra.mxu0 0.0
  %114 = vmatpush.msra.mxu0 %v101
  %115 = vmatpush.msra.mxu0 %v44
  %116 = vmatpush.msra.mxu0 %v43
  %117 = vmatpush.msra.mxu0 %v42
  %118 = vmatpush.msra.mxu0 %v41
  %119 = vmatmul.f32.gmra.mxu0 %v52
  %v120 = vpop.f32.mrf.mxu0
  %v121 = vadd.f32 %v48, %v120
  %122 = vmatmul.f32.gmra.mxu0 %v55
  %v123 = vpop.f32.mrf.mxu0
  %v124 = vadd.f32 %v48, %v123
  %125 = vmatmul.f32.gmra.mxu0 %v58
  %v126 = vpop.f32.mrf.mxu0
  %v127 = vadd.f32 %v48, %v126
  %128 = vmatmul.f32.gmra.mxu0 %v61
  %v129 = vpop.f32.mrf.mxu0
  %v130 = vadd.f32 %v48, %v129
  %131 = vmatmul.f32.gmra.mxu0 %v64
  %v132 = vpop.f32.mrf.mxu0
  %v133 = vadd.f32 %v48, %v132
  %134 = vmatmul.f32.gmra.mxu0 %v67
  %v135 = vpop.f32.mrf.mxu0
  %v136 = vadd.f32 %v48, %v135
  %137 = vmatmul.f32.gmra.mxu0 %v70
  %v138 = vpop.f32.mrf.mxu0
  %v139 = vadd.f32 %v48, %v138
  %140 = vmatmul.f32.gmra.mxu0 %v73
  %v141 = vpop.f32.mrf.mxu0
  %v142 = vadd.f32 %v48, %v141
  %143 = vmatmul.f32.gmra.mxu0 %v76
  %v144 = vpop.f32.mrf.mxu0
  %v145 = vadd.f32 %v48, %v144
  %146 = vmatmul.f32.gmra.mxu0 %v79
  %v147 = vpop.f32.mrf.mxu0
  %v148 = vadd.f32 %v48, %v147
  %149 = vmatmul.f32.gmra.mxu0 %v82
  %v150 = vpop.f32.mrf.mxu0
  %v151 = vadd.f32 %v48, %v150
  %152 = vmatmul.f32.gmra.mxu0 %v85
  %v153 = vpop.f32.mrf.mxu0
  %v154 = vadd.f32 %v48, %v153
  %155 = vmatmul.f32.gmra.mxu0 %v88
  %v156 = vpop.f32.mrf.mxu0
  %v157 = vadd.f32 %v48, %v156
  %158 = vmatmul.f32.gmra.mxu0 %v91
  %v159 = vpop.f32.mrf.mxu0
  %v160 = vadd.f32 %v48, %v159
  %161 = vmatmul.f32.gmra.mxu0 %v94
  %v162 = vpop.f32.mrf.mxu0
  %v163 = vadd.f32 %v48, %v162
  %164 = vmatmul.f32.gmra.mxu0 %v97
  %v165 = vpop.f32.mrf.mxu0
  %v166 = vadd.f32 %v48, %v165
  %167 = vdwg.mxu0
  %v168 = vmax.f32 %v121, 0.0
  %v169 = vmax.f32 %v124, 0.0
  %v170 = vmax.f32 %v127, 0.0
  %v171 = vmax.f32 %v130, 0.0
  %v172 = vmax.f32 %v133, 0.0
  %v173 = vmax.f32 %v136, 0.0
  %v174 = vmax.f32 %v139, 0.0
  %v175 = vmax.f32 %v142, 0.0
  %v176 = vmax.f32 %v145, 0.0
  %v177 = vmax.f32 %v148, 0.0
  %v178 = vmax.f32 %v151, 0.0
  %v179 = vmax.f32 %v154, 0.0
  %v180 = vmax.f32 %v157, 0.0
  %v181 = vmax.f32 %v160, 0.0
  %v182 = vmax.f32 %v163, 0.0
  %v183 = vmax.f32 %v166, 0.0
  %vm184 = vcmask 261120
  %185 = vst.msk [vmem:[%s6] sm:$0xff] %vm184, %v168
  %186 = vst.msk [vmem:[%s6 + $0x8] sm:$0xff] %vm184, %v169
  %187 = vst.msk [vmem:[%s6 + $0x10] sm:$0xff] %vm184, %v170
  %188 = vst.msk [vmem:[%s6 + $0x18] sm:$0xff] %vm184, %v171
  %189 = vst.msk [vmem:[%s6 + $0x20] sm:$0xff] %vm184, %v172
  %190 = vst.msk [vmem:[%s6 + $0x28] sm:$0xff] %vm184, %v173
  %191 = vst.msk [vmem:[%s6 + $0x30] sm:$0xff] %vm184, %v174
  %192 = vst.msk [vmem:[%s6 + $0x38] sm:$0xff] %vm184, %v175
  %193 = vst.msk [vmem:[%s6 + $0x40] sm:$0xff] %vm184, %v176
  %194 = vst.msk [vmem:[%s6 + $0x48] sm:$0xff] %vm184, %v177
  %195 = vst.msk [vmem:[%s6 + $0x50] sm:$0xff] %vm184, %v178
  %196 = vst.msk [vmem:[%s6 + $0x58] sm:$0xff] %vm184, %v179
  %197 = vst.msk [vmem:[%s6 + $0x60] sm:$0xff] %vm184, %v180
  %198 = vst.msk [vmem:[%s6 + $0x68] sm:$0xff] %vm184, %v181
  %199 = vst.msk [vmem:[%s6 + $0x70] sm:$0xff] %vm184, %v182
  %200 = vst.msk [vmem:[%s6 + $0x78] sm:$0xff] %vm184, %v183
  %v201 = vld [vmem:[%s3] sm:$0xff]
  %v202 = vld [vmem:[%s3 + $0x8] sm:$0xff]
  %v203 = vld [vmem:[%s4] sm:$0xff]
  %v204 = vld [vmem:[%s4 + $0x8] sm:$0xff]
  %v205 = vld [vmem:[%s4 + $0x10] sm:$0xff]
  %v206 = vld [vmem:[%s4 + $0x18] sm:$0xff]
  %v207 = vld [vmem:[%s5] sm:$0x1]
  %v209 = vperm.slane %v207, 0
  %v212 = vsel %vm184, %v201, 0
  %v215 = vsel %vm184, %v202, 0
  %217 = vmatpush.msra.mxu0 0.0
  %218 = vmatpush.msra.mxu0 0.0
  %219 = vmatpush.msra.mxu0 0.0
  %220 = vmatpush.msra.mxu0 0.0
  %221 = vmatpush.msra.mxu0 0.0
  %222 = vmatpush.msra.mxu0 0.0
  %223 = vmatpush.msra.mxu0 0.0
  %224 = vmatpush.msra.mxu0 0.0
  %225 = vmatpush.msra.mxu0 0.0
  %226 = vmatpush.msra.mxu0 0.0
  %227 = vmatpush.msra.mxu0 0.0
  %228 = vmatpush.msra.mxu0 0.0
  %229 = vmatpush.msra.mxu0 %v206
  %230 = vmatpush.msra.mxu0 %v205
  %231 = vmatpush.msra.mxu0 %v204
  %232 = vmatpush.msra.mxu0 %v203
  %233 = vmatmul.f32.gmra.mxu0 %v212
  %v234 = vpop.f32.mrf.mxu0
  %v235 = vadd.f32 %v209, %v234
  %236 = vmatmul.f32.gmra.mxu0 %v215
  %v237 = vpop.f32.mrf.mxu0
  %v238 = vadd.f32 %v209, %v237
  %239 = vdwg.mxu0
  %240 = vst.msk [vmem:[%s7] sm:$0xff] %vm184, %v235
  %241 = vst.msk [vmem:[%s7 + $0x8] sm:$0xff] %vm184, %v238
  // Predicated region
  $region26: #{fctr_encoder_forward.3} parent=0 // pred_check
    _
  $region27: #{fctr_encoder_forward.3} parent=0 // pred_check_branch
    %243 = sbr.rel (0) target = $region29
  $region28: #{fctr_encoder_forward.3} parent=0 // pred_region
    _
  $region29: #{fctr_encoder_forward.3} parent=0 // pred_fallthru
    _
  // Predicated region
  $region30: #{fctr_encoder_forward.3} parent=0 // pred_check
    _
  $region31: #{fctr_encoder_forward.3} parent=0 // pred_check_branch
    %245 = sbr.rel (0) target = $region33
  $region32: #{fctr_encoder_forward.3} parent=0 // pred_region
    _
  $region33: #{fctr_encoder_forward.3} parent=0 // pred_fallthru
    _
  // Predicated region
  $region34: #{fctr_encoder_forward.3} parent=0 // pred_check
    _
  $region35: #{fctr_encoder_forward.3} parent=0 // pred_check_branch
    %247 = sbr.rel (0) target = $region37
  $region36: #{fctr_encoder_forward.3} parent=0 // pred_region
    _
  $region37: #{fctr_encoder_forward.3} parent=0 // pred_fallthru
    _
  // Predicated region
  $region38: #{fctr_encoder_forward.3} parent=0 // pred_check
    _
  $region39: #{fctr_encoder_forward.3} parent=0 // pred_check_branch
    %249 = sbr.rel (0) target = $region41
  $region40: #{fctr_encoder_forward.3} parent=0 // pred_region
    _
  $region41: #{fctr_encoder_forward.3} parent=0 // pred_fallthru
    _

// kernel: fctr_encoder_forward.5
$region0: #{fctr_encoder_forward.5}
  #allocation0 [shape = 'u32[]', space=smem, size = 0x4, offset = 0x4, fixed_abs, tag = 'smem constant byte address 0x4 - core index']
  #allocation1 [shape = 'u32[72,128]{1,0:T(1,128)}', space=vmem, size = 0x9000, scoped, tag = 'internal scratch']
  %s0 = inlined_call_operand.vmem [shape: f32[16,32], index: 0, kind: input, shape index: {}]
  %s1 = inlined_call_operand.vmem [shape: f32[16,32], index: 1, kind: input, shape index: {}]
  %s2 = inlined_call_operand.vmem [shape: f32[144,32], index: 2, kind: input, shape index: {}]
  %s3 = inlined_call_operand.vmem [shape: f32[144,32], index: 3, kind: input, shape index: {}]
  %s4 = inlined_call_operand.vmem [shape: f32[2,72], index: 4, kind: input, shape index: {}]
  %s5 = inlined_call_operand.vmem [shape: f32[32,64], index: 5, kind: input, shape index: {}]
  %s6 = inlined_call_operand.vmem [shape: f32[1,64], index: 6, kind: input, shape index: {}]
  %s7 = inlined_call_operand.vmem [shape: f32[32,64], index: 7, kind: input, shape index: {}]
  %s8 = inlined_call_operand.vmem [shape: f32[1,64], index: 8, kind: input, shape index: {}]
  %s9 = inlined_call_operand.vmem [shape: f32[32,64], index: 9, kind: input, shape index: {}]
  %s10 = inlined_call_operand.vmem [shape: f32[1,64], index: 10, kind: input, shape index: {}]
  %s11 = inlined_call_operand.vmem [shape: f32[32,32], index: 11, kind: input, shape index: {}]
  %s12 = inlined_call_operand.vmem [shape: f32[1,32], index: 12, kind: input, shape index: {}]
  %s13 = inlined_call_operand.vmem [shape: f32[32,32], index: 13, kind: input, shape index: {}]
  %s14 = inlined_call_operand.vmem [shape: f32[1,32], index: 14, kind: input, shape index: {}]
  %s15 = inlined_call_operand.vmem [shape: f32[1,32], index: 15, kind: input, shape index: {}]
  %s16 = inlined_call_operand.vmem [shape: f32[1,32], index: 16, kind: input, shape index: {}]
  %s17 = inlined_call_operand.vmem [shape: f32[1,32], index: 17, kind: input, shape index: {}]
  %s18 = inlined_call_operand.vmem [shape: f32[1,32], index: 18, kind: input, shape index: {}]
  %s19 = inlined_call_operand.vmem [shape: f32[16,32], index: 19, kind: output, shape index: {0}]
  %s20 = inlined_call_operand.vmem [shape: f32[16,32], index: 20, kind: output, shape index: {1}]
  %21 = xla_tuple %s19, %s20
  %s22 = sld [smem:[#allocation0]]
  $region94: #{fctr_encoder_forward.5} parent=0
    _
  %s24 = ssub.s32 1, %s22
  %s25 = scalar_select 0, %s24, %s22
  // Predicated region
  $region2: #{fctr_encoder_forward.5} parent=0 // pred_check
    _
  $region3: #{fctr_encoder_forward.5} parent=0 // pred_check_branch
    %27 = sbr.rel (0) target = $region5
  $region4: #{fctr_encoder_forward.5} parent=0 // pred_region
    _
  $region5: #{fctr_encoder_forward.5} parent=0 // pred_fallthru
    _
  // Predicated region
  $region6: #{fctr_encoder_forward.5} parent=0 // pred_check
    _
  $region7: #{fctr_encoder_forward.5} parent=0 // pred_check_branch
    %29 = sbr.rel (0) target = $region9
  $region8: #{fctr_encoder_forward.5} parent=0 // pred_region
    _
  $region9: #{fctr_encoder_forward.5} parent=0 // pred_fallthru
    _
  // Predicated region
  $region10: #{fctr_encoder_forward.5} parent=0 // pred_check
    _
  $region11: #{fctr_encoder_forward.5} parent=0 // pred_check_branch
    %31 = sbr.rel (0) target = $region13
  $region12: #{fctr_encoder_forward.5} parent=0 // pred_region
    _
  $region13: #{fctr_encoder_forward.5} parent=0 // pred_fallthru
    _
  // Predicated region
  $region14: #{fctr_encoder_forward.5} parent=0 // pred_check
    _
  $region15: #{fctr_encoder_forward.5} parent=0 // pred_check_branch
    %33 = sbr.rel (0) target = $region17
  $region16: #{fctr_encoder_forward.5} parent=0 // pred_region
    _
  $region17: #{fctr_encoder_forward.5} parent=0 // pred_fallthru
    _
  // Predicated region
  $region18: #{fctr_encoder_forward.5} parent=0 // pred_check
    _
  $region19: #{fctr_encoder_forward.5} parent=0 // pred_check_branch
    %35 = sbr.rel (0) target = $region21
  $region20: #{fctr_encoder_forward.5} parent=0 // pred_region
    _
  $region21: #{fctr_encoder_forward.5} parent=0 // pred_fallthru
    _
  // Predicated region
  $region22: #{fctr_encoder_forward.5} parent=0 // pred_check
    _
  $region23: #{fctr_encoder_forward.5} parent=0 // pred_check_branch
    %37 = sbr.rel (0) target = $region25
  $region24: #{fctr_encoder_forward.5} parent=0 // pred_region
    _
  $region25: #{fctr_encoder_forward.5} parent=0 // pred_fallthru
    _
  // Predicated region
  $region26: #{fctr_encoder_forward.5} parent=0 // pred_check
    _
  $region27: #{fctr_encoder_forward.5} parent=0 // pred_check_branch
    %39 = sbr.rel (0) target = $region29
  $region28: #{fctr_encoder_forward.5} parent=0 // pred_region
    _
  $region29: #{fctr_encoder_forward.5} parent=0 // pred_fallthru
    _
  // Predicated region
  $region30: #{fctr_encoder_forward.5} parent=0 // pred_check
    _
  $region31: #{fctr_encoder_forward.5} parent=0 // pred_check_branch
    %41 = sbr.rel (0) target = $region33
  $region32: #{fctr_encoder_forward.5} parent=0 // pred_region
    _
  $region33: #{fctr_encoder_forward.5} parent=0 // pred_fallthru
    _
  // Predicated region
  $region34: #{fctr_encoder_forward.5} parent=0 // pred_check
    _
  $region35: #{fctr_encoder_forward.5} parent=0 // pred_check_branch
    %43 = sbr.rel (0) target = $region37
  $region36: #{fctr_encoder_forward.5} parent=0 // pred_region
    _
  $region37: #{fctr_encoder_forward.5} parent=0 // pred_fallthru
    _
  // Predicated region
  $region38: #{fctr_encoder_forward.5} parent=0 // pred_check
    _
  $region39: #{fctr_encoder_forward.5} parent=0 // pred_check_branch
    %45 = sbr.rel (0) target = $region41
  $region40: #{fctr_encoder_forward.5} parent=0 // pred_region
    _
  $region41: #{fctr_encoder_forward.5} parent=0 // pred_fallthru
    _
  // Predicated region
  $region42: #{fctr_encoder_forward.5} parent=0 // pred_check
    _
  $region43: #{fctr_encoder_forward.5} parent=0 // pred_check_branch
    %47 = sbr.rel (0) target = $region45
  $region44: #{fctr_encoder_forward.5} parent=0 // pred_region
    _
  $region45: #{fctr_encoder_forward.5} parent=0 // pred_fallthru
    _
  // Predicated region
  $region46: #{fctr_encoder_forward.5} parent=0 // pred_check
    _
  $region47: #{fctr_encoder_forward.5} parent=0 // pred_check_branch
    %49 = sbr.rel (0) target = $region49
  $region48: #{fctr_encoder_forward.5} parent=0 // pred_region
    _
  $region49: #{fctr_encoder_forward.5} parent=0 // pred_fallthru
    _
  // Predicated region
  $region50: #{fctr_encoder_forward.5} parent=0 // pred_check
    _
  $region51: #{fctr_encoder_forward.5} parent=0 // pred_check_branch
    %51 = sbr.rel (0) target = $region53
  $region52: #{fctr_encoder_forward.5} parent=0 // pred_region
    _
  $region53: #{fctr_encoder_forward.5} parent=0 // pred_fallthru
    _
  // Predicated region
  $region54: #{fctr_encoder_forward.5} parent=0 // pred_check
    _
  $region55: #{fctr_encoder_forward.5} parent=0 // pred_check_branch
    %53 = sbr.rel (0) target = $region57
  $region56: #{fctr_encoder_forward.5} parent=0 // pred_region
    _
  $region57: #{fctr_encoder_forward.5} parent=0 // pred_fallthru
    _
  // Predicated region
  $region58: #{fctr_encoder_forward.5} parent=0 // pred_check
    _
  $region59: #{fctr_encoder_forward.5} parent=0 // pred_check_branch
    %55 = sbr.rel (0) target = $region61
  $region60: #{fctr_encoder_forward.5} parent=0 // pred_region
    _
  $region61: #{fctr_encoder_forward.5} parent=0 // pred_fallthru
    _
  // Predicated region
  $region62: #{fctr_encoder_forward.5} parent=0 // pred_check
    _
  $region63: #{fctr_encoder_forward.5} parent=0 // pred_check_branch
    %57 = sbr.rel (0) target = $region65
  $region64: #{fctr_encoder_forward.5} parent=0 // pred_region
    _
  $region65: #{fctr_encoder_forward.5} parent=0 // pred_fallthru
    _
  // Predicated region
  $region66: #{fctr_encoder_forward.5} parent=0 // pred_check
    _
  $region67: #{fctr_encoder_forward.5} parent=0 // pred_check_branch
    %59 = sbr.rel (0) target = $region69
  $region68: #{fctr_encoder_forward.5} parent=0 // pred_region
    _
  $region69: #{fctr_encoder_forward.5} parent=0 // pred_fallthru
    _
  // Predicated region
  $region70: #{fctr_encoder_forward.5} parent=0 // pred_check
    _
  $region71: #{fctr_encoder_forward.5} parent=0 // pred_check_branch
    %61 = sbr.rel (0) target = $region73
  $region72: #{fctr_encoder_forward.5} parent=0 // pred_region
    _
  $region73: #{fctr_encoder_forward.5} parent=0 // pred_fallthru
    _
  // Predicated region
  $region74: #{fctr_encoder_forward.5} parent=0 // pred_check
    _
  $region75: #{fctr_encoder_forward.5} parent=0 // pred_check_branch
    %63 = sbr.rel (0) target = $region77
  $region76: #{fctr_encoder_forward.5} parent=0 // pred_region
    _
  $region77: #{fctr_encoder_forward.5} parent=0 // pred_fallthru
    _
  %v64 = vld [vmem:[%s0] sm:$0xff]
  %v65 = vld [vmem:[%s0 + $0x8] sm:$0xff]
  %v66 = vld [vmem:[%s2] sm:$0xff]
  %v67 = vld [vmem:[%s2 + $0x8] sm:$0xff]
  %v68 = vld [vmem:[%s2 + $0x10] sm:$0xff]
  %v69 = vld [vmem:[%s2 + $0x18] sm:$0xff]
  %v70 = vld [vmem:[%s2 + $0x20] sm:$0xff]
  %v71 = vld [vmem:[%s2 + $0x28] sm:$0xff]
  %v72 = vld [vmem:[%s2 + $0x30] sm:$0xff]
  %v73 = vld [vmem:[%s2 + $0x38] sm:$0xff]
  %v74 = vld [vmem:[%s2 + $0x40] sm:$0xff]
  %v75 = vld [vmem:[%s2 + $0x48] sm:$0xff]
  %v76 = vld [vmem:[%s2 + $0x50] sm:$0xff]
  %v77 = vld [vmem:[%s2 + $0x58] sm:$0xff]
  %v78 = vld [vmem:[%s2 + $0x60] sm:$0xff]
  %v79 = vld [vmem:[%s2 + $0x68] sm:$0xff]
  %v80 = vld [vmem:[%s2 + $0x70] sm:$0xff]
  %v81 = vld [vmem:[%s2 + $0x78] sm:$0xff]
  %v82 = vld [vmem:[%s2 + $0x80] sm:$0xff]
  %v83 = vld [vmem:[%s2 + $0x88] sm:$0xff]
  %v84 = vld [vmem:[%s1] sm:$0xff]
  %v85 = vld [vmem:[%s1 + $0x8] sm:$0xff]
  %v86 = vadd.f32 %v64, %v84
  %v87 = vadd.f32 %v65, %v85
  %v88 = vld [vmem:[%s3] sm:$0xff]
  %v89 = vld [vmem:[%s3 + $0x8] sm:$0xff]
  %v90 = vld [vmem:[%s3 + $0x10] sm:$0xff]
  %v91 = vld [vmem:[%s3 + $0x18] sm:$0xff]
  %v92 = vld [vmem:[%s3 + $0x20] sm:$0xff]
  %v93 = vld [vmem:[%s3 + $0x28] sm:$0xff]
  %v94 = vld [vmem:[%s3 + $0x30] sm:$0xff]
  %v95 = vld [vmem:[%s3 + $0x38] sm:$0xff]
  %v96 = vld [vmem:[%s3 + $0x40] sm:$0xff]
  %v97 = vld [vmem:[%s3 + $0x48] sm:$0xff]
  %v98 = vld [vmem:[%s3 + $0x50] sm:$0xff]
  %v99 = vld [vmem:[%s3 + $0x58] sm:$0xff]
  %v100 = vld [vmem:[%s3 + $0x60] sm:$0xff]
  %v101 = vld [vmem:[%s3 + $0x68] sm:$0xff]
  %v102 = vld [vmem:[%s3 + $0x70] sm:$0xff]
  %v103 = vld [vmem:[%s3 + $0x78] sm:$0xff]
  %v104 = vld [vmem:[%s3 + $0x80] sm:$0xff]
  %v105 = vld [vmem:[%s3 + $0x88] sm:$0xff]
  %v106 = vadd.f32 %v66, %v88
  %v107 = vadd.f32 %v67, %v89
  %v108 = vadd.f32 %v68, %v90
  %v109 = vadd.f32 %v69, %v91
  %v110 = vadd.f32 %v70, %v92
  %v111 = vadd.f32 %v71, %v93
  %v112 = vadd.f32 %v72, %v94
  %v113 = vadd.f32 %v73, %v95
  %v114 = vadd.f32 %v74, %v96
  %v115 = vadd.f32 %v75, %v97
  %v116 = vadd.f32 %v76, %v98
  %v117 = vadd.f32 %v77, %v99
  %v118 = vadd.f32 %v78, %v100
  %v119 = vadd.f32 %v79, %v101
  %v120 = vadd.f32 %v80, %v102
  %v121 = vadd.f32 %v81, %v103
  %v122 = vadd.f32 %v82, %v104
  %v123 = vadd.f32 %v83, %v105
  %v124 = vld [vmem:[%s5] sm:$0xff]
  %v125 = vld [vmem:[%s5 + $0x8] sm:$0xff]
  %v126 = vld [vmem:[%s5 + $0x10] sm:$0xff]
  %v127 = vld [vmem:[%s5 + $0x18] sm:$0xff]
  %v128 = vld [vmem:[%s6] sm:$0x1]
  %v130 = vperm.slane %v128, 0
  %vm132 = vcmask 261120
  %v134 = vsel %vm132, %v86, 0
  %v137 = vsel %vm132, %v87, 0
  %139 = vmatpush.msra.mxu0 0.0
  %140 = vmatpush.msra.mxu0 0.0
  %141 = vmatpush.msra.mxu0 0.0
  %142 = vmatpush.msra.mxu0 0.0
  %143 = vmatpush.msra.mxu0 0.0
  %144 = vmatpush.msra.mxu0 0.0
  %145 = vmatpush.msra.mxu0 0.0
  %146 = vmatpush.msra.mxu0 0.0
  %147 = vmatpush.msra.mxu0 0.0
  %148 = vmatpush.msra.mxu0 0.0
  %149 = vmatpush.msra.mxu0 0.0
  %150 = vmatpush.msra.mxu0 0.0
  %151 = vmatpush.msra.mxu0 %v127
  %152 = vmatpush.msra.mxu0 %v126
  %153 = vmatpush.msra.mxu0 %v125
  %154 = vmatpush.msra.mxu0 %v124
  %155 = vmatmul.f32.gmra.mxu0 %v134
  %v156 = vpop.f32.mrf.mxu0
  %v157 = vadd.f32 %v130, %v156
  %158 = vmatmul.f32.gmra.mxu0 %v137
  %v159 = vpop.f32.mrf.mxu0
  %v160 = vadd.f32 %v130, %v159
  %161 = vdwg.mxu0
  %v162 = vld [vmem:[%s7] sm:$0xff]
  %v163 = vld [vmem:[%s7 + $0x8] sm:$0xff]
  %v164 = vld [vmem:[%s7 + $0x10] sm:$0xff]
  %v165 = vld [vmem:[%s7 + $0x18] sm:$0xff]
  %v166 = vld [vmem:[%s8] sm:$0x1]
  %v168 = vperm.slane %v166, 0
  %v171 = vsel %vm132, %v106, 0
  %v174 = vsel %vm132, %v107, 0
  %v177 = vsel %vm132, %v108, 0
  %v180 = vsel %vm132, %v109, 0
  %v183 = vsel %vm132, %v110, 0
  %v186 = vsel %vm132, %v111, 0
  %v189 = vsel %vm132, %v112, 0
  %v192 = vsel %vm132, %v113, 0
  %v195 = vsel %vm132, %v114, 0
  %v198 = vsel %vm132, %v115, 0
  %v201 = vsel %vm132, %v116, 0
  %v204 = vsel %vm132, %v117, 0
  %v207 = vsel %vm132, %v118, 0
  %v210 = vsel %vm132, %v119, 0
  %v213 = vsel %vm132, %v120, 0
  %v216 = vsel %vm132, %v121, 0
  %v219 = vsel %vm132, %v122, 0
  %v222 = vsel %vm132, %v123, 0
  %224 = vmatpush.msra.mxu0 0.0
  %225 = vmatpush.msra.mxu0 0.0
  %226 = vmatpush.msra.mxu0 0.0
  %227 = vmatpush.msra.mxu0 0.0
  %228 = vmatpush.msra.mxu0 0.0
  %229 = vmatpush.msra.mxu0 0.0
  %230 = vmatpush.msra.mxu0 0.0
  %231 = vmatpush.msra.mxu0 0.0
  %232 = vmatpush.msra.mxu0 0.0
  %233 = vmatpush.msra.mxu0 0.0
  %234 = vmatpush.msra.mxu0 0.0
  %235 = vmatpush.msra.mxu0 0.0
  %236 = vmatpush.msra.mxu0 %v165
  %237 = vmatpush.msra.mxu0 %v164
  %238 = vmatpush.msra.mxu0 %v163
  %239 = vmatpush.msra.mxu0 %v162
  %240 = vmatmul.f32.gmra.mxu0 %v171
  %v241 = vpop.f32.mrf.mxu0
  %v242 = vadd.f32 %v168, %v241
  %243 = vmatmul.f32.gmra.mxu0 %v174
  %v244 = vpop.f32.mrf.mxu0
  %v245 = vadd.f32 %v168, %v244
  %246 = vmatmul.f32.gmra.mxu0 %v177
  %v247 = vpop.f32.mrf.mxu0
  %v248 = vadd.f32 %v168, %v247
  %249 = vmatmul.f32.gmra.mxu0 %v180
  %v250 = vpop.f32.mrf.mxu0
  %v251 = vadd.f32 %v168, %v250
  %252 = vmatmul.f32.gmra.mxu0 %v183
  %v253 = vpop.f32.mrf.mxu0
  %v254 = vadd.f32 %v168, %v253
  %255 = vmatmul.f32.gmra.mxu0 %v186
  %v256 = vpop.f32.mrf.mxu0
  %v257 = vadd.f32 %v168, %v256
  %258 = vmatmul.f32.gmra.mxu0 %v189
  %v259 = vpop.f32.mrf.mxu0
  %v260 = vadd.f32 %v168, %v259
  %261 = vmatmul.f32.gmra.mxu0 %v192
  %v262 = vpop.f32.mrf.mxu0
  %v263 = vadd.f32 %v168, %v262
  %264 = vmatmul.f32.gmra.mxu0 %v195
  %v265 = vpop.f32.mrf.mxu0
  %v266 = vadd.f32 %v168, %v265
  %267 = vmatmul.f32.gmra.mxu0 %v198
  %v268 = vpop.f32.mrf.mxu0
  %v269 = vadd.f32 %v168, %v268
  %270 = vmatmul.f32.gmra.mxu0 %v201
  %v271 = vpop.f32.mrf.mxu0
  %v272 = vadd.f32 %v168, %v271
  %273 = vmatmul.f32.gmra.mxu0 %v204
  %v274 = vpop.f32.mrf.mxu0
  %v275 = vadd.f32 %v168, %v274
  %276 = vmatmul.f32.gmra.mxu0 %v207
  %v277 = vpop.f32.mrf.mxu0
  %v278 = vadd.f32 %v168, %v277
  %279 = vmatmul.f32.gmra.mxu0 %v210
  %v280 = vpop.f32.mrf.mxu0
  %v281 = vadd.f32 %v168, %v280
  %282 = vmatmul.f32.gmra.mxu0 %v213
  %v283 = vpop.f32.mrf.mxu0
  %v284 = vadd.f32 %v168, %v283
  %285 = vmatmul.f32.gmra.mxu0 %v216
  %v286 = vpop.f32.mrf.mxu0
  %v287 = vadd.f32 %v168, %v286
  %288 = vmatmul.f32.gmra.mxu0 %v219
  %v289 = vpop.f32.mrf.mxu0
  %v290 = vadd.f32 %v168, %v289
  %291 = vmatmul.f32.gmra.mxu0 %v222
  %v292 = vpop.f32.mrf.mxu0
  %v293 = vadd.f32 %v168, %v292
  %294 = vdwg.mxu0
  %v295 = vld [vmem:[%s9] sm:$0xff]
  %v296 = vld [vmem:[%s9 + $0x8] sm:$0xff]
  %v297 = vld [vmem:[%s9 + $0x10] sm:$0xff]
  %v298 = vld [vmem:[%s9 + $0x18] sm:$0xff]
  %v299 = vld [vmem:[%s10] sm:$0x1]
  %v301 = vperm.slane %v299, 0
  %v304 = vsel %vm132, %v66, 0
  %v307 = vsel %vm132, %v67, 0
  %v310 = vsel %vm132, %v68, 0
  %v313 = vsel %vm132, %v69, 0
  %v316 = vsel %vm132, %v70, 0
  %v319 = vsel %vm132, %v71, 0
  %v322 = vsel %vm132, %v72, 0
  %v325 = vsel %vm132, %v73, 0
  %v328 = vsel %vm132, %v74, 0
  %v331 = vsel %vm132, %v75, 0
  %v334 = vsel %vm132, %v76, 0
  %v337 = vsel %vm132, %v77, 0
  %v340 = vsel %vm132, %v78, 0
  %v343 = vsel %vm132, %v79, 0
  %v346 = vsel %vm132, %v80, 0
  %v349 = vsel %vm132, %v81, 0
  %v352 = vsel %vm132, %v82, 0
  %v355 = vsel %vm132, %v83, 0
  %357 = vmatpush.msra.mxu0 0.0
  %358 = vmatpush.msra.mxu0 0.0
  %359 = vmatpush.msra.mxu0 0.0
  %360 = vmatpush.msra.mxu0 0.0
  %361 = vmatpush.msra.mxu0 0.0
  %362 = vmatpush.msra.mxu0 0.0
  %363 = vmatpush.msra.mxu0 0.0
  %364 = vmatpush.msra.mxu0 0.0
  %365 = vmatpush.msra.mxu0 0.0
  %366 = vmatpush.msra.mxu0 0.0
  %367 = vmatpush.msra.mxu0 0.0
  %368 = vmatpush.msra.mxu0 0.0
  %369 = vmatpush.msra.mxu0 %v298
  %370 = vmatpush.msra.mxu0 %v297
  %371 = vmatpush.msra.mxu0 %v296
  %372 = vmatpush.msra.mxu0 %v295
  %373 = vmatmul.f32.gmra.mxu0 %v304
  %v374 = vpop.f32.mrf.mxu0
  %v375 = vadd.f32 %v301, %v374
  %376 = vmatmul.f32.gmra.mxu0 %v307
  %v377 = vpop.f32.mrf.mxu0
  %v378 = vadd.f32 %v301, %v377
  %379 = vmatmul.f32.gmra.mxu0 %v310
  %v380 = vpop.f32.mrf.mxu0
  %v381 = vadd.f32 %v301, %v380
  %382 = vmatmul.f32.gmra.mxu0 %v313
  %v383 = vpop.f32.mrf.mxu0
  %v384 = vadd.f32 %v301, %v383
  %385 = vmatmul.f32.gmra.mxu0 %v316
  %v386 = vpop.f32.mrf.mxu0
  %v387 = vadd.f32 %v301, %v386
  %388 = vmatmul.f32.gmra.mxu0 %v319
  %v389 = vpop.f32.mrf.mxu0
  %v390 = vadd.f32 %v301, %v389
  %391 = vmatmul.f32.gmra.mxu0 %v322
  %v392 = vpop.f32.mrf.mxu0
  %v393 = vadd.f32 %v301, %v392
  %394 = vmatmul.f32.gmra.mxu0 %v325
  %v395 = vpop.f32.mrf.mxu0
  %v396 = vadd.f32 %v301, %v395
  %397 = vmatmul.f32.gmra.mxu0 %v328
  %v398 = vpop.f32.mrf.mxu0
  %v399 = vadd.f32 %v301, %v398
  %400 = vmatmul.f32.gmra.mxu0 %v331
  %v401 = vpop.f32.mrf.mxu0
  %v402 = vadd.f32 %v301, %v401
  %403 = vmatmul.f32.gmra.mxu0 %v334
  %v404 = vpop.f32.mrf.mxu0
  %v405 = vadd.f32 %v301, %v404
  %406 = vmatmul.f32.gmra.mxu0 %v337
  %v407 = vpop.f32.mrf.mxu0
  %v408 = vadd.f32 %v301, %v407
  %409 = vmatmul.f32.gmra.mxu0 %v340
  %v410 = vpop.f32.mrf.mxu0
  %v411 = vadd.f32 %v301, %v410
  %412 = vmatmul.f32.gmra.mxu0 %v343
  %v413 = vpop.f32.mrf.mxu0
  %v414 = vadd.f32 %v301, %v413
  %415 = vmatmul.f32.gmra.mxu0 %v346
  %v416 = vpop.f32.mrf.mxu0
  %v417 = vadd.f32 %v301, %v416
  %418 = vmatmul.f32.gmra.mxu0 %v349
  %v419 = vpop.f32.mrf.mxu0
  %v420 = vadd.f32 %v301, %v419
  %421 = vmatmul.f32.gmra.mxu0 %v352
  %v422 = vpop.f32.mrf.mxu0
  %v423 = vadd.f32 %v301, %v422
  %424 = vmatmul.f32.gmra.mxu0 %v355
  %v425 = vpop.f32.mrf.mxu0
  %v426 = vadd.f32 %v301, %v425
  %427 = vdwg.mxu0
  %v428 = vld [vmem:[%s4] sm:$0x3]
  %vm429 = vcmask 64512
  %v431 = vsel %vm429, %v157, 0
  %v434 = vsel %vm429, %v242, 0
  %v437 = vsel %vm429, %v245, 0
  %v440 = vsel %vm429, %v248, 0
  %v443 = vsel %vm429, %v251, 0
  %v446 = vsel %vm429, %v254, 0
  %v449 = vsel %vm429, %v257, 0
  %v452 = vsel %vm429, %v260, 0
  %v455 = vsel %vm429, %v263, 0
  %v458 = vsel %vm429, %v266, 0
  %460 = vmatpush.xpose.msra.mxu0 0.0
  %461 = vmatpush.xpose.msra.mxu0 0.0
  %462 = vmatpush.xpose.msra.mxu0 0.0
  %463 = vmatpush.xpose.msra.mxu0 0.0
  %464 = vmatpush.xpose.msra.mxu0 0.0
  %465 = vmatpush.xpose.msra.mxu0 0.0
  %466 = vmatpush.xpose.msra.mxu0 0.0
  %467 = vmatpush.xpose.msra.mxu0 %v458
  %468 = vmatpush.xpose.msra.mxu0 %v455
  %469 = vmatpush.xpose.msra.mxu0 %v452
  %470 = vmatpush.xpose.msra.mxu0 %v449
  %471 = vmatpush.xpose.msra.mxu0 %v446
  %472 = vmatpush.xpose.msra.mxu0 %v443
  %473 = vmatpush.xpose.msra.mxu0 %v440
  %474 = vmatpush.xpose.msra.mxu0 %v437
  %475 = vmatpush.xpose.msra.mxu0 %v434
  %476 = vmatmul.f32.gmra.mxu0 %v431
  %v477 = vpop.f32.mrf.mxu0
  %v478 = vadd.f32 0.0, %v477
  %479 = vdwg.mxu0
  %v480 = vmul.f32 %v478, 0.35355338
  %v481 = vperm.slane %v428, 0
  %v482 = vadd.f32 %v480, %v481
  %vm483 = vcmask 588800
  %v484 = vsel %vm483, %v482, -inf
  %485 = vmax.xlane.f32.xlu0 %v484
  %v486 = vpop.xlane.xlu0 %485
  %v487 = vsub.f32 %v482, %v486
  %v488 = vmul.f32 %v487, 1.442695
  %v489 = vpow.pop %v488
  %v490 = vsel %vm483, %v489, 0.0
  %491 = vadd.xlane.f32.xlu0 %v490
  %v492 = vpop.xlane.xlu0 %491
  %v493 = vrcp.pop %v492
  %v494 = vmul.f32 %v489, %v493
  %v496 = vsel %vm483, %v494, 0
  %498 = vmatpush.msra.mxu0 0.0
  %499 = vmatpush.msra.mxu0 0.0
  %500 = vmatpush.msra.mxu0 0.0
  %501 = vmatpush.msra.mxu0 0.0
  %502 = vmatpush.msra.mxu0 0.0
  %503 = vmatpush.msra.mxu0 0.0
  %504 = vmatpush.msra.mxu0 0.0
  %505 = vmatpush.msra.mxu0 %v399
  %506 = vmatpush.msra.mxu0 %v396
  %507 = vmatpush.msra.mxu0 %v393
  %508 = vmatpush.msra.mxu0 %v390
  %509 = vmatpush.msra.mxu0 %v387
  %510 = vmatpush.msra.mxu0 %v384
  %511 = vmatpush.msra.mxu0 %v381
  %512 = vmatpush.msra.mxu0 %v378
  %513 = vmatpush.msra.mxu0 %v375
  %514 = vmatmul.f32.gmra.mxu0 %v496
  %v515 = vpop.f32.mrf.mxu0
  %v516 = vadd.f32 0.0, %v515
  %517 = vdwg.mxu0
  %518 = vrot.lane.b32.xlu0 %v157, 120
  %v519 = vpop.permute.xlu0 %518
  %520 = vrot.lane.b32.xlu0 %v242, 120
  %v521 = vpop.permute.xlu0 %520
  %522 = vrot.lane.b32.xlu0 %v245, 120
  %v523 = vpop.permute.xlu0 %522
  %524 = vrot.lane.b32.xlu0 %v248, 120
  %v525 = vpop.permute.xlu0 %524
  %526 = vrot.lane.b32.xlu0 %v251, 120
  %v527 = vpop.permute.xlu0 %526
  %528 = vrot.lane.b32.xlu0 %v254, 120
  %v529 = vpop.permute.xlu0 %528
  %530 = vrot.lane.b32.xlu0 %v257, 120
  %v531 = vpop.permute.xlu0 %530
  %532 = vrot.lane.b32.xlu0 %v260, 120
  %v533 = vpop.permute.xlu0 %532
  %534 = vrot.lane.b32.xlu0 %v263, 120
  %v535 = vpop.permute.xlu0 %534
  %536 = vrot.lane.b32.xlu0 %v266, 120
  %v537 = vpop.permute.xlu0 %536
  %v538 = vsel %vm429, %v519, 0
  %v540 = vsel %vm429, %v521, 0
  %v542 = vsel %vm429, %v523, 0
  %v544 = vsel %vm429, %v525, 0
  %v546 = vsel %vm429, %v527, 0
  %v548 = vsel %vm429, %v529, 0
  %v550 = vsel %vm429, %v531, 0
  %v552 = vsel %vm429, %v533, 0
  %v554 = vsel %vm429, %v535, 0
  %v556 = vsel %vm429, %v537, 0
  %558 = vmatpush.xpose.msra.mxu0 0.0
  %559 = vmatpush.xpose.msra.mxu0 0.0
  %560 = vmatpush.xpose.msra.mxu0 0.0
  %561 = vmatpush.xpose.msra.mxu0 0.0
  %562 = vmatpush.xpose.msra.mxu0 0.0
  %563 = vmatpush.xpose.msra.mxu0 0.0
  %564 = vmatpush.xpose.msra.mxu0 0.0
  %565 = vmatpush.xpose.msra.mxu0 %v556
  %566 = vmatpush.xpose.msra.mxu0 %v554
  %567 = vmatpush.xpose.msra.mxu0 %v552
  %568 = vmatpush.xpose.msra.mxu0 %v550
  %569 = vmatpush.xpose.msra.mxu0 %v548
  %570 = vmatpush.xpose.msra.mxu0 %v546
  %571 = vmatpush.xpose.msra.mxu0 %v544
  %572 = vmatpush.xpose.msra.mxu0 %v542
  %573 = vmatpush.xpose.msra.mxu0 %v540
  %574 = vmatmul.f32.gmra.mxu0 %v538
  %v575 = vpop.f32.mrf.mxu0
  %v576 = vadd.f32 0.0, %v575
  %577 = vdwg.mxu0
  %v578 = vmul.f32 %v576, 0.35355338
  %v579 = vadd.f32 %v578, %v481
  %v580 = vsel %vm483, %v579, -inf
  %581 = vmax.xlane.f32.xlu0 %v580
  %v582 = vpop.xlane.xlu0 %581
  %v583 = vsub.f32 %v579, %v582
  %v584 = vmul.f32 %v583, 1.442695
  %v585 = vpow.pop %v584
  %v586 = vsel %vm483, %v585, 0.0
  %587 = vadd.xlane.f32.xlu0 %v586
  %v588 = vpop.xlane.xlu0 %587
  %v589 = vrcp.pop %v588
  %v590 = vmul.f32 %v585, %v589
  %600 = vrot.lane.b32.xlu0 %v375, 120
  %v601 = vpop.permute.xlu0 %600
  %602 = vrot.lane.b32.xlu0 %v378, 120
  %v603 = vpop.permute.xlu0 %602
  %604 = vrot.lane.b32.xlu0 %v381, 120
  %v605 = vpop.permute.xlu0 %604
  %606 = vrot.lane.b32.xlu0 %v384, 120
  %v607 = vpop.permute.xlu0 %606
  %608 = vrot.lane.b32.xlu0 %v387, 120
  %v609 = vpop.permute.xlu0 %608
  %610 = vrot.lane.b32.xlu0 %v390, 120
  %v611 = vpop.permute.xlu0 %610
  %612 = vrot.lane.b32.xlu0 %v393, 120
  %v613 = vpop.permute.xlu0 %612
  %614 = vrot.lane.b32.xlu0 %v396, 120
  %v615 = vpop.permute.xlu0 %614
  %616 = vrot.lane.b32.xlu0 %v399, 120
  %v617 = vpop.permute.xlu0 %616
  %v628 = vsel %vm483, %v590, 0
  %630 = vmatpush.msra.mxu0 0.0
  %631 = vmatpush.msra.mxu0 0.0
  %632 = vmatpush.msra.mxu0 0.0
  %633 = vmatpush.msra.mxu0 0.0
  %634 = vmatpush.msra.mxu0 0.0
  %635 = vmatpush.msra.mxu0 0.0
  %636 = vmatpush.msra.mxu0 0.0
  %637 = vmatpush.msra.mxu0 %v617
  %638 = vmatpush.msra.mxu0 %v615
  %639 = vmatpush.msra.mxu0 %v613
  %640 = vmatpush.msra.mxu0 %v611
  %641 = vmatpush.msra.mxu0 %v609
  %642 = vmatpush.msra.mxu0 %v607
  %643 = vmatpush.msra.mxu0 %v605
  %644 = vmatpush.msra.mxu0 %v603
  %645 = vmatpush.msra.mxu0 %v601
  %646 = vmatmul.f32.gmra.mxu0 %v628
  %v647 = vpop.f32.mrf.mxu0
  %v648 = vadd.f32 0.0, %v647
  %649 = vdwg.mxu0
  %650 = vrot.lane.b32.xlu0 %v157, 112
  %v651 = vpop.permute.xlu0 %650
  %652 = vrot.lane.b32.xlu0 %v242, 112
  %v653 = vpop.permute.xlu0 %652
  %654 = vrot.lane.b32.xlu0 %v245, 112
  %v655 = vpop.permute.xlu0 %654
  %656 = vrot.lane.b32.xlu0 %v248, 112
  %v657 = vpop.permute.xlu0 %656
  %658 = vrot.lane.b32.xlu0 %v251, 112
  %v659 = vpop.permute.xlu0 %658
  %660 = vrot.lane.b32.xlu0 %v254, 112
  %v661 = vpop.permute.xlu0 %660
  %662 = vrot.lane.b32.xlu0 %v257, 112
  %v663 = vpop.permute.xlu0 %662
  %664 = vrot.lane.b32.xlu0 %v260, 112
  %v665 = vpop.permute.xlu0 %664
  %666 = vrot.lane.b32.xlu0 %v263, 112
  %v667 = vpop.permute.xlu0 %666
  %668 = vrot.lane.b32.xlu0 %v266, 112
  %v669 = vpop.permute.xlu0 %668
  %v670 = vsel %vm429, %v651, 0
  %v672 = vsel %vm429, %v653, 0
  %v674 = vsel %vm429, %v655, 0
  %v676 = vsel %vm429, %v657, 0
  %v678 = vsel %vm429, %v659, 0
  %v680 = vsel %vm429, %v661, 0
  %v682 = vsel %vm429, %v663, 0
  %v684 = vsel %vm429, %v665, 0
  %v686 = vsel %vm429, %v667, 0
  %v688 = vsel %vm429, %v669, 0
  %690 = vmatpush.xpose.msra.mxu0 0.0
  %691 = vmatpush.xpose.msra.mxu0 0.0
  %692 = vmatpush.xpose.msra.mxu0 0.0
  %693 = vmatpush.xpose.msra.mxu0 0.0
  %694 = vmatpush.xpose.msra.mxu0 0.0
  %695 = vmatpush.xpose.msra.mxu0 0.0
  %696 = vmatpush.xpose.msra.mxu0 0.0
  %697 = vmatpush.xpose.msra.mxu0 %v688
  %698 = vmatpush.xpose.msra.mxu0 %v686
  %699 = vmatpush.xpose.msra.mxu0 %v684
  %700 = vmatpush.xpose.msra.mxu0 %v682
  %701 = vmatpush.xpose.msra.mxu0 %v680
  %702 = vmatpush.xpose.msra.mxu0 %v678
  %703 = vmatpush.xpose.msra.mxu0 %v676
  %704 = vmatpush.xpose.msra.mxu0 %v674
  %705 = vmatpush.xpose.msra.mxu0 %v672
  %706 = vmatmul.f32.gmra.mxu0 %v670
  %v707 = vpop.f32.mrf.mxu0
  %v708 = vadd.f32 0.0, %v707
  %709 = vdwg.mxu0
  %v710 = vmul.f32 %v708, 0.35355338
  %v711 = vadd.f32 %v710, %v481
  %v712 = vsel %vm483, %v711, -inf
  %713 = vmax.xlane.f32.xlu0 %v712
  %v714 = vpop.xlane.xlu0 %713
  %v715 = vsub.f32 %v711, %v714
  %v716 = vmul.f32 %v715, 1.442695
  %v717 = vpow.pop %v716
  %v718 = vsel %vm483, %v717, 0.0
  %719 = vadd.xlane.f32.xlu0 %v718
  %v720 = vpop.xlane.xlu0 %719
  %v721 = vrcp.pop %v720
  %v722 = vmul.f32 %v717, %v721
  %723 = vrot.lane.b32.xlu0 %v375, 112
  %v724 = vpop.permute.xlu0 %723
  %725 = vrot.lane.b32.xlu0 %v378, 112
  %v726 = vpop.permute.xlu0 %725
  %727 = vrot.lane.b32.xlu0 %v381, 112
  %v728 = vpop.permute.xlu0 %727
  %729 = vrot.lane.b32.xlu0 %v384, 112
  %v730 = vpop.permute.xlu0 %729
  %731 = vrot.lane.b32.xlu0 %v387, 112
  %v732 = vpop.permute.xlu0 %731
  %733 = vrot.lane.b32.xlu0 %v390, 112
  %v734 = vpop.permute.xlu0 %733
  %735 = vrot.lane.b32.xlu0 %v393, 112
  %v736 = vpop.permute.xlu0 %735
  %737 = vrot.lane.b32.xlu0 %v396, 112
  %v738 = vpop.permute.xlu0 %737
  %739 = vrot.lane.b32.xlu0 %v399, 112
  %v740 = vpop.permute.xlu0 %739
  %v751 = vsel %vm483, %v722, 0
  %753 = vmatpush.msra.mxu0 0.0
  %754 = vmatpush.msra.mxu0 0.0
  %755 = vmatpush.msra.mxu0 0.0
  %756 = vmatpush.msra.mxu0 0.0
  %757 = vmatpush.msra.mxu0 0.0
  %758 = vmatpush.msra.mxu0 0.0
  %759 = vmatpush.msra.mxu0 0.0
  %760 = vmatpush.msra.mxu0 %v740
  %761 = vmatpush.msra.mxu0 %v738
  %762 = vmatpush.msra.mxu0 %v736
  %763 = vmatpush.msra.mxu0 %v734
  %764 = vmatpush.msra.mxu0 %v732
  %765 = vmatpush.msra.mxu0 %v730
  %766 = vmatpush.msra.mxu0 %v728
  %767 = vmatpush.msra.mxu0 %v726
  %768 = vmatpush.msra.mxu0 %v724
  %769 = vmatmul.f32.gmra.mxu0 %v751
  %v770 = vpop.f32.mrf.mxu0
  %v771 = vadd.f32 0.0, %v770
  %772 = vdwg.mxu0
  %773 = vrot.lane.b32.xlu0 %v157, 104
  %v774 = vpop.permute.xlu0 %773
  %775 = vrot.lane.b32.xlu0 %v242, 104
  %v776 = vpop.permute.xlu0 %775
  %777 = vrot.lane.b32.xlu0 %v245, 104
  %v778 = vpop.permute.xlu0 %777
  %779 = vrot.lane.b32.xlu0 %v248, 104
  %v780 = vpop.permute.xlu0 %779
  %781 = vrot.lane.b32.xlu0 %v251, 104
  %v782 = vpop.permute.xlu0 %781
  %783 = vrot.lane.b32.xlu0 %v254, 104
  %v784 = vpop.permute.xlu0 %783
  %785 = vrot.lane.b32.xlu0 %v257, 104
  %v786 = vpop.permute.xlu0 %785
  %787 = vrot.lane.b32.xlu0 %v260, 104
  %v788 = vpop.permute.xlu0 %787
  %789 = vrot.lane.b32.xlu0 %v263, 104
  %v790 = vpop.permute.xlu0 %789
  %791 = vrot.lane.b32.xlu0 %v266, 104
  %v792 = vpop.permute.xlu0 %791
  %v793 = vsel %vm429, %v774, 0
  %v795 = vsel %vm429, %v776, 0
  %v797 = vsel %vm429, %v778, 0
  %v799 = vsel %vm429, %v780, 0
  %v801 = vsel %vm429, %v782, 0
  %v803 = vsel %vm429, %v784, 0
  %v805 = vsel %vm429, %v786, 0
  %v807 = vsel %vm429, %v788, 0
  %v809 = vsel %vm429, %v790, 0
  %v811 = vsel %vm429, %v792, 0
  %813 = vmatpush.xpose.msra.mxu0 0.0
  %814 = vmatpush.xpose.msra.mxu0 0.0
  %815 = vmatpush.xpose.msra.mxu0 0.0
  %816 = vmatpush.xpose.msra.mxu0 0.0
  %817 = vmatpush.xpose.msra.mxu0 0.0
  %818 = vmatpush.xpose.msra.mxu0 0.0
  %819 = vmatpush.xpose.msra.mxu0 0.0
  %820 = vmatpush.xpose.msra.mxu0 %v811
  %821 = vmatpush.xpose.msra.mxu0 %v809
  %822 = vmatpush.xpose.msra.mxu0 %v807
  %823 = vmatpush.xpose.msra.mxu0 %v805
  %824 = vmatpush.xpose.msra.mxu0 %v803
  %825 = vmatpush.xpose.msra.mxu0 %v801
  %826 = vmatpush.xpose.msra.mxu0 %v799
  %827 = vmatpush.xpose.msra.mxu0 %v797
  %828 = vmatpush.xpose.msra.mxu0 %v795
  %829 = vmatmul.f32.gmra.mxu0 %v793
  %v830 = vpop.f32.mrf.mxu0
  %v831 = vadd.f32 0.0, %v830
  %832 = vdwg.mxu0
  %v833 = vmul.f32 %v831, 0.35355338
  %v834 = vadd.f32 %v833, %v481
  %v835 = vsel %vm483, %v834, -inf
  %836 = vmax.xlane.f32.xlu0 %v835
  %v837 = vpop.xlane.xlu0 %836
  %v838 = vsub.f32 %v834, %v837
  %v839 = vmul.f32 %v838, 1.442695
  %v840 = vpow.pop %v839
  %v841 = vsel %vm483, %v840, 0.0
  %842 = vadd.xlane.f32.xlu0 %v841
  %v843 = vpop.xlane.xlu0 %842
  %v844 = vrcp.pop %v843
  %v845 = vmul.f32 %v840, %v844
  %846 = vrot.lane.b32.xlu0 %v375, 104
  %v847 = vpop.permute.xlu0 %846
  %848 = vrot.lane.b32.xlu0 %v378, 104
  %v849 = vpop.permute.xlu0 %848
  %850 = vrot.lane.b32.xlu0 %v381, 104
  %v851 = vpop.permute.xlu0 %850
  %852 = vrot.lane.b32.xlu0 %v384, 104
  %v853 = vpop.permute.xlu0 %852
  %854 = vrot.lane.b32.xlu0 %v387, 104
  %v855 = vpop.permute.xlu0 %854
  %856 = vrot.lane.b32.xlu0 %v390, 104
  %v857 = vpop.permute.xlu0 %856
  %858 = vrot.lane.b32.xlu0 %v393, 104
  %v859 = vpop.permute.xlu0 %858
  %860 = vrot.lane.b32.xlu0 %v396, 104
  %v861 = vpop.permute.xlu0 %860
  %862 = vrot.lane.b32.xlu0 %v399, 104
  %v863 = vpop.permute.xlu0 %862
  %v874 = vsel %vm483, %v845, 0
  %876 = vmatpush.msra.mxu0 0.0
  %877 = vmatpush.msra.mxu0 0.0
  %878 = vmatpush.msra.mxu0 0.0
  %879 = vmatpush.msra.mxu0 0.0
  %880 = vmatpush.msra.mxu0 0.0
  %881 = vmatpush.msra.mxu0 0.0
  %882 = vmatpush.msra.mxu0 0.0
  %883 = vmatpush.msra.mxu0 %v863
  %884 = vmatpush.msra.mxu0 %v861
  %885 = vmatpush.msra.mxu0 %v859
  %886 = vmatpush.msra.mxu0 %v857
  %887 = vmatpush.msra.mxu0 %v855
  %888 = vmatpush.msra.mxu0 %v853
  %889 = vmatpush.msra.mxu0 %v851
  %890 = vmatpush.msra.mxu0 %v849
  %891 = vmatpush.msra.mxu0 %v847
  %892 = vmatmul.f32.gmra.mxu0 %v874
  %v893 = vpop.f32.mrf.mxu0
  %v894 = vadd.f32 0.0, %v893
  %895 = vdwg.mxu0
  %896 = vrot.lane.b32.xlu0 %v157, 96
  %v897 = vpop.permute.xlu0 %896
  %898 = vrot.lane.b32.xlu0 %v242, 96
  %v899 = vpop.permute.xlu0 %898
  %900 = vrot.lane.b32.xlu0 %v245, 96
  %v901 = vpop.permute.xlu0 %900
  %902 = vrot.lane.b32.xlu0 %v248, 96
  %v903 = vpop.permute.xlu0 %902
  %904 = vrot.lane.b32.xlu0 %v251, 96
  %v905 = vpop.permute.xlu0 %904
  %906 = vrot.lane.b32.xlu0 %v254, 96
  %v907 = vpop.permute.xlu0 %906
  %908 = vrot.lane.b32.xlu0 %v257, 96
  %v909 = vpop.permute.xlu0 %908
  %910 = vrot.lane.b32.xlu0 %v260, 96
  %v911 = vpop.permute.xlu0 %910
  %912 = vrot.lane.b32.xlu0 %v263, 96
  %v913 = vpop.permute.xlu0 %912
  %914 = vrot.lane.b32.xlu0 %v266, 96
  %v915 = vpop.permute.xlu0 %914
  %v916 = vsel %vm429, %v897, 0
  %v918 = vsel %vm429, %v899, 0
  %v920 = vsel %vm429, %v901, 0
  %v922 = vsel %vm429, %v903, 0
  %v924 = vsel %vm429, %v905, 0
  %v926 = vsel %vm429, %v907, 0
  %v928 = vsel %vm429, %v909, 0
  %v930 = vsel %vm429, %v911, 0
  %v932 = vsel %vm429, %v913, 0
  %v934 = vsel %vm429, %v915, 0
  %936 = vmatpush.xpose.msra.mxu0 0.0
  %937 = vmatpush.xpose.msra.mxu0 0.0
  %938 = vmatpush.xpose.msra.mxu0 0.0
  %939 = vmatpush.xpose.msra.mxu0 0.0
  %940 = vmatpush.xpose.msra.mxu0 0.0
  %941 = vmatpush.xpose.msra.mxu0 0.0
  %942 = vmatpush.xpose.msra.mxu0 0.0
  %943 = vmatpush.xpose.msra.mxu0 %v934
  %944 = vmatpush.xpose.msra.mxu0 %v932
  %945 = vmatpush.xpose.msra.mxu0 %v930
  %946 = vmatpush.xpose.msra.mxu0 %v928
  %947 = vmatpush.xpose.msra.mxu0 %v926
  %948 = vmatpush.xpose.msra.mxu0 %v924
  %949 = vmatpush.xpose.msra.mxu0 %v922
  %950 = vmatpush.xpose.msra.mxu0 %v920
  %951 = vmatpush.xpose.msra.mxu0 %v918
  %952 = vmatmul.f32.gmra.mxu0 %v916
  %v953 = vpop.f32.mrf.mxu0
  %v954 = vadd.f32 0.0, %v953
  %955 = vdwg.mxu0
  %v956 = vmul.f32 %v954, 0.35355338
  %v957 = vadd.f32 %v956, %v481
  %v958 = vsel %vm483, %v957, -inf
  %959 = vmax.xlane.f32.xlu0 %v958
  %v960 = vpop.xlane.xlu0 %959
  %v961 = vsub.f32 %v957, %v960
  %v962 = vmul.f32 %v961, 1.442695
  %v963 = vpow.pop %v962
  %v964 = vsel %vm483, %v963, 0.0
  %965 = vadd.xlane.f32.xlu0 %v964
  %v966 = vpop.xlane.xlu0 %965
  %v967 = vrcp.pop %v966
  %v968 = vmul.f32 %v963, %v967
  %969 = vrot.lane.b32.xlu0 %v375, 96
  %v970 = vpop.permute.xlu0 %969
  %971 = vrot.lane.b32.xlu0 %v378, 96
  %v972 = vpop.permute.xlu0 %971
  %973 = vrot.lane.b32.xlu0 %v381, 96
  %v974 = vpop.permute.xlu0 %973
  %975 = vrot.lane.b32.xlu0 %v384, 96
  %v976 = vpop.permute.xlu0 %975
  %977 = vrot.lane.b32.xlu0 %v387, 96
  %v978 = vpop.permute.xlu0 %977
  %979 = vrot.lane.b32.xlu0 %v390, 96
  %v980 = vpop.permute.xlu0 %979
  %981 = vrot.lane.b32.xlu0 %v393, 96
  %v982 = vpop.permute.xlu0 %981
  %983 = vrot.lane.b32.xlu0 %v396, 96
  %v984 = vpop.permute.xlu0 %983
  %985 = vrot.lane.b32.xlu0 %v399, 96
  %v986 = vpop.permute.xlu0 %985
  %v997 = vsel %vm483, %v968, 0
  %999 = vmatpush.msra.mxu0 0.0
  %1000 = vmatpush.msra.mxu0 0.0
  %1001 = vmatpush.msra.mxu0 0.0
  %1002 = vmatpush.msra.mxu0 0.0
  %1003 = vmatpush.msra.mxu0 0.0
  %1004 = vmatpush.msra.mxu0 0.0
  %1005 = vmatpush.msra.mxu0 0.0
  %1006 = vmatpush.msra.mxu0 %v986
  %1007 = vmatpush.msra.mxu0 %v984
  %1008 = vmatpush.msra.mxu0 %v982
  %1009 = vmatpush.msra.mxu0 %v980
  %1010 = vmatpush.msra.mxu0 %v978
  %1011 = vmatpush.msra.mxu0 %v976
  %1012 = vmatpush.msra.mxu0 %v974
  %1013 = vmatpush.msra.mxu0 %v972
  %1014 = vmatpush.msra.mxu0 %v970
  %1015 = vmatmul.f32.gmra.mxu0 %v997
  %v1016 = vpop.f32.mrf.mxu0
  %v1017 = vadd.f32 0.0, %v1016
  %1018 = vdwg.mxu0
  %1019 = vrot.lane.b32.xlu0 %v157, 88
  %v1020 = vpop.permute.xlu0 %1019
  %1021 = vrot.lane.b32.xlu0 %v242, 88
  %v1022 = vpop.permute.xlu0 %1021
  %1023 = vrot.lane.b32.xlu0 %v245, 88
  %v1024 = vpop.permute.xlu0 %1023
  %1025 = vrot.lane.b32.xlu0 %v248, 88
  %v1026 = vpop.permute.xlu0 %1025
  %1027 = vrot.lane.b32.xlu0 %v251, 88
  %v1028 = vpop.permute.xlu0 %1027
  %1029 = vrot.lane.b32.xlu0 %v254, 88
  %v1030 = vpop.permute.xlu0 %1029
  %1031 = vrot.lane.b32.xlu0 %v257, 88
  %v1032 = vpop.permute.xlu0 %1031
  %1033 = vrot.lane.b32.xlu0 %v260, 88
  %v1034 = vpop.permute.xlu0 %1033
  %1035 = vrot.lane.b32.xlu0 %v263, 88
  %v1036 = vpop.permute.xlu0 %1035
  %1037 = vrot.lane.b32.xlu0 %v266, 88
  %v1038 = vpop.permute.xlu0 %1037
  %v1039 = vsel %vm429, %v1020, 0
  %v1041 = vsel %vm429, %v1022, 0
  %v1043 = vsel %vm429, %v1024, 0
  %v1045 = vsel %vm429, %v1026, 0
  %v1047 = vsel %vm429, %v1028, 0
  %v1049 = vsel %vm429, %v1030, 0
  %v1051 = vsel %vm429, %v1032, 0
  %v1053 = vsel %vm429, %v1034, 0
  %v1055 = vsel %vm429, %v1036, 0
  %v1057 = vsel %vm429, %v1038, 0
  %1059 = vmatpush.xpose.msra.mxu0 0.0
  %1060 = vmatpush.xpose.msra.mxu0 0.0
  %1061 = vmatpush.xpose.msra.mxu0 0.0
  %1062 = vmatpush.xpose.msra.mxu0 0.0
  %1063 = vmatpush.xpose.msra.mxu0 0.0
  %1064 = vmatpush.xpose.msra.mxu0 0.0
  %1065 = vmatpush.xpose.msra.mxu0 0.0
  %1066 = vmatpush.xpose.msra.mxu0 %v1057
  %1067 = vmatpush.xpose.msra.mxu0 %v1055
  %1068 = vmatpush.xpose.msra.mxu0 %v1053
  %1069 = vmatpush.xpose.msra.mxu0 %v1051
  %1070 = vmatpush.xpose.msra.mxu0 %v1049
  %1071 = vmatpush.xpose.msra.mxu0 %v1047
  %1072 = vmatpush.xpose.msra.mxu0 %v1045
  %1073 = vmatpush.xpose.msra.mxu0 %v1043
  %1074 = vmatpush.xpose.msra.mxu0 %v1041
  %1075 = vmatmul.f32.gmra.mxu0 %v1039
  %v1076 = vpop.f32.mrf.mxu0
  %v1077 = vadd.f32 0.0, %v1076
  %1078 = vdwg.mxu0
  %v1079 = vmul.f32 %v1077, 0.35355338
  %v1080 = vadd.f32 %v1079, %v481
  %v1081 = vsel %vm483, %v1080, -inf
  %1082 = vmax.xlane.f32.xlu0 %v1081
  %v1083 = vpop.xlane.xlu0 %1082
  %v1084 = vsub.f32 %v1080, %v1083
  %v1085 = vmul.f32 %v1084, 1.442695
  %v1086 = vpow.pop %v1085
  %v1087 = vsel %vm483, %v1086, 0.0
  %1088 = vadd.xlane.f32.xlu0 %v1087
  %v1089 = vpop.xlane.xlu0 %1088
  %v1090 = vrcp.pop %v1089
  %v1091 = vmul.f32 %v1086, %v1090
  %1092 = vrot.lane.b32.xlu0 %v375, 88
  %v1093 = vpop.permute.xlu0 %1092
  %1094 = vrot.lane.b32.xlu0 %v378, 88
  %v1095 = vpop.permute.xlu0 %1094
  %1096 = vrot.lane.b32.xlu0 %v381, 88
  %v1097 = vpop.permute.xlu0 %1096
  %1098 = vrot.lane.b32.xlu0 %v384, 88
  %v1099 = vpop.permute.xlu0 %1098
  %1100 = vrot.lane.b32.xlu0 %v387, 88
  %v1101 = vpop.permute.xlu0 %1100
  %1102 = vrot.lane.b32.xlu0 %v390, 88
  %v1103 = vpop.permute.xlu0 %1102
  %1104 = vrot.lane.b32.xlu0 %v393, 88
  %v1105 = vpop.permute.xlu0 %1104
  %1106 = vrot.lane.b32.xlu0 %v396, 88
  %v1107 = vpop.permute.xlu0 %1106
  %1108 = vrot.lane.b32.xlu0 %v399, 88
  %v1109 = vpop.permute.xlu0 %1108
  %v1120 = vsel %vm483, %v1091, 0
  %1122 = vmatpush.msra.mxu0 0.0
  %1123 = vmatpush.msra.mxu0 0.0
  %1124 = vmatpush.msra.mxu0 0.0
  %1125 = vmatpush.msra.mxu0 0.0
  %1126 = vmatpush.msra.mxu0 0.0
  %1127 = vmatpush.msra.mxu0 0.0
  %1128 = vmatpush.msra.mxu0 0.0
  %1129 = vmatpush.msra.mxu0 %v1109
  %1130 = vmatpush.msra.mxu0 %v1107
  %1131 = vmatpush.msra.mxu0 %v1105
  %1132 = vmatpush.msra.mxu0 %v1103
  %1133 = vmatpush.msra.mxu0 %v1101
  %1134 = vmatpush.msra.mxu0 %v1099
  %1135 = vmatpush.msra.mxu0 %v1097
  %1136 = vmatpush.msra.mxu0 %v1095
  %1137 = vmatpush.msra.mxu0 %v1093
  %1138 = vmatmul.f32.gmra.mxu0 %v1120
  %v1139 = vpop.f32.mrf.mxu0
  %v1140 = vadd.f32 0.0, %v1139
  %1141 = vdwg.mxu0
  %1142 = vrot.lane.b32.xlu0 %v157, 80
  %v1143 = vpop.permute.xlu0 %1142
  %1144 = vrot.lane.b32.xlu0 %v242, 80
  %v1145 = vpop.permute.xlu0 %1144
  %1146 = vrot.lane.b32.xlu0 %v245, 80
  %v1147 = vpop.permute.xlu0 %1146
  %1148 = vrot.lane.b32.xlu0 %v248, 80
  %v1149 = vpop.permute.xlu0 %1148
  %1150 = vrot.lane.b32.xlu0 %v251, 80
  %v1151 = vpop.permute.xlu0 %1150
  %1152 = vrot.lane.b32.xlu0 %v254, 80
  %v1153 = vpop.permute.xlu0 %1152
  %1154 = vrot.lane.b32.xlu0 %v257, 80
  %v1155 = vpop.permute.xlu0 %1154
  %1156 = vrot.lane.b32.xlu0 %v260, 80
  %v1157 = vpop.permute.xlu0 %1156
  %1158 = vrot.lane.b32.xlu0 %v263, 80
  %v1159 = vpop.permute.xlu0 %1158
  %1160 = vrot.lane.b32.xlu0 %v266, 80
  %v1161 = vpop.permute.xlu0 %1160
  %v1162 = vsel %vm429, %v1143, 0
  %v1164 = vsel %vm429, %v1145, 0
  %v1166 = vsel %vm429, %v1147, 0
  %v1168 = vsel %vm429, %v1149, 0
  %v1170 = vsel %vm429, %v1151, 0
  %v1172 = vsel %vm429, %v1153, 0
  %v1174 = vsel %vm429, %v1155, 0
  %v1176 = vsel %vm429, %v1157, 0
  %v1178 = vsel %vm429, %v1159, 0
  %v1180 = vsel %vm429, %v1161, 0
  %1182 = vmatpush.xpose.msra.mxu0 0.0
  %1183 = vmatpush.xpose.msra.mxu0 0.0
  %1184 = vmatpush.xpose.msra.mxu0 0.0
  %1185 = vmatpush.xpose.msra.mxu0 0.0
  %1186 = vmatpush.xpose.msra.mxu0 0.0
  %1187 = vmatpush.xpose.msra.mxu0 0.0
  %1188 = vmatpush.xpose.msra.mxu0 0.0
  %1189 = vmatpush.xpose.msra.mxu0 %v1180
  %1190 = vmatpush.xpose.msra.mxu0 %v1178
  %1191 = vmatpush.xpose.msra.mxu0 %v1176
  %1192 = vmatpush.xpose.msra.mxu0 %v1174
  %1193 = vmatpush.xpose.msra.mxu0 %v1172
  %1194 = vmatpush.xpose.msra.mxu0 %v1170
  %1195 = vmatpush.xpose.msra.mxu0 %v1168
  %1196 = vmatpush.xpose.msra.mxu0 %v1166
  %1197 = vmatpush.xpose.msra.mxu0 %v1164
  %1198 = vmatmul.f32.gmra.mxu0 %v1162
  %v1199 = vpop.f32.mrf.mxu0
  %v1200 = vadd.f32 0.0, %v1199
  %1201 = vdwg.mxu0
  %v1202 = vmul.f32 %v1200, 0.35355338
  %v1203 = vadd.f32 %v1202, %v481
  %v1204 = vsel %vm483, %v1203, -inf
  %1205 = vmax.xlane.f32.xlu0 %v1204
  %v1206 = vpop.xlane.xlu0 %1205
  %v1207 = vsub.f32 %v1203, %v1206
  %v1208 = vmul.f32 %v1207, 1.442695
  %v1209 = vpow.pop %v1208
  %v1210 = vsel %vm483, %v1209, 0.0
  %1211 = vadd.xlane.f32.xlu0 %v1210
  %v1212 = vpop.xlane.xlu0 %1211
  %v1213 = vrcp.pop %v1212
  %v1214 = vmul.f32 %v1209, %v1213
  %1215 = vrot.lane.b32.xlu0 %v375, 80
  %v1216 = vpop.permute.xlu0 %1215
  %1217 = vrot.lane.b32.xlu0 %v378, 80
  %v1218 = vpop.permute.xlu0 %1217
  %1219 = vrot.lane.b32.xlu0 %v381, 80
  %v1220 = vpop.permute.xlu0 %1219
  %1221 = vrot.lane.b32.xlu0 %v384, 80
  %v1222 = vpop.permute.xlu0 %1221
  %1223 = vrot.lane.b32.xlu0 %v387, 80
  %v1224 = vpop.permute.xlu0 %1223
  %1225 = vrot.lane.b32.xlu0 %v390, 80
  %v1226 = vpop.permute.xlu0 %1225
  %1227 = vrot.lane.b32.xlu0 %v393, 80
  %v1228 = vpop.permute.xlu0 %1227
  %1229 = vrot.lane.b32.xlu0 %v396, 80
  %v1230 = vpop.permute.xlu0 %1229
  %1231 = vrot.lane.b32.xlu0 %v399, 80
  %v1232 = vpop.permute.xlu0 %1231
  %v1243 = vsel %vm483, %v1214, 0
  %1245 = vmatpush.msra.mxu0 0.0
  %1246 = vmatpush.msra.mxu0 0.0
  %1247 = vmatpush.msra.mxu0 0.0
  %1248 = vmatpush.msra.mxu0 0.0
  %1249 = vmatpush.msra.mxu0 0.0
  %1250 = vmatpush.msra.mxu0 0.0
  %1251 = vmatpush.msra.mxu0 0.0
  %1252 = vmatpush.msra.mxu0 %v1232
  %1253 = vmatpush.msra.mxu0 %v1230
  %1254 = vmatpush.msra.mxu0 %v1228
  %1255 = vmatpush.msra.mxu0 %v1226
  %1256 = vmatpush.msra.mxu0 %v1224
  %1257 = vmatpush.msra.mxu0 %v1222
  %1258 = vmatpush.msra.mxu0 %v1220
  %1259 = vmatpush.msra.mxu0 %v1218
  %1260 = vmatpush.msra.mxu0 %v1216
  %1261 = vmatmul.f32.gmra.mxu0 %v1243
  %v1262 = vpop.f32.mrf.mxu0
  %v1263 = vadd.f32 0.0, %v1262
  %1264 = vdwg.mxu0
  %1265 = vrot.lane.b32.xlu0 %v157, 72
  %v1266 = vpop.permute.xlu0 %1265
  %1267 = vrot.lane.b32.xlu0 %v242, 72
  %v1268 = vpop.permute.xlu0 %1267
  %1269 = vrot.lane.b32.xlu0 %v245, 72
  %v1270 = vpop.permute.xlu0 %1269
  %1271 = vrot.lane.b32.xlu0 %v248, 72
  %v1272 = vpop.permute.xlu0 %1271
  %1273 = vrot.lane.b32.xlu0 %v251, 72
  %v1274 = vpop.permute.xlu0 %1273
  %1275 = vrot.lane.b32.xlu0 %v254, 72
  %v1276 = vpop.permute.xlu0 %1275
  %1277 = vrot.lane.b32.xlu0 %v257, 72
  %v1278 = vpop.permute.xlu0 %1277
  %1279 = vrot.lane.b32.xlu0 %v260, 72
  %v1280 = vpop.permute.xlu0 %1279
  %1281 = vrot.lane.b32.xlu0 %v263, 72
  %v1282 = vpop.permute.xlu0 %1281
  %1283 = vrot.lane.b32.xlu0 %v266, 72
  %v1284 = vpop.permute.xlu0 %1283
  %v1285 = vsel %vm429, %v1266, 0
  %v1287 = vsel %vm429, %v1268, 0
  %v1289 = vsel %vm429, %v1270, 0
  %v1291 = vsel %vm429, %v1272, 0
  %v1293 = vsel %vm429, %v1274, 0
  %v1295 = vsel %vm429, %v1276, 0
  %v1297 = vsel %vm429, %v1278, 0
  %v1299 = vsel %vm429, %v1280, 0
  %v1301 = vsel %vm429, %v1282, 0
  %v1303 = vsel %vm429, %v1284, 0
  %1305 = vmatpush.xpose.msra.mxu0 0.0
  %1306 = vmatpush.xpose.msra.mxu0 0.0
  %1307 = vmatpush.xpose.msra.mxu0 0.0
  %1308 = vmatpush.xpose.msra.mxu0 0.0
  %1309 = vmatpush.xpose.msra.mxu0 0.0
  %1310 = vmatpush.xpose.msra.mxu0 0.0
  %1311 = vmatpush.xpose.msra.mxu0 0.0
  %1312 = vmatpush.xpose.msra.mxu0 %v1303
  %1313 = vmatpush.xpose.msra.mxu0 %v1301
  %1314 = vmatpush.xpose.msra.mxu0 %v1299
  %1315 = vmatpush.xpose.msra.mxu0 %v1297
  %1316 = vmatpush.xpose.msra.mxu0 %v1295
  %1317 = vmatpush.xpose.msra.mxu0 %v1293
  %1318 = vmatpush.xpose.msra.mxu0 %v1291
  %1319 = vmatpush.xpose.msra.mxu0 %v1289
  %1320 = vmatpush.xpose.msra.mxu0 %v1287
  %1321 = vmatmul.f32.gmra.mxu0 %v1285
  %v1322 = vpop.f32.mrf.mxu0
  %v1323 = vadd.f32 0.0, %v1322
  %1324 = vdwg.mxu0
  %v1325 = vmul.f32 %v1323, 0.35355338
  %v1326 = vadd.f32 %v1325, %v481
  %v1327 = vsel %vm483, %v1326, -inf
  %1328 = vmax.xlane.f32.xlu0 %v1327
  %v1329 = vpop.xlane.xlu0 %1328
  %v1330 = vsub.f32 %v1326, %v1329
  %v1331 = vmul.f32 %v1330, 1.442695
  %v1332 = vpow.pop %v1331
  %v1333 = vsel %vm483, %v1332, 0.0
  %1334 = vadd.xlane.f32.xlu0 %v1333
  %v1335 = vpop.xlane.xlu0 %1334
  %v1336 = vrcp.pop %v1335
  %v1337 = vmul.f32 %v1332, %v1336
  %1338 = vrot.lane.b32.xlu0 %v375, 72
  %v1339 = vpop.permute.xlu0 %1338
  %1340 = vrot.lane.b32.xlu0 %v378, 72
  %v1341 = vpop.permute.xlu0 %1340
  %1342 = vrot.lane.b32.xlu0 %v381, 72
  %v1343 = vpop.permute.xlu0 %1342
  %1344 = vrot.lane.b32.xlu0 %v384, 72
  %v1345 = vpop.permute.xlu0 %1344
  %1346 = vrot.lane.b32.xlu0 %v387, 72
  %v1347 = vpop.permute.xlu0 %1346
  %1348 = vrot.lane.b32.xlu0 %v390, 72
  %v1349 = vpop.permute.xlu0 %1348
  %1350 = vrot.lane.b32.xlu0 %v393, 72
  %v1351 = vpop.permute.xlu0 %1350
  %1352 = vrot.lane.b32.xlu0 %v396, 72
  %v1353 = vpop.permute.xlu0 %1352
  %1354 = vrot.lane.b32.xlu0 %v399, 72
  %v1355 = vpop.permute.xlu0 %1354
  %v1366 = vsel %vm483, %v1337, 0
  %1368 = vmatpush.msra.mxu0 0.0
  %1369 = vmatpush.msra.mxu0 0.0
  %1370 = vmatpush.msra.mxu0 0.0
  %1371 = vmatpush.msra.mxu0 0.0
  %1372 = vmatpush.msra.mxu0 0.0
  %1373 = vmatpush.msra.mxu0 0.0
  %1374 = vmatpush.msra.mxu0 0.0
  %1375 = vmatpush.msra.mxu0 %v1355
  %1376 = vmatpush.msra.mxu0 %v1353
  %1377 = vmatpush.msra.mxu0 %v1351
  %1378 = vmatpush.msra.mxu0 %v1349
  %1379 = vmatpush.msra.mxu0 %v1347
  %1380 = vmatpush.msra.mxu0 %v1345
  %1381 = vmatpush.msra.mxu0 %v1343
  %1382 = vmatpush.msra.mxu0 %v1341
  %1383 = vmatpush.msra.mxu0 %v1339
  %1384 = vmatmul.f32.gmra.mxu0 %v1366
  %v1385 = vpop.f32.mrf.mxu0
  %v1386 = vadd.f32 0.0, %v1385
  %1387 = vdwg.mxu0
  %1389 = vrot.lane.b32.xlu0 %v648, 8
  %v1390 = vpop.permute.xlu0 %1389
  %1393 = vrot.lane.b32.xlu0 %v771, 16
  %v1394 = vpop.permute.xlu0 %1393
  %1397 = vrot.lane.b32.xlu0 %v894, 24
  %v1398 = vpop.permute.xlu0 %1397
  %1401 = vrot.lane.b32.xlu0 %v1017, 32
  %v1402 = vpop.permute.xlu0 %1401
  %1405 = vrot.lane.b32.xlu0 %v1140, 40
  %v1406 = vpop.permute.xlu0 %1405
  %1409 = vrot.lane.b32.xlu0 %v1263, 48
  %v1410 = vpop.permute.xlu0 %1409
  %1413 = vrot.lane.b32.xlu0 %v1386, 56
  %v1414 = vpop.permute.xlu0 %1413
  %v1416 = vsel %vm429, %v516, %v1390
  %vm1417 = vcmask 130048
  %v1418 = vsel %vm1417, %v1416, %v1394
  %vm1419 = vcmask 195584
  %v1420 = vsel %vm1419, %v1418, %v1398
  %v1421 = vsel %vm132, %v1420, %v1402
  %vm1422 = vcmask 326656
  %v1423 = vsel %vm1422, %v1421, %v1406
  %vm1424 = vcmask 392192
  %v1425 = vsel %vm1424, %v1423, %v1410
  %vm1426 = vcmask 457728
  %v1427 = vsel %vm1426, %v1425, %v1414
  %v1429 = vsel %vm429, %v160, 0
  %v1432 = vsel %vm429, %v269, 0
  %v1435 = vsel %vm429, %v272, 0
  %v1438 = vsel %vm429, %v275, 0
  %v1441 = vsel %vm429, %v278, 0
  %v1444 = vsel %vm429, %v281, 0
  %v1447 = vsel %vm429, %v284, 0
  %v1450 = vsel %vm429, %v287, 0
  %v1453 = vsel %vm429, %v290, 0
  %v1456 = vsel %vm429, %v293, 0
  %1458 = vmatpush.xpose.msra.mxu0 0.0
  %1459 = vmatpush.xpose.msra.mxu0 0.0
  %1460 = vmatpush.xpose.msra.mxu0 0.0
  %1461 = vmatpush.xpose.msra.mxu0 0.0
  %1462 = vmatpush.xpose.msra.mxu0 0.0
  %1463 = vmatpush.xpose.msra.mxu0 0.0
  %1464 = vmatpush.xpose.msra.mxu0 0.0
  %1465 = vmatpush.xpose.msra.mxu0 %v1456
  %1466 = vmatpush.xpose.msra.mxu0 %v1453
  %1467 = vmatpush.xpose.msra.mxu0 %v1450
  %1468 = vmatpush.xpose.msra.mxu0 %v1447
  %1469 = vmatpush.xpose.msra.mxu0 %v1444
  %1470 = vmatpush.xpose.msra.mxu0 %v1441
  %1471 = vmatpush.xpose.msra.mxu0 %v1438
  %1472 = vmatpush.xpose.msra.mxu0 %v1435
  %1473 = vmatpush.xpose.msra.mxu0 %v1432
  %1474 = vmatmul.f32.gmra.mxu0 %v1429
  %v1475 = vpop.f32.mrf.mxu0
  %v1476 = vadd.f32 0.0, %v1475
  %1477 = vdwg.mxu0
  %v1478 = vmul.f32 %v1476, 0.35355338
  %v1479 = vperm.slane %v428, 1
  %v1480 = vadd.f32 %v1478, %v1479
  %v1481 = vsel %vm483, %v1480, -inf
  %1482 = vmax.xlane.f32.xlu0 %v1481
  %v1483 = vpop.xlane.xlu0 %1482
  %v1484 = vsub.f32 %v1480, %v1483
  %v1485 = vmul.f32 %v1484, 1.442695
  %v1486 = vpow.pop %v1485
  %v1487 = vsel %vm483, %v1486, 0.0
  %1488 = vadd.xlane.f32.xlu0 %v1487
  %v1489 = vpop.xlane.xlu0 %1488
  %v1490 = vrcp.pop %v1489
  %v1491 = vmul.f32 %v1486, %v1490
  %v1493 = vsel %vm483, %v1491, 0
  %1495 = vmatpush.msra.mxu0 0.0
  %1496 = vmatpush.msra.mxu0 0.0
  %1497 = vmatpush.msra.mxu0 0.0
  %1498 = vmatpush.msra.mxu0 0.0
  %1499 = vmatpush.msra.mxu0 0.0
  %1500 = vmatpush.msra.mxu0 0.0
  %1501 = vmatpush.msra.mxu0 0.0
  %1502 = vmatpush.msra.mxu0 %v426
  %1503 = vmatpush.msra.mxu0 %v423
  %1504 = vmatpush.msra.mxu0 %v420
  %1505 = vmatpush.msra.mxu0 %v417
  %1506 = vmatpush.msra.mxu0 %v414
  %1507 = vmatpush.msra.mxu0 %v411
  %1508 = vmatpush.msra.mxu0 %v408
  %1509 = vmatpush.msra.mxu0 %v405
  %1510 = vmatpush.msra.mxu0 %v402
  %1511 = vmatmul.f32.gmra.mxu0 %v1493
  %v1512 = vpop.f32.mrf.mxu0
  %v1513 = vadd.f32 0.0, %v1512
  %1514 = vdwg.mxu0
  %1515 = vrot.lane.b32.xlu0 %v160, 120
  %v1516 = vpop.permute.xlu0 %1515
  %1517 = vrot.lane.b32.xlu0 %v269, 120
  %v1518 = vpop.permute.xlu0 %1517
  %1519 = vrot.lane.b32.xlu0 %v272, 120
  %v1520 = vpop.permute.xlu0 %1519
  %1521 = vrot.lane.b32.xlu0 %v275, 120
  %v1522 = vpop.permute.xlu0 %1521
  %1523 = vrot.lane.b32.xlu0 %v278, 120
  %v1524 = vpop.permute.xlu0 %1523
  %1525 = vrot.lane.b32.xlu0 %v281, 120
  %v1526 = vpop.permute.xlu0 %1525
  %1527 = vrot.lane.b32.xlu0 %v284, 120
  %v1528 = vpop.permute.xlu0 %1527
  %1529 = vrot.lane.b32.xlu0 %v287, 120
  %v1530 = vpop.permute.xlu0 %1529
  %1531 = vrot.lane.b32.xlu0 %v290, 120
  %v1532 = vpop.permute.xlu0 %1531
  %1533 = vrot.lane.b32.xlu0 %v293, 120
  %v1534 = vpop.permute.xlu0 %1533
  %v1535 = vsel %vm429, %v1516, 0
  %v1537 = vsel %vm429, %v1518, 0
  %v1539 = vsel %vm429, %v1520, 0
  %v1541 = vsel %vm429, %v1522, 0
  %v1543 = vsel %vm429, %v1524, 0
  %v1545 = vsel %vm429, %v1526, 0
  %v1547 = vsel %vm429, %v1528, 0
  %v1549 = vsel %vm429, %v1530, 0
  %v1551 = vsel %vm429, %v1532, 0
  %v1553 = vsel %vm429, %v1534, 0
  %1555 = vmatpush.xpose.msra.mxu0 0.0
  %1556 = vmatpush.xpose.msra.mxu0 0.0
  %1557 = vmatpush.xpose.msra.mxu0 0.0
  %1558 = vmatpush.xpose.msra.mxu0 0.0
  %1559 = vmatpush.xpose.msra.mxu0 0.0
  %1560 = vmatpush.xpose.msra.mxu0 0.0
  %1561 = vmatpush.xpose.msra.mxu0 0.0
  %1562 = vmatpush.xpose.msra.mxu0 %v1553
  %1563 = vmatpush.xpose.msra.mxu0 %v1551
  %1564 = vmatpush.xpose.msra.mxu0 %v1549
  %1565 = vmatpush.xpose.msra.mxu0 %v1547
  %1566 = vmatpush.xpose.msra.mxu0 %v1545
  %1567 = vmatpush.xpose.msra.mxu0 %v1543
  %1568 = vmatpush.xpose.msra.mxu0 %v1541
  %1569 = vmatpush.xpose.msra.mxu0 %v1539
  %1570 = vmatpush.xpose.msra.mxu0 %v1537
  %1571 = vmatmul.f32.gmra.mxu0 %v1535
  %v1572 = vpop.f32.mrf.mxu0
  %v1573 = vadd.f32 0.0, %v1572
  %1574 = vdwg.mxu0
  %v1575 = vmul.f32 %v1573, 0.35355338
  %v1576 = vadd.f32 %v1575, %v1479
  %v1577 = vsel %vm483, %v1576, -inf
  %1578 = vmax.xlane.f32.xlu0 %v1577
  %v1579 = vpop.xlane.xlu0 %1578
  %v1580 = vsub.f32 %v1576, %v1579
  %v1581 = vmul.f32 %v1580, 1.442695
  %v1582 = vpow.pop %v1581
  %v1583 = vsel %vm483, %v1582, 0.0
  %1584 = vadd.xlane.f32.xlu0 %v1583
  %v1585 = vpop.xlane.xlu0 %1584
  %v1586 = vrcp.pop %v1585
  %v1587 = vmul.f32 %v1582, %v1586
  %1597 = vrot.lane.b32.xlu0 %v402, 120
  %v1598 = vpop.permute.xlu0 %1597
  %1599 = vrot.lane.b32.xlu0 %v405, 120
  %v1600 = vpop.permute.xlu0 %1599
  %1601 = vrot.lane.b32.xlu0 %v408, 120
  %v1602 = vpop.permute.xlu0 %1601
  %1603 = vrot.lane.b32.xlu0 %v411, 120
  %v1604 = vpop.permute.xlu0 %1603
  %1605 = vrot.lane.b32.xlu0 %v414, 120
  %v1606 = vpop.permute.xlu0 %1605
  %1607 = vrot.lane.b32.xlu0 %v417, 120
  %v1608 = vpop.permute.xlu0 %1607
  %1609 = vrot.lane.b32.xlu0 %v420, 120
  %v1610 = vpop.permute.xlu0 %1609
  %1611 = vrot.lane.b32.xlu0 %v423, 120
  %v1612 = vpop.permute.xlu0 %1611
  %1613 = vrot.lane.b32.xlu0 %v426, 120
  %v1614 = vpop.permute.xlu0 %1613
  %v1625 = vsel %vm483, %v1587, 0
  %1627 = vmatpush.msra.mxu0 0.0
  %1628 = vmatpush.msra.mxu0 0.0
  %1629 = vmatpush.msra.mxu0 0.0
  %1630 = vmatpush.msra.mxu0 0.0
  %1631 = vmatpush.msra.mxu0 0.0
  %1632 = vmatpush.msra.mxu0 0.0
  %1633 = vmatpush.msra.mxu0 0.0
  %1634 = vmatpush.msra.mxu0 %v1614
  %1635 = vmatpush.msra.mxu0 %v1612
  %1636 = vmatpush.msra.mxu0 %v1610
  %1637 = vmatpush.msra.mxu0 %v1608
  %1638 = vmatpush.msra.mxu0 %v1606
  %1639 = vmatpush.msra.mxu0 %v1604
  %1640 = vmatpush.msra.mxu0 %v1602
  %1641 = vmatpush.msra.mxu0 %v1600
  %1642 = vmatpush.msra.mxu0 %v1598
  %1643 = vmatmul.f32.gmra.mxu0 %v1625
  %v1644 = vpop.f32.mrf.mxu0
  %v1645 = vadd.f32 0.0, %v1644
  %1646 = vdwg.mxu0
  %1647 = vrot.lane.b32.xlu0 %v160, 112
  %v1648 = vpop.permute.xlu0 %1647
  %1649 = vrot.lane.b32.xlu0 %v269, 112
  %v1650 = vpop.permute.xlu0 %1649
  %1651 = vrot.lane.b32.xlu0 %v272, 112
  %v1652 = vpop.permute.xlu0 %1651
  %1653 = vrot.lane.b32.xlu0 %v275, 112
  %v1654 = vpop.permute.xlu0 %1653
  %1655 = vrot.lane.b32.xlu0 %v278, 112
  %v1656 = vpop.permute.xlu0 %1655
  %1657 = vrot.lane.b32.xlu0 %v281, 112
  %v1658 = vpop.permute.xlu0 %1657
  %1659 = vrot.lane.b32.xlu0 %v284, 112
  %v1660 = vpop.permute.xlu0 %1659
  %1661 = vrot.lane.b32.xlu0 %v287, 112
  %v1662 = vpop.permute.xlu0 %1661
  %1663 = vrot.lane.b32.xlu0 %v290, 112
  %v1664 = vpop.permute.xlu0 %1663
  %1665 = vrot.lane.b32.xlu0 %v293, 112
  %v1666 = vpop.permute.xlu0 %1665
  %v1667 = vsel %vm429, %v1648, 0
  %v1669 = vsel %vm429, %v1650, 0
  %v1671 = vsel %vm429, %v1652, 0
  %v1673 = vsel %vm429, %v1654, 0
  %v1675 = vsel %vm429, %v1656, 0
  %v1677 = vsel %vm429, %v1658, 0
  %v1679 = vsel %vm429, %v1660, 0
  %v1681 = vsel %vm429, %v1662, 0
  %v1683 = vsel %vm429, %v1664, 0
  %v1685 = vsel %vm429, %v1666, 0
  %1687 = vmatpush.xpose.msra.mxu0 0.0
  %1688 = vmatpush.xpose.msra.mxu0 0.0
  %1689 = vmatpush.xpose.msra.mxu0 0.0
  %1690 = vmatpush.xpose.msra.mxu0 0.0
  %1691 = vmatpush.xpose.msra.mxu0 0.0
  %1692 = vmatpush.xpose.msra.mxu0 0.0
  %1693 = vmatpush.xpose.msra.mxu0 0.0
  %1694 = vmatpush.xpose.msra.mxu0 %v1685
  %1695 = vmatpush.xpose.msra.mxu0 %v1683
  %1696 = vmatpush.xpose.msra.mxu0 %v1681
  %1697 = vmatpush.xpose.msra.mxu0 %v1679
  %1698 = vmatpush.xpose.msra.mxu0 %v1677
  %1699 = vmatpush.xpose.msra.mxu0 %v1675
  %1700 = vmatpush.xpose.msra.mxu0 %v1673
  %1701 = vmatpush.xpose.msra.mxu0 %v1671
  %1702 = vmatpush.xpose.msra.mxu0 %v1669
  %1703 = vmatmul.f32.gmra.mxu0 %v1667
  %v1704 = vpop.f32.mrf.mxu0
  %v1705 = vadd.f32 0.0, %v1704
  %1706 = vdwg.mxu0
  %v1707 = vmul.f32 %v1705, 0.35355338
  %v1708 = vadd.f32 %v1707, %v1479
  %v1709 = vsel %vm483, %v1708, -inf
  %1710 = vmax.xlane.f32.xlu0 %v1709
  %v1711 = vpop.xlane.xlu0 %1710
  %v1712 = vsub.f32 %v1708, %v1711
  %v1713 = vmul.f32 %v1712, 1.442695
  %v1714 = vpow.pop %v1713
  %v1715 = vsel %vm483, %v1714, 0.0
  %1716 = vadd.xlane.f32.xlu0 %v1715
  %v1717 = vpop.xlane.xlu0 %1716
  %v1718 = vrcp.pop %v1717
  %v1719 = vmul.f32 %v1714, %v1718
  %1720 = vrot.lane.b32.xlu0 %v402, 112
  %v1721 = vpop.permute.xlu0 %1720
  %1722 = vrot.lane.b32.xlu0 %v405, 112
  %v1723 = vpop.permute.xlu0 %1722
  %1724 = vrot.lane.b32.xlu0 %v408, 112
  %v1725 = vpop.permute.xlu0 %1724
  %1726 = vrot.lane.b32.xlu0 %v411, 112
  %v1727 = vpop.permute.xlu0 %1726
  %1728 = vrot.lane.b32.xlu0 %v414, 112
  %v1729 = vpop.permute.xlu0 %1728
  %1730 = vrot.lane.b32.xlu0 %v417, 112
  %v1731 = vpop.permute.xlu0 %1730
  %1732 = vrot.lane.b32.xlu0 %v420, 112
  %v1733 = vpop.permute.xlu0 %1732
  %1734 = vrot.lane.b32.xlu0 %v423, 112
  %v1735 = vpop.permute.xlu0 %1734
  %1736 = vrot.lane.b32.xlu0 %v426, 112
  %v1737 = vpop.permute.xlu0 %1736
  %v1748 = vsel %vm483, %v1719, 0
  %1750 = vmatpush.msra.mxu0 0.0
  %1751 = vmatpush.msra.mxu0 0.0
  %1752 = vmatpush.msra.mxu0 0.0
  %1753 = vmatpush.msra.mxu0 0.0
  %1754 = vmatpush.msra.mxu0 0.0
  %1755 = vmatpush.msra.mxu0 0.0
  %1756 = vmatpush.msra.mxu0 0.0
  %1757 = vmatpush.msra.mxu0 %v1737
  %1758 = vmatpush.msra.mxu0 %v1735
  %1759 = vmatpush.msra.mxu0 %v1733
  %1760 = vmatpush.msra.mxu0 %v1731
  %1761 = vmatpush.msra.mxu0 %v1729
  %1762 = vmatpush.msra.mxu0 %v1727
  %1763 = vmatpush.msra.mxu0 %v1725
  %1764 = vmatpush.msra.mxu0 %v1723
  %1765 = vmatpush.msra.mxu0 %v1721
  %1766 = vmatmul.f32.gmra.mxu0 %v1748
  %v1767 = vpop.f32.mrf.mxu0
  %v1768 = vadd.f32 0.0, %v1767
  %1769 = vdwg.mxu0
  %1770 = vrot.lane.b32.xlu0 %v160, 104
  %v1771 = vpop.permute.xlu0 %1770
  %1772 = vrot.lane.b32.xlu0 %v269, 104
  %v1773 = vpop.permute.xlu0 %1772
  %1774 = vrot.lane.b32.xlu0 %v272, 104
  %v1775 = vpop.permute.xlu0 %1774
  %1776 = vrot.lane.b32.xlu0 %v275, 104
  %v1777 = vpop.permute.xlu0 %1776
  %1778 = vrot.lane.b32.xlu0 %v278, 104
  %v1779 = vpop.permute.xlu0 %1778
  %1780 = vrot.lane.b32.xlu0 %v281, 104
  %v1781 = vpop.permute.xlu0 %1780
  %1782 = vrot.lane.b32.xlu0 %v284, 104
  %v1783 = vpop.permute.xlu0 %1782
  %1784 = vrot.lane.b32.xlu0 %v287, 104
  %v1785 = vpop.permute.xlu0 %1784
  %1786 = vrot.lane.b32.xlu0 %v290, 104
  %v1787 = vpop.permute.xlu0 %1786
  %1788 = vrot.lane.b32.xlu0 %v293, 104
  %v1789 = vpop.permute.xlu0 %1788
  %v1790 = vsel %vm429, %v1771, 0
  %v1792 = vsel %vm429, %v1773, 0
  %v1794 = vsel %vm429, %v1775, 0
  %v1796 = vsel %vm429, %v1777, 0
  %v1798 = vsel %vm429, %v1779, 0
  %v1800 = vsel %vm429, %v1781, 0
  %v1802 = vsel %vm429, %v1783, 0
  %v1804 = vsel %vm429, %v1785, 0
  %v1806 = vsel %vm429, %v1787, 0
  %v1808 = vsel %vm429, %v1789, 0
  %1810 = vmatpush.xpose.msra.mxu0 0.0
  %1811 = vmatpush.xpose.msra.mxu0 0.0
  %1812 = vmatpush.xpose.msra.mxu0 0.0
  %1813 = vmatpush.xpose.msra.mxu0 0.0
  %1814 = vmatpush.xpose.msra.mxu0 0.0
  %1815 = vmatpush.xpose.msra.mxu0 0.0
  %1816 = vmatpush.xpose.msra.mxu0 0.0
  %1817 = vmatpush.xpose.msra.mxu0 %v1808
  %1818 = vmatpush.xpose.msra.mxu0 %v1806
  %1819 = vmatpush.xpose.msra.mxu0 %v1804
  %1820 = vmatpush.xpose.msra.mxu0 %v1802
  %1821 = vmatpush.xpose.msra.mxu0 %v1800
  %1822 = vmatpush.xpose.msra.mxu0 %v1798
  %1823 = vmatpush.xpose.msra.mxu0 %v1796
  %1824 = vmatpush.xpose.msra.mxu0 %v1794
  %1825 = vmatpush.xpose.msra.mxu0 %v1792
  %1826 = vmatmul.f32.gmra.mxu0 %v1790
  %v1827 = vpop.f32.mrf.mxu0
  %v1828 = vadd.f32 0.0, %v1827
  %1829 = vdwg.mxu0
  %v1830 = vmul.f32 %v1828, 0.35355338
  %v1831 = vadd.f32 %v1830, %v1479
  %v1832 = vsel %vm483, %v1831, -inf
  %1833 = vmax.xlane.f32.xlu0 %v1832
  %v1834 = vpop.xlane.xlu0 %1833
  %v1835 = vsub.f32 %v1831, %v1834
  %v1836 = vmul.f32 %v1835, 1.442695
  %v1837 = vpow.pop %v1836
  %v1838 = vsel %vm483, %v1837, 0.0
  %1839 = vadd.xlane.f32.xlu0 %v1838
  %v1840 = vpop.xlane.xlu0 %1839
  %v1841 = vrcp.pop %v1840
  %v1842 = vmul.f32 %v1837, %v1841
  %1843 = vrot.lane.b32.xlu0 %v402, 104
  %v1844 = vpop.permute.xlu0 %1843
  %1845 = vrot.lane.b32.xlu0 %v405, 104
  %v1846 = vpop.permute.xlu0 %1845
  %1847 = vrot.lane.b32.xlu0 %v408, 104
  %v1848 = vpop.permute.xlu0 %1847
  %1849 = vrot.lane.b32.xlu0 %v411, 104
  %v1850 = vpop.permute.xlu0 %1849
  %1851 = vrot.lane.b32.xlu0 %v414, 104
  %v1852 = vpop.permute.xlu0 %1851
  %1853 = vrot.lane.b32.xlu0 %v417, 104
  %v1854 = vpop.permute.xlu0 %1853
  %1855 = vrot.lane.b32.xlu0 %v420, 104
  %v1856 = vpop.permute.xlu0 %1855
  %1857 = vrot.lane.b32.xlu0 %v423, 104
  %v1858 = vpop.permute.xlu0 %1857
  %1859 = vrot.lane.b32.xlu0 %v426, 104
  %v1860 = vpop.permute.xlu0 %1859
  %v1871 = vsel %vm483, %v1842, 0
  %1873 = vmatpush.msra.mxu0 0.0
  %1874 = vmatpush.msra.mxu0 0.0
  %1875 = vmatpush.msra.mxu0 0.0
  %1876 = vmatpush.msra.mxu0 0.0
  %1877 = vmatpush.msra.mxu0 0.0
  %1878 = vmatpush.msra.mxu0 0.0
  %1879 = vmatpush.msra.mxu0 0.0
  %1880 = vmatpush.msra.mxu0 %v1860
  %1881 = vmatpush.msra.mxu0 %v1858
  %1882 = vmatpush.msra.mxu0 %v1856
  %1883 = vmatpush.msra.mxu0 %v1854
  %1884 = vmatpush.msra.mxu0 %v1852
  %1885 = vmatpush.msra.mxu0 %v1850
  %1886 = vmatpush.msra.mxu0 %v1848
  %1887 = vmatpush.msra.mxu0 %v1846
  %1888 = vmatpush.msra.mxu0 %v1844
  %1889 = vmatmul.f32.gmra.mxu0 %v1871
  %v1890 = vpop.f32.mrf.mxu0
  %v1891 = vadd.f32 0.0, %v1890
  %1892 = vdwg.mxu0
  %1893 = vrot.lane.b32.xlu0 %v160, 96
  %v1894 = vpop.permute.xlu0 %1893
  %1895 = vrot.lane.b32.xlu0 %v269, 96
  %v1896 = vpop.permute.xlu0 %1895
  %1897 = vrot.lane.b32.xlu0 %v272, 96
  %v1898 = vpop.permute.xlu0 %1897
  %1899 = vrot.lane.b32.xlu0 %v275, 96
  %v1900 = vpop.permute.xlu0 %1899
  %1901 = vrot.lane.b32.xlu0 %v278, 96
  %v1902 = vpop.permute.xlu0 %1901
  %1903 = vrot.lane.b32.xlu0 %v281, 96
  %v1904 = vpop.permute.xlu0 %1903
  %1905 = vrot.lane.b32.xlu0 %v284, 96
  %v1906 = vpop.permute.xlu0 %1905
  %1907 = vrot.lane.b32.xlu0 %v287, 96
  %v1908 = vpop.permute.xlu0 %1907
  %1909 = vrot.lane.b32.xlu0 %v290, 96
  %v1910 = vpop.permute.xlu0 %1909
  %1911 = vrot.lane.b32.xlu0 %v293, 96
  %v1912 = vpop.permute.xlu0 %1911
  %v1913 = vsel %vm429, %v1894, 0
  %v1915 = vsel %vm429, %v1896, 0
  %v1917 = vsel %vm429, %v1898, 0
  %v1919 = vsel %vm429, %v1900, 0
  %v1921 = vsel %vm429, %v1902, 0
  %v1923 = vsel %vm429, %v1904, 0
  %v1925 = vsel %vm429, %v1906, 0
  %v1927 = vsel %vm429, %v1908, 0
  %v1929 = vsel %vm429, %v1910, 0
  %v1931 = vsel %vm429, %v1912, 0
  %1933 = vmatpush.xpose.msra.mxu0 0.0
  %1934 = vmatpush.xpose.msra.mxu0 0.0
  %1935 = vmatpush.xpose.msra.mxu0 0.0
  %1936 = vmatpush.xpose.msra.mxu0 0.0
  %1937 = vmatpush.xpose.msra.mxu0 0.0
  %1938 = vmatpush.xpose.msra.mxu0 0.0
  %1939 = vmatpush.xpose.msra.mxu0 0.0
  %1940 = vmatpush.xpose.msra.mxu0 %v1931
  %1941 = vmatpush.xpose.msra.mxu0 %v1929
  %1942 = vmatpush.xpose.msra.mxu0 %v1927
  %1943 = vmatpush.xpose.msra.mxu0 %v1925
  %1944 = vmatpush.xpose.msra.mxu0 %v1923
  %1945 = vmatpush.xpose.msra.mxu0 %v1921
  %1946 = vmatpush.xpose.msra.mxu0 %v1919
  %1947 = vmatpush.xpose.msra.mxu0 %v1917
  %1948 = vmatpush.xpose.msra.mxu0 %v1915
  %1949 = vmatmul.f32.gmra.mxu0 %v1913
  %v1950 = vpop.f32.mrf.mxu0
  %v1951 = vadd.f32 0.0, %v1950
  %1952 = vdwg.mxu0
  %v1953 = vmul.f32 %v1951, 0.35355338
  %v1954 = vadd.f32 %v1953, %v1479
  %v1955 = vsel %vm483, %v1954, -inf
  %1956 = vmax.xlane.f32.xlu0 %v1955
  %v1957 = vpop.xlane.xlu0 %1956
  %v1958 = vsub.f32 %v1954, %v1957
  %v1959 = vmul.f32 %v1958, 1.442695
  %v1960 = vpow.pop %v1959
  %v1961 = vsel %vm483, %v1960, 0.0
  %1962 = vadd.xlane.f32.xlu0 %v1961
  %v1963 = vpop.xlane.xlu0 %1962
  %v1964 = vrcp.pop %v1963
  %v1965 = vmul.f32 %v1960, %v1964
  %1966 = vrot.lane.b32.xlu0 %v402, 96
  %v1967 = vpop.permute.xlu0 %1966
  %1968 = vrot.lane.b32.xlu0 %v405, 96
  %v1969 = vpop.permute.xlu0 %1968
  %1970 = vrot.lane.b32.xlu0 %v408, 96
  %v1971 = vpop.permute.xlu0 %1970
  %1972 = vrot.lane.b32.xlu0 %v411, 96
  %v1973 = vpop.permute.xlu0 %1972
  %1974 = vrot.lane.b32.xlu0 %v414, 96
  %v1975 = vpop.permute.xlu0 %1974
  %1976 = vrot.lane.b32.xlu0 %v417, 96
  %v1977 = vpop.permute.xlu0 %1976
  %1978 = vrot.lane.b32.xlu0 %v420, 96
  %v1979 = vpop.permute.xlu0 %1978
  %1980 = vrot.lane.b32.xlu0 %v423, 96
  %v1981 = vpop.permute.xlu0 %1980
  %1982 = vrot.lane.b32.xlu0 %v426, 96
  %v1983 = vpop.permute.xlu0 %1982
  %v1994 = vsel %vm483, %v1965, 0
  %1996 = vmatpush.msra.mxu0 0.0
  %1997 = vmatpush.msra.mxu0 0.0
  %1998 = vmatpush.msra.mxu0 0.0
  %1999 = vmatpush.msra.mxu0 0.0
  %2000 = vmatpush.msra.mxu0 0.0
  %2001 = vmatpush.msra.mxu0 0.0
  %2002 = vmatpush.msra.mxu0 0.0
  %2003 = vmatpush.msra.mxu0 %v1983
  %2004 = vmatpush.msra.mxu0 %v1981
  %2005 = vmatpush.msra.mxu0 %v1979
  %2006 = vmatpush.msra.mxu0 %v1977
  %2007 = vmatpush.msra.mxu0 %v1975
  %2008 = vmatpush.msra.mxu0 %v1973
  %2009 = vmatpush.msra.mxu0 %v1971
  %2010 = vmatpush.msra.mxu0 %v1969
  %2011 = vmatpush.msra.mxu0 %v1967
  %2012 = vmatmul.f32.gmra.mxu0 %v1994
  %v2013 = vpop.f32.mrf.mxu0
  %v2014 = vadd.f32 0.0, %v2013
  %2015 = vdwg.mxu0
  %2016 = vrot.lane.b32.xlu0 %v160, 88
  %v2017 = vpop.permute.xlu0 %2016
  %2018 = vrot.lane.b32.xlu0 %v269, 88
  %v2019 = vpop.permute.xlu0 %2018
  %2020 = vrot.lane.b32.xlu0 %v272, 88
  %v2021 = vpop.permute.xlu0 %2020
  %2022 = vrot.lane.b32.xlu0 %v275, 88
  %v2023 = vpop.permute.xlu0 %2022
  %2024 = vrot.lane.b32.xlu0 %v278, 88
  %v2025 = vpop.permute.xlu0 %2024
  %2026 = vrot.lane.b32.xlu0 %v281, 88
  %v2027 = vpop.permute.xlu0 %2026
  %2028 = vrot.lane.b32.xlu0 %v284, 88
  %v2029 = vpop.permute.xlu0 %2028
  %2030 = vrot.lane.b32.xlu0 %v287, 88
  %v2031 = vpop.permute.xlu0 %2030
  %2032 = vrot.lane.b32.xlu0 %v290, 88
  %v2033 = vpop.permute.xlu0 %2032
  %2034 = vrot.lane.b32.xlu0 %v293, 88
  %v2035 = vpop.permute.xlu0 %2034
  %v2036 = vsel %vm429, %v2017, 0
  %v2038 = vsel %vm429, %v2019, 0
  %v2040 = vsel %vm429, %v2021, 0
  %v2042 = vsel %vm429, %v2023, 0
  %v2044 = vsel %vm429, %v2025, 0
  %v2046 = vsel %vm429, %v2027, 0
  %v2048 = vsel %vm429, %v2029, 0
  %v2050 = vsel %vm429, %v2031, 0
  %v2052 = vsel %vm429, %v2033, 0
  %v2054 = vsel %vm429, %v2035, 0
  %2056 = vmatpush.xpose.msra.mxu0 0.0
  %2057 = vmatpush.xpose.msra.mxu0 0.0
  %2058 = vmatpush.xpose.msra.mxu0 0.0
  %2059 = vmatpush.xpose.msra.mxu0 0.0
  %2060 = vmatpush.xpose.msra.mxu0 0.0
  %2061 = vmatpush.xpose.msra.mxu0 0.0
  %2062 = vmatpush.xpose.msra.mxu0 0.0
  %2063 = vmatpush.xpose.msra.mxu0 %v2054
  %2064 = vmatpush.xpose.msra.mxu0 %v2052
  %2065 = vmatpush.xpose.msra.mxu0 %v2050
  %2066 = vmatpush.xpose.msra.mxu0 %v2048
  %2067 = vmatpush.xpose.msra.mxu0 %v2046
  %2068 = vmatpush.xpose.msra.mxu0 %v2044
  %2069 = vmatpush.xpose.msra.mxu0 %v2042
  %2070 = vmatpush.xpose.msra.mxu0 %v2040
  %2071 = vmatpush.xpose.msra.mxu0 %v2038
  %2072 = vmatmul.f32.gmra.mxu0 %v2036
  %v2073 = vpop.f32.mrf.mxu0
  %v2074 = vadd.f32 0.0, %v2073
  %2075 = vdwg.mxu0
  %v2076 = vmul.f32 %v2074, 0.35355338
  %v2077 = vadd.f32 %v2076, %v1479
  %v2078 = vsel %vm483, %v2077, -inf
  %2079 = vmax.xlane.f32.xlu0 %v2078
  %v2080 = vpop.xlane.xlu0 %2079
  %v2081 = vsub.f32 %v2077, %v2080
  %v2082 = vmul.f32 %v2081, 1.442695
  %v2083 = vpow.pop %v2082
  %v2084 = vsel %vm483, %v2083, 0.0
  %2085 = vadd.xlane.f32.xlu0 %v2084
  %v2086 = vpop.xlane.xlu0 %2085
  %v2087 = vrcp.pop %v2086
  %v2088 = vmul.f32 %v2083, %v2087
  %2089 = vrot.lane.b32.xlu0 %v402, 88
  %v2090 = vpop.permute.xlu0 %2089
  %2091 = vrot.lane.b32.xlu0 %v405, 88
  %v2092 = vpop.permute.xlu0 %2091
  %2093 = vrot.lane.b32.xlu0 %v408, 88
  %v2094 = vpop.permute.xlu0 %2093
  %2095 = vrot.lane.b32.xlu0 %v411, 88
  %v2096 = vpop.permute.xlu0 %2095
  %2097 = vrot.lane.b32.xlu0 %v414, 88
  %v2098 = vpop.permute.xlu0 %2097
  %2099 = vrot.lane.b32.xlu0 %v417, 88
  %v2100 = vpop.permute.xlu0 %2099
  %2101 = vrot.lane.b32.xlu0 %v420, 88
  %v2102 = vpop.permute.xlu0 %2101
  %2103 = vrot.lane.b32.xlu0 %v423, 88
  %v2104 = vpop.permute.xlu0 %2103
  %2105 = vrot.lane.b32.xlu0 %v426, 88
  %v2106 = vpop.permute.xlu0 %2105
  %v2117 = vsel %vm483, %v2088, 0
  %2119 = vmatpush.msra.mxu0 0.0
  %2120 = vmatpush.msra.mxu0 0.0
  %2121 = vmatpush.msra.mxu0 0.0
  %2122 = vmatpush.msra.mxu0 0.0
  %2123 = vmatpush.msra.mxu0 0.0
  %2124 = vmatpush.msra.mxu0 0.0
  %2125 = vmatpush.msra.mxu0 0.0
  %2126 = vmatpush.msra.mxu0 %v2106
  %2127 = vmatpush.msra.mxu0 %v2104
  %2128 = vmatpush.msra.mxu0 %v2102
  %2129 = vmatpush.msra.mxu0 %v2100
  %2130 = vmatpush.msra.mxu0 %v2098
  %2131 = vmatpush.msra.mxu0 %v2096
  %2132 = vmatpush.msra.mxu0 %v2094
  %2133 = vmatpush.msra.mxu0 %v2092
  %2134 = vmatpush.msra.mxu0 %v2090
  %2135 = vmatmul.f32.gmra.mxu0 %v2117
  %v2136 = vpop.f32.mrf.mxu0
  %v2137 = vadd.f32 0.0, %v2136
  %2138 = vdwg.mxu0
  %2139 = vrot.lane.b32.xlu0 %v160, 80
  %v2140 = vpop.permute.xlu0 %2139
  %2141 = vrot.lane.b32.xlu0 %v269, 80
  %v2142 = vpop.permute.xlu0 %2141
  %2143 = vrot.lane.b32.xlu0 %v272, 80
  %v2144 = vpop.permute.xlu0 %2143
  %2145 = vrot.lane.b32.xlu0 %v275, 80
  %v2146 = vpop.permute.xlu0 %2145
  %2147 = vrot.lane.b32.xlu0 %v278, 80
  %v2148 = vpop.permute.xlu0 %2147
  %2149 = vrot.lane.b32.xlu0 %v281, 80
  %v2150 = vpop.permute.xlu0 %2149
  %2151 = vrot.lane.b32.xlu0 %v284, 80
  %v2152 = vpop.permute.xlu0 %2151
  %2153 = vrot.lane.b32.xlu0 %v287, 80
  %v2154 = vpop.permute.xlu0 %2153
  %2155 = vrot.lane.b32.xlu0 %v290, 80
  %v2156 = vpop.permute.xlu0 %2155
  %2157 = vrot.lane.b32.xlu0 %v293, 80
  %v2158 = vpop.permute.xlu0 %2157
  %v2159 = vsel %vm429, %v2140, 0
  %v2161 = vsel %vm429, %v2142, 0
  %v2163 = vsel %vm429, %v2144, 0
  %v2165 = vsel %vm429, %v2146, 0
  %v2167 = vsel %vm429, %v2148, 0
  %v2169 = vsel %vm429, %v2150, 0
  %v2171 = vsel %vm429, %v2152, 0
  %v2173 = vsel %vm429, %v2154, 0
  %v2175 = vsel %vm429, %v2156, 0
  %v2177 = vsel %vm429, %v2158, 0
  %2179 = vmatpush.xpose.msra.mxu0 0.0
  %2180 = vmatpush.xpose.msra.mxu0 0.0
  %2181 = vmatpush.xpose.msra.mxu0 0.0
  %2182 = vmatpush.xpose.msra.mxu0 0.0
  %2183 = vmatpush.xpose.msra.mxu0 0.0
  %2184 = vmatpush.xpose.msra.mxu0 0.0
  %2185 = vmatpush.xpose.msra.mxu0 0.0
  %2186 = vmatpush.xpose.msra.mxu0 %v2177
  %2187 = vmatpush.xpose.msra.mxu0 %v2175
  %2188 = vmatpush.xpose.msra.mxu0 %v2173
  %2189 = vmatpush.xpose.msra.mxu0 %v2171
  %2190 = vmatpush.xpose.msra.mxu0 %v2169
  %2191 = vmatpush.xpose.msra.mxu0 %v2167
  %2192 = vmatpush.xpose.msra.mxu0 %v2165
  %2193 = vmatpush.xpose.msra.mxu0 %v2163
  %2194 = vmatpush.xpose.msra.mxu0 %v2161
  %2195 = vmatmul.f32.gmra.mxu0 %v2159
  %v2196 = vpop.f32.mrf.mxu0
  %v2197 = vadd.f32 0.0, %v2196
  %2198 = vdwg.mxu0
  %v2199 = vmul.f32 %v2197, 0.35355338
  %v2200 = vadd.f32 %v2199, %v1479
  %v2201 = vsel %vm483, %v2200, -inf
  %2202 = vmax.xlane.f32.xlu0 %v2201
  %v2203 = vpop.xlane.xlu0 %2202
  %v2204 = vsub.f32 %v2200, %v2203
  %v2205 = vmul.f32 %v2204, 1.442695
  %v2206 = vpow.pop %v2205
  %v2207 = vsel %vm483, %v2206, 0.0
  %2208 = vadd.xlane.f32.xlu0 %v2207
  %v2209 = vpop.xlane.xlu0 %2208
  %v2210 = vrcp.pop %v2209
  %v2211 = vmul.f32 %v2206, %v2210
  %2212 = vrot.lane.b32.xlu0 %v402, 80
  %v2213 = vpop.permute.xlu0 %2212
  %2214 = vrot.lane.b32.xlu0 %v405, 80
  %v2215 = vpop.permute.xlu0 %2214
  %2216 = vrot.lane.b32.xlu0 %v408, 80
  %v2217 = vpop.permute.xlu0 %2216
  %2218 = vrot.lane.b32.xlu0 %v411, 80
  %v2219 = vpop.permute.xlu0 %2218
  %2220 = vrot.lane.b32.xlu0 %v414, 80
  %v2221 = vpop.permute.xlu0 %2220
  %2222 = vrot.lane.b32.xlu0 %v417, 80
  %v2223 = vpop.permute.xlu0 %2222
  %2224 = vrot.lane.b32.xlu0 %v420, 80
  %v2225 = vpop.permute.xlu0 %2224
  %2226 = vrot.lane.b32.xlu0 %v423, 80
  %v2227 = vpop.permute.xlu0 %2226
  %2228 = vrot.lane.b32.xlu0 %v426, 80
  %v2229 = vpop.permute.xlu0 %2228
  %v2240 = vsel %vm483, %v2211, 0
  %2242 = vmatpush.msra.mxu0 0.0
  %2243 = vmatpush.msra.mxu0 0.0
  %2244 = vmatpush.msra.mxu0 0.0
  %2245 = vmatpush.msra.mxu0 0.0
  %2246 = vmatpush.msra.mxu0 0.0
  %2247 = vmatpush.msra.mxu0 0.0
  %2248 = vmatpush.msra.mxu0 0.0
  %2249 = vmatpush.msra.mxu0 %v2229
  %2250 = vmatpush.msra.mxu0 %v2227
  %2251 = vmatpush.msra.mxu0 %v2225
  %2252 = vmatpush.msra.mxu0 %v2223
  %2253 = vmatpush.msra.mxu0 %v2221
  %2254 = vmatpush.msra.mxu0 %v2219
  %2255 = vmatpush.msra.mxu0 %v2217
  %2256 = vmatpush.msra.mxu0 %v2215
  %2257 = vmatpush.msra.mxu0 %v2213
  %2258 = vmatmul.f32.gmra.mxu0 %v2240
  %v2259 = vpop.f32.mrf.mxu0
  %v2260 = vadd.f32 0.0, %v2259
  %2261 = vdwg.mxu0
  %2262 = vrot.lane.b32.xlu0 %v160, 72
  %v2263 = vpop.permute.xlu0 %2262
  %2264 = vrot.lane.b32.xlu0 %v269, 72
  %v2265 = vpop.permute.xlu0 %2264
  %2266 = vrot.lane.b32.xlu0 %v272, 72
  %v2267 = vpop.permute.xlu0 %2266
  %2268 = vrot.lane.b32.xlu0 %v275, 72
  %v2269 = vpop.permute.xlu0 %2268
  %2270 = vrot.lane.b32.xlu0 %v278, 72
  %v2271 = vpop.permute.xlu0 %2270
  %2272 = vrot.lane.b32.xlu0 %v281, 72
  %v2273 = vpop.permute.xlu0 %2272
  %2274 = vrot.lane.b32.xlu0 %v284, 72
  %v2275 = vpop.permute.xlu0 %2274
  %2276 = vrot.lane.b32.xlu0 %v287, 72
  %v2277 = vpop.permute.xlu0 %2276
  %2278 = vrot.lane.b32.xlu0 %v290, 72
  %v2279 = vpop.permute.xlu0 %2278
  %2280 = vrot.lane.b32.xlu0 %v293, 72
  %v2281 = vpop.permute.xlu0 %2280
  %v2282 = vsel %vm429, %v2263, 0
  %v2284 = vsel %vm429, %v2265, 0
  %v2286 = vsel %vm429, %v2267, 0
  %v2288 = vsel %vm429, %v2269, 0
  %v2290 = vsel %vm429, %v2271, 0
  %v2292 = vsel %vm429, %v2273, 0
  %v2294 = vsel %vm429, %v2275, 0
  %v2296 = vsel %vm429, %v2277, 0
  %v2298 = vsel %vm429, %v2279, 0
  %v2300 = vsel %vm429, %v2281, 0
  %2302 = vmatpush.xpose.msra.mxu0 0.0
  %2303 = vmatpush.xpose.msra.mxu0 0.0
  %2304 = vmatpush.xpose.msra.mxu0 0.0
  %2305 = vmatpush.xpose.msra.mxu0 0.0
  %2306 = vmatpush.xpose.msra.mxu0 0.0
  %2307 = vmatpush.xpose.msra.mxu0 0.0
  %2308 = vmatpush.xpose.msra.mxu0 0.0
  %2309 = vmatpush.xpose.msra.mxu0 %v2300
  %2310 = vmatpush.xpose.msra.mxu0 %v2298
  %2311 = vmatpush.xpose.msra.mxu0 %v2296
  %2312 = vmatpush.xpose.msra.mxu0 %v2294
  %2313 = vmatpush.xpose.msra.mxu0 %v2292
  %2314 = vmatpush.xpose.msra.mxu0 %v2290
  %2315 = vmatpush.xpose.msra.mxu0 %v2288
  %2316 = vmatpush.xpose.msra.mxu0 %v2286
  %2317 = vmatpush.xpose.msra.mxu0 %v2284
  %2318 = vmatmul.f32.gmra.mxu0 %v2282
  %v2319 = vpop.f32.mrf.mxu0
  %v2320 = vadd.f32 0.0, %v2319
  %2321 = vdwg.mxu0
  %v2322 = vmul.f32 %v2320, 0.35355338
  %v2323 = vadd.f32 %v2322, %v1479
  %v2324 = vsel %vm483, %v2323, -inf
  %2325 = vmax.xlane.f32.xlu0 %v2324
  %v2326 = vpop.xlane.xlu0 %2325
  %v2327 = vsub.f32 %v2323, %v2326
  %v2328 = vmul.f32 %v2327, 1.442695
  %v2329 = vpow.pop %v2328
  %v2330 = vsel %vm483, %v2329, 0.0
  %2331 = vadd.xlane.f32.xlu0 %v2330
  %v2332 = vpop.xlane.xlu0 %2331
  %v2333 = vrcp.pop %v2332
  %v2334 = vmul.f32 %v2329, %v2333
  %2335 = vrot.lane.b32.xlu0 %v402, 72
  %v2336 = vpop.permute.xlu0 %2335
  %2337 = vrot.lane.b32.xlu0 %v405, 72
  %v2338 = vpop.permute.xlu0 %2337
  %2339 = vrot.lane.b32.xlu0 %v408, 72
  %v2340 = vpop.permute.xlu0 %2339
  %2341 = vrot.lane.b32.xlu0 %v411, 72
  %v2342 = vpop.permute.xlu0 %2341
  %2343 = vrot.lane.b32.xlu0 %v414, 72
  %v2344 = vpop.permute.xlu0 %2343
  %2345 = vrot.lane.b32.xlu0 %v417, 72
  %v2346 = vpop.permute.xlu0 %2345
  %2347 = vrot.lane.b32.xlu0 %v420, 72
  %v2348 = vpop.permute.xlu0 %2347
  %2349 = vrot.lane.b32.xlu0 %v423, 72
  %v2350 = vpop.permute.xlu0 %2349
  %2351 = vrot.lane.b32.xlu0 %v426, 72
  %v2352 = vpop.permute.xlu0 %2351
  %v2363 = vsel %vm483, %v2334, 0
  %2365 = vmatpush.msra.mxu0 0.0
  %2366 = vmatpush.msra.mxu0 0.0
  %2367 = vmatpush.msra.mxu0 0.0
  %2368 = vmatpush.msra.mxu0 0.0
  %2369 = vmatpush.msra.mxu0 0.0
  %2370 = vmatpush.msra.mxu0 0.0
  %2371 = vmatpush.msra.mxu0 0.0
  %2372 = vmatpush.msra.mxu0 %v2352
  %2373 = vmatpush.msra.mxu0 %v2350
  %2374 = vmatpush.msra.mxu0 %v2348
  %2375 = vmatpush.msra.mxu0 %v2346
  %2376 = vmatpush.msra.mxu0 %v2344
  %2377 = vmatpush.msra.mxu0 %v2342
  %2378 = vmatpush.msra.mxu0 %v2340
  %2379 = vmatpush.msra.mxu0 %v2338
  %2380 = vmatpush.msra.mxu0 %v2336
  %2381 = vmatmul.f32.gmra.mxu0 %v2363
  %v2382 = vpop.f32.mrf.mxu0
  %v2383 = vadd.f32 0.0, %v2382
  %2384 = vdwg.mxu0
  %2386 = vrot.lane.b32.xlu0 %v1645, 8
  %v2387 = vpop.permute.xlu0 %2386
  %2390 = vrot.lane.b32.xlu0 %v1768, 16
  %v2391 = vpop.permute.xlu0 %2390
  %2394 = vrot.lane.b32.xlu0 %v1891, 24
  %v2395 = vpop.permute.xlu0 %2394
  %2398 = vrot.lane.b32.xlu0 %v2014, 32
  %v2399 = vpop.permute.xlu0 %2398
  %2402 = vrot.lane.b32.xlu0 %v2137, 40
  %v2403 = vpop.permute.xlu0 %2402
  %2406 = vrot.lane.b32.xlu0 %v2260, 48
  %v2407 = vpop.permute.xlu0 %2406
  %2410 = vrot.lane.b32.xlu0 %v2383, 56
  %v2411 = vpop.permute.xlu0 %2410
  %v2413 = vsel %vm429, %v1513, %v2387
  %v2414 = vsel %vm1417, %v2413, %v2391
  %v2415 = vsel %vm1419, %v2414, %v2395
  %v2416 = vsel %vm132, %v2415, %v2399
  %v2417 = vsel %vm1422, %v2416, %v2403
  %v2418 = vsel %vm1424, %v2417, %v2407
  %v2419 = vsel %vm1426, %v2418, %v2411
  %v2420 = vld [vmem:[%s11] sm:$0xff]
  %v2421 = vld [vmem:[%s11 + $0x8] sm:$0xff]
  %v2422 = vld [vmem:[%s11 + $0x10] sm:$0xff]
  %v2423 = vld [vmem:[%s11 + $0x18] sm:$0xff]
  %v2424 = vld [vmem:[%s12] sm:$0x1]
  %v2426 = vperm.slane %v2424, 0
  %v2429 = vsel %vm132, %v1427, 0
  %v2432 = vsel %vm132, %v2419, 0
  %2434 = vmatpush.msra.mxu0 0.0
  %2435 = vmatpush.msra.mxu0 0.0
  %2436 = vmatpush.msra.mxu0 0.0
  %2437 = vmatpush.msra.mxu0 0.0
  %2438 = vmatpush.msra.mxu0 0.0
  %2439 = vmatpush.msra.mxu0 0.0
  %2440 = vmatpush.msra.mxu0 0.0
  %2441 = vmatpush.msra.mxu0 0.0
  %2442 = vmatpush.msra.mxu0 0.0
  %2443 = vmatpush.msra.mxu0 0.0
  %2444 = vmatpush.msra.mxu0 0.0
  %2445 = vmatpush.msra.mxu0 0.0
  %2446 = vmatpush.msra.mxu0 %v2423
  %2447 = vmatpush.msra.mxu0 %v2422
  %2448 = vmatpush.msra.mxu0 %v2421
  %2449 = vmatpush.msra.mxu0 %v2420
  %2450 = vmatmul.f32.gmra.mxu0 %v2429
  %v2451 = vpop.f32.mrf.mxu0
  %v2452 = vadd.f32 %v2426, %v2451
  %2453 = vmatmul.f32.gmra.mxu0 %v2432
  %v2454 = vpop.f32.mrf.mxu0
  %v2455 = vadd.f32 %v2426, %v2454
  %2456 = vdwg.mxu0
  %v2457 = vld [vmem:[%s13] sm:$0xff]
  %v2458 = vld [vmem:[%s13 + $0x8] sm:$0xff]
  %v2459 = vld [vmem:[%s13 + $0x10] sm:$0xff]
  %v2460 = vld [vmem:[%s13 + $0x18] sm:$0xff]
  %v2461 = vld [vmem:[%s14] sm:$0x1]
  %v2463 = vperm.slane %v2461, 0
  %2465 = vrot.lane.b32.xlu0 %v1427, 96
  %v2466 = vpop.permute.xlu0 %2465
  %2467 = vrot.lane.b32.xlu0 %v2419, 96
  %v2468 = vpop.permute.xlu0 %2467
  %v2469 = vsel %vm132, %v2466, 0
  %v2471 = vsel %vm132, %v2468, 0
  %2473 = vmatpush.msra.mxu0 0.0
  %2474 = vmatpush.msra.mxu0 0.0
  %2475 = vmatpush.msra.mxu0 0.0
  %2476 = vmatpush.msra.mxu0 0.0
  %2477 = vmatpush.msra.mxu0 0.0
  %2478 = vmatpush.msra.mxu0 0.0
  %2479 = vmatpush.msra.mxu0 0.0
  %2480 = vmatpush.msra.mxu0 0.0
  %2481 = vmatpush.msra.mxu0 0.0
  %2482 = vmatpush.msra.mxu0 0.0
  %2483 = vmatpush.msra.mxu0 0.0
  %2484 = vmatpush.msra.mxu0 0.0
  %2485 = vmatpush.msra.mxu0 %v2460
  %2486 = vmatpush.msra.mxu0 %v2459
  %2487 = vmatpush.msra.mxu0 %v2458
  %2488 = vmatpush.msra.mxu0 %v2457
  %2489 = vmatmul.f32.gmra.mxu0 %v2469
  %v2490 = vpop.f32.mrf.mxu0
  %v2491 = vadd.f32 %v2463, %v2490
  %2492 = vmatmul.f32.gmra.mxu0 %v2471
  %v2493 = vpop.f32.mrf.mxu0
  %v2494 = vadd.f32 %v2463, %v2493
  %2495 = vdwg.mxu0
  %v2496 = vadd.f32 %v64, %v2452
  %v2497 = vadd.f32 %v65, %v2455
  %v2498 = vld [vmem:[%s15] sm:$0x1]
  %v2499 = vld [vmem:[%s16] sm:$0x1]
  %v2500 = vsel %vm132, %v2496, 0.0
  %2501 = vadd.xlane.f32.xlu0 %v2500
  %v2502 = vpop.xlane.xlu0 %2501
  %v2503 = vsel %vm132, %v2497, 0.0
  %2504 = vadd.xlane.f32.xlu0 %v2503
  %v2505 = vpop.xlane.xlu0 %2504
  %v2506 = vrcp.pop 32.0
  %v2507 = vmul.f32 32.0, %v2506
  %v2508 = vsub.f32 1.0, %v2507
  %v2509 = vmul.f32 %v2506, %v2508
  %v2510 = vadd.f32 %v2506, %v2509
  %vm2511 = vweird.f32 %v2506
  %v2512 = vsel %vm2511, %v2506, %v2510
  %v2513 = vmul.f32 %v2502, %v2512
  %v2514 = vmul.f32 %v2505, %v2512
  %v2515 = vsub.f32 %v2496, %v2513
  %v2516 = vsub.f32 %v2497, %v2514
  %v2517 = vmul.f32 %v2515, %v2515
  %v2518 = vmul.f32 %v2516, %v2516
  %v2519 = vsel %vm132, %v2517, 0.0
  %2520 = vadd.xlane.f32.xlu0 %v2519
  %v2521 = vpop.xlane.xlu0 %2520
  %v2522 = vsel %vm132, %v2518, 0.0
  %2523 = vadd.xlane.f32.xlu0 %v2522
  %v2524 = vpop.xlane.xlu0 %2523
  %v2525 = vmul.f32 %v2521, %v2512
  %v2526 = vmul.f32 %v2524, %v2512
  %v2527 = vadd.f32 %v2525, 1e-05
  %v2528 = vadd.f32 %v2526, 1e-05
  %v2529 = vrsqrt.pop %v2527
  %v2530 = vmul.f32 %v2529, %v2527
  %v2531 = vmul.f32 %v2530, %v2529
  %v2532 = vmul.f32 0.5, %v2531
  %v2533 = vsub.f32 1.5, %v2532
  %v2534 = vmul.f32 %v2529, %v2533
  %vm2535 = vweird.f32 %v2527
  %vm2536 = vweird.f32 %v2529
  %vm2537 = vmor %vm2535, %vm2536
  %v2538 = vsel %vm2537, %v2529, %v2534
  %v2539 = vrsqrt.pop %v2528
  %v2540 = vmul.f32 %v2539, %v2528
  %v2541 = vmul.f32 %v2540, %v2539
  %v2542 = vmul.f32 0.5, %v2541
  %v2543 = vsub.f32 1.5, %v2542
  %v2544 = vmul.f32 %v2539, %v2543
  %vm2545 = vweird.f32 %v2528
  %vm2546 = vweird.f32 %v2539
  %vm2547 = vmor %vm2545, %vm2546
  %v2548 = vsel %vm2547, %v2539, %v2544
  %v2549 = vmul.f32 %v2515, %v2538
  %v2550 = vmul.f32 %v2516, %v2548
  %v2552 = vperm.slane %v2498, 0
  %v2554 = vmul.f32 %v2549, %v2552
  %v2555 = vmul.f32 %v2550, %v2552
  %v2557 = vperm.slane %v2499, 0
  %v2559 = vadd.f32 %v2554, %v2557
  %v2560 = vadd.f32 %v2555, %v2557
  %2561 = vst.msk [vmem:[%s19] sm:$0xff] %vm132, %v2559
  %2562 = vst.msk [vmem:[%s19 + $0x8] sm:$0xff] %vm132, %v2560
  %v2563 = vadd.f32 %v64, %v2491
  %v2564 = vadd.f32 %v65, %v2494
  %v2565 = vld [vmem:[%s17] sm:$0x1]
  %v2566 = vld [vmem:[%s18] sm:$0x1]
  %v2567 = vsel %vm132, %v2563, 0.0
  %2568 = vadd.xlane.f32.xlu0 %v2567
  %v2569 = vpop.xlane.xlu0 %2568
  %v2570 = vsel %vm132, %v2564, 0.0
  %2571 = vadd.xlane.f32.xlu0 %v2570
  %v2572 = vpop.xlane.xlu0 %2571
  %v2573 = vmul.f32 %v2569, %v2512
  %v2574 = vmul.f32 %v2572, %v2512
  %v2575 = vsub.f32 %v2563, %v2573
  %v2576 = vsub.f32 %v2564, %v2574
  %v2577 = vmul.f32 %v2575, %v2575
  %v2578 = vmul.f32 %v2576, %v2576
  %v2579 = vsel %vm132, %v2577, 0.0
  %2580 = vadd.xlane.f32.xlu0 %v2579
  %v2581 = vpop.xlane.xlu0 %2580
  %v2582 = vsel %vm132, %v2578, 0.0
  %2583 = vadd.xlane.f32.xlu0 %v2582
  %v2584 = vpop.xlane.xlu0 %2583
  %v2585 = vmul.f32 %v2581, %v2512
  %v2586 = vmul.f32 %v2584, %v2512
  %v2587 = vadd.f32 %v2585, 1e-05
  %v2588 = vadd.f32 %v2586, 1e-05
  %v2589 = vrsqrt.pop %v2587
  %v2590 = vmul.f32 %v2589, %v2587
  %v2591 = vmul.f32 %v2590, %v2589
  %v2592 = vmul.f32 0.5, %v2591
  %v2593 = vsub.f32 1.5, %v2592
  %v2594 = vmul.f32 %v2589, %v2593
  %vm2595 = vweird.f32 %v2587
  %vm2596 = vweird.f32 %v2589
  %vm2597 = vmor %vm2595, %vm2596
  %v2598 = vsel %vm2597, %v2589, %v2594
  %v2599 = vrsqrt.pop %v2588
  %v2600 = vmul.f32 %v2599, %v2588
  %v2601 = vmul.f32 %v2600, %v2599
  %v2602 = vmul.f32 0.5, %v2601
  %v2603 = vsub.f32 1.5, %v2602
  %v2604 = vmul.f32 %v2599, %v2603
  %vm2605 = vweird.f32 %v2588
  %vm2606 = vweird.f32 %v2599
  %vm2607 = vmor %vm2605, %vm2606
  %v2608 = vsel %vm2607, %v2599, %v2604
  %v2609 = vmul.f32 %v2575, %v2598
  %v2610 = vmul.f32 %v2576, %v2608
  %v2612 = vperm.slane %v2565, 0
  %v2614 = vmul.f32 %v2609, %v2612
  %v2615 = vmul.f32 %v2610, %v2612
  %v2617 = vperm.slane %v2566, 0
  %v2619 = vadd.f32 %v2614, %v2617
  %v2620 = vadd.f32 %v2615, %v2617
  %2621 = vst.msk [vmem:[%s20] sm:$0xff] %vm132, %v2619
  %2622 = vst.msk [vmem:[%s20 + $0x8] sm:$0xff] %vm132, %v2620
  // Predicated region
  $region78: #{fctr_encoder_forward.5} parent=0 // pred_check
    _
  $region79: #{fctr_encoder_forward.5} parent=0 // pred_check_branch
    %2624 = sbr.rel (0) target = $region81
  $region80: #{fctr_encoder_forward.5} parent=0 // pred_region
    _
  $region81: #{fctr_encoder_forward.5} parent=0 // pred_fallthru
    _
  // Predicated region
  $region82: #{fctr_encoder_forward.5} parent=0 // pred_check
    _
  $region83: #{fctr_encoder_forward.5} parent=0 // pred_check_branch
    %2626 = sbr.rel (0) target = $region85
  $region84: #{fctr_encoder_forward.5} parent=0 // pred_region
    _
  $region85: #{fctr_encoder_forward.5} parent=0 // pred_fallthru
    _
  // Predicated region
  $region86: #{fctr_encoder_forward.5} parent=0 // pred_check
    _
  $region87: #{fctr_encoder_forward.5} parent=0 // pred_check_branch
    %2628 = sbr.rel (0) target = $region89
  $region88: #{fctr_encoder_forward.5} parent=0 // pred_region
    _
  $region89: #{fctr_encoder_forward.5} parent=0 // pred_fallthru
    _
  // Predicated region
  $region90: #{fctr_encoder_forward.5} parent=0 // pred_check
    _
  $region91: #{fctr_encoder_forward.5} parent=0 // pred_check_branch
    %2630 = sbr.rel (0) target = $region93
  $region92: #{fctr_encoder_forward.5} parent=0 // pred_region
    _
  $region93: #{fctr_encoder_forward.5} parent=0 // pred_fallthru
    _

// kernel: fctr_encoder_forward.4
$region0: #{fctr_encoder_forward.4}
  #allocation0 [shape = 'u32[]', space=smem, size = 0x4, offset = 0x4, fixed_abs, tag = 'smem constant byte address 0x4 - core index']
  #allocation1 [shape = 'u32[72,128]{1,0:T(1,128)}', space=vmem, size = 0x9000, scoped, tag = 'internal scratch']
  %s0 = inlined_call_operand.vmem [shape: f32[144,32], index: 0, kind: input, shape index: {}]
  %s1 = inlined_call_operand.vmem [shape: f32[144,32], index: 1, kind: input, shape index: {}]
  %s2 = inlined_call_operand.vmem [shape: f32[2,72], index: 2, kind: input, shape index: {}]
  %s3 = inlined_call_operand.vmem [shape: f32[32,64], index: 3, kind: input, shape index: {}]
  %s4 = inlined_call_operand.vmem [shape: f32[1,64], index: 4, kind: input, shape index: {}]
  %s5 = inlined_call_operand.vmem [shape: f32[32,32], index: 5, kind: input, shape index: {}]
  %s6 = inlined_call_operand.vmem [shape: f32[1,32], index: 6, kind: input, shape index: {}]
  %s7 = inlined_call_operand.vmem [shape: f32[32,32], index: 7, kind: input, shape index: {}]
  %s8 = inlined_call_operand.vmem [shape: f32[1,32], index: 8, kind: input, shape index: {}]
  %s9 = inlined_call_operand.vmem [shape: f32[1,32], index: 9, kind: input, shape index: {}]
  %s10 = inlined_call_operand.vmem [shape: f32[1,32], index: 10, kind: input, shape index: {}]
  %s11 = inlined_call_operand.vmem [shape: f32[32,64], index: 11, kind: input, shape index: {}]
  %s12 = inlined_call_operand.vmem [shape: f32[1,64], index: 12, kind: input, shape index: {}]
  %s13 = inlined_call_operand.vmem [shape: f32[64,32], index: 13, kind: input, shape index: {}]
  %s14 = inlined_call_operand.vmem [shape: f32[1,32], index: 14, kind: input, shape index: {}]
  %s15 = inlined_call_operand.vmem [shape: f32[1,32], index: 15, kind: input, shape index: {}]
  %s16 = inlined_call_operand.vmem [shape: f32[1,32], index: 16, kind: input, shape index: {}]
  %s17 = inlined_call_operand.vmem [shape: f32[144,32], index: 17, kind: output, shape index: {}]
  %s18 = sld [smem:[#allocation0]]
  $region78: #{fctr_encoder_forward.4} parent=0
    _
  %s20 = ssub.s32 1, %s18
  %s21 = scalar_select 0, %s20, %s18
  // Predicated region
  $region2: #{fctr_encoder_forward.4} parent=0 // pred_check
    _
  $region3: #{fctr_encoder_forward.4} parent=0 // pred_check_branch
    %23 = sbr.rel (0) target = $region5
  $region4: #{fctr_encoder_forward.4} parent=0 // pred_region
    _
  $region5: #{fctr_encoder_forward.4} parent=0 // pred_fallthru
    _
  // Predicated region
  $region6: #{fctr_encoder_forward.4} parent=0 // pred_check
    _
  $region7: #{fctr_encoder_forward.4} parent=0 // pred_check_branch
    %25 = sbr.rel (0) target = $region9
  $region8: #{fctr_encoder_forward.4} parent=0 // pred_region
    _
  $region9: #{fctr_encoder_forward.4} parent=0 // pred_fallthru
    _
  // Predicated region
  $region10: #{fctr_encoder_forward.4} parent=0 // pred_check
    _
  $region11: #{fctr_encoder_forward.4} parent=0 // pred_check_branch
    %27 = sbr.rel (0) target = $region13
  $region12: #{fctr_encoder_forward.4} parent=0 // pred_region
    _
  $region13: #{fctr_encoder_forward.4} parent=0 // pred_fallthru
    _
  // Predicated region
  $region14: #{fctr_encoder_forward.4} parent=0 // pred_check
    _
  $region15: #{fctr_encoder_forward.4} parent=0 // pred_check_branch
    %29 = sbr.rel (0) target = $region17
  $region16: #{fctr_encoder_forward.4} parent=0 // pred_region
    _
  $region17: #{fctr_encoder_forward.4} parent=0 // pred_fallthru
    _
  // Predicated region
  $region18: #{fctr_encoder_forward.4} parent=0 // pred_check
    _
  $region19: #{fctr_encoder_forward.4} parent=0 // pred_check_branch
    %31 = sbr.rel (0) target = $region21
  $region20: #{fctr_encoder_forward.4} parent=0 // pred_region
    _
  $region21: #{fctr_encoder_forward.4} parent=0 // pred_fallthru
    _
  // Predicated region
  $region22: #{fctr_encoder_forward.4} parent=0 // pred_check
    _
  $region23: #{fctr_encoder_forward.4} parent=0 // pred_check_branch
    %33 = sbr.rel (0) target = $region25
  $region24: #{fctr_encoder_forward.4} parent=0 // pred_region
    _
  $region25: #{fctr_encoder_forward.4} parent=0 // pred_fallthru
    _
  // Predicated region
  $region26: #{fctr_encoder_forward.4} parent=0 // pred_check
    _
  $region27: #{fctr_encoder_forward.4} parent=0 // pred_check_branch
    %35 = sbr.rel (0) target = $region29
  $region28: #{fctr_encoder_forward.4} parent=0 // pred_region
    _
  $region29: #{fctr_encoder_forward.4} parent=0 // pred_fallthru
    _
  // Predicated region
  $region30: #{fctr_encoder_forward.4} parent=0 // pred_check
    _
  $region31: #{fctr_encoder_forward.4} parent=0 // pred_check_branch
    %37 = sbr.rel (0) target = $region33
  $region32: #{fctr_encoder_forward.4} parent=0 // pred_region
    _
  $region33: #{fctr_encoder_forward.4} parent=0 // pred_fallthru
    _
  // Predicated region
  $region34: #{fctr_encoder_forward.4} parent=0 // pred_check
    _
  $region35: #{fctr_encoder_forward.4} parent=0 // pred_check_branch
    %39 = sbr.rel (0) target = $region37
  $region36: #{fctr_encoder_forward.4} parent=0 // pred_region
    _
  $region37: #{fctr_encoder_forward.4} parent=0 // pred_fallthru
    _
  // Predicated region
  $region38: #{fctr_encoder_forward.4} parent=0 // pred_check
    _
  $region39: #{fctr_encoder_forward.4} parent=0 // pred_check_branch
    %41 = sbr.rel (0) target = $region41
  $region40: #{fctr_encoder_forward.4} parent=0 // pred_region
    _
  $region41: #{fctr_encoder_forward.4} parent=0 // pred_fallthru
    _
  // Predicated region
  $region42: #{fctr_encoder_forward.4} parent=0 // pred_check
    _
  $region43: #{fctr_encoder_forward.4} parent=0 // pred_check_branch
    %43 = sbr.rel (0) target = $region45
  $region44: #{fctr_encoder_forward.4} parent=0 // pred_region
    _
  $region45: #{fctr_encoder_forward.4} parent=0 // pred_fallthru
    _
  // Predicated region
  $region46: #{fctr_encoder_forward.4} parent=0 // pred_check
    _
  $region47: #{fctr_encoder_forward.4} parent=0 // pred_check_branch
    %45 = sbr.rel (0) target = $region49
  $region48: #{fctr_encoder_forward.4} parent=0 // pred_region
    _
  $region49: #{fctr_encoder_forward.4} parent=0 // pred_fallthru
    _
  // Predicated region
  $region50: #{fctr_encoder_forward.4} parent=0 // pred_check
    _
  $region51: #{fctr_encoder_forward.4} parent=0 // pred_check_branch
    %47 = sbr.rel (0) target = $region53
  $region52: #{fctr_encoder_forward.4} parent=0 // pred_region
    _
  $region53: #{fctr_encoder_forward.4} parent=0 // pred_fallthru
    _
  // Predicated region
  $region54: #{fctr_encoder_forward.4} parent=0 // pred_check
    _
  $region55: #{fctr_encoder_forward.4} parent=0 // pred_check_branch
    %49 = sbr.rel (0) target = $region57
  $region56: #{fctr_encoder_forward.4} parent=0 // pred_region
    _
  $region57: #{fctr_encoder_forward.4} parent=0 // pred_fallthru
    _
  // Predicated region
  $region58: #{fctr_encoder_forward.4} parent=0 // pred_check
    _
  $region59: #{fctr_encoder_forward.4} parent=0 // pred_check_branch
    %51 = sbr.rel (0) target = $region61
  $region60: #{fctr_encoder_forward.4} parent=0 // pred_region
    _
  $region61: #{fctr_encoder_forward.4} parent=0 // pred_fallthru
    _
  // Predicated region
  $region62: #{fctr_encoder_forward.4} parent=0 // pred_check
    _
  $region63: #{fctr_encoder_forward.4} parent=0 // pred_check_branch
    %53 = sbr.rel (0) target = $region65
  $region64: #{fctr_encoder_forward.4} parent=0 // pred_region
    _
  $region65: #{fctr_encoder_forward.4} parent=0 // pred_fallthru
    _
  // Predicated region
  $region66: #{fctr_encoder_forward.4} parent=0 // pred_check
    _
  $region67: #{fctr_encoder_forward.4} parent=0 // pred_check_branch
    %55 = sbr.rel (0) target = $region69
  $region68: #{fctr_encoder_forward.4} parent=0 // pred_region
    _
  $region69: #{fctr_encoder_forward.4} parent=0 // pred_fallthru
    _
  %v56 = vld [vmem:[%s0] sm:$0xff]
  %v57 = vld [vmem:[%s0 + $0x8] sm:$0xff]
  %v58 = vld [vmem:[%s0 + $0x10] sm:$0xff]
  %v59 = vld [vmem:[%s0 + $0x18] sm:$0xff]
  %v60 = vld [vmem:[%s0 + $0x20] sm:$0xff]
  %v61 = vld [vmem:[%s0 + $0x28] sm:$0xff]
  %v62 = vld [vmem:[%s0 + $0x30] sm:$0xff]
  %v63 = vld [vmem:[%s0 + $0x38] sm:$0xff]
  %v64 = vld [vmem:[%s0 + $0x40] sm:$0xff]
  %v65 = vld [vmem:[%s0 + $0x48] sm:$0xff]
  %v66 = vld [vmem:[%s0 + $0x50] sm:$0xff]
  %v67 = vld [vmem:[%s0 + $0x58] sm:$0xff]
  %v68 = vld [vmem:[%s0 + $0x60] sm:$0xff]
  %v69 = vld [vmem:[%s0 + $0x68] sm:$0xff]
  %v70 = vld [vmem:[%s0 + $0x70] sm:$0xff]
  %v71 = vld [vmem:[%s0 + $0x78] sm:$0xff]
  %v72 = vld [vmem:[%s0 + $0x80] sm:$0xff]
  %v73 = vld [vmem:[%s0 + $0x88] sm:$0xff]
  %v74 = vld [vmem:[%s1] sm:$0xff]
  %v75 = vld [vmem:[%s1 + $0x8] sm:$0xff]
  %v76 = vld [vmem:[%s1 + $0x10] sm:$0xff]
  %v77 = vld [vmem:[%s1 + $0x18] sm:$0xff]
  %v78 = vld [vmem:[%s1 + $0x20] sm:$0xff]
  %v79 = vld [vmem:[%s1 + $0x28] sm:$0xff]
  %v80 = vld [vmem:[%s1 + $0x30] sm:$0xff]
  %v81 = vld [vmem:[%s1 + $0x38] sm:$0xff]
  %v82 = vld [vmem:[%s1 + $0x40] sm:$0xff]
  %v83 = vld [vmem:[%s1 + $0x48] sm:$0xff]
  %v84 = vld [vmem:[%s1 + $0x50] sm:$0xff]
  %v85 = vld [vmem:[%s1 + $0x58] sm:$0xff]
  %v86 = vld [vmem:[%s1 + $0x60] sm:$0xff]
  %v87 = vld [vmem:[%s1 + $0x68] sm:$0xff]
  %v88 = vld [vmem:[%s1 + $0x70] sm:$0xff]
  %v89 = vld [vmem:[%s1 + $0x78] sm:$0xff]
  %v90 = vld [vmem:[%s1 + $0x80] sm:$0xff]
  %v91 = vld [vmem:[%s1 + $0x88] sm:$0xff]
  %v92 = vadd.f32 %v56, %v74
  %v93 = vadd.f32 %v57, %v75
  %v94 = vadd.f32 %v58, %v76
  %v95 = vadd.f32 %v59, %v77
  %v96 = vadd.f32 %v60, %v78
  %v97 = vadd.f32 %v61, %v79
  %v98 = vadd.f32 %v62, %v80
  %v99 = vadd.f32 %v63, %v81
  %v100 = vadd.f32 %v64, %v82
  %v101 = vadd.f32 %v65, %v83
  %v102 = vadd.f32 %v66, %v84
  %v103 = vadd.f32 %v67, %v85
  %v104 = vadd.f32 %v68, %v86
  %v105 = vadd.f32 %v69, %v87
  %v106 = vadd.f32 %v70, %v88
  %v107 = vadd.f32 %v71, %v89
  %v108 = vadd.f32 %v72, %v90
  %v109 = vadd.f32 %v73, %v91
  %v110 = vld [vmem:[%s3] sm:$0xff]
  %v111 = vld [vmem:[%s3 + $0x8] sm:$0xff]
  %v112 = vld [vmem:[%s3 + $0x10] sm:$0xff]
  %v113 = vld [vmem:[%s3 + $0x18] sm:$0xff]
  %v114 = vld [vmem:[%s4] sm:$0x1]
  %v116 = vperm.slane %v114, 0
  %vm118 = vcmask 261120
  %v120 = vsel %vm118, %v92, 0
  %v123 = vsel %vm118, %v93, 0
  %v126 = vsel %vm118, %v94, 0
  %v129 = vsel %vm118, %v95, 0
  %v132 = vsel %vm118, %v96, 0
  %v135 = vsel %vm118, %v97, 0
  %v138 = vsel %vm118, %v98, 0
  %v141 = vsel %vm118, %v99, 0
  %v144 = vsel %vm118, %v100, 0
  %v147 = vsel %vm118, %v101, 0
  %v150 = vsel %vm118, %v102, 0
  %v153 = vsel %vm118, %v103, 0
  %v156 = vsel %vm118, %v104, 0
  %v159 = vsel %vm118, %v105, 0
  %v162 = vsel %vm118, %v106, 0
  %v165 = vsel %vm118, %v107, 0
  %v168 = vsel %vm118, %v108, 0
  %v171 = vsel %vm118, %v109, 0
  %173 = vmatpush.msra.mxu0 0.0
  %174 = vmatpush.msra.mxu0 0.0
  %175 = vmatpush.msra.mxu0 0.0
  %176 = vmatpush.msra.mxu0 0.0
  %177 = vmatpush.msra.mxu0 0.0
  %178 = vmatpush.msra.mxu0 0.0
  %179 = vmatpush.msra.mxu0 0.0
  %180 = vmatpush.msra.mxu0 0.0
  %181 = vmatpush.msra.mxu0 0.0
  %182 = vmatpush.msra.mxu0 0.0
  %183 = vmatpush.msra.mxu0 0.0
  %184 = vmatpush.msra.mxu0 0.0
  %185 = vmatpush.msra.mxu0 %v113
  %186 = vmatpush.msra.mxu0 %v112
  %187 = vmatpush.msra.mxu0 %v111
  %188 = vmatpush.msra.mxu0 %v110
  %189 = vmatmul.f32.gmra.mxu0 %v120
  %v190 = vpop.f32.mrf.mxu0
  %v191 = vadd.f32 %v116, %v190
  %192 = vmatmul.f32.gmra.mxu0 %v123
  %v193 = vpop.f32.mrf.mxu0
  %v194 = vadd.f32 %v116, %v193
  %195 = vmatmul.f32.gmra.mxu0 %v126
  %v196 = vpop.f32.mrf.mxu0
  %v197 = vadd.f32 %v116, %v196
  %198 = vmatmul.f32.gmra.mxu0 %v129
  %v199 = vpop.f32.mrf.mxu0
  %v200 = vadd.f32 %v116, %v199
  %201 = vmatmul.f32.gmra.mxu0 %v132
  %v202 = vpop.f32.mrf.mxu0
  %v203 = vadd.f32 %v116, %v202
  %204 = vmatmul.f32.gmra.mxu0 %v135
  %v205 = vpop.f32.mrf.mxu0
  %v206 = vadd.f32 %v116, %v205
  %207 = vmatmul.f32.gmra.mxu0 %v138
  %v208 = vpop.f32.mrf.mxu0
  %v209 = vadd.f32 %v116, %v208
  %210 = vmatmul.f32.gmra.mxu0 %v141
  %v211 = vpop.f32.mrf.mxu0
  %v212 = vadd.f32 %v116, %v211
  %213 = vmatmul.f32.gmra.mxu0 %v144
  %v214 = vpop.f32.mrf.mxu0
  %v215 = vadd.f32 %v116, %v214
  %216 = vmatmul.f32.gmra.mxu0 %v147
  %v217 = vpop.f32.mrf.mxu0
  %v218 = vadd.f32 %v116, %v217
  %219 = vmatmul.f32.gmra.mxu0 %v150
  %v220 = vpop.f32.mrf.mxu0
  %v221 = vadd.f32 %v116, %v220
  %222 = vmatmul.f32.gmra.mxu0 %v153
  %v223 = vpop.f32.mrf.mxu0
  %v224 = vadd.f32 %v116, %v223
  %225 = vmatmul.f32.gmra.mxu0 %v156
  %v226 = vpop.f32.mrf.mxu0
  %v227 = vadd.f32 %v116, %v226
  %228 = vmatmul.f32.gmra.mxu0 %v159
  %v229 = vpop.f32.mrf.mxu0
  %v230 = vadd.f32 %v116, %v229
  %231 = vmatmul.f32.gmra.mxu0 %v162
  %v232 = vpop.f32.mrf.mxu0
  %v233 = vadd.f32 %v116, %v232
  %234 = vmatmul.f32.gmra.mxu0 %v165
  %v235 = vpop.f32.mrf.mxu0
  %v236 = vadd.f32 %v116, %v235
  %237 = vmatmul.f32.gmra.mxu0 %v168
  %v238 = vpop.f32.mrf.mxu0
  %v239 = vadd.f32 %v116, %v238
  %240 = vmatmul.f32.gmra.mxu0 %v171
  %v241 = vpop.f32.mrf.mxu0
  %v242 = vadd.f32 %v116, %v241
  %243 = vdwg.mxu0
  %v244 = vld [vmem:[%s5] sm:$0xff]
  %v245 = vld [vmem:[%s5 + $0x8] sm:$0xff]
  %v246 = vld [vmem:[%s5 + $0x10] sm:$0xff]
  %v247 = vld [vmem:[%s5 + $0x18] sm:$0xff]
  %v248 = vld [vmem:[%s6] sm:$0x1]
  %v250 = vperm.slane %v248, 0
  %v253 = vsel %vm118, %v56, 0
  %v256 = vsel %vm118, %v57, 0
  %v259 = vsel %vm118, %v58, 0
  %v262 = vsel %vm118, %v59, 0
  %v265 = vsel %vm118, %v60, 0
  %v268 = vsel %vm118, %v61, 0
  %v271 = vsel %vm118, %v62, 0
  %v274 = vsel %vm118, %v63, 0
  %v277 = vsel %vm118, %v64, 0
  %v280 = vsel %vm118, %v65, 0
  %v283 = vsel %vm118, %v66, 0
  %v286 = vsel %vm118, %v67, 0
  %v289 = vsel %vm118, %v68, 0
  %v292 = vsel %vm118, %v69, 0
  %v295 = vsel %vm118, %v70, 0
  %v298 = vsel %vm118, %v71, 0
  %v301 = vsel %vm118, %v72, 0
  %v304 = vsel %vm118, %v73, 0
  %306 = vmatpush.msra.mxu0 0.0
  %307 = vmatpush.msra.mxu0 0.0
  %308 = vmatpush.msra.mxu0 0.0
  %309 = vmatpush.msra.mxu0 0.0
  %310 = vmatpush.msra.mxu0 0.0
  %311 = vmatpush.msra.mxu0 0.0
  %312 = vmatpush.msra.mxu0 0.0
  %313 = vmatpush.msra.mxu0 0.0
  %314 = vmatpush.msra.mxu0 0.0
  %315 = vmatpush.msra.mxu0 0.0
  %316 = vmatpush.msra.mxu0 0.0
  %317 = vmatpush.msra.mxu0 0.0
  %318 = vmatpush.msra.mxu0 %v247
  %319 = vmatpush.msra.mxu0 %v246
  %320 = vmatpush.msra.mxu0 %v245
  %321 = vmatpush.msra.mxu0 %v244
  %322 = vmatmul.f32.gmra.mxu0 %v253
  %v323 = vpop.f32.mrf.mxu0
  %v324 = vadd.f32 %v250, %v323
  %325 = vmatmul.f32.gmra.mxu0 %v256
  %v326 = vpop.f32.mrf.mxu0
  %v327 = vadd.f32 %v250, %v326
  %328 = vmatmul.f32.gmra.mxu0 %v259
  %v329 = vpop.f32.mrf.mxu0
  %v330 = vadd.f32 %v250, %v329
  %331 = vmatmul.f32.gmra.mxu0 %v262
  %v332 = vpop.f32.mrf.mxu0
  %v333 = vadd.f32 %v250, %v332
  %334 = vmatmul.f32.gmra.mxu0 %v265
  %v335 = vpop.f32.mrf.mxu0
  %v336 = vadd.f32 %v250, %v335
  %337 = vmatmul.f32.gmra.mxu0 %v268
  %v338 = vpop.f32.mrf.mxu0
  %v339 = vadd.f32 %v250, %v338
  %340 = vmatmul.f32.gmra.mxu0 %v271
  %v341 = vpop.f32.mrf.mxu0
  %v342 = vadd.f32 %v250, %v341
  %343 = vmatmul.f32.gmra.mxu0 %v274
  %v344 = vpop.f32.mrf.mxu0
  %v345 = vadd.f32 %v250, %v344
  %346 = vmatmul.f32.gmra.mxu0 %v277
  %v347 = vpop.f32.mrf.mxu0
  %v348 = vadd.f32 %v250, %v347
  %349 = vmatmul.f32.gmra.mxu0 %v280
  %v350 = vpop.f32.mrf.mxu0
  %v351 = vadd.f32 %v250, %v350
  %352 = vmatmul.f32.gmra.mxu0 %v283
  %v353 = vpop.f32.mrf.mxu0
  %v354 = vadd.f32 %v250, %v353
  %355 = vmatmul.f32.gmra.mxu0 %v286
  %v356 = vpop.f32.mrf.mxu0
  %v357 = vadd.f32 %v250, %v356
  %358 = vmatmul.f32.gmra.mxu0 %v289
  %v359 = vpop.f32.mrf.mxu0
  %v360 = vadd.f32 %v250, %v359
  %361 = vmatmul.f32.gmra.mxu0 %v292
  %v362 = vpop.f32.mrf.mxu0
  %v363 = vadd.f32 %v250, %v362
  %364 = vmatmul.f32.gmra.mxu0 %v295
  %v365 = vpop.f32.mrf.mxu0
  %v366 = vadd.f32 %v250, %v365
  %367 = vmatmul.f32.gmra.mxu0 %v298
  %v368 = vpop.f32.mrf.mxu0
  %v369 = vadd.f32 %v250, %v368
  %370 = vmatmul.f32.gmra.mxu0 %v301
  %v371 = vpop.f32.mrf.mxu0
  %v372 = vadd.f32 %v250, %v371
  %373 = vmatmul.f32.gmra.mxu0 %v304
  %v374 = vpop.f32.mrf.mxu0
  %v375 = vadd.f32 %v250, %v374
  %376 = vdwg.mxu0
  %v377 = vld [vmem:[%s2] sm:$0x3]
  %387 = vrot.lane.b32.xlu0 %v191, 96
  %v388 = vpop.permute.xlu0 %387
  %389 = vrot.lane.b32.xlu0 %v194, 96
  %v390 = vpop.permute.xlu0 %389
  %391 = vrot.lane.b32.xlu0 %v197, 96
  %v392 = vpop.permute.xlu0 %391
  %393 = vrot.lane.b32.xlu0 %v200, 96
  %v394 = vpop.permute.xlu0 %393
  %395 = vrot.lane.b32.xlu0 %v203, 96
  %v396 = vpop.permute.xlu0 %395
  %397 = vrot.lane.b32.xlu0 %v206, 96
  %v398 = vpop.permute.xlu0 %397
  %399 = vrot.lane.b32.xlu0 %v209, 96
  %v400 = vpop.permute.xlu0 %399
  %401 = vrot.lane.b32.xlu0 %v212, 96
  %v402 = vpop.permute.xlu0 %401
  %403 = vrot.lane.b32.xlu0 %v215, 96
  %v404 = vpop.permute.xlu0 %403
  %vm405 = vcmask 64512
  %v406 = vsel %vm405, %v191, 0
  %v408 = vsel %vm405, %v194, 0
  %v410 = vsel %vm405, %v197, 0
  %v412 = vsel %vm405, %v200, 0
  %v414 = vsel %vm405, %v203, 0
  %v416 = vsel %vm405, %v206, 0
  %v418 = vsel %vm405, %v209, 0
  %v420 = vsel %vm405, %v212, 0
  %v422 = vsel %vm405, %v215, 0
  %v424 = vsel %vm405, %v388, 0
  %v426 = vsel %vm405, %v390, 0
  %v428 = vsel %vm405, %v392, 0
  %v430 = vsel %vm405, %v394, 0
  %v432 = vsel %vm405, %v396, 0
  %v434 = vsel %vm405, %v398, 0
  %v436 = vsel %vm405, %v400, 0
  %v438 = vsel %vm405, %v402, 0
  %v440 = vsel %vm405, %v404, 0
  %442 = vmatpush.xpose.msra.mxu0 0.0
  %443 = vmatpush.xpose.msra.mxu0 0.0
  %444 = vmatpush.xpose.msra.mxu0 0.0
  %445 = vmatpush.xpose.msra.mxu0 0.0
  %446 = vmatpush.xpose.msra.mxu0 0.0
  %447 = vmatpush.xpose.msra.mxu0 0.0
  %448 = vmatpush.xpose.msra.mxu0 0.0
  %449 = vmatpush.xpose.msra.mxu0 %v440
  %450 = vmatpush.xpose.msra.mxu0 %v438
  %451 = vmatpush.xpose.msra.mxu0 %v436
  %452 = vmatpush.xpose.msra.mxu0 %v434
  %453 = vmatpush.xpose.msra.mxu0 %v432
  %454 = vmatpush.xpose.msra.mxu0 %v430
  %455 = vmatpush.xpose.msra.mxu0 %v428
  %456 = vmatpush.xpose.msra.mxu0 %v426
  %457 = vmatpush.xpose.msra.mxu0 %v424
  %458 = vmatmul.f32.gmra.mxu0 %v406
  %v459 = vpop.f32.mrf.mxu0
  %v460 = vadd.f32 0.0, %v459
  %461 = vmatmul.f32.gmra.mxu0 %v408
  %v462 = vpop.f32.mrf.mxu0
  %v463 = vadd.f32 0.0, %v462
  %464 = vmatmul.f32.gmra.mxu0 %v410
  %v465 = vpop.f32.mrf.mxu0
  %v466 = vadd.f32 0.0, %v465
  %467 = vmatmul.f32.gmra.mxu0 %v412
  %v468 = vpop.f32.mrf.mxu0
  %v469 = vadd.f32 0.0, %v468
  %470 = vmatmul.f32.gmra.mxu0 %v414
  %v471 = vpop.f32.mrf.mxu0
  %v472 = vadd.f32 0.0, %v471
  %473 = vmatmul.f32.gmra.mxu0 %v416
  %v474 = vpop.f32.mrf.mxu0
  %v475 = vadd.f32 0.0, %v474
  %476 = vmatmul.f32.gmra.mxu0 %v418
  %v477 = vpop.f32.mrf.mxu0
  %v478 = vadd.f32 0.0, %v477
  %479 = vmatmul.f32.gmra.mxu0 %v420
  %v480 = vpop.f32.mrf.mxu0
  %v481 = vadd.f32 0.0, %v480
  %482 = vmatmul.f32.gmra.mxu0 %v422
  %v483 = vpop.f32.mrf.mxu0
  %v484 = vadd.f32 0.0, %v483
  %485 = vdwg.mxu0
  %v486 = vmul.f32 %v460, 0.35355338
  %v487 = vmul.f32 %v463, 0.35355338
  %v488 = vmul.f32 %v466, 0.35355338
  %v489 = vmul.f32 %v469, 0.35355338
  %v490 = vmul.f32 %v472, 0.35355338
  %v491 = vmul.f32 %v475, 0.35355338
  %v492 = vmul.f32 %v478, 0.35355338
  %v493 = vmul.f32 %v481, 0.35355338
  %v494 = vmul.f32 %v484, 0.35355338
  %v495 = vperm.slane %v377, 0
  %v496 = vadd.f32 %v486, %v495
  %v497 = vadd.f32 %v487, %v495
  %v498 = vadd.f32 %v488, %v495
  %v499 = vadd.f32 %v489, %v495
  %v500 = vadd.f32 %v490, %v495
  %v501 = vadd.f32 %v491, %v495
  %v502 = vadd.f32 %v492, %v495
  %v503 = vadd.f32 %v493, %v495
  %v504 = vadd.f32 %v494, %v495
  %vm505 = vcmask 588800
  %v506 = vsel %vm505, %v496, -inf
  %507 = vmax.xlane.f32.xlu0 %v506
  %v508 = vpop.xlane.xlu0 %507
  %v509 = vsel %vm505, %v497, -inf
  %510 = vmax.xlane.f32.xlu0 %v509
  %v511 = vpop.xlane.xlu0 %510
  %v512 = vsel %vm505, %v498, -inf
  %513 = vmax.xlane.f32.xlu0 %v512
  %v514 = vpop.xlane.xlu0 %513
  %v515 = vsel %vm505, %v499, -inf
  %516 = vmax.xlane.f32.xlu0 %v515
  %v517 = vpop.xlane.xlu0 %516
  %v518 = vsel %vm505, %v500, -inf
  %519 = vmax.xlane.f32.xlu0 %v518
  %v520 = vpop.xlane.xlu0 %519
  %v521 = vsel %vm505, %v501, -inf
  %522 = vmax.xlane.f32.xlu0 %v521
  %v523 = vpop.xlane.xlu0 %522
  %v524 = vsel %vm505, %v502, -inf
  %525 = vmax.xlane.f32.xlu0 %v524
  %v526 = vpop.xlane.xlu0 %525
  %v527 = vsel %vm505, %v503, -inf
  %528 = vmax.xlane.f32.xlu0 %v527
  %v529 = vpop.xlane.xlu0 %528
  %v530 = vsel %vm505, %v504, -inf
  %531 = vmax.xlane.f32.xlu0 %v530
  %v532 = vpop.xlane.xlu0 %531
  %v533 = vsub.f32 %v496, %v508
  %v534 = vsub.f32 %v497, %v511
  %v535 = vsub.f32 %v498, %v514
  %v536 = vsub.f32 %v499, %v517
  %v537 = vsub.f32 %v500, %v520
  %v538 = vsub.f32 %v501, %v523
  %v539 = vsub.f32 %v502, %v526
  %v540 = vsub.f32 %v503, %v529
  %v541 = vsub.f32 %v504, %v532
  %v542 = vmul.f32 %v533, 1.442695
  %v543 = vpow.pop %v542
  %v544 = vmul.f32 %v534, 1.442695
  %v545 = vpow.pop %v544
  %v546 = vmul.f32 %v535, 1.442695
  %v547 = vpow.pop %v546
  %v548 = vmul.f32 %v536, 1.442695
  %v549 = vpow.pop %v548
  %v550 = vmul.f32 %v537, 1.442695
  %v551 = vpow.pop %v550
  %v552 = vmul.f32 %v538, 1.442695
  %v553 = vpow.pop %v552
  %v554 = vmul.f32 %v539, 1.442695
  %v555 = vpow.pop %v554
  %v556 = vmul.f32 %v540, 1.442695
  %v557 = vpow.pop %v556
  %v558 = vmul.f32 %v541, 1.442695
  %v559 = vpow.pop %v558
  %v560 = vsel %vm505, %v543, 0.0
  %561 = vadd.xlane.f32.xlu0 %v560
  %v562 = vpop.xlane.xlu0 %561
  %v563 = vsel %vm505, %v545, 0.0
  %564 = vadd.xlane.f32.xlu0 %v563
  %v565 = vpop.xlane.xlu0 %564
  %v566 = vsel %vm505, %v547, 0.0
  %567 = vadd.xlane.f32.xlu0 %v566
  %v568 = vpop.xlane.xlu0 %567
  %v569 = vsel %vm505, %v549, 0.0
  %570 = vadd.xlane.f32.xlu0 %v569
  %v571 = vpop.xlane.xlu0 %570
  %v572 = vsel %vm505, %v551, 0.0
  %573 = vadd.xlane.f32.xlu0 %v572
  %v574 = vpop.xlane.xlu0 %573
  %v575 = vsel %vm505, %v553, 0.0
  %576 = vadd.xlane.f32.xlu0 %v575
  %v577 = vpop.xlane.xlu0 %576
  %v578 = vsel %vm505, %v555, 0.0
  %579 = vadd.xlane.f32.xlu0 %v578
  %v580 = vpop.xlane.xlu0 %579
  %v581 = vsel %vm505, %v557, 0.0
  %582 = vadd.xlane.f32.xlu0 %v581
  %v583 = vpop.xlane.xlu0 %582
  %v584 = vsel %vm505, %v559, 0.0
  %585 = vadd.xlane.f32.xlu0 %v584
  %v586 = vpop.xlane.xlu0 %585
  %v587 = vrcp.pop %v562
  %v588 = vrcp.pop %v565
  %v589 = vrcp.pop %v568
  %v590 = vrcp.pop %v571
  %v591 = vrcp.pop %v574
  %v592 = vrcp.pop %v577
  %v593 = vrcp.pop %v580
  %v594 = vrcp.pop %v583
  %v595 = vrcp.pop %v586
  %v596 = vmul.f32 %v543, %v587
  %v597 = vmul.f32 %v545, %v588
  %v598 = vmul.f32 %v547, %v589
  %v599 = vmul.f32 %v549, %v590
  %v600 = vmul.f32 %v551, %v591
  %v601 = vmul.f32 %v553, %v592
  %v602 = vmul.f32 %v555, %v593
  %v603 = vmul.f32 %v557, %v594
  %v604 = vmul.f32 %v559, %v595
  %v606 = vsel %vm505, %v596, 0
  %v609 = vsel %vm505, %v597, 0
  %v612 = vsel %vm505, %v598, 0
  %v615 = vsel %vm505, %v599, 0
  %v618 = vsel %vm505, %v600, 0
  %v621 = vsel %vm505, %v601, 0
  %v624 = vsel %vm505, %v602, 0
  %v627 = vsel %vm505, %v603, 0
  %v630 = vsel %vm505, %v604, 0
  %632 = vmatpush.msra.mxu0 0.0
  %633 = vmatpush.msra.mxu0 0.0
  %634 = vmatpush.msra.mxu0 0.0
  %635 = vmatpush.msra.mxu0 0.0
  %636 = vmatpush.msra.mxu0 0.0
  %637 = vmatpush.msra.mxu0 0.0
  %638 = vmatpush.msra.mxu0 0.0
  %639 = vmatpush.msra.mxu0 %v348
  %640 = vmatpush.msra.mxu0 %v345
  %641 = vmatpush.msra.mxu0 %v342
  %642 = vmatpush.msra.mxu0 %v339
  %643 = vmatpush.msra.mxu0 %v336
  %644 = vmatpush.msra.mxu0 %v333
  %645 = vmatpush.msra.mxu0 %v330
  %646 = vmatpush.msra.mxu0 %v327
  %647 = vmatpush.msra.mxu0 %v324
  %648 = vmatmul.f32.gmra.mxu0 %v606
  %v649 = vpop.f32.mrf.mxu0
  %v650 = vadd.f32 0.0, %v649
  %651 = vmatmul.f32.gmra.mxu0 %v609
  %v652 = vpop.f32.mrf.mxu0
  %v653 = vadd.f32 0.0, %v652
  %654 = vmatmul.f32.gmra.mxu0 %v612
  %v655 = vpop.f32.mrf.mxu0
  %v656 = vadd.f32 0.0, %v655
  %657 = vmatmul.f32.gmra.mxu0 %v615
  %v658 = vpop.f32.mrf.mxu0
  %v659 = vadd.f32 0.0, %v658
  %660 = vmatmul.f32.gmra.mxu0 %v618
  %v661 = vpop.f32.mrf.mxu0
  %v662 = vadd.f32 0.0, %v661
  %663 = vmatmul.f32.gmra.mxu0 %v621
  %v664 = vpop.f32.mrf.mxu0
  %v665 = vadd.f32 0.0, %v664
  %666 = vmatmul.f32.gmra.mxu0 %v624
  %v667 = vpop.f32.mrf.mxu0
  %v668 = vadd.f32 0.0, %v667
  %669 = vmatmul.f32.gmra.mxu0 %v627
  %v670 = vpop.f32.mrf.mxu0
  %v671 = vadd.f32 0.0, %v670
  %672 = vmatmul.f32.gmra.mxu0 %v630
  %v673 = vpop.f32.mrf.mxu0
  %v674 = vadd.f32 0.0, %v673
  %675 = vdwg.mxu0
  %676 = vrot.lane.b32.xlu0 %v191, 120
  %v677 = vpop.permute.xlu0 %676
  %678 = vrot.lane.b32.xlu0 %v194, 120
  %v679 = vpop.permute.xlu0 %678
  %680 = vrot.lane.b32.xlu0 %v197, 120
  %v681 = vpop.permute.xlu0 %680
  %682 = vrot.lane.b32.xlu0 %v200, 120
  %v683 = vpop.permute.xlu0 %682
  %684 = vrot.lane.b32.xlu0 %v203, 120
  %v685 = vpop.permute.xlu0 %684
  %686 = vrot.lane.b32.xlu0 %v206, 120
  %v687 = vpop.permute.xlu0 %686
  %688 = vrot.lane.b32.xlu0 %v209, 120
  %v689 = vpop.permute.xlu0 %688
  %690 = vrot.lane.b32.xlu0 %v212, 120
  %v691 = vpop.permute.xlu0 %690
  %692 = vrot.lane.b32.xlu0 %v215, 120
  %v693 = vpop.permute.xlu0 %692
  %694 = vrot.lane.b32.xlu0 %v191, 88
  %v695 = vpop.permute.xlu0 %694
  %696 = vrot.lane.b32.xlu0 %v194, 88
  %v697 = vpop.permute.xlu0 %696
  %698 = vrot.lane.b32.xlu0 %v197, 88
  %v699 = vpop.permute.xlu0 %698
  %700 = vrot.lane.b32.xlu0 %v200, 88
  %v701 = vpop.permute.xlu0 %700
  %702 = vrot.lane.b32.xlu0 %v203, 88
  %v703 = vpop.permute.xlu0 %702
  %704 = vrot.lane.b32.xlu0 %v206, 88
  %v705 = vpop.permute.xlu0 %704
  %706 = vrot.lane.b32.xlu0 %v209, 88
  %v707 = vpop.permute.xlu0 %706
  %708 = vrot.lane.b32.xlu0 %v212, 88
  %v709 = vpop.permute.xlu0 %708
  %710 = vrot.lane.b32.xlu0 %v215, 88
  %v711 = vpop.permute.xlu0 %710
  %v712 = vsel %vm405, %v677, 0
  %v714 = vsel %vm405, %v679, 0
  %v716 = vsel %vm405, %v681, 0
  %v718 = vsel %vm405, %v683, 0
  %v720 = vsel %vm405, %v685, 0
  %v722 = vsel %vm405, %v687, 0
  %v724 = vsel %vm405, %v689, 0
  %v726 = vsel %vm405, %v691, 0
  %v728 = vsel %vm405, %v693, 0
  %v730 = vsel %vm405, %v695, 0
  %v732 = vsel %vm405, %v697, 0
  %v734 = vsel %vm405, %v699, 0
  %v736 = vsel %vm405, %v701, 0
  %v738 = vsel %vm405, %v703, 0
  %v740 = vsel %vm405, %v705, 0
  %v742 = vsel %vm405, %v707, 0
  %v744 = vsel %vm405, %v709, 0
  %v746 = vsel %vm405, %v711, 0
  %748 = vmatpush.xpose.msra.mxu0 0.0
  %749 = vmatpush.xpose.msra.mxu0 0.0
  %750 = vmatpush.xpose.msra.mxu0 0.0
  %751 = vmatpush.xpose.msra.mxu0 0.0
  %752 = vmatpush.xpose.msra.mxu0 0.0
  %753 = vmatpush.xpose.msra.mxu0 0.0
  %754 = vmatpush.xpose.msra.mxu0 0.0
  %755 = vmatpush.xpose.msra.mxu0 %v746
  %756 = vmatpush.xpose.msra.mxu0 %v744
  %757 = vmatpush.xpose.msra.mxu0 %v742
  %758 = vmatpush.xpose.msra.mxu0 %v740
  %759 = vmatpush.xpose.msra.mxu0 %v738
  %760 = vmatpush.xpose.msra.mxu0 %v736
  %761 = vmatpush.xpose.msra.mxu0 %v734
  %762 = vmatpush.xpose.msra.mxu0 %v732
  %763 = vmatpush.xpose.msra.mxu0 %v730
  %764 = vmatmul.f32.gmra.mxu0 %v712
  %v765 = vpop.f32.mrf.mxu0
  %v766 = vadd.f32 0.0, %v765
  %767 = vmatmul.f32.gmra.mxu0 %v714
  %v768 = vpop.f32.mrf.mxu0
  %v769 = vadd.f32 0.0, %v768
  %770 = vmatmul.f32.gmra.mxu0 %v716
  %v771 = vpop.f32.mrf.mxu0
  %v772 = vadd.f32 0.0, %v771
  %773 = vmatmul.f32.gmra.mxu0 %v718
  %v774 = vpop.f32.mrf.mxu0
  %v775 = vadd.f32 0.0, %v774
  %776 = vmatmul.f32.gmra.mxu0 %v720
  %v777 = vpop.f32.mrf.mxu0
  %v778 = vadd.f32 0.0, %v777
  %779 = vmatmul.f32.gmra.mxu0 %v722
  %v780 = vpop.f32.mrf.mxu0
  %v781 = vadd.f32 0.0, %v780
  %782 = vmatmul.f32.gmra.mxu0 %v724
  %v783 = vpop.f32.mrf.mxu0
  %v784 = vadd.f32 0.0, %v783
  %785 = vmatmul.f32.gmra.mxu0 %v726
  %v786 = vpop.f32.mrf.mxu0
  %v787 = vadd.f32 0.0, %v786
  %788 = vmatmul.f32.gmra.mxu0 %v728
  %v789 = vpop.f32.mrf.mxu0
  %v790 = vadd.f32 0.0, %v789
  %791 = vdwg.mxu0
  %v792 = vmul.f32 %v766, 0.35355338
  %v793 = vmul.f32 %v769, 0.35355338
  %v794 = vmul.f32 %v772, 0.35355338
  %v795 = vmul.f32 %v775, 0.35355338
  %v796 = vmul.f32 %v778, 0.35355338
  %v797 = vmul.f32 %v781, 0.35355338
  %v798 = vmul.f32 %v784, 0.35355338
  %v799 = vmul.f32 %v787, 0.35355338
  %v800 = vmul.f32 %v790, 0.35355338
  %v801 = vadd.f32 %v792, %v495
  %v802 = vadd.f32 %v793, %v495
  %v803 = vadd.f32 %v794, %v495
  %v804 = vadd.f32 %v795, %v495
  %v805 = vadd.f32 %v796, %v495
  %v806 = vadd.f32 %v797, %v495
  %v807 = vadd.f32 %v798, %v495
  %v808 = vadd.f32 %v799, %v495
  %v809 = vadd.f32 %v800, %v495
  %v810 = vsel %vm505, %v801, -inf
  %811 = vmax.xlane.f32.xlu0 %v810
  %v812 = vpop.xlane.xlu0 %811
  %v813 = vsel %vm505, %v802, -inf
  %814 = vmax.xlane.f32.xlu0 %v813
  %v815 = vpop.xlane.xlu0 %814
  %v816 = vsel %vm505, %v803, -inf
  %817 = vmax.xlane.f32.xlu0 %v816
  %v818 = vpop.xlane.xlu0 %817
  %v819 = vsel %vm505, %v804, -inf
  %820 = vmax.xlane.f32.xlu0 %v819
  %v821 = vpop.xlane.xlu0 %820
  %v822 = vsel %vm505, %v805, -inf
  %823 = vmax.xlane.f32.xlu0 %v822
  %v824 = vpop.xlane.xlu0 %823
  %v825 = vsel %vm505, %v806, -inf
  %826 = vmax.xlane.f32.xlu0 %v825
  %v827 = vpop.xlane.xlu0 %826
  %v828 = vsel %vm505, %v807, -inf
  %829 = vmax.xlane.f32.xlu0 %v828
  %v830 = vpop.xlane.xlu0 %829
  %v831 = vsel %vm505, %v808, -inf
  %832 = vmax.xlane.f32.xlu0 %v831
  %v833 = vpop.xlane.xlu0 %832
  %v834 = vsel %vm505, %v809, -inf
  %835 = vmax.xlane.f32.xlu0 %v834
  %v836 = vpop.xlane.xlu0 %835
  %v837 = vsub.f32 %v801, %v812
  %v838 = vsub.f32 %v802, %v815
  %v839 = vsub.f32 %v803, %v818
  %v840 = vsub.f32 %v804, %v821
  %v841 = vsub.f32 %v805, %v824
  %v842 = vsub.f32 %v806, %v827
  %v843 = vsub.f32 %v807, %v830
  %v844 = vsub.f32 %v808, %v833
  %v845 = vsub.f32 %v809, %v836
  %v846 = vmul.f32 %v837, 1.442695
  %v847 = vpow.pop %v846
  %v848 = vmul.f32 %v838, 1.442695
  %v849 = vpow.pop %v848
  %v850 = vmul.f32 %v839, 1.442695
  %v851 = vpow.pop %v850
  %v852 = vmul.f32 %v840, 1.442695
  %v853 = vpow.pop %v852
  %v854 = vmul.f32 %v841, 1.442695
  %v855 = vpow.pop %v854
  %v856 = vmul.f32 %v842, 1.442695
  %v857 = vpow.pop %v856
  %v858 = vmul.f32 %v843, 1.442695
  %v859 = vpow.pop %v858
  %v860 = vmul.f32 %v844, 1.442695
  %v861 = vpow.pop %v860
  %v862 = vmul.f32 %v845, 1.442695
  %v863 = vpow.pop %v862
  %v864 = vsel %vm505, %v847, 0.0
  %865 = vadd.xlane.f32.xlu0 %v864
  %v866 = vpop.xlane.xlu0 %865
  %v867 = vsel %vm505, %v849, 0.0
  %868 = vadd.xlane.f32.xlu0 %v867
  %v869 = vpop.xlane.xlu0 %868
  %v870 = vsel %vm505, %v851, 0.0
  %871 = vadd.xlane.f32.xlu0 %v870
  %v872 = vpop.xlane.xlu0 %871
  %v873 = vsel %vm505, %v853, 0.0
  %874 = vadd.xlane.f32.xlu0 %v873
  %v875 = vpop.xlane.xlu0 %874
  %v876 = vsel %vm505, %v855, 0.0
  %877 = vadd.xlane.f32.xlu0 %v876
  %v878 = vpop.xlane.xlu0 %877
  %v879 = vsel %vm505, %v857, 0.0
  %880 = vadd.xlane.f32.xlu0 %v879
  %v881 = vpop.xlane.xlu0 %880
  %v882 = vsel %vm505, %v859, 0.0
  %883 = vadd.xlane.f32.xlu0 %v882
  %v884 = vpop.xlane.xlu0 %883
  %v885 = vsel %vm505, %v861, 0.0
  %886 = vadd.xlane.f32.xlu0 %v885
  %v887 = vpop.xlane.xlu0 %886
  %v888 = vsel %vm505, %v863, 0.0
  %889 = vadd.xlane.f32.xlu0 %v888
  %v890 = vpop.xlane.xlu0 %889
  %v891 = vrcp.pop %v866
  %v892 = vrcp.pop %v869
  %v893 = vrcp.pop %v872
  %v894 = vrcp.pop %v875
  %v895 = vrcp.pop %v878
  %v896 = vrcp.pop %v881
  %v897 = vrcp.pop %v884
  %v898 = vrcp.pop %v887
  %v899 = vrcp.pop %v890
  %v900 = vmul.f32 %v847, %v891
  %v901 = vmul.f32 %v849, %v892
  %v902 = vmul.f32 %v851, %v893
  %v903 = vmul.f32 %v853, %v894
  %v904 = vmul.f32 %v855, %v895
  %v905 = vmul.f32 %v857, %v896
  %v906 = vmul.f32 %v859, %v897
  %v907 = vmul.f32 %v861, %v898
  %v908 = vmul.f32 %v863, %v899
  %918 = vrot.lane.b32.xlu0 %v324, 120
  %v919 = vpop.permute.xlu0 %918
  %920 = vrot.lane.b32.xlu0 %v327, 120
  %v921 = vpop.permute.xlu0 %920
  %922 = vrot.lane.b32.xlu0 %v330, 120
  %v923 = vpop.permute.xlu0 %922
  %924 = vrot.lane.b32.xlu0 %v333, 120
  %v925 = vpop.permute.xlu0 %924
  %926 = vrot.lane.b32.xlu0 %v336, 120
  %v927 = vpop.permute.xlu0 %926
  %928 = vrot.lane.b32.xlu0 %v339, 120
  %v929 = vpop.permute.xlu0 %928
  %930 = vrot.lane.b32.xlu0 %v342, 120
  %v931 = vpop.permute.xlu0 %930
  %932 = vrot.lane.b32.xlu0 %v345, 120
  %v933 = vpop.permute.xlu0 %932
  %934 = vrot.lane.b32.xlu0 %v348, 120
  %v935 = vpop.permute.xlu0 %934
  %v946 = vsel %vm505, %v900, 0
  %v949 = vsel %vm505, %v901, 0
  %v952 = vsel %vm505, %v902, 0
  %v955 = vsel %vm505, %v903, 0
  %v958 = vsel %vm505, %v904, 0
  %v961 = vsel %vm505, %v905, 0
  %v964 = vsel %vm505, %v906, 0
  %v967 = vsel %vm505, %v907, 0
  %v970 = vsel %vm505, %v908, 0
  %972 = vmatpush.msra.mxu0 0.0
  %973 = vmatpush.msra.mxu0 0.0
  %974 = vmatpush.msra.mxu0 0.0
  %975 = vmatpush.msra.mxu0 0.0
  %976 = vmatpush.msra.mxu0 0.0
  %977 = vmatpush.msra.mxu0 0.0
  %978 = vmatpush.msra.mxu0 0.0
  %979 = vmatpush.msra.mxu0 %v935
  %980 = vmatpush.msra.mxu0 %v933
  %981 = vmatpush.msra.mxu0 %v931
  %982 = vmatpush.msra.mxu0 %v929
  %983 = vmatpush.msra.mxu0 %v927
  %984 = vmatpush.msra.mxu0 %v925
  %985 = vmatpush.msra.mxu0 %v923
  %986 = vmatpush.msra.mxu0 %v921
  %987 = vmatpush.msra.mxu0 %v919
  %988 = vmatmul.f32.gmra.mxu0 %v946
  %v989 = vpop.f32.mrf.mxu0
  %v990 = vadd.f32 0.0, %v989
  %991 = vmatmul.f32.gmra.mxu0 %v949
  %v992 = vpop.f32.mrf.mxu0
  %v993 = vadd.f32 0.0, %v992
  %994 = vmatmul.f32.gmra.mxu0 %v952
  %v995 = vpop.f32.mrf.mxu0
  %v996 = vadd.f32 0.0, %v995
  %997 = vmatmul.f32.gmra.mxu0 %v955
  %v998 = vpop.f32.mrf.mxu0
  %v999 = vadd.f32 0.0, %v998
  %1000 = vmatmul.f32.gmra.mxu0 %v958
  %v1001 = vpop.f32.mrf.mxu0
  %v1002 = vadd.f32 0.0, %v1001
  %1003 = vmatmul.f32.gmra.mxu0 %v961
  %v1004 = vpop.f32.mrf.mxu0
  %v1005 = vadd.f32 0.0, %v1004
  %1006 = vmatmul.f32.gmra.mxu0 %v964
  %v1007 = vpop.f32.mrf.mxu0
  %v1008 = vadd.f32 0.0, %v1007
  %1009 = vmatmul.f32.gmra.mxu0 %v967
  %v1010 = vpop.f32.mrf.mxu0
  %v1011 = vadd.f32 0.0, %v1010
  %1012 = vmatmul.f32.gmra.mxu0 %v970
  %v1013 = vpop.f32.mrf.mxu0
  %v1014 = vadd.f32 0.0, %v1013
  %1015 = vdwg.mxu0
  %1016 = vrot.lane.b32.xlu0 %v191, 112
  %v1017 = vpop.permute.xlu0 %1016
  %1018 = vrot.lane.b32.xlu0 %v194, 112
  %v1019 = vpop.permute.xlu0 %1018
  %1020 = vrot.lane.b32.xlu0 %v197, 112
  %v1021 = vpop.permute.xlu0 %1020
  %1022 = vrot.lane.b32.xlu0 %v200, 112
  %v1023 = vpop.permute.xlu0 %1022
  %1024 = vrot.lane.b32.xlu0 %v203, 112
  %v1025 = vpop.permute.xlu0 %1024
  %1026 = vrot.lane.b32.xlu0 %v206, 112
  %v1027 = vpop.permute.xlu0 %1026
  %1028 = vrot.lane.b32.xlu0 %v209, 112
  %v1029 = vpop.permute.xlu0 %1028
  %1030 = vrot.lane.b32.xlu0 %v212, 112
  %v1031 = vpop.permute.xlu0 %1030
  %1032 = vrot.lane.b32.xlu0 %v215, 112
  %v1033 = vpop.permute.xlu0 %1032
  %1034 = vrot.lane.b32.xlu0 %v191, 80
  %v1035 = vpop.permute.xlu0 %1034
  %1036 = vrot.lane.b32.xlu0 %v194, 80
  %v1037 = vpop.permute.xlu0 %1036
  %1038 = vrot.lane.b32.xlu0 %v197, 80
  %v1039 = vpop.permute.xlu0 %1038
  %1040 = vrot.lane.b32.xlu0 %v200, 80
  %v1041 = vpop.permute.xlu0 %1040
  %1042 = vrot.lane.b32.xlu0 %v203, 80
  %v1043 = vpop.permute.xlu0 %1042
  %1044 = vrot.lane.b32.xlu0 %v206, 80
  %v1045 = vpop.permute.xlu0 %1044
  %1046 = vrot.lane.b32.xlu0 %v209, 80
  %v1047 = vpop.permute.xlu0 %1046
  %1048 = vrot.lane.b32.xlu0 %v212, 80
  %v1049 = vpop.permute.xlu0 %1048
  %1050 = vrot.lane.b32.xlu0 %v215, 80
  %v1051 = vpop.permute.xlu0 %1050
  %v1052 = vsel %vm405, %v1017, 0
  %v1054 = vsel %vm405, %v1019, 0
  %v1056 = vsel %vm405, %v1021, 0
  %v1058 = vsel %vm405, %v1023, 0
  %v1060 = vsel %vm405, %v1025, 0
  %v1062 = vsel %vm405, %v1027, 0
  %v1064 = vsel %vm405, %v1029, 0
  %v1066 = vsel %vm405, %v1031, 0
  %v1068 = vsel %vm405, %v1033, 0
  %v1070 = vsel %vm405, %v1035, 0
  %v1072 = vsel %vm405, %v1037, 0
  %v1074 = vsel %vm405, %v1039, 0
  %v1076 = vsel %vm405, %v1041, 0
  %v1078 = vsel %vm405, %v1043, 0
  %v1080 = vsel %vm405, %v1045, 0
  %v1082 = vsel %vm405, %v1047, 0
  %v1084 = vsel %vm405, %v1049, 0
  %v1086 = vsel %vm405, %v1051, 0
  %1088 = vmatpush.xpose.msra.mxu0 0.0
  %1089 = vmatpush.xpose.msra.mxu0 0.0
  %1090 = vmatpush.xpose.msra.mxu0 0.0
  %1091 = vmatpush.xpose.msra.mxu0 0.0
  %1092 = vmatpush.xpose.msra.mxu0 0.0
  %1093 = vmatpush.xpose.msra.mxu0 0.0
  %1094 = vmatpush.xpose.msra.mxu0 0.0
  %1095 = vmatpush.xpose.msra.mxu0 %v1086
  %1096 = vmatpush.xpose.msra.mxu0 %v1084
  %1097 = vmatpush.xpose.msra.mxu0 %v1082
  %1098 = vmatpush.xpose.msra.mxu0 %v1080
  %1099 = vmatpush.xpose.msra.mxu0 %v1078
  %1100 = vmatpush.xpose.msra.mxu0 %v1076
  %1101 = vmatpush.xpose.msra.mxu0 %v1074
  %1102 = vmatpush.xpose.msra.mxu0 %v1072
  %1103 = vmatpush.xpose.msra.mxu0 %v1070
  %1104 = vmatmul.f32.gmra.mxu0 %v1052
  %v1105 = vpop.f32.mrf.mxu0
  %v1106 = vadd.f32 0.0, %v1105
  %1107 = vmatmul.f32.gmra.mxu0 %v1054
  %v1108 = vpop.f32.mrf.mxu0
  %v1109 = vadd.f32 0.0, %v1108
  %1110 = vmatmul.f32.gmra.mxu0 %v1056
  %v1111 = vpop.f32.mrf.mxu0
  %v1112 = vadd.f32 0.0, %v1111
  %1113 = vmatmul.f32.gmra.mxu0 %v1058
  %v1114 = vpop.f32.mrf.mxu0
  %v1115 = vadd.f32 0.0, %v1114
  %1116 = vmatmul.f32.gmra.mxu0 %v1060
  %v1117 = vpop.f32.mrf.mxu0
  %v1118 = vadd.f32 0.0, %v1117
  %1119 = vmatmul.f32.gmra.mxu0 %v1062
  %v1120 = vpop.f32.mrf.mxu0
  %v1121 = vadd.f32 0.0, %v1120
  %1122 = vmatmul.f32.gmra.mxu0 %v1064
  %v1123 = vpop.f32.mrf.mxu0
  %v1124 = vadd.f32 0.0, %v1123
  %1125 = vmatmul.f32.gmra.mxu0 %v1066
  %v1126 = vpop.f32.mrf.mxu0
  %v1127 = vadd.f32 0.0, %v1126
  %1128 = vmatmul.f32.gmra.mxu0 %v1068
  %v1129 = vpop.f32.mrf.mxu0
  %v1130 = vadd.f32 0.0, %v1129
  %1131 = vdwg.mxu0
  %v1132 = vmul.f32 %v1106, 0.35355338
  %v1133 = vmul.f32 %v1109, 0.35355338
  %v1134 = vmul.f32 %v1112, 0.35355338
  %v1135 = vmul.f32 %v1115, 0.35355338
  %v1136 = vmul.f32 %v1118, 0.35355338
  %v1137 = vmul.f32 %v1121, 0.35355338
  %v1138 = vmul.f32 %v1124, 0.35355338
  %v1139 = vmul.f32 %v1127, 0.35355338
  %v1140 = vmul.f32 %v1130, 0.35355338
  %v1141 = vadd.f32 %v1132, %v495
  %v1142 = vadd.f32 %v1133, %v495
  %v1143 = vadd.f32 %v1134, %v495
  %v1144 = vadd.f32 %v1135, %v495
  %v1145 = vadd.f32 %v1136, %v495
  %v1146 = vadd.f32 %v1137, %v495
  %v1147 = vadd.f32 %v1138, %v495
  %v1148 = vadd.f32 %v1139, %v495
  %v1149 = vadd.f32 %v1140, %v495
  %v1150 = vsel %vm505, %v1141, -inf
  %1151 = vmax.xlane.f32.xlu0 %v1150
  %v1152 = vpop.xlane.xlu0 %1151
  %v1153 = vsel %vm505, %v1142, -inf
  %1154 = vmax.xlane.f32.xlu0 %v1153
  %v1155 = vpop.xlane.xlu0 %1154
  %v1156 = vsel %vm505, %v1143, -inf
  %1157 = vmax.xlane.f32.xlu0 %v1156
  %v1158 = vpop.xlane.xlu0 %1157
  %v1159 = vsel %vm505, %v1144, -inf
  %1160 = vmax.xlane.f32.xlu0 %v1159
  %v1161 = vpop.xlane.xlu0 %1160
  %v1162 = vsel %vm505, %v1145, -inf
  %1163 = vmax.xlane.f32.xlu0 %v1162
  %v1164 = vpop.xlane.xlu0 %1163
  %v1165 = vsel %vm505, %v1146, -inf
  %1166 = vmax.xlane.f32.xlu0 %v1165
  %v1167 = vpop.xlane.xlu0 %1166
  %v1168 = vsel %vm505, %v1147, -inf
  %1169 = vmax.xlane.f32.xlu0 %v1168
  %v1170 = vpop.xlane.xlu0 %1169
  %v1171 = vsel %vm505, %v1148, -inf
  %1172 = vmax.xlane.f32.xlu0 %v1171
  %v1173 = vpop.xlane.xlu0 %1172
  %v1174 = vsel %vm505, %v1149, -inf
  %1175 = vmax.xlane.f32.xlu0 %v1174
  %v1176 = vpop.xlane.xlu0 %1175
  %v1177 = vsub.f32 %v1141, %v1152
  %v1178 = vsub.f32 %v1142, %v1155
  %v1179 = vsub.f32 %v1143, %v1158
  %v1180 = vsub.f32 %v1144, %v1161
  %v1181 = vsub.f32 %v1145, %v1164
  %v1182 = vsub.f32 %v1146, %v1167
  %v1183 = vsub.f32 %v1147, %v1170
  %v1184 = vsub.f32 %v1148, %v1173
  %v1185 = vsub.f32 %v1149, %v1176
  %v1186 = vmul.f32 %v1177, 1.442695
  %v1187 = vpow.pop %v1186
  %v1188 = vmul.f32 %v1178, 1.442695
  %v1189 = vpow.pop %v1188
  %v1190 = vmul.f32 %v1179, 1.442695
  %v1191 = vpow.pop %v1190
  %v1192 = vmul.f32 %v1180, 1.442695
  %v1193 = vpow.pop %v1192
  %v1194 = vmul.f32 %v1181, 1.442695
  %v1195 = vpow.pop %v1194
  %v1196 = vmul.f32 %v1182, 1.442695
  %v1197 = vpow.pop %v1196
  %v1198 = vmul.f32 %v1183, 1.442695
  %v1199 = vpow.pop %v1198
  %v1200 = vmul.f32 %v1184, 1.442695
  %v1201 = vpow.pop %v1200
  %v1202 = vmul.f32 %v1185, 1.442695
  %v1203 = vpow.pop %v1202
  %v1204 = vsel %vm505, %v1187, 0.0
  %1205 = vadd.xlane.f32.xlu0 %v1204
  %v1206 = vpop.xlane.xlu0 %1205
  %v1207 = vsel %vm505, %v1189, 0.0
  %1208 = vadd.xlane.f32.xlu0 %v1207
  %v1209 = vpop.xlane.xlu0 %1208
  %v1210 = vsel %vm505, %v1191, 0.0
  %1211 = vadd.xlane.f32.xlu0 %v1210
  %v1212 = vpop.xlane.xlu0 %1211
  %v1213 = vsel %vm505, %v1193, 0.0
  %1214 = vadd.xlane.f32.xlu0 %v1213
  %v1215 = vpop.xlane.xlu0 %1214
  %v1216 = vsel %vm505, %v1195, 0.0
  %1217 = vadd.xlane.f32.xlu0 %v1216
  %v1218 = vpop.xlane.xlu0 %1217
  %v1219 = vsel %vm505, %v1197, 0.0
  %1220 = vadd.xlane.f32.xlu0 %v1219
  %v1221 = vpop.xlane.xlu0 %1220
  %v1222 = vsel %vm505, %v1199, 0.0
  %1223 = vadd.xlane.f32.xlu0 %v1222
  %v1224 = vpop.xlane.xlu0 %1223
  %v1225 = vsel %vm505, %v1201, 0.0
  %1226 = vadd.xlane.f32.xlu0 %v1225
  %v1227 = vpop.xlane.xlu0 %1226
  %v1228 = vsel %vm505, %v1203, 0.0
  %1229 = vadd.xlane.f32.xlu0 %v1228
  %v1230 = vpop.xlane.xlu0 %1229
  %v1231 = vrcp.pop %v1206
  %v1232 = vrcp.pop %v1209
  %v1233 = vrcp.pop %v1212
  %v1234 = vrcp.pop %v1215
  %v1235 = vrcp.pop %v1218
  %v1236 = vrcp.pop %v1221
  %v1237 = vrcp.pop %v1224
  %v1238 = vrcp.pop %v1227
  %v1239 = vrcp.pop %v1230
  %v1240 = vmul.f32 %v1187, %v1231
  %v1241 = vmul.f32 %v1189, %v1232
  %v1242 = vmul.f32 %v1191, %v1233
  %v1243 = vmul.f32 %v1193, %v1234
  %v1244 = vmul.f32 %v1195, %v1235
  %v1245 = vmul.f32 %v1197, %v1236
  %v1246 = vmul.f32 %v1199, %v1237
  %v1247 = vmul.f32 %v1201, %v1238
  %v1248 = vmul.f32 %v1203, %v1239
  %1249 = vrot.lane.b32.xlu0 %v324, 112
  %v1250 = vpop.permute.xlu0 %1249
  %1251 = vrot.lane.b32.xlu0 %v327, 112
  %v1252 = vpop.permute.xlu0 %1251
  %1253 = vrot.lane.b32.xlu0 %v330, 112
  %v1254 = vpop.permute.xlu0 %1253
  %1255 = vrot.lane.b32.xlu0 %v333, 112
  %v1256 = vpop.permute.xlu0 %1255
  %1257 = vrot.lane.b32.xlu0 %v336, 112
  %v1258 = vpop.permute.xlu0 %1257
  %1259 = vrot.lane.b32.xlu0 %v339, 112
  %v1260 = vpop.permute.xlu0 %1259
  %1261 = vrot.lane.b32.xlu0 %v342, 112
  %v1262 = vpop.permute.xlu0 %1261
  %1263 = vrot.lane.b32.xlu0 %v345, 112
  %v1264 = vpop.permute.xlu0 %1263
  %1265 = vrot.lane.b32.xlu0 %v348, 112
  %v1266 = vpop.permute.xlu0 %1265
  %v1277 = vsel %vm505, %v1240, 0
  %v1280 = vsel %vm505, %v1241, 0
  %v1283 = vsel %vm505, %v1242, 0
  %v1286 = vsel %vm505, %v1243, 0
  %v1289 = vsel %vm505, %v1244, 0
  %v1292 = vsel %vm505, %v1245, 0
  %v1295 = vsel %vm505, %v1246, 0
  %v1298 = vsel %vm505, %v1247, 0
  %v1301 = vsel %vm505, %v1248, 0
  %1303 = vmatpush.msra.mxu0 0.0
  %1304 = vmatpush.msra.mxu0 0.0
  %1305 = vmatpush.msra.mxu0 0.0
  %1306 = vmatpush.msra.mxu0 0.0
  %1307 = vmatpush.msra.mxu0 0.0
  %1308 = vmatpush.msra.mxu0 0.0
  %1309 = vmatpush.msra.mxu0 0.0
  %1310 = vmatpush.msra.mxu0 %v1266
  %1311 = vmatpush.msra.mxu0 %v1264
  %1312 = vmatpush.msra.mxu0 %v1262
  %1313 = vmatpush.msra.mxu0 %v1260
  %1314 = vmatpush.msra.mxu0 %v1258
  %1315 = vmatpush.msra.mxu0 %v1256
  %1316 = vmatpush.msra.mxu0 %v1254
  %1317 = vmatpush.msra.mxu0 %v1252
  %1318 = vmatpush.msra.mxu0 %v1250
  %1319 = vmatmul.f32.gmra.mxu0 %v1277
  %v1320 = vpop.f32.mrf.mxu0
  %v1321 = vadd.f32 0.0, %v1320
  %1322 = vmatmul.f32.gmra.mxu0 %v1280
  %v1323 = vpop.f32.mrf.mxu0
  %v1324 = vadd.f32 0.0, %v1323
  %1325 = vmatmul.f32.gmra.mxu0 %v1283
  %v1326 = vpop.f32.mrf.mxu0
  %v1327 = vadd.f32 0.0, %v1326
  %1328 = vmatmul.f32.gmra.mxu0 %v1286
  %v1329 = vpop.f32.mrf.mxu0
  %v1330 = vadd.f32 0.0, %v1329
  %1331 = vmatmul.f32.gmra.mxu0 %v1289
  %v1332 = vpop.f32.mrf.mxu0
  %v1333 = vadd.f32 0.0, %v1332
  %1334 = vmatmul.f32.gmra.mxu0 %v1292
  %v1335 = vpop.f32.mrf.mxu0
  %v1336 = vadd.f32 0.0, %v1335
  %1337 = vmatmul.f32.gmra.mxu0 %v1295
  %v1338 = vpop.f32.mrf.mxu0
  %v1339 = vadd.f32 0.0, %v1338
  %1340 = vmatmul.f32.gmra.mxu0 %v1298
  %v1341 = vpop.f32.mrf.mxu0
  %v1342 = vadd.f32 0.0, %v1341
  %1343 = vmatmul.f32.gmra.mxu0 %v1301
  %v1344 = vpop.f32.mrf.mxu0
  %v1345 = vadd.f32 0.0, %v1344
  %1346 = vdwg.mxu0
  %1347 = vrot.lane.b32.xlu0 %v191, 104
  %v1348 = vpop.permute.xlu0 %1347
  %1349 = vrot.lane.b32.xlu0 %v194, 104
  %v1350 = vpop.permute.xlu0 %1349
  %1351 = vrot.lane.b32.xlu0 %v197, 104
  %v1352 = vpop.permute.xlu0 %1351
  %1353 = vrot.lane.b32.xlu0 %v200, 104
  %v1354 = vpop.permute.xlu0 %1353
  %1355 = vrot.lane.b32.xlu0 %v203, 104
  %v1356 = vpop.permute.xlu0 %1355
  %1357 = vrot.lane.b32.xlu0 %v206, 104
  %v1358 = vpop.permute.xlu0 %1357
  %1359 = vrot.lane.b32.xlu0 %v209, 104
  %v1360 = vpop.permute.xlu0 %1359
  %1361 = vrot.lane.b32.xlu0 %v212, 104
  %v1362 = vpop.permute.xlu0 %1361
  %1363 = vrot.lane.b32.xlu0 %v215, 104
  %v1364 = vpop.permute.xlu0 %1363
  %1365 = vrot.lane.b32.xlu0 %v191, 72
  %v1366 = vpop.permute.xlu0 %1365
  %1367 = vrot.lane.b32.xlu0 %v194, 72
  %v1368 = vpop.permute.xlu0 %1367
  %1369 = vrot.lane.b32.xlu0 %v197, 72
  %v1370 = vpop.permute.xlu0 %1369
  %1371 = vrot.lane.b32.xlu0 %v200, 72
  %v1372 = vpop.permute.xlu0 %1371
  %1373 = vrot.lane.b32.xlu0 %v203, 72
  %v1374 = vpop.permute.xlu0 %1373
  %1375 = vrot.lane.b32.xlu0 %v206, 72
  %v1376 = vpop.permute.xlu0 %1375
  %1377 = vrot.lane.b32.xlu0 %v209, 72
  %v1378 = vpop.permute.xlu0 %1377
  %1379 = vrot.lane.b32.xlu0 %v212, 72
  %v1380 = vpop.permute.xlu0 %1379
  %1381 = vrot.lane.b32.xlu0 %v215, 72
  %v1382 = vpop.permute.xlu0 %1381
  %v1383 = vsel %vm405, %v1348, 0
  %v1385 = vsel %vm405, %v1350, 0
  %v1387 = vsel %vm405, %v1352, 0
  %v1389 = vsel %vm405, %v1354, 0
  %v1391 = vsel %vm405, %v1356, 0
  %v1393 = vsel %vm405, %v1358, 0
  %v1395 = vsel %vm405, %v1360, 0
  %v1397 = vsel %vm405, %v1362, 0
  %v1399 = vsel %vm405, %v1364, 0
  %v1401 = vsel %vm405, %v1366, 0
  %v1403 = vsel %vm405, %v1368, 0
  %v1405 = vsel %vm405, %v1370, 0
  %v1407 = vsel %vm405, %v1372, 0
  %v1409 = vsel %vm405, %v1374, 0
  %v1411 = vsel %vm405, %v1376, 0
  %v1413 = vsel %vm405, %v1378, 0
  %v1415 = vsel %vm405, %v1380, 0
  %v1417 = vsel %vm405, %v1382, 0
  %1419 = vmatpush.xpose.msra.mxu0 0.0
  %1420 = vmatpush.xpose.msra.mxu0 0.0
  %1421 = vmatpush.xpose.msra.mxu0 0.0
  %1422 = vmatpush.xpose.msra.mxu0 0.0
  %1423 = vmatpush.xpose.msra.mxu0 0.0
  %1424 = vmatpush.xpose.msra.mxu0 0.0
  %1425 = vmatpush.xpose.msra.mxu0 0.0
  %1426 = vmatpush.xpose.msra.mxu0 %v1417
  %1427 = vmatpush.xpose.msra.mxu0 %v1415
  %1428 = vmatpush.xpose.msra.mxu0 %v1413
  %1429 = vmatpush.xpose.msra.mxu0 %v1411
  %1430 = vmatpush.xpose.msra.mxu0 %v1409
  %1431 = vmatpush.xpose.msra.mxu0 %v1407
  %1432 = vmatpush.xpose.msra.mxu0 %v1405
  %1433 = vmatpush.xpose.msra.mxu0 %v1403
  %1434 = vmatpush.xpose.msra.mxu0 %v1401
  %1435 = vmatmul.f32.gmra.mxu0 %v1383
  %v1436 = vpop.f32.mrf.mxu0
  %v1437 = vadd.f32 0.0, %v1436
  %1438 = vmatmul.f32.gmra.mxu0 %v1385
  %v1439 = vpop.f32.mrf.mxu0
  %v1440 = vadd.f32 0.0, %v1439
  %1441 = vmatmul.f32.gmra.mxu0 %v1387
  %v1442 = vpop.f32.mrf.mxu0
  %v1443 = vadd.f32 0.0, %v1442
  %1444 = vmatmul.f32.gmra.mxu0 %v1389
  %v1445 = vpop.f32.mrf.mxu0
  %v1446 = vadd.f32 0.0, %v1445
  %1447 = vmatmul.f32.gmra.mxu0 %v1391
  %v1448 = vpop.f32.mrf.mxu0
  %v1449 = vadd.f32 0.0, %v1448
  %1450 = vmatmul.f32.gmra.mxu0 %v1393
  %v1451 = vpop.f32.mrf.mxu0
  %v1452 = vadd.f32 0.0, %v1451
  %1453 = vmatmul.f32.gmra.mxu0 %v1395
  %v1454 = vpop.f32.mrf.mxu0
  %v1455 = vadd.f32 0.0, %v1454
  %1456 = vmatmul.f32.gmra.mxu0 %v1397
  %v1457 = vpop.f32.mrf.mxu0
  %v1458 = vadd.f32 0.0, %v1457
  %1459 = vmatmul.f32.gmra.mxu0 %v1399
  %v1460 = vpop.f32.mrf.mxu0
  %v1461 = vadd.f32 0.0, %v1460
  %1462 = vdwg.mxu0
  %v1463 = vmul.f32 %v1437, 0.35355338
  %v1464 = vmul.f32 %v1440, 0.35355338
  %v1465 = vmul.f32 %v1443, 0.35355338
  %v1466 = vmul.f32 %v1446, 0.35355338
  %v1467 = vmul.f32 %v1449, 0.35355338
  %v1468 = vmul.f32 %v1452, 0.35355338
  %v1469 = vmul.f32 %v1455, 0.35355338
  %v1470 = vmul.f32 %v1458, 0.35355338
  %v1471 = vmul.f32 %v1461, 0.35355338
  %v1472 = vadd.f32 %v1463, %v495
  %v1473 = vadd.f32 %v1464, %v495
  %v1474 = vadd.f32 %v1465, %v495
  %v1475 = vadd.f32 %v1466, %v495
  %v1476 = vadd.f32 %v1467, %v495
  %v1477 = vadd.f32 %v1468, %v495
  %v1478 = vadd.f32 %v1469, %v495
  %v1479 = vadd.f32 %v1470, %v495
  %v1480 = vadd.f32 %v1471, %v495
  %v1481 = vsel %vm505, %v1472, -inf
  %1482 = vmax.xlane.f32.xlu0 %v1481
  %v1483 = vpop.xlane.xlu0 %1482
  %v1484 = vsel %vm505, %v1473, -inf
  %1485 = vmax.xlane.f32.xlu0 %v1484
  %v1486 = vpop.xlane.xlu0 %1485
  %v1487 = vsel %vm505, %v1474, -inf
  %1488 = vmax.xlane.f32.xlu0 %v1487
  %v1489 = vpop.xlane.xlu0 %1488
  %v1490 = vsel %vm505, %v1475, -inf
  %1491 = vmax.xlane.f32.xlu0 %v1490
  %v1492 = vpop.xlane.xlu0 %1491
  %v1493 = vsel %vm505, %v1476, -inf
  %1494 = vmax.xlane.f32.xlu0 %v1493
  %v1495 = vpop.xlane.xlu0 %1494
  %v1496 = vsel %vm505, %v1477, -inf
  %1497 = vmax.xlane.f32.xlu0 %v1496
  %v1498 = vpop.xlane.xlu0 %1497
  %v1499 = vsel %vm505, %v1478, -inf
  %1500 = vmax.xlane.f32.xlu0 %v1499
  %v1501 = vpop.xlane.xlu0 %1500
  %v1502 = vsel %vm505, %v1479, -inf
  %1503 = vmax.xlane.f32.xlu0 %v1502
  %v1504 = vpop.xlane.xlu0 %1503
  %v1505 = vsel %vm505, %v1480, -inf
  %1506 = vmax.xlane.f32.xlu0 %v1505
  %v1507 = vpop.xlane.xlu0 %1506
  %v1508 = vsub.f32 %v1472, %v1483
  %v1509 = vsub.f32 %v1473, %v1486
  %v1510 = vsub.f32 %v1474, %v1489
  %v1511 = vsub.f32 %v1475, %v1492
  %v1512 = vsub.f32 %v1476, %v1495
  %v1513 = vsub.f32 %v1477, %v1498
  %v1514 = vsub.f32 %v1478, %v1501
  %v1515 = vsub.f32 %v1479, %v1504
  %v1516 = vsub.f32 %v1480, %v1507
  %v1517 = vmul.f32 %v1508, 1.442695
  %v1518 = vpow.pop %v1517
  %v1519 = vmul.f32 %v1509, 1.442695
  %v1520 = vpow.pop %v1519
  %v1521 = vmul.f32 %v1510, 1.442695
  %v1522 = vpow.pop %v1521
  %v1523 = vmul.f32 %v1511, 1.442695
  %v1524 = vpow.pop %v1523
  %v1525 = vmul.f32 %v1512, 1.442695
  %v1526 = vpow.pop %v1525
  %v1527 = vmul.f32 %v1513, 1.442695
  %v1528 = vpow.pop %v1527
  %v1529 = vmul.f32 %v1514, 1.442695
  %v1530 = vpow.pop %v1529
  %v1531 = vmul.f32 %v1515, 1.442695
  %v1532 = vpow.pop %v1531
  %v1533 = vmul.f32 %v1516, 1.442695
  %v1534 = vpow.pop %v1533
  %v1535 = vsel %vm505, %v1518, 0.0
  %1536 = vadd.xlane.f32.xlu0 %v1535
  %v1537 = vpop.xlane.xlu0 %1536
  %v1538 = vsel %vm505, %v1520, 0.0
  %1539 = vadd.xlane.f32.xlu0 %v1538
  %v1540 = vpop.xlane.xlu0 %1539
  %v1541 = vsel %vm505, %v1522, 0.0
  %1542 = vadd.xlane.f32.xlu0 %v1541
  %v1543 = vpop.xlane.xlu0 %1542
  %v1544 = vsel %vm505, %v1524, 0.0
  %1545 = vadd.xlane.f32.xlu0 %v1544
  %v1546 = vpop.xlane.xlu0 %1545
  %v1547 = vsel %vm505, %v1526, 0.0
  %1548 = vadd.xlane.f32.xlu0 %v1547
  %v1549 = vpop.xlane.xlu0 %1548
  %v1550 = vsel %vm505, %v1528, 0.0
  %1551 = vadd.xlane.f32.xlu0 %v1550
  %v1552 = vpop.xlane.xlu0 %1551
  %v1553 = vsel %vm505, %v1530, 0.0
  %1554 = vadd.xlane.f32.xlu0 %v1553
  %v1555 = vpop.xlane.xlu0 %1554
  %v1556 = vsel %vm505, %v1532, 0.0
  %1557 = vadd.xlane.f32.xlu0 %v1556
  %v1558 = vpop.xlane.xlu0 %1557
  %v1559 = vsel %vm505, %v1534, 0.0
  %1560 = vadd.xlane.f32.xlu0 %v1559
  %v1561 = vpop.xlane.xlu0 %1560
  %v1562 = vrcp.pop %v1537
  %v1563 = vrcp.pop %v1540
  %v1564 = vrcp.pop %v1543
  %v1565 = vrcp.pop %v1546
  %v1566 = vrcp.pop %v1549
  %v1567 = vrcp.pop %v1552
  %v1568 = vrcp.pop %v1555
  %v1569 = vrcp.pop %v1558
  %v1570 = vrcp.pop %v1561
  %v1571 = vmul.f32 %v1518, %v1562
  %v1572 = vmul.f32 %v1520, %v1563
  %v1573 = vmul.f32 %v1522, %v1564
  %v1574 = vmul.f32 %v1524, %v1565
  %v1575 = vmul.f32 %v1526, %v1566
  %v1576 = vmul.f32 %v1528, %v1567
  %v1577 = vmul.f32 %v1530, %v1568
  %v1578 = vmul.f32 %v1532, %v1569
  %v1579 = vmul.f32 %v1534, %v1570
  %1580 = vrot.lane.b32.xlu0 %v324, 104
  %v1581 = vpop.permute.xlu0 %1580
  %1582 = vrot.lane.b32.xlu0 %v327, 104
  %v1583 = vpop.permute.xlu0 %1582
  %1584 = vrot.lane.b32.xlu0 %v330, 104
  %v1585 = vpop.permute.xlu0 %1584
  %1586 = vrot.lane.b32.xlu0 %v333, 104
  %v1587 = vpop.permute.xlu0 %1586
  %1588 = vrot.lane.b32.xlu0 %v336, 104
  %v1589 = vpop.permute.xlu0 %1588
  %1590 = vrot.lane.b32.xlu0 %v339, 104
  %v1591 = vpop.permute.xlu0 %1590
  %1592 = vrot.lane.b32.xlu0 %v342, 104
  %v1593 = vpop.permute.xlu0 %1592
  %1594 = vrot.lane.b32.xlu0 %v345, 104
  %v1595 = vpop.permute.xlu0 %1594
  %1596 = vrot.lane.b32.xlu0 %v348, 104
  %v1597 = vpop.permute.xlu0 %1596
  %v1608 = vsel %vm505, %v1571, 0
  %v1611 = vsel %vm505, %v1572, 0
  %v1614 = vsel %vm505, %v1573, 0
  %v1617 = vsel %vm505, %v1574, 0
  %v1620 = vsel %vm505, %v1575, 0
  %v1623 = vsel %vm505, %v1576, 0
  %v1626 = vsel %vm505, %v1577, 0
  %v1629 = vsel %vm505, %v1578, 0
  %v1632 = vsel %vm505, %v1579, 0
  %1634 = vmatpush.msra.mxu0 0.0
  %1635 = vmatpush.msra.mxu0 0.0
  %1636 = vmatpush.msra.mxu0 0.0
  %1637 = vmatpush.msra.mxu0 0.0
  %1638 = vmatpush.msra.mxu0 0.0
  %1639 = vmatpush.msra.mxu0 0.0
  %1640 = vmatpush.msra.mxu0 0.0
  %1641 = vmatpush.msra.mxu0 %v1597
  %1642 = vmatpush.msra.mxu0 %v1595
  %1643 = vmatpush.msra.mxu0 %v1593
  %1644 = vmatpush.msra.mxu0 %v1591
  %1645 = vmatpush.msra.mxu0 %v1589
  %1646 = vmatpush.msra.mxu0 %v1587
  %1647 = vmatpush.msra.mxu0 %v1585
  %1648 = vmatpush.msra.mxu0 %v1583
  %1649 = vmatpush.msra.mxu0 %v1581
  %1650 = vmatmul.f32.gmra.mxu0 %v1608
  %v1651 = vpop.f32.mrf.mxu0
  %v1652 = vadd.f32 0.0, %v1651
  %1653 = vmatmul.f32.gmra.mxu0 %v1611
  %v1654 = vpop.f32.mrf.mxu0
  %v1655 = vadd.f32 0.0, %v1654
  %1656 = vmatmul.f32.gmra.mxu0 %v1614
  %v1657 = vpop.f32.mrf.mxu0
  %v1658 = vadd.f32 0.0, %v1657
  %1659 = vmatmul.f32.gmra.mxu0 %v1617
  %v1660 = vpop.f32.mrf.mxu0
  %v1661 = vadd.f32 0.0, %v1660
  %1662 = vmatmul.f32.gmra.mxu0 %v1620
  %v1663 = vpop.f32.mrf.mxu0
  %v1664 = vadd.f32 0.0, %v1663
  %1665 = vmatmul.f32.gmra.mxu0 %v1623
  %v1666 = vpop.f32.mrf.mxu0
  %v1667 = vadd.f32 0.0, %v1666
  %1668 = vmatmul.f32.gmra.mxu0 %v1626
  %v1669 = vpop.f32.mrf.mxu0
  %v1670 = vadd.f32 0.0, %v1669
  %1671 = vmatmul.f32.gmra.mxu0 %v1629
  %v1672 = vpop.f32.mrf.mxu0
  %v1673 = vadd.f32 0.0, %v1672
  %1674 = vmatmul.f32.gmra.mxu0 %v1632
  %v1675 = vpop.f32.mrf.mxu0
  %v1676 = vadd.f32 0.0, %v1675
  %1677 = vdwg.mxu0
  %1687 = vrot.lane.b32.xlu0 %v990, 8
  %v1688 = vpop.permute.xlu0 %1687
  %1689 = vrot.lane.b32.xlu0 %v993, 8
  %v1690 = vpop.permute.xlu0 %1689
  %1691 = vrot.lane.b32.xlu0 %v996, 8
  %v1692 = vpop.permute.xlu0 %1691
  %1693 = vrot.lane.b32.xlu0 %v999, 8
  %v1694 = vpop.permute.xlu0 %1693
  %1695 = vrot.lane.b32.xlu0 %v1002, 8
  %v1696 = vpop.permute.xlu0 %1695
  %1697 = vrot.lane.b32.xlu0 %v1005, 8
  %v1698 = vpop.permute.xlu0 %1697
  %1699 = vrot.lane.b32.xlu0 %v1008, 8
  %v1700 = vpop.permute.xlu0 %1699
  %1701 = vrot.lane.b32.xlu0 %v1011, 8
  %v1702 = vpop.permute.xlu0 %1701
  %1703 = vrot.lane.b32.xlu0 %v1014, 8
  %v1704 = vpop.permute.xlu0 %1703
  %1723 = vrot.lane.b32.xlu0 %v1321, 16
  %v1724 = vpop.permute.xlu0 %1723
  %1725 = vrot.lane.b32.xlu0 %v1324, 16
  %v1726 = vpop.permute.xlu0 %1725
  %1727 = vrot.lane.b32.xlu0 %v1327, 16
  %v1728 = vpop.permute.xlu0 %1727
  %1729 = vrot.lane.b32.xlu0 %v1330, 16
  %v1730 = vpop.permute.xlu0 %1729
  %1731 = vrot.lane.b32.xlu0 %v1333, 16
  %v1732 = vpop.permute.xlu0 %1731
  %1733 = vrot.lane.b32.xlu0 %v1336, 16
  %v1734 = vpop.permute.xlu0 %1733
  %1735 = vrot.lane.b32.xlu0 %v1339, 16
  %v1736 = vpop.permute.xlu0 %1735
  %1737 = vrot.lane.b32.xlu0 %v1342, 16
  %v1738 = vpop.permute.xlu0 %1737
  %1739 = vrot.lane.b32.xlu0 %v1345, 16
  %v1740 = vpop.permute.xlu0 %1739
  %1759 = vrot.lane.b32.xlu0 %v1652, 24
  %v1760 = vpop.permute.xlu0 %1759
  %1761 = vrot.lane.b32.xlu0 %v1655, 24
  %v1762 = vpop.permute.xlu0 %1761
  %1763 = vrot.lane.b32.xlu0 %v1658, 24
  %v1764 = vpop.permute.xlu0 %1763
  %1765 = vrot.lane.b32.xlu0 %v1661, 24
  %v1766 = vpop.permute.xlu0 %1765
  %1767 = vrot.lane.b32.xlu0 %v1664, 24
  %v1768 = vpop.permute.xlu0 %1767
  %1769 = vrot.lane.b32.xlu0 %v1667, 24
  %v1770 = vpop.permute.xlu0 %1769
  %1771 = vrot.lane.b32.xlu0 %v1670, 24
  %v1772 = vpop.permute.xlu0 %1771
  %1773 = vrot.lane.b32.xlu0 %v1673, 24
  %v1774 = vpop.permute.xlu0 %1773
  %1775 = vrot.lane.b32.xlu0 %v1676, 24
  %v1776 = vpop.permute.xlu0 %1775
  %v1786 = vsel %vm405, %v650, %v1688
  %v1787 = vsel %vm405, %v653, %v1690
  %v1788 = vsel %vm405, %v656, %v1692
  %v1789 = vsel %vm405, %v659, %v1694
  %v1790 = vsel %vm405, %v662, %v1696
  %v1791 = vsel %vm405, %v665, %v1698
  %v1792 = vsel %vm405, %v668, %v1700
  %v1793 = vsel %vm405, %v671, %v1702
  %v1794 = vsel %vm405, %v674, %v1704
  %vm1795 = vcmask 130048
  %v1796 = vsel %vm1795, %v1786, %v1724
  %v1797 = vsel %vm1795, %v1787, %v1726
  %v1798 = vsel %vm1795, %v1788, %v1728
  %v1799 = vsel %vm1795, %v1789, %v1730
  %v1800 = vsel %vm1795, %v1790, %v1732
  %v1801 = vsel %vm1795, %v1791, %v1734
  %v1802 = vsel %vm1795, %v1792, %v1736
  %v1803 = vsel %vm1795, %v1793, %v1738
  %v1804 = vsel %vm1795, %v1794, %v1740
  %vm1805 = vcmask 195584
  %v1806 = vsel %vm1805, %v1796, %v1760
  %v1807 = vsel %vm1805, %v1797, %v1762
  %v1808 = vsel %vm1805, %v1798, %v1764
  %v1809 = vsel %vm1805, %v1799, %v1766
  %v1810 = vsel %vm1805, %v1800, %v1768
  %v1811 = vsel %vm1805, %v1801, %v1770
  %v1812 = vsel %vm1805, %v1802, %v1772
  %v1813 = vsel %vm1805, %v1803, %v1774
  %v1814 = vsel %vm1805, %v1804, %v1776
  %1824 = vrot.lane.b32.xlu0 %v218, 96
  %v1825 = vpop.permute.xlu0 %1824
  %1826 = vrot.lane.b32.xlu0 %v221, 96
  %v1827 = vpop.permute.xlu0 %1826
  %1828 = vrot.lane.b32.xlu0 %v224, 96
  %v1829 = vpop.permute.xlu0 %1828
  %1830 = vrot.lane.b32.xlu0 %v227, 96
  %v1831 = vpop.permute.xlu0 %1830
  %1832 = vrot.lane.b32.xlu0 %v230, 96
  %v1833 = vpop.permute.xlu0 %1832
  %1834 = vrot.lane.b32.xlu0 %v233, 96
  %v1835 = vpop.permute.xlu0 %1834
  %1836 = vrot.lane.b32.xlu0 %v236, 96
  %v1837 = vpop.permute.xlu0 %1836
  %1838 = vrot.lane.b32.xlu0 %v239, 96
  %v1839 = vpop.permute.xlu0 %1838
  %1840 = vrot.lane.b32.xlu0 %v242, 96
  %v1841 = vpop.permute.xlu0 %1840
  %v1842 = vsel %vm405, %v218, 0
  %v1844 = vsel %vm405, %v221, 0
  %v1846 = vsel %vm405, %v224, 0
  %v1848 = vsel %vm405, %v227, 0
  %v1850 = vsel %vm405, %v230, 0
  %v1852 = vsel %vm405, %v233, 0
  %v1854 = vsel %vm405, %v236, 0
  %v1856 = vsel %vm405, %v239, 0
  %v1858 = vsel %vm405, %v242, 0
  %v1860 = vsel %vm405, %v1825, 0
  %v1862 = vsel %vm405, %v1827, 0
  %v1864 = vsel %vm405, %v1829, 0
  %v1866 = vsel %vm405, %v1831, 0
  %v1868 = vsel %vm405, %v1833, 0
  %v1870 = vsel %vm405, %v1835, 0
  %v1872 = vsel %vm405, %v1837, 0
  %v1874 = vsel %vm405, %v1839, 0
  %v1876 = vsel %vm405, %v1841, 0
  %1878 = vmatpush.xpose.msra.mxu0 0.0
  %1879 = vmatpush.xpose.msra.mxu0 0.0
  %1880 = vmatpush.xpose.msra.mxu0 0.0
  %1881 = vmatpush.xpose.msra.mxu0 0.0
  %1882 = vmatpush.xpose.msra.mxu0 0.0
  %1883 = vmatpush.xpose.msra.mxu0 0.0
  %1884 = vmatpush.xpose.msra.mxu0 0.0
  %1885 = vmatpush.xpose.msra.mxu0 %v1876
  %1886 = vmatpush.xpose.msra.mxu0 %v1874
  %1887 = vmatpush.xpose.msra.mxu0 %v1872
  %1888 = vmatpush.xpose.msra.mxu0 %v1870
  %1889 = vmatpush.xpose.msra.mxu0 %v1868
  %1890 = vmatpush.xpose.msra.mxu0 %v1866
  %1891 = vmatpush.xpose.msra.mxu0 %v1864
  %1892 = vmatpush.xpose.msra.mxu0 %v1862
  %1893 = vmatpush.xpose.msra.mxu0 %v1860
  %1894 = vmatmul.f32.gmra.mxu0 %v1842
  %v1895 = vpop.f32.mrf.mxu0
  %v1896 = vadd.f32 0.0, %v1895
  %1897 = vmatmul.f32.gmra.mxu0 %v1844
  %v1898 = vpop.f32.mrf.mxu0
  %v1899 = vadd.f32 0.0, %v1898
  %1900 = vmatmul.f32.gmra.mxu0 %v1846
  %v1901 = vpop.f32.mrf.mxu0
  %v1902 = vadd.f32 0.0, %v1901
  %1903 = vmatmul.f32.gmra.mxu0 %v1848
  %v1904 = vpop.f32.mrf.mxu0
  %v1905 = vadd.f32 0.0, %v1904
  %1906 = vmatmul.f32.gmra.mxu0 %v1850
  %v1907 = vpop.f32.mrf.mxu0
  %v1908 = vadd.f32 0.0, %v1907
  %1909 = vmatmul.f32.gmra.mxu0 %v1852
  %v1910 = vpop.f32.mrf.mxu0
  %v1911 = vadd.f32 0.0, %v1910
  %1912 = vmatmul.f32.gmra.mxu0 %v1854
  %v1913 = vpop.f32.mrf.mxu0
  %v1914 = vadd.f32 0.0, %v1913
  %1915 = vmatmul.f32.gmra.mxu0 %v1856
  %v1916 = vpop.f32.mrf.mxu0
  %v1917 = vadd.f32 0.0, %v1916
  %1918 = vmatmul.f32.gmra.mxu0 %v1858
  %v1919 = vpop.f32.mrf.mxu0
  %v1920 = vadd.f32 0.0, %v1919
  %1921 = vdwg.mxu0
  %v1922 = vmul.f32 %v1896, 0.35355338
  %v1923 = vmul.f32 %v1899, 0.35355338
  %v1924 = vmul.f32 %v1902, 0.35355338
  %v1925 = vmul.f32 %v1905, 0.35355338
  %v1926 = vmul.f32 %v1908, 0.35355338
  %v1927 = vmul.f32 %v1911, 0.35355338
  %v1928 = vmul.f32 %v1914, 0.35355338
  %v1929 = vmul.f32 %v1917, 0.35355338
  %v1930 = vmul.f32 %v1920, 0.35355338
  %v1931 = vperm.slane %v377, 1
  %v1932 = vadd.f32 %v1922, %v1931
  %v1933 = vadd.f32 %v1923, %v1931
  %v1934 = vadd.f32 %v1924, %v1931
  %v1935 = vadd.f32 %v1925, %v1931
  %v1936 = vadd.f32 %v1926, %v1931
  %v1937 = vadd.f32 %v1927, %v1931
  %v1938 = vadd.f32 %v1928, %v1931
  %v1939 = vadd.f32 %v1929, %v1931
  %v1940 = vadd.f32 %v1930, %v1931
  %v1941 = vsel %vm505, %v1932, -inf
  %1942 = vmax.xlane.f32.xlu0 %v1941
  %v1943 = vpop.xlane.xlu0 %1942
  %v1944 = vsel %vm505, %v1933, -inf
  %1945 = vmax.xlane.f32.xlu0 %v1944
  %v1946 = vpop.xlane.xlu0 %1945
  %v1947 = vsel %vm505, %v1934, -inf
  %1948 = vmax.xlane.f32.xlu0 %v1947
  %v1949 = vpop.xlane.xlu0 %1948
  %v1950 = vsel %vm505, %v1935, -inf
  %1951 = vmax.xlane.f32.xlu0 %v1950
  %v1952 = vpop.xlane.xlu0 %1951
  %v1953 = vsel %vm505, %v1936, -inf
  %1954 = vmax.xlane.f32.xlu0 %v1953
  %v1955 = vpop.xlane.xlu0 %1954
  %v1956 = vsel %vm505, %v1937, -inf
  %1957 = vmax.xlane.f32.xlu0 %v1956
  %v1958 = vpop.xlane.xlu0 %1957
  %v1959 = vsel %vm505, %v1938, -inf
  %1960 = vmax.xlane.f32.xlu0 %v1959
  %v1961 = vpop.xlane.xlu0 %1960
  %v1962 = vsel %vm505, %v1939, -inf
  %1963 = vmax.xlane.f32.xlu0 %v1962
  %v1964 = vpop.xlane.xlu0 %1963
  %v1965 = vsel %vm505, %v1940, -inf
  %1966 = vmax.xlane.f32.xlu0 %v1965
  %v1967 = vpop.xlane.xlu0 %1966
  %v1968 = vsub.f32 %v1932, %v1943
  %v1969 = vsub.f32 %v1933, %v1946
  %v1970 = vsub.f32 %v1934, %v1949
  %v1971 = vsub.f32 %v1935, %v1952
  %v1972 = vsub.f32 %v1936, %v1955
  %v1973 = vsub.f32 %v1937, %v1958
  %v1974 = vsub.f32 %v1938, %v1961
  %v1975 = vsub.f32 %v1939, %v1964
  %v1976 = vsub.f32 %v1940, %v1967
  %v1977 = vmul.f32 %v1968, 1.442695
  %v1978 = vpow.pop %v1977
  %v1979 = vmul.f32 %v1969, 1.442695
  %v1980 = vpow.pop %v1979
  %v1981 = vmul.f32 %v1970, 1.442695
  %v1982 = vpow.pop %v1981
  %v1983 = vmul.f32 %v1971, 1.442695
  %v1984 = vpow.pop %v1983
  %v1985 = vmul.f32 %v1972, 1.442695
  %v1986 = vpow.pop %v1985
  %v1987 = vmul.f32 %v1973, 1.442695
  %v1988 = vpow.pop %v1987
  %v1989 = vmul.f32 %v1974, 1.442695
  %v1990 = vpow.pop %v1989
  %v1991 = vmul.f32 %v1975, 1.442695
  %v1992 = vpow.pop %v1991
  %v1993 = vmul.f32 %v1976, 1.442695
  %v1994 = vpow.pop %v1993
  %v1995 = vsel %vm505, %v1978, 0.0
  %1996 = vadd.xlane.f32.xlu0 %v1995
  %v1997 = vpop.xlane.xlu0 %1996
  %v1998 = vsel %vm505, %v1980, 0.0
  %1999 = vadd.xlane.f32.xlu0 %v1998
  %v2000 = vpop.xlane.xlu0 %1999
  %v2001 = vsel %vm505, %v1982, 0.0
  %2002 = vadd.xlane.f32.xlu0 %v2001
  %v2003 = vpop.xlane.xlu0 %2002
  %v2004 = vsel %vm505, %v1984, 0.0
  %2005 = vadd.xlane.f32.xlu0 %v2004
  %v2006 = vpop.xlane.xlu0 %2005
  %v2007 = vsel %vm505, %v1986, 0.0
  %2008 = vadd.xlane.f32.xlu0 %v2007
  %v2009 = vpop.xlane.xlu0 %2008
  %v2010 = vsel %vm505, %v1988, 0.0
  %2011 = vadd.xlane.f32.xlu0 %v2010
  %v2012 = vpop.xlane.xlu0 %2011
  %v2013 = vsel %vm505, %v1990, 0.0
  %2014 = vadd.xlane.f32.xlu0 %v2013
  %v2015 = vpop.xlane.xlu0 %2014
  %v2016 = vsel %vm505, %v1992, 0.0
  %2017 = vadd.xlane.f32.xlu0 %v2016
  %v2018 = vpop.xlane.xlu0 %2017
  %v2019 = vsel %vm505, %v1994, 0.0
  %2020 = vadd.xlane.f32.xlu0 %v2019
  %v2021 = vpop.xlane.xlu0 %2020
  %v2022 = vrcp.pop %v1997
  %v2023 = vrcp.pop %v2000
  %v2024 = vrcp.pop %v2003
  %v2025 = vrcp.pop %v2006
  %v2026 = vrcp.pop %v2009
  %v2027 = vrcp.pop %v2012
  %v2028 = vrcp.pop %v2015
  %v2029 = vrcp.pop %v2018
  %v2030 = vrcp.pop %v2021
  %v2031 = vmul.f32 %v1978, %v2022
  %v2032 = vmul.f32 %v1980, %v2023
  %v2033 = vmul.f32 %v1982, %v2024
  %v2034 = vmul.f32 %v1984, %v2025
  %v2035 = vmul.f32 %v1986, %v2026
  %v2036 = vmul.f32 %v1988, %v2027
  %v2037 = vmul.f32 %v1990, %v2028
  %v2038 = vmul.f32 %v1992, %v2029
  %v2039 = vmul.f32 %v1994, %v2030
  %v2041 = vsel %vm505, %v2031, 0
  %v2044 = vsel %vm505, %v2032, 0
  %v2047 = vsel %vm505, %v2033, 0
  %v2050 = vsel %vm505, %v2034, 0
  %v2053 = vsel %vm505, %v2035, 0
  %v2056 = vsel %vm505, %v2036, 0
  %v2059 = vsel %vm505, %v2037, 0
  %v2062 = vsel %vm505, %v2038, 0
  %v2065 = vsel %vm505, %v2039, 0
  %2067 = vmatpush.msra.mxu0 0.0
  %2068 = vmatpush.msra.mxu0 0.0
  %2069 = vmatpush.msra.mxu0 0.0
  %2070 = vmatpush.msra.mxu0 0.0
  %2071 = vmatpush.msra.mxu0 0.0
  %2072 = vmatpush.msra.mxu0 0.0
  %2073 = vmatpush.msra.mxu0 0.0
  %2074 = vmatpush.msra.mxu0 %v375
  %2075 = vmatpush.msra.mxu0 %v372
  %2076 = vmatpush.msra.mxu0 %v369
  %2077 = vmatpush.msra.mxu0 %v366
  %2078 = vmatpush.msra.mxu0 %v363
  %2079 = vmatpush.msra.mxu0 %v360
  %2080 = vmatpush.msra.mxu0 %v357
  %2081 = vmatpush.msra.mxu0 %v354
  %2082 = vmatpush.msra.mxu0 %v351
  %2083 = vmatmul.f32.gmra.mxu0 %v2041
  %v2084 = vpop.f32.mrf.mxu0
  %v2085 = vadd.f32 0.0, %v2084
  %2086 = vmatmul.f32.gmra.mxu0 %v2044
  %v2087 = vpop.f32.mrf.mxu0
  %v2088 = vadd.f32 0.0, %v2087
  %2089 = vmatmul.f32.gmra.mxu0 %v2047
  %v2090 = vpop.f32.mrf.mxu0
  %v2091 = vadd.f32 0.0, %v2090
  %2092 = vmatmul.f32.gmra.mxu0 %v2050
  %v2093 = vpop.f32.mrf.mxu0
  %v2094 = vadd.f32 0.0, %v2093
  %2095 = vmatmul.f32.gmra.mxu0 %v2053
  %v2096 = vpop.f32.mrf.mxu0
  %v2097 = vadd.f32 0.0, %v2096
  %2098 = vmatmul.f32.gmra.mxu0 %v2056
  %v2099 = vpop.f32.mrf.mxu0
  %v2100 = vadd.f32 0.0, %v2099
  %2101 = vmatmul.f32.gmra.mxu0 %v2059
  %v2102 = vpop.f32.mrf.mxu0
  %v2103 = vadd.f32 0.0, %v2102
  %2104 = vmatmul.f32.gmra.mxu0 %v2062
  %v2105 = vpop.f32.mrf.mxu0
  %v2106 = vadd.f32 0.0, %v2105
  %2107 = vmatmul.f32.gmra.mxu0 %v2065
  %v2108 = vpop.f32.mrf.mxu0
  %v2109 = vadd.f32 0.0, %v2108
  %2110 = vdwg.mxu0
  %2111 = vrot.lane.b32.xlu0 %v218, 120
  %v2112 = vpop.permute.xlu0 %2111
  %2113 = vrot.lane.b32.xlu0 %v221, 120
  %v2114 = vpop.permute.xlu0 %2113
  %2115 = vrot.lane.b32.xlu0 %v224, 120
  %v2116 = vpop.permute.xlu0 %2115
  %2117 = vrot.lane.b32.xlu0 %v227, 120
  %v2118 = vpop.permute.xlu0 %2117
  %2119 = vrot.lane.b32.xlu0 %v230, 120
  %v2120 = vpop.permute.xlu0 %2119
  %2121 = vrot.lane.b32.xlu0 %v233, 120
  %v2122 = vpop.permute.xlu0 %2121
  %2123 = vrot.lane.b32.xlu0 %v236, 120
  %v2124 = vpop.permute.xlu0 %2123
  %2125 = vrot.lane.b32.xlu0 %v239, 120
  %v2126 = vpop.permute.xlu0 %2125
  %2127 = vrot.lane.b32.xlu0 %v242, 120
  %v2128 = vpop.permute.xlu0 %2127
  %2129 = vrot.lane.b32.xlu0 %v218, 88
  %v2130 = vpop.permute.xlu0 %2129
  %2131 = vrot.lane.b32.xlu0 %v221, 88
  %v2132 = vpop.permute.xlu0 %2131
  %2133 = vrot.lane.b32.xlu0 %v224, 88
  %v2134 = vpop.permute.xlu0 %2133
  %2135 = vrot.lane.b32.xlu0 %v227, 88
  %v2136 = vpop.permute.xlu0 %2135
  %2137 = vrot.lane.b32.xlu0 %v230, 88
  %v2138 = vpop.permute.xlu0 %2137
  %2139 = vrot.lane.b32.xlu0 %v233, 88
  %v2140 = vpop.permute.xlu0 %2139
  %2141 = vrot.lane.b32.xlu0 %v236, 88
  %v2142 = vpop.permute.xlu0 %2141
  %2143 = vrot.lane.b32.xlu0 %v239, 88
  %v2144 = vpop.permute.xlu0 %2143
  %2145 = vrot.lane.b32.xlu0 %v242, 88
  %v2146 = vpop.permute.xlu0 %2145
  %v2147 = vsel %vm405, %v2112, 0
  %v2149 = vsel %vm405, %v2114, 0
  %v2151 = vsel %vm405, %v2116, 0
  %v2153 = vsel %vm405, %v2118, 0
  %v2155 = vsel %vm405, %v2120, 0
  %v2157 = vsel %vm405, %v2122, 0
  %v2159 = vsel %vm405, %v2124, 0
  %v2161 = vsel %vm405, %v2126, 0
  %v2163 = vsel %vm405, %v2128, 0
  %v2165 = vsel %vm405, %v2130, 0
  %v2167 = vsel %vm405, %v2132, 0
  %v2169 = vsel %vm405, %v2134, 0
  %v2171 = vsel %vm405, %v2136, 0
  %v2173 = vsel %vm405, %v2138, 0
  %v2175 = vsel %vm405, %v2140, 0
  %v2177 = vsel %vm405, %v2142, 0
  %v2179 = vsel %vm405, %v2144, 0
  %v2181 = vsel %vm405, %v2146, 0
  %2183 = vmatpush.xpose.msra.mxu0 0.0
  %2184 = vmatpush.xpose.msra.mxu0 0.0
  %2185 = vmatpush.xpose.msra.mxu0 0.0
  %2186 = vmatpush.xpose.msra.mxu0 0.0
  %2187 = vmatpush.xpose.msra.mxu0 0.0
  %2188 = vmatpush.xpose.msra.mxu0 0.0
  %2189 = vmatpush.xpose.msra.mxu0 0.0
  %2190 = vmatpush.xpose.msra.mxu0 %v2181
  %2191 = vmatpush.xpose.msra.mxu0 %v2179
  %2192 = vmatpush.xpose.msra.mxu0 %v2177
  %2193 = vmatpush.xpose.msra.mxu0 %v2175
  %2194 = vmatpush.xpose.msra.mxu0 %v2173
  %2195 = vmatpush.xpose.msra.mxu0 %v2171
  %2196 = vmatpush.xpose.msra.mxu0 %v2169
  %2197 = vmatpush.xpose.msra.mxu0 %v2167
  %2198 = vmatpush.xpose.msra.mxu0 %v2165
  %2199 = vmatmul.f32.gmra.mxu0 %v2147
  %v2200 = vpop.f32.mrf.mxu0
  %v2201 = vadd.f32 0.0, %v2200
  %2202 = vmatmul.f32.gmra.mxu0 %v2149
  %v2203 = vpop.f32.mrf.mxu0
  %v2204 = vadd.f32 0.0, %v2203
  %2205 = vmatmul.f32.gmra.mxu0 %v2151
  %v2206 = vpop.f32.mrf.mxu0
  %v2207 = vadd.f32 0.0, %v2206
  %2208 = vmatmul.f32.gmra.mxu0 %v2153
  %v2209 = vpop.f32.mrf.mxu0
  %v2210 = vadd.f32 0.0, %v2209
  %2211 = vmatmul.f32.gmra.mxu0 %v2155
  %v2212 = vpop.f32.mrf.mxu0
  %v2213 = vadd.f32 0.0, %v2212
  %2214 = vmatmul.f32.gmra.mxu0 %v2157
  %v2215 = vpop.f32.mrf.mxu0
  %v2216 = vadd.f32 0.0, %v2215
  %2217 = vmatmul.f32.gmra.mxu0 %v2159
  %v2218 = vpop.f32.mrf.mxu0
  %v2219 = vadd.f32 0.0, %v2218
  %2220 = vmatmul.f32.gmra.mxu0 %v2161
  %v2221 = vpop.f32.mrf.mxu0
  %v2222 = vadd.f32 0.0, %v2221
  %2223 = vmatmul.f32.gmra.mxu0 %v2163
  %v2224 = vpop.f32.mrf.mxu0
  %v2225 = vadd.f32 0.0, %v2224
  %2226 = vdwg.mxu0
  %v2227 = vmul.f32 %v2201, 0.35355338
  %v2228 = vmul.f32 %v2204, 0.35355338
  %v2229 = vmul.f32 %v2207, 0.35355338
  %v2230 = vmul.f32 %v2210, 0.35355338
  %v2231 = vmul.f32 %v2213, 0.35355338
  %v2232 = vmul.f32 %v2216, 0.35355338
  %v2233 = vmul.f32 %v2219, 0.35355338
  %v2234 = vmul.f32 %v2222, 0.35355338
  %v2235 = vmul.f32 %v2225, 0.35355338
  %v2236 = vadd.f32 %v2227, %v1931
  %v2237 = vadd.f32 %v2228, %v1931
  %v2238 = vadd.f32 %v2229, %v1931
  %v2239 = vadd.f32 %v2230, %v1931
  %v2240 = vadd.f32 %v2231, %v1931
  %v2241 = vadd.f32 %v2232, %v1931
  %v2242 = vadd.f32 %v2233, %v1931
  %v2243 = vadd.f32 %v2234, %v1931
  %v2244 = vadd.f32 %v2235, %v1931
  %v2245 = vsel %vm505, %v2236, -inf
  %2246 = vmax.xlane.f32.xlu0 %v2245
  %v2247 = vpop.xlane.xlu0 %2246
  %v2248 = vsel %vm505, %v2237, -inf
  %2249 = vmax.xlane.f32.xlu0 %v2248
  %v2250 = vpop.xlane.xlu0 %2249
  %v2251 = vsel %vm505, %v2238, -inf
  %2252 = vmax.xlane.f32.xlu0 %v2251
  %v2253 = vpop.xlane.xlu0 %2252
  %v2254 = vsel %vm505, %v2239, -inf
  %2255 = vmax.xlane.f32.xlu0 %v2254
  %v2256 = vpop.xlane.xlu0 %2255
  %v2257 = vsel %vm505, %v2240, -inf
  %2258 = vmax.xlane.f32.xlu0 %v2257
  %v2259 = vpop.xlane.xlu0 %2258
  %v2260 = vsel %vm505, %v2241, -inf
  %2261 = vmax.xlane.f32.xlu0 %v2260
  %v2262 = vpop.xlane.xlu0 %2261
  %v2263 = vsel %vm505, %v2242, -inf
  %2264 = vmax.xlane.f32.xlu0 %v2263
  %v2265 = vpop.xlane.xlu0 %2264
  %v2266 = vsel %vm505, %v2243, -inf
  %2267 = vmax.xlane.f32.xlu0 %v2266
  %v2268 = vpop.xlane.xlu0 %2267
  %v2269 = vsel %vm505, %v2244, -inf
  %2270 = vmax.xlane.f32.xlu0 %v2269
  %v2271 = vpop.xlane.xlu0 %2270
  %v2272 = vsub.f32 %v2236, %v2247
  %v2273 = vsub.f32 %v2237, %v2250
  %v2274 = vsub.f32 %v2238, %v2253
  %v2275 = vsub.f32 %v2239, %v2256
  %v2276 = vsub.f32 %v2240, %v2259
  %v2277 = vsub.f32 %v2241, %v2262
  %v2278 = vsub.f32 %v2242, %v2265
  %v2279 = vsub.f32 %v2243, %v2268
  %v2280 = vsub.f32 %v2244, %v2271
  %v2281 = vmul.f32 %v2272, 1.442695
  %v2282 = vpow.pop %v2281
  %v2283 = vmul.f32 %v2273, 1.442695
  %v2284 = vpow.pop %v2283
  %v2285 = vmul.f32 %v2274, 1.442695
  %v2286 = vpow.pop %v2285
  %v2287 = vmul.f32 %v2275, 1.442695
  %v2288 = vpow.pop %v2287
  %v2289 = vmul.f32 %v2276, 1.442695
  %v2290 = vpow.pop %v2289
  %v2291 = vmul.f32 %v2277, 1.442695
  %v2292 = vpow.pop %v2291
  %v2293 = vmul.f32 %v2278, 1.442695
  %v2294 = vpow.pop %v2293
  %v2295 = vmul.f32 %v2279, 1.442695
  %v2296 = vpow.pop %v2295
  %v2297 = vmul.f32 %v2280, 1.442695
  %v2298 = vpow.pop %v2297
  %v2299 = vsel %vm505, %v2282, 0.0
  %2300 = vadd.xlane.f32.xlu0 %v2299
  %v2301 = vpop.xlane.xlu0 %2300
  %v2302 = vsel %vm505, %v2284, 0.0
  %2303 = vadd.xlane.f32.xlu0 %v2302
  %v2304 = vpop.xlane.xlu0 %2303
  %v2305 = vsel %vm505, %v2286, 0.0
  %2306 = vadd.xlane.f32.xlu0 %v2305
  %v2307 = vpop.xlane.xlu0 %2306
  %v2308 = vsel %vm505, %v2288, 0.0
  %2309 = vadd.xlane.f32.xlu0 %v2308
  %v2310 = vpop.xlane.xlu0 %2309
  %v2311 = vsel %vm505, %v2290, 0.0
  %2312 = vadd.xlane.f32.xlu0 %v2311
  %v2313 = vpop.xlane.xlu0 %2312
  %v2314 = vsel %vm505, %v2292, 0.0
  %2315 = vadd.xlane.f32.xlu0 %v2314
  %v2316 = vpop.xlane.xlu0 %2315
  %v2317 = vsel %vm505, %v2294, 0.0
  %2318 = vadd.xlane.f32.xlu0 %v2317
  %v2319 = vpop.xlane.xlu0 %2318
  %v2320 = vsel %vm505, %v2296, 0.0
  %2321 = vadd.xlane.f32.xlu0 %v2320
  %v2322 = vpop.xlane.xlu0 %2321
  %v2323 = vsel %vm505, %v2298, 0.0
  %2324 = vadd.xlane.f32.xlu0 %v2323
  %v2325 = vpop.xlane.xlu0 %2324
  %v2326 = vrcp.pop %v2301
  %v2327 = vrcp.pop %v2304
  %v2328 = vrcp.pop %v2307
  %v2329 = vrcp.pop %v2310
  %v2330 = vrcp.pop %v2313
  %v2331 = vrcp.pop %v2316
  %v2332 = vrcp.pop %v2319
  %v2333 = vrcp.pop %v2322
  %v2334 = vrcp.pop %v2325
  %v2335 = vmul.f32 %v2282, %v2326
  %v2336 = vmul.f32 %v2284, %v2327
  %v2337 = vmul.f32 %v2286, %v2328
  %v2338 = vmul.f32 %v2288, %v2329
  %v2339 = vmul.f32 %v2290, %v2330
  %v2340 = vmul.f32 %v2292, %v2331
  %v2341 = vmul.f32 %v2294, %v2332
  %v2342 = vmul.f32 %v2296, %v2333
  %v2343 = vmul.f32 %v2298, %v2334
  %2353 = vrot.lane.b32.xlu0 %v351, 120
  %v2354 = vpop.permute.xlu0 %2353
  %2355 = vrot.lane.b32.xlu0 %v354, 120
  %v2356 = vpop.permute.xlu0 %2355
  %2357 = vrot.lane.b32.xlu0 %v357, 120
  %v2358 = vpop.permute.xlu0 %2357
  %2359 = vrot.lane.b32.xlu0 %v360, 120
  %v2360 = vpop.permute.xlu0 %2359
  %2361 = vrot.lane.b32.xlu0 %v363, 120
  %v2362 = vpop.permute.xlu0 %2361
  %2363 = vrot.lane.b32.xlu0 %v366, 120
  %v2364 = vpop.permute.xlu0 %2363
  %2365 = vrot.lane.b32.xlu0 %v369, 120
  %v2366 = vpop.permute.xlu0 %2365
  %2367 = vrot.lane.b32.xlu0 %v372, 120
  %v2368 = vpop.permute.xlu0 %2367
  %2369 = vrot.lane.b32.xlu0 %v375, 120
  %v2370 = vpop.permute.xlu0 %2369
  %v2381 = vsel %vm505, %v2335, 0
  %v2384 = vsel %vm505, %v2336, 0
  %v2387 = vsel %vm505, %v2337, 0
  %v2390 = vsel %vm505, %v2338, 0
  %v2393 = vsel %vm505, %v2339, 0
  %v2396 = vsel %vm505, %v2340, 0
  %v2399 = vsel %vm505, %v2341, 0
  %v2402 = vsel %vm505, %v2342, 0
  %v2405 = vsel %vm505, %v2343, 0
  %2407 = vmatpush.msra.mxu0 0.0
  %2408 = vmatpush.msra.mxu0 0.0
  %2409 = vmatpush.msra.mxu0 0.0
  %2410 = vmatpush.msra.mxu0 0.0
  %2411 = vmatpush.msra.mxu0 0.0
  %2412 = vmatpush.msra.mxu0 0.0
  %2413 = vmatpush.msra.mxu0 0.0
  %2414 = vmatpush.msra.mxu0 %v2370
  %2415 = vmatpush.msra.mxu0 %v2368
  %2416 = vmatpush.msra.mxu0 %v2366
  %2417 = vmatpush.msra.mxu0 %v2364
  %2418 = vmatpush.msra.mxu0 %v2362
  %2419 = vmatpush.msra.mxu0 %v2360
  %2420 = vmatpush.msra.mxu0 %v2358
  %2421 = vmatpush.msra.mxu0 %v2356
  %2422 = vmatpush.msra.mxu0 %v2354
  %2423 = vmatmul.f32.gmra.mxu0 %v2381
  %v2424 = vpop.f32.mrf.mxu0
  %v2425 = vadd.f32 0.0, %v2424
  %2426 = vmatmul.f32.gmra.mxu0 %v2384
  %v2427 = vpop.f32.mrf.mxu0
  %v2428 = vadd.f32 0.0, %v2427
  %2429 = vmatmul.f32.gmra.mxu0 %v2387
  %v2430 = vpop.f32.mrf.mxu0
  %v2431 = vadd.f32 0.0, %v2430
  %2432 = vmatmul.f32.gmra.mxu0 %v2390
  %v2433 = vpop.f32.mrf.mxu0
  %v2434 = vadd.f32 0.0, %v2433
  %2435 = vmatmul.f32.gmra.mxu0 %v2393
  %v2436 = vpop.f32.mrf.mxu0
  %v2437 = vadd.f32 0.0, %v2436
  %2438 = vmatmul.f32.gmra.mxu0 %v2396
  %v2439 = vpop.f32.mrf.mxu0
  %v2440 = vadd.f32 0.0, %v2439
  %2441 = vmatmul.f32.gmra.mxu0 %v2399
  %v2442 = vpop.f32.mrf.mxu0
  %v2443 = vadd.f32 0.0, %v2442
  %2444 = vmatmul.f32.gmra.mxu0 %v2402
  %v2445 = vpop.f32.mrf.mxu0
  %v2446 = vadd.f32 0.0, %v2445
  %2447 = vmatmul.f32.gmra.mxu0 %v2405
  %v2448 = vpop.f32.mrf.mxu0
  %v2449 = vadd.f32 0.0, %v2448
  %2450 = vdwg.mxu0
  %2451 = vrot.lane.b32.xlu0 %v218, 112
  %v2452 = vpop.permute.xlu0 %2451
  %2453 = vrot.lane.b32.xlu0 %v221, 112
  %v2454 = vpop.permute.xlu0 %2453
  %2455 = vrot.lane.b32.xlu0 %v224, 112
  %v2456 = vpop.permute.xlu0 %2455
  %2457 = vrot.lane.b32.xlu0 %v227, 112
  %v2458 = vpop.permute.xlu0 %2457
  %2459 = vrot.lane.b32.xlu0 %v230, 112
  %v2460 = vpop.permute.xlu0 %2459
  %2461 = vrot.lane.b32.xlu0 %v233, 112
  %v2462 = vpop.permute.xlu0 %2461
  %2463 = vrot.lane.b32.xlu0 %v236, 112
  %v2464 = vpop.permute.xlu0 %2463
  %2465 = vrot.lane.b32.xlu0 %v239, 112
  %v2466 = vpop.permute.xlu0 %2465
  %2467 = vrot.lane.b32.xlu0 %v242, 112
  %v2468 = vpop.permute.xlu0 %2467
  %2469 = vrot.lane.b32.xlu0 %v218, 80
  %v2470 = vpop.permute.xlu0 %2469
  %2471 = vrot.lane.b32.xlu0 %v221, 80
  %v2472 = vpop.permute.xlu0 %2471
  %2473 = vrot.lane.b32.xlu0 %v224, 80
  %v2474 = vpop.permute.xlu0 %2473
  %2475 = vrot.lane.b32.xlu0 %v227, 80
  %v2476 = vpop.permute.xlu0 %2475
  %2477 = vrot.lane.b32.xlu0 %v230, 80
  %v2478 = vpop.permute.xlu0 %2477
  %2479 = vrot.lane.b32.xlu0 %v233, 80
  %v2480 = vpop.permute.xlu0 %2479
  %2481 = vrot.lane.b32.xlu0 %v236, 80
  %v2482 = vpop.permute.xlu0 %2481
  %2483 = vrot.lane.b32.xlu0 %v239, 80
  %v2484 = vpop.permute.xlu0 %2483
  %2485 = vrot.lane.b32.xlu0 %v242, 80
  %v2486 = vpop.permute.xlu0 %2485
  %v2487 = vsel %vm405, %v2452, 0
  %v2489 = vsel %vm405, %v2454, 0
  %v2491 = vsel %vm405, %v2456, 0
  %v2493 = vsel %vm405, %v2458, 0
  %v2495 = vsel %vm405, %v2460, 0
  %v2497 = vsel %vm405, %v2462, 0
  %v2499 = vsel %vm405, %v2464, 0
  %v2501 = vsel %vm405, %v2466, 0
  %v2503 = vsel %vm405, %v2468, 0
  %v2505 = vsel %vm405, %v2470, 0
  %v2507 = vsel %vm405, %v2472, 0
  %v2509 = vsel %vm405, %v2474, 0
  %v2511 = vsel %vm405, %v2476, 0
  %v2513 = vsel %vm405, %v2478, 0
  %v2515 = vsel %vm405, %v2480, 0
  %v2517 = vsel %vm405, %v2482, 0
  %v2519 = vsel %vm405, %v2484, 0
  %v2521 = vsel %vm405, %v2486, 0
  %2523 = vmatpush.xpose.msra.mxu0 0.0
  %2524 = vmatpush.xpose.msra.mxu0 0.0
  %2525 = vmatpush.xpose.msra.mxu0 0.0
  %2526 = vmatpush.xpose.msra.mxu0 0.0
  %2527 = vmatpush.xpose.msra.mxu0 0.0
  %2528 = vmatpush.xpose.msra.mxu0 0.0
  %2529 = vmatpush.xpose.msra.mxu0 0.0
  %2530 = vmatpush.xpose.msra.mxu0 %v2521
  %2531 = vmatpush.xpose.msra.mxu0 %v2519
  %2532 = vmatpush.xpose.msra.mxu0 %v2517
  %2533 = vmatpush.xpose.msra.mxu0 %v2515
  %2534 = vmatpush.xpose.msra.mxu0 %v2513
  %2535 = vmatpush.xpose.msra.mxu0 %v2511
  %2536 = vmatpush.xpose.msra.mxu0 %v2509
  %2537 = vmatpush.xpose.msra.mxu0 %v2507
  %2538 = vmatpush.xpose.msra.mxu0 %v2505
  %2539 = vmatmul.f32.gmra.mxu0 %v2487
  %v2540 = vpop.f32.mrf.mxu0
  %v2541 = vadd.f32 0.0, %v2540
  %2542 = vmatmul.f32.gmra.mxu0 %v2489
  %v2543 = vpop.f32.mrf.mxu0
  %v2544 = vadd.f32 0.0, %v2543
  %2545 = vmatmul.f32.gmra.mxu0 %v2491
  %v2546 = vpop.f32.mrf.mxu0
  %v2547 = vadd.f32 0.0, %v2546
  %2548 = vmatmul.f32.gmra.mxu0 %v2493
  %v2549 = vpop.f32.mrf.mxu0
  %v2550 = vadd.f32 0.0, %v2549
  %2551 = vmatmul.f32.gmra.mxu0 %v2495
  %v2552 = vpop.f32.mrf.mxu0
  %v2553 = vadd.f32 0.0, %v2552
  %2554 = vmatmul.f32.gmra.mxu0 %v2497
  %v2555 = vpop.f32.mrf.mxu0
  %v2556 = vadd.f32 0.0, %v2555
  %2557 = vmatmul.f32.gmra.mxu0 %v2499
  %v2558 = vpop.f32.mrf.mxu0
  %v2559 = vadd.f32 0.0, %v2558
  %2560 = vmatmul.f32.gmra.mxu0 %v2501
  %v2561 = vpop.f32.mrf.mxu0
  %v2562 = vadd.f32 0.0, %v2561
  %2563 = vmatmul.f32.gmra.mxu0 %v2503
  %v2564 = vpop.f32.mrf.mxu0
  %v2565 = vadd.f32 0.0, %v2564
  %2566 = vdwg.mxu0
  %v2567 = vmul.f32 %v2541, 0.35355338
  %v2568 = vmul.f32 %v2544, 0.35355338
  %v2569 = vmul.f32 %v2547, 0.35355338
  %v2570 = vmul.f32 %v2550, 0.35355338
  %v2571 = vmul.f32 %v2553, 0.35355338
  %v2572 = vmul.f32 %v2556, 0.35355338
  %v2573 = vmul.f32 %v2559, 0.35355338
  %v2574 = vmul.f32 %v2562, 0.35355338
  %v2575 = vmul.f32 %v2565, 0.35355338
  %v2576 = vadd.f32 %v2567, %v1931
  %v2577 = vadd.f32 %v2568, %v1931
  %v2578 = vadd.f32 %v2569, %v1931
  %v2579 = vadd.f32 %v2570, %v1931
  %v2580 = vadd.f32 %v2571, %v1931
  %v2581 = vadd.f32 %v2572, %v1931
  %v2582 = vadd.f32 %v2573, %v1931
  %v2583 = vadd.f32 %v2574, %v1931
  %v2584 = vadd.f32 %v2575, %v1931
  %v2585 = vsel %vm505, %v2576, -inf
  %2586 = vmax.xlane.f32.xlu0 %v2585
  %v2587 = vpop.xlane.xlu0 %2586
  %v2588 = vsel %vm505, %v2577, -inf
  %2589 = vmax.xlane.f32.xlu0 %v2588
  %v2590 = vpop.xlane.xlu0 %2589
  %v2591 = vsel %vm505, %v2578, -inf
  %2592 = vmax.xlane.f32.xlu0 %v2591
  %v2593 = vpop.xlane.xlu0 %2592
  %v2594 = vsel %vm505, %v2579, -inf
  %2595 = vmax.xlane.f32.xlu0 %v2594
  %v2596 = vpop.xlane.xlu0 %2595
  %v2597 = vsel %vm505, %v2580, -inf
  %2598 = vmax.xlane.f32.xlu0 %v2597
  %v2599 = vpop.xlane.xlu0 %2598
  %v2600 = vsel %vm505, %v2581, -inf
  %2601 = vmax.xlane.f32.xlu0 %v2600
  %v2602 = vpop.xlane.xlu0 %2601
  %v2603 = vsel %vm505, %v2582, -inf
  %2604 = vmax.xlane.f32.xlu0 %v2603
  %v2605 = vpop.xlane.xlu0 %2604
  %v2606 = vsel %vm505, %v2583, -inf
  %2607 = vmax.xlane.f32.xlu0 %v2606
  %v2608 = vpop.xlane.xlu0 %2607
  %v2609 = vsel %vm505, %v2584, -inf
  %2610 = vmax.xlane.f32.xlu0 %v2609
  %v2611 = vpop.xlane.xlu0 %2610
  %v2612 = vsub.f32 %v2576, %v2587
  %v2613 = vsub.f32 %v2577, %v2590
  %v2614 = vsub.f32 %v2578, %v2593
  %v2615 = vsub.f32 %v2579, %v2596
  %v2616 = vsub.f32 %v2580, %v2599
  %v2617 = vsub.f32 %v2581, %v2602
  %v2618 = vsub.f32 %v2582, %v2605
  %v2619 = vsub.f32 %v2583, %v2608
  %v2620 = vsub.f32 %v2584, %v2611
  %v2621 = vmul.f32 %v2612, 1.442695
  %v2622 = vpow.pop %v2621
  %v2623 = vmul.f32 %v2613, 1.442695
  %v2624 = vpow.pop %v2623
  %v2625 = vmul.f32 %v2614, 1.442695
  %v2626 = vpow.pop %v2625
  %v2627 = vmul.f32 %v2615, 1.442695
  %v2628 = vpow.pop %v2627
  %v2629 = vmul.f32 %v2616, 1.442695
  %v2630 = vpow.pop %v2629
  %v2631 = vmul.f32 %v2617, 1.442695
  %v2632 = vpow.pop %v2631
  %v2633 = vmul.f32 %v2618, 1.442695
  %v2634 = vpow.pop %v2633
  %v2635 = vmul.f32 %v2619, 1.442695
  %v2636 = vpow.pop %v2635
  %v2637 = vmul.f32 %v2620, 1.442695
  %v2638 = vpow.pop %v2637
  %v2639 = vsel %vm505, %v2622, 0.0
  %2640 = vadd.xlane.f32.xlu0 %v2639
  %v2641 = vpop.xlane.xlu0 %2640
  %v2642 = vsel %vm505, %v2624, 0.0
  %2643 = vadd.xlane.f32.xlu0 %v2642
  %v2644 = vpop.xlane.xlu0 %2643
  %v2645 = vsel %vm505, %v2626, 0.0
  %2646 = vadd.xlane.f32.xlu0 %v2645
  %v2647 = vpop.xlane.xlu0 %2646
  %v2648 = vsel %vm505, %v2628, 0.0
  %2649 = vadd.xlane.f32.xlu0 %v2648
  %v2650 = vpop.xlane.xlu0 %2649
  %v2651 = vsel %vm505, %v2630, 0.0
  %2652 = vadd.xlane.f32.xlu0 %v2651
  %v2653 = vpop.xlane.xlu0 %2652
  %v2654 = vsel %vm505, %v2632, 0.0
  %2655 = vadd.xlane.f32.xlu0 %v2654
  %v2656 = vpop.xlane.xlu0 %2655
  %v2657 = vsel %vm505, %v2634, 0.0
  %2658 = vadd.xlane.f32.xlu0 %v2657
  %v2659 = vpop.xlane.xlu0 %2658
  %v2660 = vsel %vm505, %v2636, 0.0
  %2661 = vadd.xlane.f32.xlu0 %v2660
  %v2662 = vpop.xlane.xlu0 %2661
  %v2663 = vsel %vm505, %v2638, 0.0
  %2664 = vadd.xlane.f32.xlu0 %v2663
  %v2665 = vpop.xlane.xlu0 %2664
  %v2666 = vrcp.pop %v2641
  %v2667 = vrcp.pop %v2644
  %v2668 = vrcp.pop %v2647
  %v2669 = vrcp.pop %v2650
  %v2670 = vrcp.pop %v2653
  %v2671 = vrcp.pop %v2656
  %v2672 = vrcp.pop %v2659
  %v2673 = vrcp.pop %v2662
  %v2674 = vrcp.pop %v2665
  %v2675 = vmul.f32 %v2622, %v2666
  %v2676 = vmul.f32 %v2624, %v2667
  %v2677 = vmul.f32 %v2626, %v2668
  %v2678 = vmul.f32 %v2628, %v2669
  %v2679 = vmul.f32 %v2630, %v2670
  %v2680 = vmul.f32 %v2632, %v2671
  %v2681 = vmul.f32 %v2634, %v2672
  %v2682 = vmul.f32 %v2636, %v2673
  %v2683 = vmul.f32 %v2638, %v2674
  %2684 = vrot.lane.b32.xlu0 %v351, 112
  %v2685 = vpop.permute.xlu0 %2684
  %2686 = vrot.lane.b32.xlu0 %v354, 112
  %v2687 = vpop.permute.xlu0 %2686
  %2688 = vrot.lane.b32.xlu0 %v357, 112
  %v2689 = vpop.permute.xlu0 %2688
  %2690 = vrot.lane.b32.xlu0 %v360, 112
  %v2691 = vpop.permute.xlu0 %2690
  %2692 = vrot.lane.b32.xlu0 %v363, 112
  %v2693 = vpop.permute.xlu0 %2692
  %2694 = vrot.lane.b32.xlu0 %v366, 112
  %v2695 = vpop.permute.xlu0 %2694
  %2696 = vrot.lane.b32.xlu0 %v369, 112
  %v2697 = vpop.permute.xlu0 %2696
  %2698 = vrot.lane.b32.xlu0 %v372, 112
  %v2699 = vpop.permute.xlu0 %2698
  %2700 = vrot.lane.b32.xlu0 %v375, 112
  %v2701 = vpop.permute.xlu0 %2700
  %v2712 = vsel %vm505, %v2675, 0
  %v2715 = vsel %vm505, %v2676, 0
  %v2718 = vsel %vm505, %v2677, 0
  %v2721 = vsel %vm505, %v2678, 0
  %v2724 = vsel %vm505, %v2679, 0
  %v2727 = vsel %vm505, %v2680, 0
  %v2730 = vsel %vm505, %v2681, 0
  %v2733 = vsel %vm505, %v2682, 0
  %v2736 = vsel %vm505, %v2683, 0
  %2738 = vmatpush.msra.mxu0 0.0
  %2739 = vmatpush.msra.mxu0 0.0
  %2740 = vmatpush.msra.mxu0 0.0
  %2741 = vmatpush.msra.mxu0 0.0
  %2742 = vmatpush.msra.mxu0 0.0
  %2743 = vmatpush.msra.mxu0 0.0
  %2744 = vmatpush.msra.mxu0 0.0
  %2745 = vmatpush.msra.mxu0 %v2701
  %2746 = vmatpush.msra.mxu0 %v2699
  %2747 = vmatpush.msra.mxu0 %v2697
  %2748 = vmatpush.msra.mxu0 %v2695
  %2749 = vmatpush.msra.mxu0 %v2693
  %2750 = vmatpush.msra.mxu0 %v2691
  %2751 = vmatpush.msra.mxu0 %v2689
  %2752 = vmatpush.msra.mxu0 %v2687
  %2753 = vmatpush.msra.mxu0 %v2685
  %2754 = vmatmul.f32.gmra.mxu0 %v2712
  %v2755 = vpop.f32.mrf.mxu0
  %v2756 = vadd.f32 0.0, %v2755
  %2757 = vmatmul.f32.gmra.mxu0 %v2715
  %v2758 = vpop.f32.mrf.mxu0
  %v2759 = vadd.f32 0.0, %v2758
  %2760 = vmatmul.f32.gmra.mxu0 %v2718
  %v2761 = vpop.f32.mrf.mxu0
  %v2762 = vadd.f32 0.0, %v2761
  %2763 = vmatmul.f32.gmra.mxu0 %v2721
  %v2764 = vpop.f32.mrf.mxu0
  %v2765 = vadd.f32 0.0, %v2764
  %2766 = vmatmul.f32.gmra.mxu0 %v2724
  %v2767 = vpop.f32.mrf.mxu0
  %v2768 = vadd.f32 0.0, %v2767
  %2769 = vmatmul.f32.gmra.mxu0 %v2727
  %v2770 = vpop.f32.mrf.mxu0
  %v2771 = vadd.f32 0.0, %v2770
  %2772 = vmatmul.f32.gmra.mxu0 %v2730
  %v2773 = vpop.f32.mrf.mxu0
  %v2774 = vadd.f32 0.0, %v2773
  %2775 = vmatmul.f32.gmra.mxu0 %v2733
  %v2776 = vpop.f32.mrf.mxu0
  %v2777 = vadd.f32 0.0, %v2776
  %2778 = vmatmul.f32.gmra.mxu0 %v2736
  %v2779 = vpop.f32.mrf.mxu0
  %v2780 = vadd.f32 0.0, %v2779
  %2781 = vdwg.mxu0
  %2782 = vrot.lane.b32.xlu0 %v218, 104
  %v2783 = vpop.permute.xlu0 %2782
  %2784 = vrot.lane.b32.xlu0 %v221, 104
  %v2785 = vpop.permute.xlu0 %2784
  %2786 = vrot.lane.b32.xlu0 %v224, 104
  %v2787 = vpop.permute.xlu0 %2786
  %2788 = vrot.lane.b32.xlu0 %v227, 104
  %v2789 = vpop.permute.xlu0 %2788
  %2790 = vrot.lane.b32.xlu0 %v230, 104
  %v2791 = vpop.permute.xlu0 %2790
  %2792 = vrot.lane.b32.xlu0 %v233, 104
  %v2793 = vpop.permute.xlu0 %2792
  %2794 = vrot.lane.b32.xlu0 %v236, 104
  %v2795 = vpop.permute.xlu0 %2794
  %2796 = vrot.lane.b32.xlu0 %v239, 104
  %v2797 = vpop.permute.xlu0 %2796
  %2798 = vrot.lane.b32.xlu0 %v242, 104
  %v2799 = vpop.permute.xlu0 %2798
  %2800 = vrot.lane.b32.xlu0 %v218, 72
  %v2801 = vpop.permute.xlu0 %2800
  %2802 = vrot.lane.b32.xlu0 %v221, 72
  %v2803 = vpop.permute.xlu0 %2802
  %2804 = vrot.lane.b32.xlu0 %v224, 72
  %v2805 = vpop.permute.xlu0 %2804
  %2806 = vrot.lane.b32.xlu0 %v227, 72
  %v2807 = vpop.permute.xlu0 %2806
  %2808 = vrot.lane.b32.xlu0 %v230, 72
  %v2809 = vpop.permute.xlu0 %2808
  %2810 = vrot.lane.b32.xlu0 %v233, 72
  %v2811 = vpop.permute.xlu0 %2810
  %2812 = vrot.lane.b32.xlu0 %v236, 72
  %v2813 = vpop.permute.xlu0 %2812
  %2814 = vrot.lane.b32.xlu0 %v239, 72
  %v2815 = vpop.permute.xlu0 %2814
  %2816 = vrot.lane.b32.xlu0 %v242, 72
  %v2817 = vpop.permute.xlu0 %2816
  %v2818 = vsel %vm405, %v2783, 0
  %v2820 = vsel %vm405, %v2785, 0
  %v2822 = vsel %vm405, %v2787, 0
  %v2824 = vsel %vm405, %v2789, 0
  %v2826 = vsel %vm405, %v2791, 0
  %v2828 = vsel %vm405, %v2793, 0
  %v2830 = vsel %vm405, %v2795, 0
  %v2832 = vsel %vm405, %v2797, 0
  %v2834 = vsel %vm405, %v2799, 0
  %v2836 = vsel %vm405, %v2801, 0
  %v2838 = vsel %vm405, %v2803, 0
  %v2840 = vsel %vm405, %v2805, 0
  %v2842 = vsel %vm405, %v2807, 0
  %v2844 = vsel %vm405, %v2809, 0
  %v2846 = vsel %vm405, %v2811, 0
  %v2848 = vsel %vm405, %v2813, 0
  %v2850 = vsel %vm405, %v2815, 0
  %v2852 = vsel %vm405, %v2817, 0
  %2854 = vmatpush.xpose.msra.mxu0 0.0
  %2855 = vmatpush.xpose.msra.mxu0 0.0
  %2856 = vmatpush.xpose.msra.mxu0 0.0
  %2857 = vmatpush.xpose.msra.mxu0 0.0
  %2858 = vmatpush.xpose.msra.mxu0 0.0
  %2859 = vmatpush.xpose.msra.mxu0 0.0
  %2860 = vmatpush.xpose.msra.mxu0 0.0
  %2861 = vmatpush.xpose.msra.mxu0 %v2852
  %2862 = vmatpush.xpose.msra.mxu0 %v2850
  %2863 = vmatpush.xpose.msra.mxu0 %v2848
  %2864 = vmatpush.xpose.msra.mxu0 %v2846
  %2865 = vmatpush.xpose.msra.mxu0 %v2844
  %2866 = vmatpush.xpose.msra.mxu0 %v2842
  %2867 = vmatpush.xpose.msra.mxu0 %v2840
  %2868 = vmatpush.xpose.msra.mxu0 %v2838
  %2869 = vmatpush.xpose.msra.mxu0 %v2836
  %2870 = vmatmul.f32.gmra.mxu0 %v2818
  %v2871 = vpop.f32.mrf.mxu0
  %v2872 = vadd.f32 0.0, %v2871
  %2873 = vmatmul.f32.gmra.mxu0 %v2820
  %v2874 = vpop.f32.mrf.mxu0
  %v2875 = vadd.f32 0.0, %v2874
  %2876 = vmatmul.f32.gmra.mxu0 %v2822
  %v2877 = vpop.f32.mrf.mxu0
  %v2878 = vadd.f32 0.0, %v2877
  %2879 = vmatmul.f32.gmra.mxu0 %v2824
  %v2880 = vpop.f32.mrf.mxu0
  %v2881 = vadd.f32 0.0, %v2880
  %2882 = vmatmul.f32.gmra.mxu0 %v2826
  %v2883 = vpop.f32.mrf.mxu0
  %v2884 = vadd.f32 0.0, %v2883
  %2885 = vmatmul.f32.gmra.mxu0 %v2828
  %v2886 = vpop.f32.mrf.mxu0
  %v2887 = vadd.f32 0.0, %v2886
  %2888 = vmatmul.f32.gmra.mxu0 %v2830
  %v2889 = vpop.f32.mrf.mxu0
  %v2890 = vadd.f32 0.0, %v2889
  %2891 = vmatmul.f32.gmra.mxu0 %v2832
  %v2892 = vpop.f32.mrf.mxu0
  %v2893 = vadd.f32 0.0, %v2892
  %2894 = vmatmul.f32.gmra.mxu0 %v2834
  %v2895 = vpop.f32.mrf.mxu0
  %v2896 = vadd.f32 0.0, %v2895
  %2897 = vdwg.mxu0
  %v2898 = vmul.f32 %v2872, 0.35355338
  %v2899 = vmul.f32 %v2875, 0.35355338
  %v2900 = vmul.f32 %v2878, 0.35355338
  %v2901 = vmul.f32 %v2881, 0.35355338
  %v2902 = vmul.f32 %v2884, 0.35355338
  %v2903 = vmul.f32 %v2887, 0.35355338
  %v2904 = vmul.f32 %v2890, 0.35355338
  %v2905 = vmul.f32 %v2893, 0.35355338
  %v2906 = vmul.f32 %v2896, 0.35355338
  %v2907 = vadd.f32 %v2898, %v1931
  %v2908 = vadd.f32 %v2899, %v1931
  %v2909 = vadd.f32 %v2900, %v1931
  %v2910 = vadd.f32 %v2901, %v1931
  %v2911 = vadd.f32 %v2902, %v1931
  %v2912 = vadd.f32 %v2903, %v1931
  %v2913 = vadd.f32 %v2904, %v1931
  %v2914 = vadd.f32 %v2905, %v1931
  %v2915 = vadd.f32 %v2906, %v1931
  %v2916 = vsel %vm505, %v2907, -inf
  %2917 = vmax.xlane.f32.xlu0 %v2916
  %v2918 = vpop.xlane.xlu0 %2917
  %v2919 = vsel %vm505, %v2908, -inf
  %2920 = vmax.xlane.f32.xlu0 %v2919
  %v2921 = vpop.xlane.xlu0 %2920
  %v2922 = vsel %vm505, %v2909, -inf
  %2923 = vmax.xlane.f32.xlu0 %v2922
  %v2924 = vpop.xlane.xlu0 %2923
  %v2925 = vsel %vm505, %v2910, -inf
  %2926 = vmax.xlane.f32.xlu0 %v2925
  %v2927 = vpop.xlane.xlu0 %2926
  %v2928 = vsel %vm505, %v2911, -inf
  %2929 = vmax.xlane.f32.xlu0 %v2928
  %v2930 = vpop.xlane.xlu0 %2929
  %v2931 = vsel %vm505, %v2912, -inf
  %2932 = vmax.xlane.f32.xlu0 %v2931
  %v2933 = vpop.xlane.xlu0 %2932
  %v2934 = vsel %vm505, %v2913, -inf
  %2935 = vmax.xlane.f32.xlu0 %v2934
  %v2936 = vpop.xlane.xlu0 %2935
  %v2937 = vsel %vm505, %v2914, -inf
  %2938 = vmax.xlane.f32.xlu0 %v2937
  %v2939 = vpop.xlane.xlu0 %2938
  %v2940 = vsel %vm505, %v2915, -inf
  %2941 = vmax.xlane.f32.xlu0 %v2940
  %v2942 = vpop.xlane.xlu0 %2941
  %v2943 = vsub.f32 %v2907, %v2918
  %v2944 = vsub.f32 %v2908, %v2921
  %v2945 = vsub.f32 %v2909, %v2924
  %v2946 = vsub.f32 %v2910, %v2927
  %v2947 = vsub.f32 %v2911, %v2930
  %v2948 = vsub.f32 %v2912, %v2933
  %v2949 = vsub.f32 %v2913, %v2936
  %v2950 = vsub.f32 %v2914, %v2939
  %v2951 = vsub.f32 %v2915, %v2942
  %v2952 = vmul.f32 %v2943, 1.442695
  %v2953 = vpow.pop %v2952
  %v2954 = vmul.f32 %v2944, 1.442695
  %v2955 = vpow.pop %v2954
  %v2956 = vmul.f32 %v2945, 1.442695
  %v2957 = vpow.pop %v2956
  %v2958 = vmul.f32 %v2946, 1.442695
  %v2959 = vpow.pop %v2958
  %v2960 = vmul.f32 %v2947, 1.442695
  %v2961 = vpow.pop %v2960
  %v2962 = vmul.f32 %v2948, 1.442695
  %v2963 = vpow.pop %v2962
  %v2964 = vmul.f32 %v2949, 1.442695
  %v2965 = vpow.pop %v2964
  %v2966 = vmul.f32 %v2950, 1.442695
  %v2967 = vpow.pop %v2966
  %v2968 = vmul.f32 %v2951, 1.442695
  %v2969 = vpow.pop %v2968
  %v2970 = vsel %vm505, %v2953, 0.0
  %2971 = vadd.xlane.f32.xlu0 %v2970
  %v2972 = vpop.xlane.xlu0 %2971
  %v2973 = vsel %vm505, %v2955, 0.0
  %2974 = vadd.xlane.f32.xlu0 %v2973
  %v2975 = vpop.xlane.xlu0 %2974
  %v2976 = vsel %vm505, %v2957, 0.0
  %2977 = vadd.xlane.f32.xlu0 %v2976
  %v2978 = vpop.xlane.xlu0 %2977
  %v2979 = vsel %vm505, %v2959, 0.0
  %2980 = vadd.xlane.f32.xlu0 %v2979
  %v2981 = vpop.xlane.xlu0 %2980
  %v2982 = vsel %vm505, %v2961, 0.0
  %2983 = vadd.xlane.f32.xlu0 %v2982
  %v2984 = vpop.xlane.xlu0 %2983
  %v2985 = vsel %vm505, %v2963, 0.0
  %2986 = vadd.xlane.f32.xlu0 %v2985
  %v2987 = vpop.xlane.xlu0 %2986
  %v2988 = vsel %vm505, %v2965, 0.0
  %2989 = vadd.xlane.f32.xlu0 %v2988
  %v2990 = vpop.xlane.xlu0 %2989
  %v2991 = vsel %vm505, %v2967, 0.0
  %2992 = vadd.xlane.f32.xlu0 %v2991
  %v2993 = vpop.xlane.xlu0 %2992
  %v2994 = vsel %vm505, %v2969, 0.0
  %2995 = vadd.xlane.f32.xlu0 %v2994
  %v2996 = vpop.xlane.xlu0 %2995
  %v2997 = vrcp.pop %v2972
  %v2998 = vrcp.pop %v2975
  %v2999 = vrcp.pop %v2978
  %v3000 = vrcp.pop %v2981
  %v3001 = vrcp.pop %v2984
  %v3002 = vrcp.pop %v2987
  %v3003 = vrcp.pop %v2990
  %v3004 = vrcp.pop %v2993
  %v3005 = vrcp.pop %v2996
  %v3006 = vmul.f32 %v2953, %v2997
  %v3007 = vmul.f32 %v2955, %v2998
  %v3008 = vmul.f32 %v2957, %v2999
  %v3009 = vmul.f32 %v2959, %v3000
  %v3010 = vmul.f32 %v2961, %v3001
  %v3011 = vmul.f32 %v2963, %v3002
  %v3012 = vmul.f32 %v2965, %v3003
  %v3013 = vmul.f32 %v2967, %v3004
  %v3014 = vmul.f32 %v2969, %v3005
  %3015 = vrot.lane.b32.xlu0 %v351, 104
  %v3016 = vpop.permute.xlu0 %3015
  %3017 = vrot.lane.b32.xlu0 %v354, 104
  %v3018 = vpop.permute.xlu0 %3017
  %3019 = vrot.lane.b32.xlu0 %v357, 104
  %v3020 = vpop.permute.xlu0 %3019
  %3021 = vrot.lane.b32.xlu0 %v360, 104
  %v3022 = vpop.permute.xlu0 %3021
  %3023 = vrot.lane.b32.xlu0 %v363, 104
  %v3024 = vpop.permute.xlu0 %3023
  %3025 = vrot.lane.b32.xlu0 %v366, 104
  %v3026 = vpop.permute.xlu0 %3025
  %3027 = vrot.lane.b32.xlu0 %v369, 104
  %v3028 = vpop.permute.xlu0 %3027
  %3029 = vrot.lane.b32.xlu0 %v372, 104
  %v3030 = vpop.permute.xlu0 %3029
  %3031 = vrot.lane.b32.xlu0 %v375, 104
  %v3032 = vpop.permute.xlu0 %3031
  %v3043 = vsel %vm505, %v3006, 0
  %v3046 = vsel %vm505, %v3007, 0
  %v3049 = vsel %vm505, %v3008, 0
  %v3052 = vsel %vm505, %v3009, 0
  %v3055 = vsel %vm505, %v3010, 0
  %v3058 = vsel %vm505, %v3011, 0
  %v3061 = vsel %vm505, %v3012, 0
  %v3064 = vsel %vm505, %v3013, 0
  %v3067 = vsel %vm505, %v3014, 0
  %3069 = vmatpush.msra.mxu0 0.0
  %3070 = vmatpush.msra.mxu0 0.0
  %3071 = vmatpush.msra.mxu0 0.0
  %3072 = vmatpush.msra.mxu0 0.0
  %3073 = vmatpush.msra.mxu0 0.0
  %3074 = vmatpush.msra.mxu0 0.0
  %3075 = vmatpush.msra.mxu0 0.0
  %3076 = vmatpush.msra.mxu0 %v3032
  %3077 = vmatpush.msra.mxu0 %v3030
  %3078 = vmatpush.msra.mxu0 %v3028
  %3079 = vmatpush.msra.mxu0 %v3026
  %3080 = vmatpush.msra.mxu0 %v3024
  %3081 = vmatpush.msra.mxu0 %v3022
  %3082 = vmatpush.msra.mxu0 %v3020
  %3083 = vmatpush.msra.mxu0 %v3018
  %3084 = vmatpush.msra.mxu0 %v3016
  %3085 = vmatmul.f32.gmra.mxu0 %v3043
  %v3086 = vpop.f32.mrf.mxu0
  %v3087 = vadd.f32 0.0, %v3086
  %3088 = vmatmul.f32.gmra.mxu0 %v3046
  %v3089 = vpop.f32.mrf.mxu0
  %v3090 = vadd.f32 0.0, %v3089
  %3091 = vmatmul.f32.gmra.mxu0 %v3049
  %v3092 = vpop.f32.mrf.mxu0
  %v3093 = vadd.f32 0.0, %v3092
  %3094 = vmatmul.f32.gmra.mxu0 %v3052
  %v3095 = vpop.f32.mrf.mxu0
  %v3096 = vadd.f32 0.0, %v3095
  %3097 = vmatmul.f32.gmra.mxu0 %v3055
  %v3098 = vpop.f32.mrf.mxu0
  %v3099 = vadd.f32 0.0, %v3098
  %3100 = vmatmul.f32.gmra.mxu0 %v3058
  %v3101 = vpop.f32.mrf.mxu0
  %v3102 = vadd.f32 0.0, %v3101
  %3103 = vmatmul.f32.gmra.mxu0 %v3061
  %v3104 = vpop.f32.mrf.mxu0
  %v3105 = vadd.f32 0.0, %v3104
  %3106 = vmatmul.f32.gmra.mxu0 %v3064
  %v3107 = vpop.f32.mrf.mxu0
  %v3108 = vadd.f32 0.0, %v3107
  %3109 = vmatmul.f32.gmra.mxu0 %v3067
  %v3110 = vpop.f32.mrf.mxu0
  %v3111 = vadd.f32 0.0, %v3110
  %3112 = vdwg.mxu0
  %3122 = vrot.lane.b32.xlu0 %v2425, 8
  %v3123 = vpop.permute.xlu0 %3122
  %3124 = vrot.lane.b32.xlu0 %v2428, 8
  %v3125 = vpop.permute.xlu0 %3124
  %3126 = vrot.lane.b32.xlu0 %v2431, 8
  %v3127 = vpop.permute.xlu0 %3126
  %3128 = vrot.lane.b32.xlu0 %v2434, 8
  %v3129 = vpop.permute.xlu0 %3128
  %3130 = vrot.lane.b32.xlu0 %v2437, 8
  %v3131 = vpop.permute.xlu0 %3130
  %3132 = vrot.lane.b32.xlu0 %v2440, 8
  %v3133 = vpop.permute.xlu0 %3132
  %3134 = vrot.lane.b32.xlu0 %v2443, 8
  %v3135 = vpop.permute.xlu0 %3134
  %3136 = vrot.lane.b32.xlu0 %v2446, 8
  %v3137 = vpop.permute.xlu0 %3136
  %3138 = vrot.lane.b32.xlu0 %v2449, 8
  %v3139 = vpop.permute.xlu0 %3138
  %3158 = vrot.lane.b32.xlu0 %v2756, 16
  %v3159 = vpop.permute.xlu0 %3158
  %3160 = vrot.lane.b32.xlu0 %v2759, 16
  %v3161 = vpop.permute.xlu0 %3160
  %3162 = vrot.lane.b32.xlu0 %v2762, 16
  %v3163 = vpop.permute.xlu0 %3162
  %3164 = vrot.lane.b32.xlu0 %v2765, 16
  %v3165 = vpop.permute.xlu0 %3164
  %3166 = vrot.lane.b32.xlu0 %v2768, 16
  %v3167 = vpop.permute.xlu0 %3166
  %3168 = vrot.lane.b32.xlu0 %v2771, 16
  %v3169 = vpop.permute.xlu0 %3168
  %3170 = vrot.lane.b32.xlu0 %v2774, 16
  %v3171 = vpop.permute.xlu0 %3170
  %3172 = vrot.lane.b32.xlu0 %v2777, 16
  %v3173 = vpop.permute.xlu0 %3172
  %3174 = vrot.lane.b32.xlu0 %v2780, 16
  %v3175 = vpop.permute.xlu0 %3174
  %3194 = vrot.lane.b32.xlu0 %v3087, 24
  %v3195 = vpop.permute.xlu0 %3194
  %3196 = vrot.lane.b32.xlu0 %v3090, 24
  %v3197 = vpop.permute.xlu0 %3196
  %3198 = vrot.lane.b32.xlu0 %v3093, 24
  %v3199 = vpop.permute.xlu0 %3198
  %3200 = vrot.lane.b32.xlu0 %v3096, 24
  %v3201 = vpop.permute.xlu0 %3200
  %3202 = vrot.lane.b32.xlu0 %v3099, 24
  %v3203 = vpop.permute.xlu0 %3202
  %3204 = vrot.lane.b32.xlu0 %v3102, 24
  %v3205 = vpop.permute.xlu0 %3204
  %3206 = vrot.lane.b32.xlu0 %v3105, 24
  %v3207 = vpop.permute.xlu0 %3206
  %3208 = vrot.lane.b32.xlu0 %v3108, 24
  %v3209 = vpop.permute.xlu0 %3208
  %3210 = vrot.lane.b32.xlu0 %v3111, 24
  %v3211 = vpop.permute.xlu0 %3210
  %v3221 = vsel %vm405, %v2085, %v3123
  %v3222 = vsel %vm405, %v2088, %v3125
  %v3223 = vsel %vm405, %v2091, %v3127
  %v3224 = vsel %vm405, %v2094, %v3129
  %v3225 = vsel %vm405, %v2097, %v3131
  %v3226 = vsel %vm405, %v2100, %v3133
  %v3227 = vsel %vm405, %v2103, %v3135
  %v3228 = vsel %vm405, %v2106, %v3137
  %v3229 = vsel %vm405, %v2109, %v3139
  %v3230 = vsel %vm1795, %v3221, %v3159
  %v3231 = vsel %vm1795, %v3222, %v3161
  %v3232 = vsel %vm1795, %v3223, %v3163
  %v3233 = vsel %vm1795, %v3224, %v3165
  %v3234 = vsel %vm1795, %v3225, %v3167
  %v3235 = vsel %vm1795, %v3226, %v3169
  %v3236 = vsel %vm1795, %v3227, %v3171
  %v3237 = vsel %vm1795, %v3228, %v3173
  %v3238 = vsel %vm1795, %v3229, %v3175
  %v3239 = vsel %vm1805, %v3230, %v3195
  %v3240 = vsel %vm1805, %v3231, %v3197
  %v3241 = vsel %vm1805, %v3232, %v3199
  %v3242 = vsel %vm1805, %v3233, %v3201
  %v3243 = vsel %vm1805, %v3234, %v3203
  %v3244 = vsel %vm1805, %v3235, %v3205
  %v3245 = vsel %vm1805, %v3236, %v3207
  %v3246 = vsel %vm1805, %v3237, %v3209
  %v3247 = vsel %vm1805, %v3238, %v3211
  %v3248 = vld [vmem:[%s7] sm:$0xff]
  %v3249 = vld [vmem:[%s7 + $0x8] sm:$0xff]
  %v3250 = vld [vmem:[%s7 + $0x10] sm:$0xff]
  %v3251 = vld [vmem:[%s7 + $0x18] sm:$0xff]
  %v3252 = vld [vmem:[%s8] sm:$0x1]
  %v3254 = vperm.slane %v3252, 0
  %v3257 = vsel %vm118, %v1806, 0
  %v3260 = vsel %vm118, %v1807, 0
  %v3263 = vsel %vm118, %v1808, 0
  %v3266 = vsel %vm118, %v1809, 0
  %v3269 = vsel %vm118, %v1810, 0
  %v3272 = vsel %vm118, %v1811, 0
  %v3275 = vsel %vm118, %v1812, 0
  %v3278 = vsel %vm118, %v1813, 0
  %v3281 = vsel %vm118, %v1814, 0
  %v3284 = vsel %vm118, %v3239, 0
  %v3287 = vsel %vm118, %v3240, 0
  %v3290 = vsel %vm118, %v3241, 0
  %v3293 = vsel %vm118, %v3242, 0
  %v3296 = vsel %vm118, %v3243, 0
  %v3299 = vsel %vm118, %v3244, 0
  %v3302 = vsel %vm118, %v3245, 0
  %v3305 = vsel %vm118, %v3246, 0
  %v3308 = vsel %vm118, %v3247, 0
  %3310 = vmatpush.msra.mxu0 0.0
  %3311 = vmatpush.msra.mxu0 0.0
  %3312 = vmatpush.msra.mxu0 0.0
  %3313 = vmatpush.msra.mxu0 0.0
  %3314 = vmatpush.msra.mxu0 0.0
  %3315 = vmatpush.msra.mxu0 0.0
  %3316 = vmatpush.msra.mxu0 0.0
  %3317 = vmatpush.msra.mxu0 0.0
  %3318 = vmatpush.msra.mxu0 0.0
  %3319 = vmatpush.msra.mxu0 0.0
  %3320 = vmatpush.msra.mxu0 0.0
  %3321 = vmatpush.msra.mxu0 0.0
  %3322 = vmatpush.msra.mxu0 %v3251
  %3323 = vmatpush.msra.mxu0 %v3250
  %3324 = vmatpush.msra.mxu0 %v3249
  %3325 = vmatpush.msra.mxu0 %v3248
  %3326 = vmatmul.f32.gmra.mxu0 %v3257
  %v3327 = vpop.f32.mrf.mxu0
  %v3328 = vadd.f32 %v3254, %v3327
  %3329 = vmatmul.f32.gmra.mxu0 %v3260
  %v3330 = vpop.f32.mrf.mxu0
  %v3331 = vadd.f32 %v3254, %v3330
  %3332 = vmatmul.f32.gmra.mxu0 %v3263
  %v3333 = vpop.f32.mrf.mxu0
  %v3334 = vadd.f32 %v3254, %v3333
  %3335 = vmatmul.f32.gmra.mxu0 %v3266
  %v3336 = vpop.f32.mrf.mxu0
  %v3337 = vadd.f32 %v3254, %v3336
  %3338 = vmatmul.f32.gmra.mxu0 %v3269
  %v3339 = vpop.f32.mrf.mxu0
  %v3340 = vadd.f32 %v3254, %v3339
  %3341 = vmatmul.f32.gmra.mxu0 %v3272
  %v3342 = vpop.f32.mrf.mxu0
  %v3343 = vadd.f32 %v3254, %v3342
  %3344 = vmatmul.f32.gmra.mxu0 %v3275
  %v3345 = vpop.f32.mrf.mxu0
  %v3346 = vadd.f32 %v3254, %v3345
  %3347 = vmatmul.f32.gmra.mxu0 %v3278
  %v3348 = vpop.f32.mrf.mxu0
  %v3349 = vadd.f32 %v3254, %v3348
  %3350 = vmatmul.f32.gmra.mxu0 %v3281
  %v3351 = vpop.f32.mrf.mxu0
  %v3352 = vadd.f32 %v3254, %v3351
  %3353 = vmatmul.f32.gmra.mxu0 %v3284
  %v3354 = vpop.f32.mrf.mxu0
  %v3355 = vadd.f32 %v3254, %v3354
  %3356 = vmatmul.f32.gmra.mxu0 %v3287
  %v3357 = vpop.f32.mrf.mxu0
  %v3358 = vadd.f32 %v3254, %v3357
  %3359 = vmatmul.f32.gmra.mxu0 %v3290
  %v3360 = vpop.f32.mrf.mxu0
  %v3361 = vadd.f32 %v3254, %v3360
  %3362 = vmatmul.f32.gmra.mxu0 %v3293
  %v3363 = vpop.f32.mrf.mxu0
  %v3364 = vadd.f32 %v3254, %v3363
  %3365 = vmatmul.f32.gmra.mxu0 %v3296
  %v3366 = vpop.f32.mrf.mxu0
  %v3367 = vadd.f32 %v3254, %v3366
  %3368 = vmatmul.f32.gmra.mxu0 %v3299
  %v3369 = vpop.f32.mrf.mxu0
  %v3370 = vadd.f32 %v3254, %v3369
  %3371 = vmatmul.f32.gmra.mxu0 %v3302
  %v3372 = vpop.f32.mrf.mxu0
  %v3373 = vadd.f32 %v3254, %v3372
  %3374 = vmatmul.f32.gmra.mxu0 %v3305
  %v3375 = vpop.f32.mrf.mxu0
  %v3376 = vadd.f32 %v3254, %v3375
  %3377 = vmatmul.f32.gmra.mxu0 %v3308
  %v3378 = vpop.f32.mrf.mxu0
  %v3379 = vadd.f32 %v3254, %v3378
  %3380 = vdwg.mxu0
  %v3381 = vadd.f32 %v56, %v3328
  %v3382 = vadd.f32 %v57, %v3331
  %v3383 = vadd.f32 %v58, %v3334
  %v3384 = vadd.f32 %v59, %v3337
  %v3385 = vadd.f32 %v60, %v3340
  %v3386 = vadd.f32 %v61, %v3343
  %v3387 = vadd.f32 %v62, %v3346
  %v3388 = vadd.f32 %v63, %v3349
  %v3389 = vadd.f32 %v64, %v3352
  %v3390 = vadd.f32 %v65, %v3355
  %v3391 = vadd.f32 %v66, %v3358
  %v3392 = vadd.f32 %v67, %v3361
  %v3393 = vadd.f32 %v68, %v3364
  %v3394 = vadd.f32 %v69, %v3367
  %v3395 = vadd.f32 %v70, %v3370
  %v3396 = vadd.f32 %v71, %v3373
  %v3397 = vadd.f32 %v72, %v3376
  %v3398 = vadd.f32 %v73, %v3379
  %v3399 = vld [vmem:[%s9] sm:$0x1]
  %v3400 = vld [vmem:[%s10] sm:$0x1]
  %v3401 = vsel %vm118, %v3381, 0.0
  %3402 = vadd.xlane.f32.xlu0 %v3401
  %v3403 = vpop.xlane.xlu0 %3402
  %v3404 = vsel %vm118, %v3382, 0.0
  %3405 = vadd.xlane.f32.xlu0 %v3404
  %v3406 = vpop.xlane.xlu0 %3405
  %v3407 = vsel %vm118, %v3383, 0.0
  %3408 = vadd.xlane.f32.xlu0 %v3407
  %v3409 = vpop.xlane.xlu0 %3408
  %v3410 = vsel %vm118, %v3384, 0.0
  %3411 = vadd.xlane.f32.xlu0 %v3410
  %v3412 = vpop.xlane.xlu0 %3411
  %v3413 = vsel %vm118, %v3385, 0.0
  %3414 = vadd.xlane.f32.xlu0 %v3413
  %v3415 = vpop.xlane.xlu0 %3414
  %v3416 = vsel %vm118, %v3386, 0.0
  %3417 = vadd.xlane.f32.xlu0 %v3416
  %v3418 = vpop.xlane.xlu0 %3417
  %v3419 = vsel %vm118, %v3387, 0.0
  %3420 = vadd.xlane.f32.xlu0 %v3419
  %v3421 = vpop.xlane.xlu0 %3420
  %v3422 = vsel %vm118, %v3388, 0.0
  %3423 = vadd.xlane.f32.xlu0 %v3422
  %v3424 = vpop.xlane.xlu0 %3423
  %v3425 = vsel %vm118, %v3389, 0.0
  %3426 = vadd.xlane.f32.xlu0 %v3425
  %v3427 = vpop.xlane.xlu0 %3426
  %v3428 = vsel %vm118, %v3390, 0.0
  %3429 = vadd.xlane.f32.xlu0 %v3428
  %v3430 = vpop.xlane.xlu0 %3429
  %v3431 = vsel %vm118, %v3391, 0.0
  %3432 = vadd.xlane.f32.xlu0 %v3431
  %v3433 = vpop.xlane.xlu0 %3432
  %v3434 = vsel %vm118, %v3392, 0.0
  %3435 = vadd.xlane.f32.xlu0 %v3434
  %v3436 = vpop.xlane.xlu0 %3435
  %v3437 = vsel %vm118, %v3393, 0.0
  %3438 = vadd.xlane.f32.xlu0 %v3437
  %v3439 = vpop.xlane.xlu0 %3438
  %v3440 = vsel %vm118, %v3394, 0.0
  %3441 = vadd.xlane.f32.xlu0 %v3440
  %v3442 = vpop.xlane.xlu0 %3441
  %v3443 = vsel %vm118, %v3395, 0.0
  %3444 = vadd.xlane.f32.xlu0 %v3443
  %v3445 = vpop.xlane.xlu0 %3444
  %v3446 = vsel %vm118, %v3396, 0.0
  %3447 = vadd.xlane.f32.xlu0 %v3446
  %v3448 = vpop.xlane.xlu0 %3447
  %v3449 = vsel %vm118, %v3397, 0.0
  %3450 = vadd.xlane.f32.xlu0 %v3449
  %v3451 = vpop.xlane.xlu0 %3450
  %v3452 = vsel %vm118, %v3398, 0.0
  %3453 = vadd.xlane.f32.xlu0 %v3452
  %v3454 = vpop.xlane.xlu0 %3453
  %v3455 = vrcp.pop 32.0
  %v3456 = vmul.f32 32.0, %v3455
  %v3457 = vsub.f32 1.0, %v3456
  %v3458 = vmul.f32 %v3455, %v3457
  %v3459 = vadd.f32 %v3455, %v3458
  %vm3460 = vweird.f32 %v3455
  %v3461 = vsel %vm3460, %v3455, %v3459
  %v3462 = vmul.f32 %v3403, %v3461
  %v3463 = vmul.f32 %v3406, %v3461
  %v3464 = vmul.f32 %v3409, %v3461
  %v3465 = vmul.f32 %v3412, %v3461
  %v3466 = vmul.f32 %v3415, %v3461
  %v3467 = vmul.f32 %v3418, %v3461
  %v3468 = vmul.f32 %v3421, %v3461
  %v3469 = vmul.f32 %v3424, %v3461
  %v3470 = vmul.f32 %v3427, %v3461
  %v3471 = vmul.f32 %v3430, %v3461
  %v3472 = vmul.f32 %v3433, %v3461
  %v3473 = vmul.f32 %v3436, %v3461
  %v3474 = vmul.f32 %v3439, %v3461
  %v3475 = vmul.f32 %v3442, %v3461
  %v3476 = vmul.f32 %v3445, %v3461
  %v3477 = vmul.f32 %v3448, %v3461
  %v3478 = vmul.f32 %v3451, %v3461
  %v3479 = vmul.f32 %v3454, %v3461
  %v3480 = vsub.f32 %v3381, %v3462
  %v3481 = vsub.f32 %v3382, %v3463
  %v3482 = vsub.f32 %v3383, %v3464
  %v3483 = vsub.f32 %v3384, %v3465
  %v3484 = vsub.f32 %v3385, %v3466
  %v3485 = vsub.f32 %v3386, %v3467
  %v3486 = vsub.f32 %v3387, %v3468
  %v3487 = vsub.f32 %v3388, %v3469
  %v3488 = vsub.f32 %v3389, %v3470
  %v3489 = vsub.f32 %v3390, %v3471
  %v3490 = vsub.f32 %v3391, %v3472
  %v3491 = vsub.f32 %v3392, %v3473
  %v3492 = vsub.f32 %v3393, %v3474
  %v3493 = vsub.f32 %v3394, %v3475
  %v3494 = vsub.f32 %v3395, %v3476
  %v3495 = vsub.f32 %v3396, %v3477
  %v3496 = vsub.f32 %v3397, %v3478
  %v3497 = vsub.f32 %v3398, %v3479
  %v3498 = vmul.f32 %v3480, %v3480
  %v3499 = vmul.f32 %v3481, %v3481
  %v3500 = vmul.f32 %v3482, %v3482
  %v3501 = vmul.f32 %v3483, %v3483
  %v3502 = vmul.f32 %v3484, %v3484
  %v3503 = vmul.f32 %v3485, %v3485
  %v3504 = vmul.f32 %v3486, %v3486
  %v3505 = vmul.f32 %v3487, %v3487
  %v3506 = vmul.f32 %v3488, %v3488
  %v3507 = vmul.f32 %v3489, %v3489
  %v3508 = vmul.f32 %v3490, %v3490
  %v3509 = vmul.f32 %v3491, %v3491
  %v3510 = vmul.f32 %v3492, %v3492
  %v3511 = vmul.f32 %v3493, %v3493
  %v3512 = vmul.f32 %v3494, %v3494
  %v3513 = vmul.f32 %v3495, %v3495
  %v3514 = vmul.f32 %v3496, %v3496
  %v3515 = vmul.f32 %v3497, %v3497
  %v3516 = vsel %vm118, %v3498, 0.0
  %3517 = vadd.xlane.f32.xlu0 %v3516
  %v3518 = vpop.xlane.xlu0 %3517
  %v3519 = vsel %vm118, %v3499, 0.0
  %3520 = vadd.xlane.f32.xlu0 %v3519
  %v3521 = vpop.xlane.xlu0 %3520
  %v3522 = vsel %vm118, %v3500, 0.0
  %3523 = vadd.xlane.f32.xlu0 %v3522
  %v3524 = vpop.xlane.xlu0 %3523
  %v3525 = vsel %vm118, %v3501, 0.0
  %3526 = vadd.xlane.f32.xlu0 %v3525
  %v3527 = vpop.xlane.xlu0 %3526
  %v3528 = vsel %vm118, %v3502, 0.0
  %3529 = vadd.xlane.f32.xlu0 %v3528
  %v3530 = vpop.xlane.xlu0 %3529
  %v3531 = vsel %vm118, %v3503, 0.0
  %3532 = vadd.xlane.f32.xlu0 %v3531
  %v3533 = vpop.xlane.xlu0 %3532
  %v3534 = vsel %vm118, %v3504, 0.0
  %3535 = vadd.xlane.f32.xlu0 %v3534
  %v3536 = vpop.xlane.xlu0 %3535
  %v3537 = vsel %vm118, %v3505, 0.0
  %3538 = vadd.xlane.f32.xlu0 %v3537
  %v3539 = vpop.xlane.xlu0 %3538
  %v3540 = vsel %vm118, %v3506, 0.0
  %3541 = vadd.xlane.f32.xlu0 %v3540
  %v3542 = vpop.xlane.xlu0 %3541
  %v3543 = vsel %vm118, %v3507, 0.0
  %3544 = vadd.xlane.f32.xlu0 %v3543
  %v3545 = vpop.xlane.xlu0 %3544
  %v3546 = vsel %vm118, %v3508, 0.0
  %3547 = vadd.xlane.f32.xlu0 %v3546
  %v3548 = vpop.xlane.xlu0 %3547
  %v3549 = vsel %vm118, %v3509, 0.0
  %3550 = vadd.xlane.f32.xlu0 %v3549
  %v3551 = vpop.xlane.xlu0 %3550
  %v3552 = vsel %vm118, %v3510, 0.0
  %3553 = vadd.xlane.f32.xlu0 %v3552
  %v3554 = vpop.xlane.xlu0 %3553
  %v3555 = vsel %vm118, %v3511, 0.0
  %3556 = vadd.xlane.f32.xlu0 %v3555
  %v3557 = vpop.xlane.xlu0 %3556
  %v3558 = vsel %vm118, %v3512, 0.0
  %3559 = vadd.xlane.f32.xlu0 %v3558
  %v3560 = vpop.xlane.xlu0 %3559
  %v3561 = vsel %vm118, %v3513, 0.0
  %3562 = vadd.xlane.f32.xlu0 %v3561
  %v3563 = vpop.xlane.xlu0 %3562
  %v3564 = vsel %vm118, %v3514, 0.0
  %3565 = vadd.xlane.f32.xlu0 %v3564
  %v3566 = vpop.xlane.xlu0 %3565
  %v3567 = vsel %vm118, %v3515, 0.0
  %3568 = vadd.xlane.f32.xlu0 %v3567
  %v3569 = vpop.xlane.xlu0 %3568
  %v3570 = vmul.f32 %v3518, %v3461
  %v3571 = vmul.f32 %v3521, %v3461
  %v3572 = vmul.f32 %v3524, %v3461
  %v3573 = vmul.f32 %v3527, %v3461
  %v3574 = vmul.f32 %v3530, %v3461
  %v3575 = vmul.f32 %v3533, %v3461
  %v3576 = vmul.f32 %v3536, %v3461
  %v3577 = vmul.f32 %v3539, %v3461
  %v3578 = vmul.f32 %v3542, %v3461
  %v3579 = vmul.f32 %v3545, %v3461
  %v3580 = vmul.f32 %v3548, %v3461
  %v3581 = vmul.f32 %v3551, %v3461
  %v3582 = vmul.f32 %v3554, %v3461
  %v3583 = vmul.f32 %v3557, %v3461
  %v3584 = vmul.f32 %v3560, %v3461
  %v3585 = vmul.f32 %v3563, %v3461
  %v3586 = vmul.f32 %v3566, %v3461
  %v3587 = vmul.f32 %v3569, %v3461
  %v3588 = vadd.f32 %v3570, 1e-05
  %v3589 = vadd.f32 %v3571, 1e-05
  %v3590 = vadd.f32 %v3572, 1e-05
  %v3591 = vadd.f32 %v3573, 1e-05
  %v3592 = vadd.f32 %v3574, 1e-05
  %v3593 = vadd.f32 %v3575, 1e-05
  %v3594 = vadd.f32 %v3576, 1e-05
  %v3595 = vadd.f32 %v3577, 1e-05
  %v3596 = vadd.f32 %v3578, 1e-05
  %v3597 = vadd.f32 %v3579, 1e-05
  %v3598 = vadd.f32 %v3580, 1e-05
  %v3599 = vadd.f32 %v3581, 1e-05
  %v3600 = vadd.f32 %v3582, 1e-05
  %v3601 = vadd.f32 %v3583, 1e-05
  %v3602 = vadd.f32 %v3584, 1e-05
  %v3603 = vadd.f32 %v3585, 1e-05
  %v3604 = vadd.f32 %v3586, 1e-05
  %v3605 = vadd.f32 %v3587, 1e-05
  %v3606 = vrsqrt.pop %v3588
  %v3607 = vmul.f32 %v3606, %v3588
  %v3608 = vmul.f32 %v3607, %v3606
  %v3609 = vmul.f32 0.5, %v3608
  %v3610 = vsub.f32 1.5, %v3609
  %v3611 = vmul.f32 %v3606, %v3610
  %vm3612 = vweird.f32 %v3588
  %vm3613 = vweird.f32 %v3606
  %vm3614 = vmor %vm3612, %vm3613
  %v3615 = vsel %vm3614, %v3606, %v3611
  %v3616 = vrsqrt.pop %v3589
  %v3617 = vmul.f32 %v3616, %v3589
  %v3618 = vmul.f32 %v3617, %v3616
  %v3619 = vmul.f32 0.5, %v3618
  %v3620 = vsub.f32 1.5, %v3619
  %v3621 = vmul.f32 %v3616, %v3620
  %vm3622 = vweird.f32 %v3589
  %vm3623 = vweird.f32 %v3616
  %vm3624 = vmor %vm3622, %vm3623
  %v3625 = vsel %vm3624, %v3616, %v3621
  %v3626 = vrsqrt.pop %v3590
  %v3627 = vmul.f32 %v3626, %v3590
  %v3628 = vmul.f32 %v3627, %v3626
  %v3629 = vmul.f32 0.5, %v3628
  %v3630 = vsub.f32 1.5, %v3629
  %v3631 = vmul.f32 %v3626, %v3630
  %vm3632 = vweird.f32 %v3590
  %vm3633 = vweird.f32 %v3626
  %vm3634 = vmor %vm3632, %vm3633
  %v3635 = vsel %vm3634, %v3626, %v3631
  %v3636 = vrsqrt.pop %v3591
  %v3637 = vmul.f32 %v3636, %v3591
  %v3638 = vmul.f32 %v3637, %v3636
  %v3639 = vmul.f32 0.5, %v3638
  %v3640 = vsub.f32 1.5, %v3639
  %v3641 = vmul.f32 %v3636, %v3640
  %vm3642 = vweird.f32 %v3591
  %vm3643 = vweird.f32 %v3636
  %vm3644 = vmor %vm3642, %vm3643
  %v3645 = vsel %vm3644, %v3636, %v3641
  %v3646 = vrsqrt.pop %v3592
  %v3647 = vmul.f32 %v3646, %v3592
  %v3648 = vmul.f32 %v3647, %v3646
  %v3649 = vmul.f32 0.5, %v3648
  %v3650 = vsub.f32 1.5, %v3649
  %v3651 = vmul.f32 %v3646, %v3650
  %vm3652 = vweird.f32 %v3592
  %vm3653 = vweird.f32 %v3646
  %vm3654 = vmor %vm3652, %vm3653
  %v3655 = vsel %vm3654, %v3646, %v3651
  %v3656 = vrsqrt.pop %v3593
  %v3657 = vmul.f32 %v3656, %v3593
  %v3658 = vmul.f32 %v3657, %v3656
  %v3659 = vmul.f32 0.5, %v3658
  %v3660 = vsub.f32 1.5, %v3659
  %v3661 = vmul.f32 %v3656, %v3660
  %vm3662 = vweird.f32 %v3593
  %vm3663 = vweird.f32 %v3656
  %vm3664 = vmor %vm3662, %vm3663
  %v3665 = vsel %vm3664, %v3656, %v3661
  %v3666 = vrsqrt.pop %v3594
  %v3667 = vmul.f32 %v3666, %v3594
  %v3668 = vmul.f32 %v3667, %v3666
  %v3669 = vmul.f32 0.5, %v3668
  %v3670 = vsub.f32 1.5, %v3669
  %v3671 = vmul.f32 %v3666, %v3670
  %vm3672 = vweird.f32 %v3594
  %vm3673 = vweird.f32 %v3666
  %vm3674 = vmor %vm3672, %vm3673
  %v3675 = vsel %vm3674, %v3666, %v3671
  %v3676 = vrsqrt.pop %v3595
  %v3677 = vmul.f32 %v3676, %v3595
  %v3678 = vmul.f32 %v3677, %v3676
  %v3679 = vmul.f32 0.5, %v3678
  %v3680 = vsub.f32 1.5, %v3679
  %v3681 = vmul.f32 %v3676, %v3680
  %vm3682 = vweird.f32 %v3595
  %vm3683 = vweird.f32 %v3676
  %vm3684 = vmor %vm3682, %vm3683
  %v3685 = vsel %vm3684, %v3676, %v3681
  %v3686 = vrsqrt.pop %v3596
  %v3687 = vmul.f32 %v3686, %v3596
  %v3688 = vmul.f32 %v3687, %v3686
  %v3689 = vmul.f32 0.5, %v3688
  %v3690 = vsub.f32 1.5, %v3689
  %v3691 = vmul.f32 %v3686, %v3690
  %vm3692 = vweird.f32 %v3596
  %vm3693 = vweird.f32 %v3686
  %vm3694 = vmor %vm3692, %vm3693
  %v3695 = vsel %vm3694, %v3686, %v3691
  %v3696 = vrsqrt.pop %v3597
  %v3697 = vmul.f32 %v3696, %v3597
  %v3698 = vmul.f32 %v3697, %v3696
  %v3699 = vmul.f32 0.5, %v3698
  %v3700 = vsub.f32 1.5, %v3699
  %v3701 = vmul.f32 %v3696, %v3700
  %vm3702 = vweird.f32 %v3597
  %vm3703 = vweird.f32 %v3696
  %vm3704 = vmor %vm3702, %vm3703
  %v3705 = vsel %vm3704, %v3696, %v3701
  %v3706 = vrsqrt.pop %v3598
  %v3707 = vmul.f32 %v3706, %v3598
  %v3708 = vmul.f32 %v3707, %v3706
  %v3709 = vmul.f32 0.5, %v3708
  %v3710 = vsub.f32 1.5, %v3709
  %v3711 = vmul.f32 %v3706, %v3710
  %vm3712 = vweird.f32 %v3598
  %vm3713 = vweird.f32 %v3706
  %vm3714 = vmor %vm3712, %vm3713
  %v3715 = vsel %vm3714, %v3706, %v3711
  %v3716 = vrsqrt.pop %v3599
  %v3717 = vmul.f32 %v3716, %v3599
  %v3718 = vmul.f32 %v3717, %v3716
  %v3719 = vmul.f32 0.5, %v3718
  %v3720 = vsub.f32 1.5, %v3719
  %v3721 = vmul.f32 %v3716, %v3720
  %vm3722 = vweird.f32 %v3599
  %vm3723 = vweird.f32 %v3716
  %vm3724 = vmor %vm3722, %vm3723
  %v3725 = vsel %vm3724, %v3716, %v3721
  %v3726 = vrsqrt.pop %v3600
  %v3727 = vmul.f32 %v3726, %v3600
  %v3728 = vmul.f32 %v3727, %v3726
  %v3729 = vmul.f32 0.5, %v3728
  %v3730 = vsub.f32 1.5, %v3729
  %v3731 = vmul.f32 %v3726, %v3730
  %vm3732 = vweird.f32 %v3600
  %vm3733 = vweird.f32 %v3726
  %vm3734 = vmor %vm3732, %vm3733
  %v3735 = vsel %vm3734, %v3726, %v3731
  %v3736 = vrsqrt.pop %v3601
  %v3737 = vmul.f32 %v3736, %v3601
  %v3738 = vmul.f32 %v3737, %v3736
  %v3739 = vmul.f32 0.5, %v3738
  %v3740 = vsub.f32 1.5, %v3739
  %v3741 = vmul.f32 %v3736, %v3740
  %vm3742 = vweird.f32 %v3601
  %vm3743 = vweird.f32 %v3736
  %vm3744 = vmor %vm3742, %vm3743
  %v3745 = vsel %vm3744, %v3736, %v3741
  %v3746 = vrsqrt.pop %v3602
  %v3747 = vmul.f32 %v3746, %v3602
  %v3748 = vmul.f32 %v3747, %v3746
  %v3749 = vmul.f32 0.5, %v3748
  %v3750 = vsub.f32 1.5, %v3749
  %v3751 = vmul.f32 %v3746, %v3750
  %vm3752 = vweird.f32 %v3602
  %vm3753 = vweird.f32 %v3746
  %vm3754 = vmor %vm3752, %vm3753
  %v3755 = vsel %vm3754, %v3746, %v3751
  %v3756 = vrsqrt.pop %v3603
  %v3757 = vmul.f32 %v3756, %v3603
  %v3758 = vmul.f32 %v3757, %v3756
  %v3759 = vmul.f32 0.5, %v3758
  %v3760 = vsub.f32 1.5, %v3759
  %v3761 = vmul.f32 %v3756, %v3760
  %vm3762 = vweird.f32 %v3603
  %vm3763 = vweird.f32 %v3756
  %vm3764 = vmor %vm3762, %vm3763
  %v3765 = vsel %vm3764, %v3756, %v3761
  %v3766 = vrsqrt.pop %v3604
  %v3767 = vmul.f32 %v3766, %v3604
  %v3768 = vmul.f32 %v3767, %v3766
  %v3769 = vmul.f32 0.5, %v3768
  %v3770 = vsub.f32 1.5, %v3769
  %v3771 = vmul.f32 %v3766, %v3770
  %vm3772 = vweird.f32 %v3604
  %vm3773 = vweird.f32 %v3766
  %vm3774 = vmor %vm3772, %vm3773
  %v3775 = vsel %vm3774, %v3766, %v3771
  %v3776 = vrsqrt.pop %v3605
  %v3777 = vmul.f32 %v3776, %v3605
  %v3778 = vmul.f32 %v3777, %v3776
  %v3779 = vmul.f32 0.5, %v3778
  %v3780 = vsub.f32 1.5, %v3779
  %v3781 = vmul.f32 %v3776, %v3780
  %vm3782 = vweird.f32 %v3605
  %vm3783 = vweird.f32 %v3776
  %vm3784 = vmor %vm3782, %vm3783
  %v3785 = vsel %vm3784, %v3776, %v3781
  %v3786 = vmul.f32 %v3480, %v3615
  %v3787 = vmul.f32 %v3481, %v3625
  %v3788 = vmul.f32 %v3482, %v3635
  %v3789 = vmul.f32 %v3483, %v3645
  %v3790 = vmul.f32 %v3484, %v3655
  %v3791 = vmul.f32 %v3485, %v3665
  %v3792 = vmul.f32 %v3486, %v3675
  %v3793 = vmul.f32 %v3487, %v3685
  %v3794 = vmul.f32 %v3488, %v3695
  %v3795 = vmul.f32 %v3489, %v3705
  %v3796 = vmul.f32 %v3490, %v3715
  %v3797 = vmul.f32 %v3491, %v3725
  %v3798 = vmul.f32 %v3492, %v3735
  %v3799 = vmul.f32 %v3493, %v3745
  %v3800 = vmul.f32 %v3494, %v3755
  %v3801 = vmul.f32 %v3495, %v3765
  %v3802 = vmul.f32 %v3496, %v3775
  %v3803 = vmul.f32 %v3497, %v3785
  %v3805 = vperm.slane %v3399, 0
  %v3807 = vmul.f32 %v3786, %v3805
  %v3808 = vmul.f32 %v3787, %v3805
  %v3809 = vmul.f32 %v3788, %v3805
  %v3810 = vmul.f32 %v3789, %v3805
  %v3811 = vmul.f32 %v3790, %v3805
  %v3812 = vmul.f32 %v3791, %v3805
  %v3813 = vmul.f32 %v3792, %v3805
  %v3814 = vmul.f32 %v3793, %v3805
  %v3815 = vmul.f32 %v3794, %v3805
  %v3816 = vmul.f32 %v3795, %v3805
  %v3817 = vmul.f32 %v3796, %v3805
  %v3818 = vmul.f32 %v3797, %v3805
  %v3819 = vmul.f32 %v3798, %v3805
  %v3820 = vmul.f32 %v3799, %v3805
  %v3821 = vmul.f32 %v3800, %v3805
  %v3822 = vmul.f32 %v3801, %v3805
  %v3823 = vmul.f32 %v3802, %v3805
  %v3824 = vmul.f32 %v3803, %v3805
  %v3826 = vperm.slane %v3400, 0
  %v3828 = vadd.f32 %v3807, %v3826
  %v3829 = vadd.f32 %v3808, %v3826
  %v3830 = vadd.f32 %v3809, %v3826
  %v3831 = vadd.f32 %v3810, %v3826
  %v3832 = vadd.f32 %v3811, %v3826
  %v3833 = vadd.f32 %v3812, %v3826
  %v3834 = vadd.f32 %v3813, %v3826
  %v3835 = vadd.f32 %v3814, %v3826
  %v3836 = vadd.f32 %v3815, %v3826
  %v3837 = vadd.f32 %v3816, %v3826
  %v3838 = vadd.f32 %v3817, %v3826
  %v3839 = vadd.f32 %v3818, %v3826
  %v3840 = vadd.f32 %v3819, %v3826
  %v3841 = vadd.f32 %v3820, %v3826
  %v3842 = vadd.f32 %v3821, %v3826
  %v3843 = vadd.f32 %v3822, %v3826
  %v3844 = vadd.f32 %v3823, %v3826
  %v3845 = vadd.f32 %v3824, %v3826
  %v3846 = vld [vmem:[%s11] sm:$0xff]
  %v3847 = vld [vmem:[%s11 + $0x8] sm:$0xff]
  %v3848 = vld [vmem:[%s11 + $0x10] sm:$0xff]
  %v3849 = vld [vmem:[%s11 + $0x18] sm:$0xff]
  %v3850 = vld [vmem:[%s12] sm:$0x1]
  %v3852 = vperm.slane %v3850, 0
  %v3855 = vsel %vm118, %v3828, 0
  %v3858 = vsel %vm118, %v3829, 0
  %v3861 = vsel %vm118, %v3830, 0
  %v3864 = vsel %vm118, %v3831, 0
  %v3867 = vsel %vm118, %v3832, 0
  %v3870 = vsel %vm118, %v3833, 0
  %v3873 = vsel %vm118, %v3834, 0
  %v3876 = vsel %vm118, %v3835, 0
  %v3879 = vsel %vm118, %v3836, 0
  %v3882 = vsel %vm118, %v3837, 0
  %v3885 = vsel %vm118, %v3838, 0
  %v3888 = vsel %vm118, %v3839, 0
  %v3891 = vsel %vm118, %v3840, 0
  %v3894 = vsel %vm118, %v3841, 0
  %v3897 = vsel %vm118, %v3842, 0
  %v3900 = vsel %vm118, %v3843, 0
  %v3903 = vsel %vm118, %v3844, 0
  %v3906 = vsel %vm118, %v3845, 0
  %3908 = vmatpush.msra.mxu0 0.0
  %3909 = vmatpush.msra.mxu0 0.0
  %3910 = vmatpush.msra.mxu0 0.0
  %3911 = vmatpush.msra.mxu0 0.0
  %3912 = vmatpush.msra.mxu0 0.0
  %3913 = vmatpush.msra.mxu0 0.0
  %3914 = vmatpush.msra.mxu0 0.0
  %3915 = vmatpush.msra.mxu0 0.0
  %3916 = vmatpush.msra.mxu0 0.0
  %3917 = vmatpush.msra.mxu0 0.0
  %3918 = vmatpush.msra.mxu0 0.0
  %3919 = vmatpush.msra.mxu0 0.0
  %3920 = vmatpush.msra.mxu0 %v3849
  %3921 = vmatpush.msra.mxu0 %v3848
  %3922 = vmatpush.msra.mxu0 %v3847
  %3923 = vmatpush.msra.mxu0 %v3846
  %3924 = vmatmul.f32.gmra.mxu0 %v3855
  %v3925 = vpop.f32.mrf.mxu0
  %v3926 = vadd.f32 %v3852, %v3925
  %3927 = vmatmul.f32.gmra.mxu0 %v3858
  %v3928 = vpop.f32.mrf.mxu0
  %v3929 = vadd.f32 %v3852, %v3928
  %3930 = vmatmul.f32.gmra.mxu0 %v3861
  %v3931 = vpop.f32.mrf.mxu0
  %v3932 = vadd.f32 %v3852, %v3931
  %3933 = vmatmul.f32.gmra.mxu0 %v3864
  %v3934 = vpop.f32.mrf.mxu0
  %v3935 = vadd.f32 %v3852, %v3934
  %3936 = vmatmul.f32.gmra.mxu0 %v3867
  %v3937 = vpop.f32.mrf.mxu0
  %v3938 = vadd.f32 %v3852, %v3937
  %3939 = vmatmul.f32.gmra.mxu0 %v3870
  %v3940 = vpop.f32.mrf.mxu0
  %v3941 = vadd.f32 %v3852, %v3940
  %3942 = vmatmul.f32.gmra.mxu0 %v3873
  %v3943 = vpop.f32.mrf.mxu0
  %v3944 = vadd.f32 %v3852, %v3943
  %3945 = vmatmul.f32.gmra.mxu0 %v3876
  %v3946 = vpop.f32.mrf.mxu0
  %v3947 = vadd.f32 %v3852, %v3946
  %3948 = vmatmul.f32.gmra.mxu0 %v3879
  %v3949 = vpop.f32.mrf.mxu0
  %v3950 = vadd.f32 %v3852, %v3949
  %3951 = vmatmul.f32.gmra.mxu0 %v3882
  %v3952 = vpop.f32.mrf.mxu0
  %v3953 = vadd.f32 %v3852, %v3952
  %3954 = vmatmul.f32.gmra.mxu0 %v3885
  %v3955 = vpop.f32.mrf.mxu0
  %v3956 = vadd.f32 %v3852, %v3955
  %3957 = vmatmul.f32.gmra.mxu0 %v3888
  %v3958 = vpop.f32.mrf.mxu0
  %v3959 = vadd.f32 %v3852, %v3958
  %3960 = vmatmul.f32.gmra.mxu0 %v3891
  %v3961 = vpop.f32.mrf.mxu0
  %v3962 = vadd.f32 %v3852, %v3961
  %3963 = vmatmul.f32.gmra.mxu0 %v3894
  %v3964 = vpop.f32.mrf.mxu0
  %v3965 = vadd.f32 %v3852, %v3964
  %3966 = vmatmul.f32.gmra.mxu0 %v3897
  %v3967 = vpop.f32.mrf.mxu0
  %v3968 = vadd.f32 %v3852, %v3967
  %3969 = vmatmul.f32.gmra.mxu0 %v3900
  %v3970 = vpop.f32.mrf.mxu0
  %v3971 = vadd.f32 %v3852, %v3970
  %3972 = vmatmul.f32.gmra.mxu0 %v3903
  %v3973 = vpop.f32.mrf.mxu0
  %v3974 = vadd.f32 %v3852, %v3973
  %3975 = vmatmul.f32.gmra.mxu0 %v3906
  %v3976 = vpop.f32.mrf.mxu0
  %v3977 = vadd.f32 %v3852, %v3976
  %3978 = vdwg.mxu0
  %v3979 = vmax.f32 %v3926, 0.0
  %v3980 = vmax.f32 %v3929, 0.0
  %v3981 = vmax.f32 %v3932, 0.0
  %v3982 = vmax.f32 %v3935, 0.0
  %v3983 = vmax.f32 %v3938, 0.0
  %v3984 = vmax.f32 %v3941, 0.0
  %v3985 = vmax.f32 %v3944, 0.0
  %v3986 = vmax.f32 %v3947, 0.0
  %v3987 = vmax.f32 %v3950, 0.0
  %v3988 = vmax.f32 %v3953, 0.0
  %v3989 = vmax.f32 %v3956, 0.0
  %v3990 = vmax.f32 %v3959, 0.0
  %v3991 = vmax.f32 %v3962, 0.0
  %v3992 = vmax.f32 %v3965, 0.0
  %v3993 = vmax.f32 %v3968, 0.0
  %v3994 = vmax.f32 %v3971, 0.0
  %v3995 = vmax.f32 %v3974, 0.0
  %v3996 = vmax.f32 %v3977, 0.0
  %v3997 = vld [vmem:[%s13] sm:$0xff]
  %v3998 = vld [vmem:[%s13 + $0x8] sm:$0xff]
  %v3999 = vld [vmem:[%s13 + $0x10] sm:$0xff]
  %v4000 = vld [vmem:[%s13 + $0x18] sm:$0xff]
  %v4001 = vld [vmem:[%s13 + $0x20] sm:$0xff]
  %v4002 = vld [vmem:[%s13 + $0x28] sm:$0xff]
  %v4003 = vld [vmem:[%s13 + $0x30] sm:$0xff]
  %v4004 = vld [vmem:[%s13 + $0x38] sm:$0xff]
  %v4005 = vld [vmem:[%s14] sm:$0x1]
  %v4007 = vperm.slane %v4005, 0
  %vm4009 = vcmask 523264
  %v4011 = vsel %vm4009, %v3979, 0
  %v4014 = vsel %vm4009, %v3980, 0
  %v4017 = vsel %vm4009, %v3981, 0
  %v4020 = vsel %vm4009, %v3982, 0
  %v4023 = vsel %vm4009, %v3983, 0
  %v4026 = vsel %vm4009, %v3984, 0
  %v4029 = vsel %vm4009, %v3985, 0
  %v4032 = vsel %vm4009, %v3986, 0
  %v4035 = vsel %vm4009, %v3987, 0
  %v4038 = vsel %vm4009, %v3988, 0
  %v4041 = vsel %vm4009, %v3989, 0
  %v4044 = vsel %vm4009, %v3990, 0
  %v4047 = vsel %vm4009, %v3991, 0
  %v4050 = vsel %vm4009, %v3992, 0
  %v4053 = vsel %vm4009, %v3993, 0
  %v4056 = vsel %vm4009, %v3994, 0
  %v4059 = vsel %vm4009, %v3995, 0
  %v4062 = vsel %vm4009, %v3996, 0
  %4064 = vmatpush.msra.mxu0 0.0
  %4065 = vmatpush.msra.mxu0 0.0
  %4066 = vmatpush.msra.mxu0 0.0
  %4067 = vmatpush.msra.mxu0 0.0
  %4068 = vmatpush.msra.mxu0 0.0
  %4069 = vmatpush.msra.mxu0 0.0
  %4070 = vmatpush.msra.mxu0 0.0
  %4071 = vmatpush.msra.mxu0 0.0
  %4072 = vmatpush.msra.mxu0 %v4004
  %4073 = vmatpush.msra.mxu0 %v4003
  %4074 = vmatpush.msra.mxu0 %v4002
  %4075 = vmatpush.msra.mxu0 %v4001
  %4076 = vmatpush.msra.mxu0 %v4000
  %4077 = vmatpush.msra.mxu0 %v3999
  %4078 = vmatpush.msra.mxu0 %v3998
  %4079 = vmatpush.msra.mxu0 %v3997
  %4080 = vmatmul.f32.gmra.mxu0 %v4011
  %v4081 = vpop.f32.mrf.mxu0
  %v4082 = vadd.f32 %v4007, %v4081
  %4083 = vmatmul.f32.gmra.mxu0 %v4014
  %v4084 = vpop.f32.mrf.mxu0
  %v4085 = vadd.f32 %v4007, %v4084
  %4086 = vmatmul.f32.gmra.mxu0 %v4017
  %v4087 = vpop.f32.mrf.mxu0
  %v4088 = vadd.f32 %v4007, %v4087
  %4089 = vmatmul.f32.gmra.mxu0 %v4020
  %v4090 = vpop.f32.mrf.mxu0
  %v4091 = vadd.f32 %v4007, %v4090
  %4092 = vmatmul.f32.gmra.mxu0 %v4023
  %v4093 = vpop.f32.mrf.mxu0
  %v4094 = vadd.f32 %v4007, %v4093
  %4095 = vmatmul.f32.gmra.mxu0 %v4026
  %v4096 = vpop.f32.mrf.mxu0
  %v4097 = vadd.f32 %v4007, %v4096
  %4098 = vmatmul.f32.gmra.mxu0 %v4029
  %v4099 = vpop.f32.mrf.mxu0
  %v4100 = vadd.f32 %v4007, %v4099
  %4101 = vmatmul.f32.gmra.mxu0 %v4032
  %v4102 = vpop.f32.mrf.mxu0
  %v4103 = vadd.f32 %v4007, %v4102
  %4104 = vmatmul.f32.gmra.mxu0 %v4035
  %v4105 = vpop.f32.mrf.mxu0
  %v4106 = vadd.f32 %v4007, %v4105
  %4107 = vmatmul.f32.gmra.mxu0 %v4038
  %v4108 = vpop.f32.mrf.mxu0
  %v4109 = vadd.f32 %v4007, %v4108
  %4110 = vmatmul.f32.gmra.mxu0 %v4041
  %v4111 = vpop.f32.mrf.mxu0
  %v4112 = vadd.f32 %v4007, %v4111
  %4113 = vmatmul.f32.gmra.mxu0 %v4044
  %v4114 = vpop.f32.mrf.mxu0
  %v4115 = vadd.f32 %v4007, %v4114
  %4116 = vmatmul.f32.gmra.mxu0 %v4047
  %v4117 = vpop.f32.mrf.mxu0
  %v4118 = vadd.f32 %v4007, %v4117
  %4119 = vmatmul.f32.gmra.mxu0 %v4050
  %v4120 = vpop.f32.mrf.mxu0
  %v4121 = vadd.f32 %v4007, %v4120
  %4122 = vmatmul.f32.gmra.mxu0 %v4053
  %v4123 = vpop.f32.mrf.mxu0
  %v4124 = vadd.f32 %v4007, %v4123
  %4125 = vmatmul.f32.gmra.mxu0 %v4056
  %v4126 = vpop.f32.mrf.mxu0
  %v4127 = vadd.f32 %v4007, %v4126
  %4128 = vmatmul.f32.gmra.mxu0 %v4059
  %v4129 = vpop.f32.mrf.mxu0
  %v4130 = vadd.f32 %v4007, %v4129
  %4131 = vmatmul.f32.gmra.mxu0 %v4062
  %v4132 = vpop.f32.mrf.mxu0
  %v4133 = vadd.f32 %v4007, %v4132
  %4134 = vdwg.mxu0
  %v4135 = vadd.f32 %v3828, %v4082
  %v4136 = vadd.f32 %v3829, %v4085
  %v4137 = vadd.f32 %v3830, %v4088
  %v4138 = vadd.f32 %v3831, %v4091
  %v4139 = vadd.f32 %v3832, %v4094
  %v4140 = vadd.f32 %v3833, %v4097
  %v4141 = vadd.f32 %v3834, %v4100
  %v4142 = vadd.f32 %v3835, %v4103
  %v4143 = vadd.f32 %v3836, %v4106
  %v4144 = vadd.f32 %v3837, %v4109
  %v4145 = vadd.f32 %v3838, %v4112
  %v4146 = vadd.f32 %v3839, %v4115
  %v4147 = vadd.f32 %v3840, %v4118
  %v4148 = vadd.f32 %v3841, %v4121
  %v4149 = vadd.f32 %v3842, %v4124
  %v4150 = vadd.f32 %v3843, %v4127
  %v4151 = vadd.f32 %v3844, %v4130
  %v4152 = vadd.f32 %v3845, %v4133
  %v4153 = vld [vmem:[%s15] sm:$0x1]
  %v4154 = vld [vmem:[%s16] sm:$0x1]
  %v4155 = vsel %vm118, %v4135, 0.0
  %4156 = vadd.xlane.f32.xlu0 %v4155
  %v4157 = vpop.xlane.xlu0 %4156
  %v4158 = vsel %vm118, %v4136, 0.0
  %4159 = vadd.xlane.f32.xlu0 %v4158
  %v4160 = vpop.xlane.xlu0 %4159
  %v4161 = vsel %vm118, %v4137, 0.0
  %4162 = vadd.xlane.f32.xlu0 %v4161
  %v4163 = vpop.xlane.xlu0 %4162
  %v4164 = vsel %vm118, %v4138, 0.0
  %4165 = vadd.xlane.f32.xlu0 %v4164
  %v4166 = vpop.xlane.xlu0 %4165
  %v4167 = vsel %vm118, %v4139, 0.0
  %4168 = vadd.xlane.f32.xlu0 %v4167
  %v4169 = vpop.xlane.xlu0 %4168
  %v4170 = vsel %vm118, %v4140, 0.0
  %4171 = vadd.xlane.f32.xlu0 %v4170
  %v4172 = vpop.xlane.xlu0 %4171
  %v4173 = vsel %vm118, %v4141, 0.0
  %4174 = vadd.xlane.f32.xlu0 %v4173
  %v4175 = vpop.xlane.xlu0 %4174
  %v4176 = vsel %vm118, %v4142, 0.0
  %4177 = vadd.xlane.f32.xlu0 %v4176
  %v4178 = vpop.xlane.xlu0 %4177
  %v4179 = vsel %vm118, %v4143, 0.0
  %4180 = vadd.xlane.f32.xlu0 %v4179
  %v4181 = vpop.xlane.xlu0 %4180
  %v4182 = vsel %vm118, %v4144, 0.0
  %4183 = vadd.xlane.f32.xlu0 %v4182
  %v4184 = vpop.xlane.xlu0 %4183
  %v4185 = vsel %vm118, %v4145, 0.0
  %4186 = vadd.xlane.f32.xlu0 %v4185
  %v4187 = vpop.xlane.xlu0 %4186
  %v4188 = vsel %vm118, %v4146, 0.0
  %4189 = vadd.xlane.f32.xlu0 %v4188
  %v4190 = vpop.xlane.xlu0 %4189
  %v4191 = vsel %vm118, %v4147, 0.0
  %4192 = vadd.xlane.f32.xlu0 %v4191
  %v4193 = vpop.xlane.xlu0 %4192
  %v4194 = vsel %vm118, %v4148, 0.0
  %4195 = vadd.xlane.f32.xlu0 %v4194
  %v4196 = vpop.xlane.xlu0 %4195
  %v4197 = vsel %vm118, %v4149, 0.0
  %4198 = vadd.xlane.f32.xlu0 %v4197
  %v4199 = vpop.xlane.xlu0 %4198
  %v4200 = vsel %vm118, %v4150, 0.0
  %4201 = vadd.xlane.f32.xlu0 %v4200
  %v4202 = vpop.xlane.xlu0 %4201
  %v4203 = vsel %vm118, %v4151, 0.0
  %4204 = vadd.xlane.f32.xlu0 %v4203
  %v4205 = vpop.xlane.xlu0 %4204
  %v4206 = vsel %vm118, %v4152, 0.0
  %4207 = vadd.xlane.f32.xlu0 %v4206
  %v4208 = vpop.xlane.xlu0 %4207
  %v4209 = vmul.f32 %v4157, %v3461
  %v4210 = vmul.f32 %v4160, %v3461
  %v4211 = vmul.f32 %v4163, %v3461
  %v4212 = vmul.f32 %v4166, %v3461
  %v4213 = vmul.f32 %v4169, %v3461
  %v4214 = vmul.f32 %v4172, %v3461
  %v4215 = vmul.f32 %v4175, %v3461
  %v4216 = vmul.f32 %v4178, %v3461
  %v4217 = vmul.f32 %v4181, %v3461
  %v4218 = vmul.f32 %v4184, %v3461
  %v4219 = vmul.f32 %v4187, %v3461
  %v4220 = vmul.f32 %v4190, %v3461
  %v4221 = vmul.f32 %v4193, %v3461
  %v4222 = vmul.f32 %v4196, %v3461
  %v4223 = vmul.f32 %v4199, %v3461
  %v4224 = vmul.f32 %v4202, %v3461
  %v4225 = vmul.f32 %v4205, %v3461
  %v4226 = vmul.f32 %v4208, %v3461
  %v4227 = vsub.f32 %v4135, %v4209
  %v4228 = vsub.f32 %v4136, %v4210
  %v4229 = vsub.f32 %v4137, %v4211
  %v4230 = vsub.f32 %v4138, %v4212
  %v4231 = vsub.f32 %v4139, %v4213
  %v4232 = vsub.f32 %v4140, %v4214
  %v4233 = vsub.f32 %v4141, %v4215
  %v4234 = vsub.f32 %v4142, %v4216
  %v4235 = vsub.f32 %v4143, %v4217
  %v4236 = vsub.f32 %v4144, %v4218
  %v4237 = vsub.f32 %v4145, %v4219
  %v4238 = vsub.f32 %v4146, %v4220
  %v4239 = vsub.f32 %v4147, %v4221
  %v4240 = vsub.f32 %v4148, %v4222
  %v4241 = vsub.f32 %v4149, %v4223
  %v4242 = vsub.f32 %v4150, %v4224
  %v4243 = vsub.f32 %v4151, %v4225
  %v4244 = vsub.f32 %v4152, %v4226
  %v4245 = vmul.f32 %v4227, %v4227
  %v4246 = vmul.f32 %v4228, %v4228
  %v4247 = vmul.f32 %v4229, %v4229
  %v4248 = vmul.f32 %v4230, %v4230
  %v4249 = vmul.f32 %v4231, %v4231
  %v4250 = vmul.f32 %v4232, %v4232
  %v4251 = vmul.f32 %v4233, %v4233
  %v4252 = vmul.f32 %v4234, %v4234
  %v4253 = vmul.f32 %v4235, %v4235
  %v4254 = vmul.f32 %v4236, %v4236
  %v4255 = vmul.f32 %v4237, %v4237
  %v4256 = vmul.f32 %v4238, %v4238
  %v4257 = vmul.f32 %v4239, %v4239
  %v4258 = vmul.f32 %v4240, %v4240
  %v4259 = vmul.f32 %v4241, %v4241
  %v4260 = vmul.f32 %v4242, %v4242
  %v4261 = vmul.f32 %v4243, %v4243
  %v4262 = vmul.f32 %v4244, %v4244
  %v4263 = vsel %vm118, %v4245, 0.0
  %4264 = vadd.xlane.f32.xlu0 %v4263
  %v4265 = vpop.xlane.xlu0 %4264
  %v4266 = vsel %vm118, %v4246, 0.0
  %4267 = vadd.xlane.f32.xlu0 %v4266
  %v4268 = vpop.xlane.xlu0 %4267
  %v4269 = vsel %vm118, %v4247, 0.0
  %4270 = vadd.xlane.f32.xlu0 %v4269
  %v4271 = vpop.xlane.xlu0 %4270
  %v4272 = vsel %vm118, %v4248, 0.0
  %4273 = vadd.xlane.f32.xlu0 %v4272
  %v4274 = vpop.xlane.xlu0 %4273
  %v4275 = vsel %vm118, %v4249, 0.0
  %4276 = vadd.xlane.f32.xlu0 %v4275
  %v4277 = vpop.xlane.xlu0 %4276
  %v4278 = vsel %vm118, %v4250, 0.0
  %4279 = vadd.xlane.f32.xlu0 %v4278
  %v4280 = vpop.xlane.xlu0 %4279
  %v4281 = vsel %vm118, %v4251, 0.0
  %4282 = vadd.xlane.f32.xlu0 %v4281
  %v4283 = vpop.xlane.xlu0 %4282
  %v4284 = vsel %vm118, %v4252, 0.0
  %4285 = vadd.xlane.f32.xlu0 %v4284
  %v4286 = vpop.xlane.xlu0 %4285
  %v4287 = vsel %vm118, %v4253, 0.0
  %4288 = vadd.xlane.f32.xlu0 %v4287
  %v4289 = vpop.xlane.xlu0 %4288
  %v4290 = vsel %vm118, %v4254, 0.0
  %4291 = vadd.xlane.f32.xlu0 %v4290
  %v4292 = vpop.xlane.xlu0 %4291
  %v4293 = vsel %vm118, %v4255, 0.0
  %4294 = vadd.xlane.f32.xlu0 %v4293
  %v4295 = vpop.xlane.xlu0 %4294
  %v4296 = vsel %vm118, %v4256, 0.0
  %4297 = vadd.xlane.f32.xlu0 %v4296
  %v4298 = vpop.xlane.xlu0 %4297
  %v4299 = vsel %vm118, %v4257, 0.0
  %4300 = vadd.xlane.f32.xlu0 %v4299
  %v4301 = vpop.xlane.xlu0 %4300
  %v4302 = vsel %vm118, %v4258, 0.0
  %4303 = vadd.xlane.f32.xlu0 %v4302
  %v4304 = vpop.xlane.xlu0 %4303
  %v4305 = vsel %vm118, %v4259, 0.0
  %4306 = vadd.xlane.f32.xlu0 %v4305
  %v4307 = vpop.xlane.xlu0 %4306
  %v4308 = vsel %vm118, %v4260, 0.0
  %4309 = vadd.xlane.f32.xlu0 %v4308
  %v4310 = vpop.xlane.xlu0 %4309
  %v4311 = vsel %vm118, %v4261, 0.0
  %4312 = vadd.xlane.f32.xlu0 %v4311
  %v4313 = vpop.xlane.xlu0 %4312
  %v4314 = vsel %vm118, %v4262, 0.0
  %4315 = vadd.xlane.f32.xlu0 %v4314
  %v4316 = vpop.xlane.xlu0 %4315
  %v4317 = vmul.f32 %v4265, %v3461
  %v4318 = vmul.f32 %v4268, %v3461
  %v4319 = vmul.f32 %v4271, %v3461
  %v4320 = vmul.f32 %v4274, %v3461
  %v4321 = vmul.f32 %v4277, %v3461
  %v4322 = vmul.f32 %v4280, %v3461
  %v4323 = vmul.f32 %v4283, %v3461
  %v4324 = vmul.f32 %v4286, %v3461
  %v4325 = vmul.f32 %v4289, %v3461
  %v4326 = vmul.f32 %v4292, %v3461
  %v4327 = vmul.f32 %v4295, %v3461
  %v4328 = vmul.f32 %v4298, %v3461
  %v4329 = vmul.f32 %v4301, %v3461
  %v4330 = vmul.f32 %v4304, %v3461
  %v4331 = vmul.f32 %v4307, %v3461
  %v4332 = vmul.f32 %v4310, %v3461
  %v4333 = vmul.f32 %v4313, %v3461
  %v4334 = vmul.f32 %v4316, %v3461
  %v4335 = vadd.f32 %v4317, 1e-05
  %v4336 = vadd.f32 %v4318, 1e-05
  %v4337 = vadd.f32 %v4319, 1e-05
  %v4338 = vadd.f32 %v4320, 1e-05
  %v4339 = vadd.f32 %v4321, 1e-05
  %v4340 = vadd.f32 %v4322, 1e-05
  %v4341 = vadd.f32 %v4323, 1e-05
  %v4342 = vadd.f32 %v4324, 1e-05
  %v4343 = vadd.f32 %v4325, 1e-05
  %v4344 = vadd.f32 %v4326, 1e-05
  %v4345 = vadd.f32 %v4327, 1e-05
  %v4346 = vadd.f32 %v4328, 1e-05
  %v4347 = vadd.f32 %v4329, 1e-05
  %v4348 = vadd.f32 %v4330, 1e-05
  %v4349 = vadd.f32 %v4331, 1e-05
  %v4350 = vadd.f32 %v4332, 1e-05
  %v4351 = vadd.f32 %v4333, 1e-05
  %v4352 = vadd.f32 %v4334, 1e-05
  %v4353 = vrsqrt.pop %v4335
  %v4354 = vmul.f32 %v4353, %v4335
  %v4355 = vmul.f32 %v4354, %v4353
  %v4356 = vmul.f32 0.5, %v4355
  %v4357 = vsub.f32 1.5, %v4356
  %v4358 = vmul.f32 %v4353, %v4357
  %vm4359 = vweird.f32 %v4335
  %vm4360 = vweird.f32 %v4353
  %vm4361 = vmor %vm4359, %vm4360
  %v4362 = vsel %vm4361, %v4353, %v4358
  %v4363 = vrsqrt.pop %v4336
  %v4364 = vmul.f32 %v4363, %v4336
  %v4365 = vmul.f32 %v4364, %v4363
  %v4366 = vmul.f32 0.5, %v4365
  %v4367 = vsub.f32 1.5, %v4366
  %v4368 = vmul.f32 %v4363, %v4367
  %vm4369 = vweird.f32 %v4336
  %vm4370 = vweird.f32 %v4363
  %vm4371 = vmor %vm4369, %vm4370
  %v4372 = vsel %vm4371, %v4363, %v4368
  %v4373 = vrsqrt.pop %v4337
  %v4374 = vmul.f32 %v4373, %v4337
  %v4375 = vmul.f32 %v4374, %v4373
  %v4376 = vmul.f32 0.5, %v4375
  %v4377 = vsub.f32 1.5, %v4376
  %v4378 = vmul.f32 %v4373, %v4377
  %vm4379 = vweird.f32 %v4337
  %vm4380 = vweird.f32 %v4373
  %vm4381 = vmor %vm4379, %vm4380
  %v4382 = vsel %vm4381, %v4373, %v4378
  %v4383 = vrsqrt.pop %v4338
  %v4384 = vmul.f32 %v4383, %v4338
  %v4385 = vmul.f32 %v4384, %v4383
  %v4386 = vmul.f32 0.5, %v4385
  %v4387 = vsub.f32 1.5, %v4386
  %v4388 = vmul.f32 %v4383, %v4387
  %vm4389 = vweird.f32 %v4338
  %vm4390 = vweird.f32 %v4383
  %vm4391 = vmor %vm4389, %vm4390
  %v4392 = vsel %vm4391, %v4383, %v4388
  %v4393 = vrsqrt.pop %v4339
  %v4394 = vmul.f32 %v4393, %v4339
  %v4395 = vmul.f32 %v4394, %v4393
  %v4396 = vmul.f32 0.5, %v4395
  %v4397 = vsub.f32 1.5, %v4396
  %v4398 = vmul.f32 %v4393, %v4397
  %vm4399 = vweird.f32 %v4339
  %vm4400 = vweird.f32 %v4393
  %vm4401 = vmor %vm4399, %vm4400
  %v4402 = vsel %vm4401, %v4393, %v4398
  %v4403 = vrsqrt.pop %v4340
  %v4404 = vmul.f32 %v4403, %v4340
  %v4405 = vmul.f32 %v4404, %v4403
  %v4406 = vmul.f32 0.5, %v4405
  %v4407 = vsub.f32 1.5, %v4406
  %v4408 = vmul.f32 %v4403, %v4407
  %vm4409 = vweird.f32 %v4340
  %vm4410 = vweird.f32 %v4403
  %vm4411 = vmor %vm4409, %vm4410
  %v4412 = vsel %vm4411, %v4403, %v4408
  %v4413 = vrsqrt.pop %v4341
  %v4414 = vmul.f32 %v4413, %v4341
  %v4415 = vmul.f32 %v4414, %v4413
  %v4416 = vmul.f32 0.5, %v4415
  %v4417 = vsub.f32 1.5, %v4416
  %v4418 = vmul.f32 %v4413, %v4417
  %vm4419 = vweird.f32 %v4341
  %vm4420 = vweird.f32 %v4413
  %vm4421 = vmor %vm4419, %vm4420
  %v4422 = vsel %vm4421, %v4413, %v4418
  %v4423 = vrsqrt.pop %v4342
  %v4424 = vmul.f32 %v4423, %v4342
  %v4425 = vmul.f32 %v4424, %v4423
  %v4426 = vmul.f32 0.5, %v4425
  %v4427 = vsub.f32 1.5, %v4426
  %v4428 = vmul.f32 %v4423, %v4427
  %vm4429 = vweird.f32 %v4342
  %vm4430 = vweird.f32 %v4423
  %vm4431 = vmor %vm4429, %vm4430
  %v4432 = vsel %vm4431, %v4423, %v4428
  %v4433 = vrsqrt.pop %v4343
  %v4434 = vmul.f32 %v4433, %v4343
  %v4435 = vmul.f32 %v4434, %v4433
  %v4436 = vmul.f32 0.5, %v4435
  %v4437 = vsub.f32 1.5, %v4436
  %v4438 = vmul.f32 %v4433, %v4437
  %vm4439 = vweird.f32 %v4343
  %vm4440 = vweird.f32 %v4433
  %vm4441 = vmor %vm4439, %vm4440
  %v4442 = vsel %vm4441, %v4433, %v4438
  %v4443 = vrsqrt.pop %v4344
  %v4444 = vmul.f32 %v4443, %v4344
  %v4445 = vmul.f32 %v4444, %v4443
  %v4446 = vmul.f32 0.5, %v4445
  %v4447 = vsub.f32 1.5, %v4446
  %v4448 = vmul.f32 %v4443, %v4447
  %vm4449 = vweird.f32 %v4344
  %vm4450 = vweird.f32 %v4443
  %vm4451 = vmor %vm4449, %vm4450
  %v4452 = vsel %vm4451, %v4443, %v4448
  %v4453 = vrsqrt.pop %v4345
  %v4454 = vmul.f32 %v4453, %v4345
  %v4455 = vmul.f32 %v4454, %v4453
  %v4456 = vmul.f32 0.5, %v4455
  %v4457 = vsub.f32 1.5, %v4456
  %v4458 = vmul.f32 %v4453, %v4457
  %vm4459 = vweird.f32 %v4345
  %vm4460 = vweird.f32 %v4453
  %vm4461 = vmor %vm4459, %vm4460
  %v4462 = vsel %vm4461, %v4453, %v4458
  %v4463 = vrsqrt.pop %v4346
  %v4464 = vmul.f32 %v4463, %v4346
  %v4465 = vmul.f32 %v4464, %v4463
  %v4466 = vmul.f32 0.5, %v4465
  %v4467 = vsub.f32 1.5, %v4466
  %v4468 = vmul.f32 %v4463, %v4467
  %vm4469 = vweird.f32 %v4346
  %vm4470 = vweird.f32 %v4463
  %vm4471 = vmor %vm4469, %vm4470
  %v4472 = vsel %vm4471, %v4463, %v4468
  %v4473 = vrsqrt.pop %v4347
  %v4474 = vmul.f32 %v4473, %v4347
  %v4475 = vmul.f32 %v4474, %v4473
  %v4476 = vmul.f32 0.5, %v4475
  %v4477 = vsub.f32 1.5, %v4476
  %v4478 = vmul.f32 %v4473, %v4477
  %vm4479 = vweird.f32 %v4347
  %vm4480 = vweird.f32 %v4473
  %vm4481 = vmor %vm4479, %vm4480
  %v4482 = vsel %vm4481, %v4473, %v4478
  %v4483 = vrsqrt.pop %v4348
  %v4484 = vmul.f32 %v4483, %v4348
  %v4485 = vmul.f32 %v4484, %v4483
  %v4486 = vmul.f32 0.5, %v4485
  %v4487 = vsub.f32 1.5, %v4486
  %v4488 = vmul.f32 %v4483, %v4487
  %vm4489 = vweird.f32 %v4348
  %vm4490 = vweird.f32 %v4483
  %vm4491 = vmor %vm4489, %vm4490
  %v4492 = vsel %vm4491, %v4483, %v4488
  %v4493 = vrsqrt.pop %v4349
  %v4494 = vmul.f32 %v4493, %v4349
  %v4495 = vmul.f32 %v4494, %v4493
  %v4496 = vmul.f32 0.5, %v4495
  %v4497 = vsub.f32 1.5, %v4496
  %v4498 = vmul.f32 %v4493, %v4497
  %vm4499 = vweird.f32 %v4349
  %vm4500 = vweird.f32 %v4493
  %vm4501 = vmor %vm4499, %vm4500
  %v4502 = vsel %vm4501, %v4493, %v4498
  %v4503 = vrsqrt.pop %v4350
  %v4504 = vmul.f32 %v4503, %v4350
  %v4505 = vmul.f32 %v4504, %v4503
  %v4506 = vmul.f32 0.5, %v4505
  %v4507 = vsub.f32 1.5, %v4506
  %v4508 = vmul.f32 %v4503, %v4507
  %vm4509 = vweird.f32 %v4350
  %vm4510 = vweird.f32 %v4503
  %vm4511 = vmor %vm4509, %vm4510
  %v4512 = vsel %vm4511, %v4503, %v4508
  %v4513 = vrsqrt.pop %v4351
  %v4514 = vmul.f32 %v4513, %v4351
  %v4515 = vmul.f32 %v4514, %v4513
  %v4516 = vmul.f32 0.5, %v4515
  %v4517 = vsub.f32 1.5, %v4516
  %v4518 = vmul.f32 %v4513, %v4517
  %vm4519 = vweird.f32 %v4351
  %vm4520 = vweird.f32 %v4513
  %vm4521 = vmor %vm4519, %vm4520
  %v4522 = vsel %vm4521, %v4513, %v4518
  %v4523 = vrsqrt.pop %v4352
  %v4524 = vmul.f32 %v4523, %v4352
  %v4525 = vmul.f32 %v4524, %v4523
  %v4526 = vmul.f32 0.5, %v4525
  %v4527 = vsub.f32 1.5, %v4526
  %v4528 = vmul.f32 %v4523, %v4527
  %vm4529 = vweird.f32 %v4352
  %vm4530 = vweird.f32 %v4523
  %vm4531 = vmor %vm4529, %vm4530
  %v4532 = vsel %vm4531, %v4523, %v4528
  %v4533 = vmul.f32 %v4227, %v4362
  %v4534 = vmul.f32 %v4228, %v4372
  %v4535 = vmul.f32 %v4229, %v4382
  %v4536 = vmul.f32 %v4230, %v4392
  %v4537 = vmul.f32 %v4231, %v4402
  %v4538 = vmul.f32 %v4232, %v4412
  %v4539 = vmul.f32 %v4233, %v4422
  %v4540 = vmul.f32 %v4234, %v4432
  %v4541 = vmul.f32 %v4235, %v4442
  %v4542 = vmul.f32 %v4236, %v4452
  %v4543 = vmul.f32 %v4237, %v4462
  %v4544 = vmul.f32 %v4238, %v4472
  %v4545 = vmul.f32 %v4239, %v4482
  %v4546 = vmul.f32 %v4240, %v4492
  %v4547 = vmul.f32 %v4241, %v4502
  %v4548 = vmul.f32 %v4242, %v4512
  %v4549 = vmul.f32 %v4243, %v4522
  %v4550 = vmul.f32 %v4244, %v4532
  %v4552 = vperm.slane %v4153, 0
  %v4554 = vmul.f32 %v4533, %v4552
  %v4555 = vmul.f32 %v4534, %v4552
  %v4556 = vmul.f32 %v4535, %v4552
  %v4557 = vmul.f32 %v4536, %v4552
  %v4558 = vmul.f32 %v4537, %v4552
  %v4559 = vmul.f32 %v4538, %v4552
  %v4560 = vmul.f32 %v4539, %v4552
  %v4561 = vmul.f32 %v4540, %v4552
  %v4562 = vmul.f32 %v4541, %v4552
  %v4563 = vmul.f32 %v4542, %v4552
  %v4564 = vmul.f32 %v4543, %v4552
  %v4565 = vmul.f32 %v4544, %v4552
  %v4566 = vmul.f32 %v4545, %v4552
  %v4567 = vmul.f32 %v4546, %v4552
  %v4568 = vmul.f32 %v4547, %v4552
  %v4569 = vmul.f32 %v4548, %v4552
  %v4570 = vmul.f32 %v4549, %v4552
  %v4571 = vmul.f32 %v4550, %v4552
  %v4573 = vperm.slane %v4154, 0
  %v4575 = vadd.f32 %v4554, %v4573
  %v4576 = vadd.f32 %v4555, %v4573
  %v4577 = vadd.f32 %v4556, %v4573
  %v4578 = vadd.f32 %v4557, %v4573
  %v4579 = vadd.f32 %v4558, %v4573
  %v4580 = vadd.f32 %v4559, %v4573
  %v4581 = vadd.f32 %v4560, %v4573
  %v4582 = vadd.f32 %v4561, %v4573
  %v4583 = vadd.f32 %v4562, %v4573
  %v4584 = vadd.f32 %v4563, %v4573
  %v4585 = vadd.f32 %v4564, %v4573
  %v4586 = vadd.f32 %v4565, %v4573
  %v4587 = vadd.f32 %v4566, %v4573
  %v4588 = vadd.f32 %v4567, %v4573
  %v4589 = vadd.f32 %v4568, %v4573
  %v4590 = vadd.f32 %v4569, %v4573
  %v4591 = vadd.f32 %v4570, %v4573
  %v4592 = vadd.f32 %v4571, %v4573
  %4593 = vst.msk [vmem:[%s17] sm:$0xff] %vm118, %v4575
  %4594 = vst.msk [vmem:[%s17 + $0x8] sm:$0xff] %vm118, %v4576
  %4595 = vst.msk [vmem:[%s17 + $0x10] sm:$0xff] %vm118, %v4577
  %4596 = vst.msk [vmem:[%s17 + $0x18] sm:$0xff] %vm118, %v4578
  %4597 = vst.msk [vmem:[%s17 + $0x20] sm:$0xff] %vm118, %v4579
  %4598 = vst.msk [vmem:[%s17 + $0x28] sm:$0xff] %vm118, %v4580
  %4599 = vst.msk [vmem:[%s17 + $0x30] sm:$0xff] %vm118, %v4581
  %4600 = vst.msk [vmem:[%s17 + $0x38] sm:$0xff] %vm118, %v4582
  %4601 = vst.msk [vmem:[%s17 + $0x40] sm:$0xff] %vm118, %v4583
  %4602 = vst.msk [vmem:[%s17 + $0x48] sm:$0xff] %vm118, %v4584
  %4603 = vst.msk [vmem:[%s17 + $0x50] sm:$0xff] %vm118, %v4585
  %4604 = vst.msk [vmem:[%s17 + $0x58] sm:$0xff] %vm118, %v4586
  %4605 = vst.msk [vmem:[%s17 + $0x60] sm:$0xff] %vm118, %v4587
  %4606 = vst.msk [vmem:[%s17 + $0x68] sm:$0xff] %vm118, %v4588
  %4607 = vst.msk [vmem:[%s17 + $0x70] sm:$0xff] %vm118, %v4589
  %4608 = vst.msk [vmem:[%s17 + $0x78] sm:$0xff] %vm118, %v4590
  %4609 = vst.msk [vmem:[%s17 + $0x80] sm:$0xff] %vm118, %v4591
  %4610 = vst.msk [vmem:[%s17 + $0x88] sm:$0xff] %vm118, %v4592
  // Predicated region
  $region70: #{fctr_encoder_forward.4} parent=0 // pred_check
    _
  $region71: #{fctr_encoder_forward.4} parent=0 // pred_check_branch
    %4612 = sbr.rel (0) target = $region73
  $region72: #{fctr_encoder_forward.4} parent=0 // pred_region
    _
  $region73: #{fctr_encoder_forward.4} parent=0 // pred_fallthru
    _
  // Predicated region
  $region74: #{fctr_encoder_forward.4} parent=0 // pred_check
    _
  $region75: #{fctr_encoder_forward.4} parent=0 // pred_check_branch
    %4614 = sbr.rel (0) target = $region77
  $region76: #{fctr_encoder_forward.4} parent=0 // pred_region
    _
  $region77: #{fctr_encoder_forward.4} parent=0 // pred_fallthru
    _

</llo_original>
